<compile_context>
chip_gen: v6e
topology: v6e:2x2x1
jax: 0.10.0
libtpu: 0.0.40
codegen_flags: <defaults>
</compile_context>

<pallas_src>
import jax
import jax.numpy as jnp
from jax import lax
from jax.experimental import pallas as pl
from jax.experimental.pallas import tpu as pltpu

# ---- small synthetic CLIP-text config ----
VOCAB = 64          # vocab size (EOT token = VOCAB - 1 -> argmax pooling)
T = 8               # context length
D = 32              # transformer width
H = 2               # attention heads
DH = D // H         # head dim
L = 2               # transformer layers
E = 32              # output text-embedding dim
FF = 4 * D          # MLP hidden width
EPS = 1e-5
NEG_BIG = -1e30     # finite "minus infinity" for the causal bias
SCALE = DH ** -0.5
MXU_DTYPE = jnp.bfloat16                    # streamed-weight / matmul-operand dtype

# packed per-layer vector stream: (L, NV, VW), one lane-dense row per small param
NV = 10
VW = ((FF + 127) // 128) * 128              # lane-padded row width (>= widest = 4D)
ROW_LN1_G, ROW_LN1_B = 0, 1
ROW_BQ, ROW_BK, ROW_BV, ROW_BO = 2, 3, 4, 5
ROW_LN2_G, ROW_LN2_B = 6, 7
ROW_B1, ROW_B2 = 8, 9


def _layernorm(x, g, b):
    mu = jnp.mean(x, axis=-1, keepdims=True)
    var = jnp.mean((x - mu) ** 2, axis=-1, keepdims=True)
    return (x - mu) * lax.rsqrt(var + EPS) * g + b


# ------------------ fused encoder kernel ------------------
def _make_kernel(BB):
    R = BB * T   # flattened rows handled per batch block

    def kernel(eot_ref,                                    # SMEM, scalar-prefetched (B,)
               x0_ref, wqkv_ref, wo_ref, w1_ref, w2_ref, vec_ref, lnf_ref, proj_ref,
               out_ref, x_scr, bias_scr):
        nb = pl.program_id(0)
        l = pl.program_id(1)

        # -------- prologue (layer 0): load activations, build causal bias once --------
        @pl.when(l == 0)
        def _prologue():
            x_scr[...] = x0_ref[...]
            rows = lax.broadcasted_iota(jnp.int32, (T, T), 0)
            cols = lax.broadcasted_iota(jnp.int32, (T, T), 1)
            bias_scr[...] = jnp.where(cols <= rows, 0.0, NEG_BIG).astype(jnp.float32)

        x = x_scr[...]                                     # (R, D)   f32
        vec = vec_ref[0]                                   # (NV, VW) f32  packed vectors
        wqkv = wqkv_ref[0]                                 # (3H, D, DH)   bf16
        wo = wo_ref[0]                                     # (H, DH, D)    bf16
        bias = bias_scr[...]                               # (T, T)   f32

        ln1_g, ln1_b = vec[ROW_LN1_G:ROW_LN1_G + 1, :D], vec[ROW_LN1_B:ROW_LN1_B + 1, :D]
        ln2_g, ln2_b = vec[ROW_LN2_G:ROW_LN2_G + 1, :D], vec[ROW_LN2_B:ROW_LN2_B + 1, :D]
        b_q, b_k, b_v = vec[ROW_BQ:ROW_BQ + 1, :D], vec[ROW_BK:ROW_BK + 1, :D], vec[ROW_BV:ROW_BV + 1, :D]
        b_o = vec[ROW_BO:ROW_BO + 1, :D]
        b1 = vec[ROW_B1:ROW_B1 + 1, :FF]
        b2 = vec[ROW_B2:ROW_B2 + 1, :D]

        # -------- causal multi-head attention (per-head loop, no lane slicing) --------
        xn = _layernorm(x, ln1_g, ln1_b)
        xn_b = xn.astype(MXU_DTYPE)

        attn = jnp.zeros((R, D), jnp.float32)
        for h in range(H):
            q = (jnp.dot(xn_b, wqkv[0 * H + h], preferred_element_type=jnp.float32)
                 + b_q[:, h * DH:(h + 1) * DH]).reshape(BB, T, DH)
            k = (jnp.dot(xn_b, wqkv[1 * H + h], preferred_element_type=jnp.float32)
                 + b_k[:, h * DH:(h + 1) * DH]).reshape(BB, T, DH)
            v = (jnp.dot(xn_b, wqkv[2 * H + h], preferred_element_type=jnp.float32)
                 + b_v[:, h * DH:(h + 1) * DH]).reshape(BB, T, DH)

            s = jnp.einsum('bqd,bkd->bqk', q.astype(MXU_DTYPE), k.astype(MXU_DTYPE),
                           preferred_element_type=jnp.float32) * SCALE
            s = s + bias[None, :, :]
            s = s - jnp.max(s, axis=-1, keepdims=True)
            p = jnp.exp(s)
            p = p * pl.reciprocal(jnp.sum(p, axis=-1, keepdims=True), approx=True)

            ctx = jnp.einsum('bqk,bkd->bqd', p.astype(MXU_DTYPE), v.astype(MXU_DTYPE),
                             preferred_element_type=jnp.float32).reshape(R, DH)
            attn = attn + jnp.dot(ctx.astype(MXU_DTYPE), wo[h],
                                  preferred_element_type=jnp.float32)
        x = x + attn + b_o

        # -------- QuickGELU MLP --------
        xn2 = _layernorm(x, ln2_g, ln2_b)
        hdn = jnp.dot(xn2.astype(MXU_DTYPE), w1_ref[0],
                      preferred_element_type=jnp.float32) + b1
        hdn = hdn * jax.nn.sigmoid(1.702 * hdn)
        x = x + jnp.dot(hdn.astype(MXU_DTYPE), w2_ref[0],
                        preferred_element_type=jnp.float32) + b2

        x_scr[...] = x

        # -------- epilogue: EOT pooling + final LN + text projection --------
        @pl.when(l == pl.num_programs(1) - 1)
        def _finalize():
            lnf = lnf_ref[...]                             # (2, D): gamma / beta
            rows = []
            for b in range(BB):                            # static unroll, BB small
                r = eot_ref[nb * BB + b] + b * T           # scalar from SMEM
                rows.append(x_scr[pl.ds(r, 1), :])         # (1, D)
            pooled = jnp.concatenate(rows, axis=0)         # (BB, D)
            pooled = _layernorm(pooled, lnf[0:1], lnf[1:2])
            out_ref[...] = jnp.dot(pooled.astype(MXU_DTYPE), proj_ref[...],
                                   preferred_element_type=jnp.float32)

    return kernel


# ------------------ wrapper: one pallas_call for the whole encoder ------------------
def clip_encode_text(tokens, params):
    B = tokens.shape[0]
    tokens = tokens.astype(jnp.int32)

    # Batch blocking: keep R = BB*T >= 128 so matmuls fill the MXU sublanes; split
    # into two "parallel" blocks (v7x's two TensorCores) once each block still has
    # >= 128 rows.
    if B % 2 == 0 and (B // 2) * T >= 128:
        BB = B // 2
    else:
        BB = B
    assert B % BB == 0
    NB = B // BB
    R = BB * T

    # Embedding gather + EOT argmax as tiny host-side XLA ops (perf review: keeps the
    # full vocab table out of VMEM and removes the wasted one-hot MXU matmul).
    x0 = (jnp.take(params["tok_emb"], tokens, axis=0)
          + params["pos_emb"][None, :, :]).reshape(B * T, D).astype(jnp.float32)
    eot_idx = jnp.argmax(tokens, axis=-1).astype(jnp.int32)          # (B,)

    grid_spec = pltpu.PrefetchScalarGridSpec(
        num_scalar_prefetch=1,                 # eot_idx -> SMEM
        grid=(NB, L),
        in_specs=[
            pl.BlockSpec((R, D), lambda nb, l, eot: (nb, 0)),                 # activations (used l==0)
            pl.BlockSpec((1, 3 * H, D, DH), lambda nb, l, eot: (l, 0, 0, 0)),  # per-head qkv weights
            pl.BlockSpec((1, H, DH, D), lambda nb, l, eot: (l, 0, 0, 0)),      # per-head out-proj
            pl.BlockSpec((1, D, FF), lambda nb, l, eot: (l, 0, 0)),            # mlp fc1
            pl.BlockSpec((1, FF, D), lambda nb, l, eot: (l, 0, 0)),            # mlp fc2
            pl.BlockSpec((1, NV, VW), lambda nb, l, eot: (l, 0, 0)),           # packed LN/bias vectors
            pl.BlockSpec((2, D), lambda nb, l, eot: (0, 0)),                   # final LN gamma/beta
            pl.BlockSpec((D, E), lambda nb, l, eot: (0, 0)),                   # text projection
        ],
        out_specs=pl.BlockSpec((BB, E), lambda nb, l, eot: (nb, 0)),
        scratch_shapes=[
            pltpu.VMEM((R, D), jnp.float32),   # activations resident across all layers
            pltpu.VMEM((T, T), jnp.float32),   # causal bias, built once at l == 0
        ],
    )

    return pl.pallas_call(
        _make_kernel(BB),
        out_shape=jax.ShapeDtypeStruct((B, E), jnp.float32),
        grid_spec=grid_spec,
        compiler_params=pltpu.CompilerParams(
            dimension_semantics=("parallel", "arbitrary"),
            vmem_limit_bytes=64 * 1024 * 1024),
    )(eot_idx, x0, params["w_qkv"], params["w_o"], params["w1"], params["w2"],
      params["vecs"], params["ln_f"], params["proj"])


# ------------------ parameter init (deterministic, synthetic) ------------------
def init_params(key):
    ks = jax.random.split(key, 7)
    params = {
        "tok_emb": jax.random.normal(ks[0], (VOCAB, D), jnp.float32) * 0.02,
        "pos_emb": jax.random.normal(ks[1], (T, D), jnp.float32) * 0.01,
        "ln_f": jnp.concatenate([jnp.ones((1, D), jnp.float32),
                                 jnp.zeros((1, D), jnp.float32)], axis=0),      # (2, D)
        "proj": (jax.random.normal(ks[2], (D, E), jnp.float32) * (D ** -0.5)).astype(MXU_DTYPE),
        # streamed per-layer MXU weights (bf16), head axis pre-split at init time
        "w_qkv": (jax.random.normal(ks[3], (L, 3 * H, D, DH), jnp.float32)
                  * (D ** -0.5)).astype(MXU_DTYPE),
        "w_o": (jax.random.normal(ks[4], (L, H, DH, D), jnp.float32)
                * (D ** -0.5)).astype(MXU_DTYPE),
        "w1": (jax.random.normal(ks[5], (L, D, FF), jnp.float32)
               * (D ** -0.5)).astype(MXU_DTYPE),
        "w2": (jax.random.normal(ks[6], (L, FF, D), jnp.float32)
               * (FF ** -0.5)).astype(MXU_DTYPE),
    }
    # packed per-layer small vectors: LN gammas = 1, all biases/betas = 0
    vecs = jnp.zeros((L, NV, VW), jnp.float32)
    vecs = vecs.at[:, ROW_LN1_G, :D].set(1.0)
    vecs = vecs.at[:, ROW_LN2_G, :D].set(1.0)
    params["vecs"] = vecs
    return params


if __name__ == "__main__":
    key = jax.random.PRNGKey(0)
    pkey, tkey = jax.random.split(key)
    params = init_params(pkey)

    B = 16   # R = B*T = 128 rows per grid step (perf review: fill the MXU sublanes)
    body = jax.random.randint(tkey, (B, T - 1), 1, VOCAB - 1, dtype=jnp.int32)
    eot_col = jnp.full((B, 1), VOCAB - 1, dtype=jnp.int32)   # EOT token at last position
    tokens = jnp.concatenate([body, eot_col], axis=-1)       # [B, T] int32

    text_embed = jax.jit(clip_encode_text)(tokens, params)   # [B, E]
    jax.block_until_ready(text_embed)
    assert text_embed.shape == (B, E) and text_embed.dtype == jnp.float32
    assert bool(jnp.all(jnp.isfinite(text_embed)))
    print("KERNEL_OK")
</pallas_src>

<mosaic_0001>
module attributes {stable_mosaic.version = 11 : i64} {
  func.func @kernel(%arg0: i32, %arg1: i32, %arg2: memref<16xi32, #tpu.memory_space<smem>>, %arg3: memref<128x32xf32, #tpu.memory_space<vmem>>, %arg4: memref<1x6x32x16xbf16, #tpu.memory_space<vmem>>, %arg5: memref<1x2x16x32xbf16, #tpu.memory_space<vmem>>, %arg6: memref<1x32x128xbf16, #tpu.memory_space<vmem>>, %arg7: memref<1x128x32xbf16, #tpu.memory_space<vmem>>, %arg8: memref<1x10x128xf32, #tpu.memory_space<vmem>>, %arg9: memref<2x32xf32, #tpu.memory_space<vmem>>, %arg10: memref<32x32xbf16, #tpu.memory_space<vmem>>, %arg11: memref<16x32xf32, #tpu.memory_space<vmem>>, %arg12: memref<128x32xf32, #tpu.memory_space<vmem>>, %arg13: memref<8x8xf32, #tpu.memory_space<vmem>>) attributes {dimension_semantics = [#tpu.dimension_semantics<parallel>, #tpu.dimension_semantics<arbitrary>], iteration_bounds = array<i64: 1, 2>, scalar_prefetch = 1 : i64, scratch_operands = 2 : i64, tpu.core_type = #tpu.core_type<tc>, window_params = [{transform_indices = @transform_0, window_bounds = array<i64: 128, 32>}, {transform_indices = @transform_1, window_bounds = array<i64: 1, 6, 32, 16>}, {transform_indices = @transform_2, window_bounds = array<i64: 1, 2, 16, 32>}, {transform_indices = @transform_3, window_bounds = array<i64: 1, 32, 128>}, {transform_indices = @transform_4, window_bounds = array<i64: 1, 128, 32>}, {transform_indices = @transform_5, window_bounds = array<i64: 1, 10, 128>}, {pipeline_mode = #tpu.pipeline_mode<synchronous>, transform_indices = @transform_6, window_bounds = array<i64: 2, 32>}, {pipeline_mode = #tpu.pipeline_mode<synchronous>, transform_indices = @transform_7, window_bounds = array<i64: 32, 32>}, {transform_indices = @transform_8, window_bounds = array<i64: 16, 32>}]} {
    %c0_i32 = arith.constant 0 : i32
    %0 = arith.cmpi eq, %arg1, %c0_i32 : i32
    %1 = arith.extui %0 : i1 to i32
    %c0_i32_0 = arith.constant 0 : i32
    %2 = arith.cmpi ne, %1, %c0_i32_0 : i32
    scf.if %2 {
      %c0_56 = arith.constant 0 : index
      %c0_57 = arith.constant 0 : index
      %191 = vector.load %arg3[%c0_56, %c0_57] : memref<128x32xf32, #tpu.memory_space<vmem>>, vector<128x32xf32>
      %c0_58 = arith.constant 0 : index
      %c0_59 = arith.constant 0 : index
      %192 = vector.load %arg12[%c0_58, %c0_59] : memref<128x32xf32, #tpu.memory_space<vmem>>, vector<128x32xf32>
      tpu.vector_store %arg12[%c0_58, %c0_59], %191 {strides = array<i32>} : memref<128x32xf32, #tpu.memory_space<vmem>>, vector<128x32xf32>,
      %193 = tpu.iota {dimensions = array<i32: 0>} : vector<8x8xi32>
      %194 = tpu.iota {dimensions = array<i32: 1>} : vector<8x8xi32>
      %195 = arith.cmpi sle, %194, %193 : vector<8x8xi32>
      %cst_60 = arith.constant 0.000000e+00 : f32
      %cst_61 = arith.constant -1.000000e+30 : f32
      %196 = vector.broadcast %cst_60 : f32 to vector<8x8xf32>
      %197 = vector.broadcast %cst_61 : f32 to vector<8x8xf32>
      %198 = arith.select %195, %196, %197 : vector<8x8xi1>, vector<8x8xf32>
      %c0_62 = arith.constant 0 : index
      %c0_63 = arith.constant 0 : index
      %199 = vector.load %arg13[%c0_62, %c0_63] : memref<8x8xf32, #tpu.memory_space<vmem>>, vector<8x8xf32>
      tpu.vector_store %arg13[%c0_62, %c0_63], %198 {strides = array<i32>} : memref<8x8xf32, #tpu.memory_space<vmem>>, vector<8x8xf32>,
    } else {
    }
    %c0 = arith.constant 0 : index
    %c0_1 = arith.constant 0 : index
    %3 = vector.load %arg12[%c0, %c0_1] : memref<128x32xf32, #tpu.memory_space<vmem>>, vector<128x32xf32>
    %c0_2 = arith.constant 0 : index
    %c0_3 = arith.constant 0 : index
    %c0_4 = arith.constant 0 : index
    %4 = vector.load %arg8[%c0_2, %c0_3, %c0_4] : memref<1x10x128xf32, #tpu.memory_space<vmem>>, vector<1x10x128xf32>
    %5 = vector.shape_cast %4 : vector<1x10x128xf32> to vector<10x128xf32>
    %c0_5 = arith.constant 0 : index
    %c0_6 = arith.constant 0 : index
    %c0_7 = arith.constant 0 : index
    %c0_8 = arith.constant 0 : index
    %6 = vector.load %arg4[%c0_5, %c0_6, %c0_7, %c0_8] : memref<1x6x32x16xbf16, #tpu.memory_space<vmem>>, vector<1x6x32x16xbf16>
    %7 = vector.shape_cast %6 : vector<1x6x32x16xbf16> to vector<6x32x16xbf16>
    %c0_9 = arith.constant 0 : index
    %c0_10 = arith.constant 0 : index
    %c0_11 = arith.constant 0 : index
    %c0_12 = arith.constant 0 : index
    %8 = vector.load %arg5[%c0_9, %c0_10, %c0_11, %c0_12] : memref<1x2x16x32xbf16, #tpu.memory_space<vmem>>, vector<1x2x16x32xbf16>
    %9 = vector.shape_cast %8 : vector<1x2x16x32xbf16> to vector<2x16x32xbf16>
    %c0_13 = arith.constant 0 : index
    %c0_14 = arith.constant 0 : index
    %10 = vector.load %arg13[%c0_13, %c0_14] : memref<8x8xf32, #tpu.memory_space<vmem>>, vector<8x8xf32>
    %11 = vector.extract_strided_slice %5 {offsets = [0, 0], sizes = [1, 32], strides = [1, 1]} : vector<10x128xf32> to vector<1x32xf32>
    %12 = vector.extract_strided_slice %5 {offsets = [1, 0], sizes = [1, 32], strides = [1, 1]} : vector<10x128xf32> to vector<1x32xf32>
    %13 = vector.extract_strided_slice %5 {offsets = [6, 0], sizes = [1, 32], strides = [1, 1]} : vector<10x128xf32> to vector<1x32xf32>
    %14 = vector.extract_strided_slice %5 {offsets = [7, 0], sizes = [1, 32], strides = [1, 1]} : vector<10x128xf32> to vector<1x32xf32>
    %15 = vector.extract_strided_slice %5 {offsets = [2, 0], sizes = [1, 32], strides = [1, 1]} : vector<10x128xf32> to vector<1x32xf32>
    %16 = vector.extract_strided_slice %5 {offsets = [3, 0], sizes = [1, 32], strides = [1, 1]} : vector<10x128xf32> to vector<1x32xf32>
    %17 = vector.extract_strided_slice %5 {offsets = [4, 0], sizes = [1, 32], strides = [1, 1]} : vector<10x128xf32> to vector<1x32xf32>
    %18 = vector.extract_strided_slice %5 {offsets = [5, 0], sizes = [1, 32], strides = [1, 1]} : vector<10x128xf32> to vector<1x32xf32>
    %19 = vector.extract_strided_slice %5 {offsets = [8, 0], sizes = [1, 128], strides = [1, 1]} : vector<10x128xf32> to vector<1x128xf32>
    %20 = vector.extract_strided_slice %5 {offsets = [9, 0], sizes = [1, 32], strides = [1, 1]} : vector<10x128xf32> to vector<1x32xf32>
    %cst = arith.constant dense<0.000000e+00> : vector<128xf32>
    %21 = vector.multi_reduction <add>, %3, %cst [1] : vector<128x32xf32> to vector<128xf32>
    %22 = vector.shape_cast %21 : vector<128xf32> to vector<128x1xf32>
    %cst_15 = arith.constant 3.200000e+01 : f32
    %23 = vector.broadcast %cst_15 : f32 to vector<128x1xf32>
    %24 = arith.divf %22, %23 : vector<128x1xf32>
    %25 = vector.broadcast %24 : vector<128x1xf32> to vector<128x32xf32>
    %26 = arith.subf %3, %25 : vector<128x32xf32>
    %27 = arith.mulf %26, %26 : vector<128x32xf32>
    %cst_16 = arith.constant dense<0.000000e+00> : vector<128xf32>
    %28 = vector.multi_reduction <add>, %27, %cst_16 [1] : vector<128x32xf32> to vector<128xf32>
    %29 = vector.shape_cast %28 : vector<128xf32> to vector<128x1xf32>
    %cst_17 = arith.constant 3.200000e+01 : f32
    %30 = vector.broadcast %cst_17 : f32 to vector<128x1xf32>
    %31 = arith.divf %29, %30 : vector<128x1xf32>
    %32 = vector.broadcast %24 : vector<128x1xf32> to vector<128x32xf32>
    %33 = arith.subf %3, %32 : vector<128x32xf32>
    %cst_18 = arith.constant 9.99999974E-6 : f32
    %34 = vector.broadcast %cst_18 : f32 to vector<128x1xf32>
    %35 = arith.addf %31, %34 : vector<128x1xf32>
    %36 = math.rsqrt %35 : vector<128x1xf32>
    %37 = vector.broadcast %36 : vector<128x1xf32> to vector<128x32xf32>
    %38 = arith.mulf %33, %37 : vector<128x32xf32>
    %39 = vector.broadcast %11 : vector<1x32xf32> to vector<128x32xf32>
    %40 = arith.mulf %38, %39 : vector<128x32xf32>
    %41 = vector.broadcast %12 : vector<1x32xf32> to vector<128x32xf32>
    %42 = arith.addf %40, %41 : vector<128x32xf32>
    %43 = arith.truncf %42 : vector<128x32xf32> to vector<128x32xbf16>
    %cst_19 = arith.constant 0.000000e+00 : f32
    %44 = vector.broadcast %cst_19 : f32 to vector<128x32xf32>
    %45 = vector.extract_strided_slice %7 {offsets = [0, 0, 0], sizes = [1, 32, 16], strides = [1, 1, 1]} : vector<6x32x16xbf16> to vector<1x32x16xbf16>
    %46 = vector.shape_cast %45 : vector<1x32x16xbf16> to vector<32x16xbf16>
    %cst_20 = arith.constant dense<0.000000e+00> : vector<128x16xf32>
    %47 = tpu.matmul %43, %46, %cst_20 {dimension_numbers = #tpu.dot_dimension_numbers<[1], [0], [0], [1], [0, 0, 1, 1], [], []>} : vector<128x32xbf16>, vector<32x16xbf16>, vector<128x16xf32> -> vector<128x16xf32>
    %48 = vector.extract_strided_slice %15 {offsets = [0, 0], sizes = [1, 16], strides = [1, 1]} : vector<1x32xf32> to vector<1x16xf32>
    %49 = vector.broadcast %48 : vector<1x16xf32> to vector<128x16xf32>
    %50 = arith.addf %47, %49 : vector<128x16xf32>
    %51 = vector.shape_cast %50 : vector<128x16xf32> to vector<16x8x16xf32>
    %52 = vector.extract_strided_slice %7 {offsets = [2, 0, 0], sizes = [1, 32, 16], strides = [1, 1, 1]} : vector<6x32x16xbf16> to vector<1x32x16xbf16>
    %53 = vector.shape_cast %52 : vector<1x32x16xbf16> to vector<32x16xbf16>
    %cst_21 = arith.constant dense<0.000000e+00> : vector<128x16xf32>
    %54 = tpu.matmul %43, %53, %cst_21 {dimension_numbers = #tpu.dot_dimension_numbers<[1], [0], [0], [1], [0, 0, 1, 1], [], []>} : vector<128x32xbf16>, vector<32x16xbf16>, vector<128x16xf32> -> vector<128x16xf32>
    %55 = vector.extract_strided_slice %16 {offsets = [0, 0], sizes = [1, 16], strides = [1, 1]} : vector<1x32xf32> to vector<1x16xf32>
    %56 = vector.broadcast %55 : vector<1x16xf32> to vector<128x16xf32>
    %57 = arith.addf %54, %56 : vector<128x16xf32>
    %58 = vector.shape_cast %57 : vector<128x16xf32> to vector<16x8x16xf32>
    %59 = vector.extract_strided_slice %7 {offsets = [4, 0, 0], sizes = [1, 32, 16], strides = [1, 1, 1]} : vector<6x32x16xbf16> to vector<1x32x16xbf16>
    %60 = vector.shape_cast %59 : vector<1x32x16xbf16> to vector<32x16xbf16>
    %cst_22 = arith.constant dense<0.000000e+00> : vector<128x16xf32>
    %61 = tpu.matmul %43, %60, %cst_22 {dimension_numbers = #tpu.dot_dimension_numbers<[1], [0], [0], [1], [0, 0, 1, 1], [], []>} : vector<128x32xbf16>, vector<32x16xbf16>, vector<128x16xf32> -> vector<128x16xf32>
    %62 = vector.extract_strided_slice %17 {offsets = [0, 0], sizes = [1, 16], strides = [1, 1]} : vector<1x32xf32> to vector<1x16xf32>
    %63 = vector.broadcast %62 : vector<1x16xf32> to vector<128x16xf32>
    %64 = arith.addf %61, %63 : vector<128x16xf32>
    %65 = vector.shape_cast %64 : vector<128x16xf32> to vector<16x8x16xf32>
    %66 = arith.truncf %51 : vector<16x8x16xf32> to vector<16x8x16xbf16>
    %67 = arith.truncf %58 : vector<16x8x16xf32> to vector<16x8x16xbf16>
    "tpu.trace_start"() <{level = 10 : i32, message = "bqd,bkd->bqk"}> : () -> ()
    %cst_23 = arith.constant dense<0.000000e+00> : vector<16x8x8xf32>
    %68 = tpu.matmul %66, %67, %cst_23 {dimension_numbers = #tpu.dot_dimension_numbers<[2], [2], [1], [1], [0, 0, 0, 1, 1, 1], [0], [0]>} : vector<16x8x16xbf16>, vector<16x8x16xbf16>, vector<16x8x8xf32> -> vector<16x8x8xf32>
    "tpu.trace_stop"() : () -> ()
    %cst_24 = arith.constant 2.500000e-01 : f32
    %69 = vector.broadcast %cst_24 : f32 to vector<16x8x8xf32>
    %70 = arith.mulf %68, %69 : vector<16x8x8xf32>
    %71 = vector.shape_cast %10 : vector<8x8xf32> to vector<1x8x8xf32>
    %72 = vector.broadcast %71 : vector<1x8x8xf32> to vector<16x8x8xf32>
    %73 = arith.addf %70, %72 : vector<16x8x8xf32>
    %cst_25 = arith.constant dense<0xFF800000> : vector<16x8xf32>
    %74 = vector.multi_reduction <maximumf>, %73, %cst_25 [2] : vector<16x8x8xf32> to vector<16x8xf32>
    %75 = vector.shape_cast %74 : vector<16x8xf32> to vector<16x8x1xf32>
    %76 = vector.broadcast %75 : vector<16x8x1xf32> to vector<16x8x8xf32>
    %77 = arith.subf %73, %76 : vector<16x8x8xf32>
    %78 = math.exp %77 : vector<16x8x8xf32>
    %cst_26 = arith.constant dense<0.000000e+00> : vector<16x8xf32>
    %79 = vector.multi_reduction <add>, %78, %cst_26 [2] : vector<16x8x8xf32> to vector<16x8xf32>
    %80 = vector.shape_cast %79 : vector<16x8xf32> to vector<16x8x1xf32>
    %81 = tpu.reciprocal %80 {approx = true} : vector<16x8x1xf32> -> vector<16x8x1xf32>
    %82 = vector.broadcast %81 : vector<16x8x1xf32> to vector<16x8x8xf32>
    %83 = arith.mulf %78, %82 : vector<16x8x8xf32>
    %84 = arith.truncf %83 : vector<16x8x8xf32> to vector<16x8x8xbf16>
    %85 = arith.truncf %65 : vector<16x8x16xf32> to vector<16x8x16xbf16>
    "tpu.trace_start"() <{level = 10 : i32, message = "bqk,bkd->bqd"}> : () -> ()
    %cst_27 = arith.constant dense<0.000000e+00> : vector<16x8x16xf32>
    %86 = tpu.matmul %84, %85, %cst_27 {dimension_numbers = #tpu.dot_dimension_numbers<[2], [1], [1], [2], [0, 0, 0, 1, 1, 2], [0], [0]>} : vector<16x8x8xbf16>, vector<16x8x16xbf16>, vector<16x8x16xf32> -> vector<16x8x16xf32>
    "tpu.trace_stop"() : () -> ()
    %87 = vector.shape_cast %86 : vector<16x8x16xf32> to vector<128x16xf32>
    %88 = arith.truncf %87 : vector<128x16xf32> to vector<128x16xbf16>
    %89 = vector.extract_strided_slice %9 {offsets = [0, 0, 0], sizes = [1, 16, 32], strides = [1, 1, 1]} : vector<2x16x32xbf16> to vector<1x16x32xbf16>
    %90 = vector.shape_cast %89 : vector<1x16x32xbf16> to vector<16x32xbf16>
    %cst_28 = arith.constant dense<0.000000e+00> : vector<128x32xf32>
    %91 = tpu.matmul %88, %90, %cst_28 {dimension_numbers = #tpu.dot_dimension_numbers<[1], [0], [0], [1], [0, 0, 1, 1], [], []>} : vector<128x16xbf16>, vector<16x32xbf16>, vector<128x32xf32> -> vector<128x32xf32>
    %92 = arith.addf %44, %91 : vector<128x32xf32>
    %93 = vector.extract_strided_slice %7 {offsets = [1, 0, 0], sizes = [1, 32, 16], strides = [1, 1, 1]} : vector<6x32x16xbf16> to vector<1x32x16xbf16>
    %94 = vector.shape_cast %93 : vector<1x32x16xbf16> to vector<32x16xbf16>
    %cst_29 = arith.constant dense<0.000000e+00> : vector<128x16xf32>
    %95 = tpu.matmul %43, %94, %cst_29 {dimension_numbers = #tpu.dot_dimension_numbers<[1], [0], [0], [1], [0, 0, 1, 1], [], []>} : vector<128x32xbf16>, vector<32x16xbf16>, vector<128x16xf32> -> vector<128x16xf32>
    %96 = vector.extract_strided_slice %15 {offsets = [0, 16], sizes = [1, 16], strides = [1, 1]} : vector<1x32xf32> to vector<1x16xf32>
    %97 = vector.broadcast %96 : vector<1x16xf32> to vector<128x16xf32>
    %98 = arith.addf %95, %97 : vector<128x16xf32>
    %99 = vector.shape_cast %98 : vector<128x16xf32> to vector<16x8x16xf32>
    %100 = vector.extract_strided_slice %7 {offsets = [3, 0, 0], sizes = [1, 32, 16], strides = [1, 1, 1]} : vector<6x32x16xbf16> to vector<1x32x16xbf16>
    %101 = vector.shape_cast %100 : vector<1x32x16xbf16> to vector<32x16xbf16>
    %cst_30 = arith.constant dense<0.000000e+00> : vector<128x16xf32>
    %102 = tpu.matmul %43, %101, %cst_30 {dimension_numbers = #tpu.dot_dimension_numbers<[1], [0], [0], [1], [0, 0, 1, 1], [], []>} : vector<128x32xbf16>, vector<32x16xbf16>, vector<128x16xf32> -> vector<128x16xf32>
    %103 = vector.extract_strided_slice %16 {offsets = [0, 16], sizes = [1, 16], strides = [1, 1]} : vector<1x32xf32> to vector<1x16xf32>
    %104 = vector.broadcast %103 : vector<1x16xf32> to vector<128x16xf32>
    %105 = arith.addf %102, %104 : vector<128x16xf32>
    %106 = vector.shape_cast %105 : vector<128x16xf32> to vector<16x8x16xf32>
    %107 = vector.extract_strided_slice %7 {offsets = [5, 0, 0], sizes = [1, 32, 16], strides = [1, 1, 1]} : vector<6x32x16xbf16> to vector<1x32x16xbf16>
    %108 = vector.shape_cast %107 : vector<1x32x16xbf16> to vector<32x16xbf16>
    %cst_31 = arith.constant dense<0.000000e+00> : vector<128x16xf32>
    %109 = tpu.matmul %43, %108, %cst_31 {dimension_numbers = #tpu.dot_dimension_numbers<[1], [0], [0], [1], [0, 0, 1, 1], [], []>} : vector<128x32xbf16>, vector<32x16xbf16>, vector<128x16xf32> -> vector<128x16xf32>
    %110 = vector.extract_strided_slice %17 {offsets = [0, 16], sizes = [1, 16], strides = [1, 1]} : vector<1x32xf32> to vector<1x16xf32>
    %111 = vector.broadcast %110 : vector<1x16xf32> to vector<128x16xf32>
    %112 = arith.addf %109, %111 : vector<128x16xf32>
    %113 = vector.shape_cast %112 : vector<128x16xf32> to vector<16x8x16xf32>
    %114 = arith.truncf %99 : vector<16x8x16xf32> to vector<16x8x16xbf16>
    %115 = arith.truncf %106 : vector<16x8x16xf32> to vector<16x8x16xbf16>
    "tpu.trace_start"() <{level = 10 : i32, message = "bqd,bkd->bqk"}> : () -> ()
    %cst_32 = arith.constant dense<0.000000e+00> : vector<16x8x8xf32>
    %116 = tpu.matmul %114, %115, %cst_32 {dimension_numbers = #tpu.dot_dimension_numbers<[2], [2], [1], [1], [0, 0, 0, 1, 1, 1], [0], [0]>} : vector<16x8x16xbf16>, vector<16x8x16xbf16>, vector<16x8x8xf32> -> vector<16x8x8xf32>
    "tpu.trace_stop"() : () -> ()
    %cst_33 = arith.constant 2.500000e-01 : f32
    %117 = vector.broadcast %cst_33 : f32 to vector<16x8x8xf32>
    %118 = arith.mulf %116, %117 : vector<16x8x8xf32>
    %119 = vector.shape_cast %10 : vector<8x8xf32> to vector<1x8x8xf32>
    %120 = vector.broadcast %119 : vector<1x8x8xf32> to vector<16x8x8xf32>
    %121 = arith.addf %118, %120 : vector<16x8x8xf32>
    %cst_34 = arith.constant dense<0xFF800000> : vector<16x8xf32>
    %122 = vector.multi_reduction <maximumf>, %121, %cst_34 [2] : vector<16x8x8xf32> to vector<16x8xf32>
    %123 = vector.shape_cast %122 : vector<16x8xf32> to vector<16x8x1xf32>
    %124 = vector.broadcast %123 : vector<16x8x1xf32> to vector<16x8x8xf32>
    %125 = arith.subf %121, %124 : vector<16x8x8xf32>
    %126 = math.exp %125 : vector<16x8x8xf32>
    %cst_35 = arith.constant dense<0.000000e+00> : vector<16x8xf32>
    %127 = vector.multi_reduction <add>, %126, %cst_35 [2] : vector<16x8x8xf32> to vector<16x8xf32>
    %128 = vector.shape_cast %127 : vector<16x8xf32> to vector<16x8x1xf32>
    %129 = tpu.reciprocal %128 {approx = true} : vector<16x8x1xf32> -> vector<16x8x1xf32>
    %130 = vector.broadcast %129 : vector<16x8x1xf32> to vector<16x8x8xf32>
    %131 = arith.mulf %126, %130 : vector<16x8x8xf32>
    %132 = arith.truncf %131 : vector<16x8x8xf32> to vector<16x8x8xbf16>
    %133 = arith.truncf %113 : vector<16x8x16xf32> to vector<16x8x16xbf16>
    "tpu.trace_start"() <{level = 10 : i32, message = "bqk,bkd->bqd"}> : () -> ()
    %cst_36 = arith.constant dense<0.000000e+00> : vector<16x8x16xf32>
    %134 = tpu.matmul %132, %133, %cst_36 {dimension_numbers = #tpu.dot_dimension_numbers<[2], [1], [1], [2], [0, 0, 0, 1, 1, 2], [0], [0]>} : vector<16x8x8xbf16>, vector<16x8x16xbf16>, vector<16x8x16xf32> -> vector<16x8x16xf32>
    "tpu.trace_stop"() : () -> ()
    %135 = vector.shape_cast %134 : vector<16x8x16xf32> to vector<128x16xf32>
    %136 = arith.truncf %135 : vector<128x16xf32> to vector<128x16xbf16>
    %137 = vector.extract_strided_slice %9 {offsets = [1, 0, 0], sizes = [1, 16, 32], strides = [1, 1, 1]} : vector<2x16x32xbf16> to vector<1x16x32xbf16>
    %138 = vector.shape_cast %137 : vector<1x16x32xbf16> to vector<16x32xbf16>
    %cst_37 = arith.constant dense<0.000000e+00> : vector<128x32xf32>
    %139 = tpu.matmul %136, %138, %cst_37 {dimension_numbers = #tpu.dot_dimension_numbers<[1], [0], [0], [1], [0, 0, 1, 1], [], []>} : vector<128x16xbf16>, vector<16x32xbf16>, vector<128x32xf32> -> vector<128x32xf32>
    %140 = arith.addf %92, %139 : vector<128x32xf32>
    %141 = arith.addf %3, %140 : vector<128x32xf32>
    %142 = vector.broadcast %18 : vector<1x32xf32> to vector<128x32xf32>
    %143 = arith.addf %141, %142 : vector<128x32xf32>
    %cst_38 = arith.constant dense<0.000000e+00> : vector<128xf32>
    %144 = vector.multi_reduction <add>, %143, %cst_38 [1] : vector<128x32xf32> to vector<128xf32>
    %145 = vector.shape_cast %144 : vector<128xf32> to vector<128x1xf32>
    %cst_39 = arith.constant 3.200000e+01 : f32
    %146 = vector.broadcast %cst_39 : f32 to vector<128x1xf32>
    %147 = arith.divf %145, %146 : vector<128x1xf32>
    %148 = vector.broadcast %147 : vector<128x1xf32> to vector<128x32xf32>
    %149 = arith.subf %143, %148 : vector<128x32xf32>
    %150 = arith.mulf %149, %149 : vector<128x32xf32>
    %cst_40 = arith.constant dense<0.000000e+00> : vector<128xf32>
    %151 = vector.multi_reduction <add>, %150, %cst_40 [1] : vector<128x32xf32> to vector<128xf32>
    %152 = vector.shape_cast %151 : vector<128xf32> to vector<128x1xf32>
    %cst_41 = arith.constant 3.200000e+01 : f32
    %153 = vector.broadcast %cst_41 : f32 to vector<128x1xf32>
    %154 = arith.divf %152, %153 : vector<128x1xf32>
    %155 = vector.broadcast %147 : vector<128x1xf32> to vector<128x32xf32>
    %156 = arith.subf %143, %155 : vector<128x32xf32>
    %cst_42 = arith.constant 9.99999974E-6 : f32
    %157 = vector.broadcast %cst_42 : f32 to vector<128x1xf32>
    %158 = arith.addf %154, %157 : vector<128x1xf32>
    %159 = math.rsqrt %158 : vector<128x1xf32>
    %160 = vector.broadcast %159 : vector<128x1xf32> to vector<128x32xf32>
    %161 = arith.mulf %156, %160 : vector<128x32xf32>
    %162 = vector.broadcast %13 : vector<1x32xf32> to vector<128x32xf32>
    %163 = arith.mulf %161, %162 : vector<128x32xf32>
    %164 = vector.broadcast %14 : vector<1x32xf32> to vector<128x32xf32>
    %165 = arith.addf %163, %164 : vector<128x32xf32>
    %166 = arith.truncf %165 : vector<128x32xf32> to vector<128x32xbf16>
    %c0_43 = arith.constant 0 : index
    %c0_44 = arith.constant 0 : index
    %c0_45 = arith.constant 0 : index
    %167 = vector.load %arg6[%c0_43, %c0_44, %c0_45] : memref<1x32x128xbf16, #tpu.memory_space<vmem>>, vector<1x32x128xbf16>
    %168 = vector.shape_cast %167 : vector<1x32x128xbf16> to vector<32x128xbf16>
    %cst_46 = arith.constant dense<0.000000e+00> : vector<128x128xf32>
    %169 = tpu.matmul %166, %168, %cst_46 {dimension_numbers = #tpu.dot_dimension_numbers<[1], [0], [0], [1], [0, 0, 1, 1], [], []>} : vector<128x32xbf16>, vector<32x128xbf16>, vector<128x128xf32> -> vector<128x128xf32>
    %170 = vector.broadcast %19 : vector<1x128xf32> to vector<128x128xf32>
    %171 = arith.addf %169, %170 : vector<128x128xf32>
    %cst_47 = arith.constant 1.702000e+00 : f32
    %172 = vector.broadcast %cst_47 : f32 to vector<128x128xf32>
    %173 = arith.mulf %172, %171 : vector<128x128xf32>
    %174 = arith.negf %173 : vector<128x128xf32>
    %175 = math.exp %174 : vector<128x128xf32>
    %cst_48 = arith.constant 1.000000e+00 : f32
    %176 = vector.broadcast %cst_48 : f32 to vector<128x128xf32>
    %177 = arith.addf %176, %175 : vector<128x128xf32>
    %178 = arith.divf %176, %177 : vector<128x128xf32>
    %179 = arith.mulf %171, %178 : vector<128x128xf32>
    %180 = arith.truncf %179 : vector<128x128xf32> to vector<128x128xbf16>
    %c0_49 = arith.constant 0 : index
    %c0_50 = arith.constant 0 : index
    %c0_51 = arith.constant 0 : index
    %181 = vector.load %arg7[%c0_49, %c0_50, %c0_51] : memref<1x128x32xbf16, #tpu.memory_space<vmem>>, vector<1x128x32xbf16>
    %182 = vector.shape_cast %181 : vector<1x128x32xbf16> to vector<128x32xbf16>
    %cst_52 = arith.constant dense<0.000000e+00> : vector<128x32xf32>
    %183 = tpu.matmul %180, %182, %cst_52 {dimension_numbers = #tpu.dot_dimension_numbers<[1], [0], [0], [1], [0, 0, 1, 1], [], []>} : vector<128x128xbf16>, vector<128x32xbf16>, vector<128x32xf32> -> vector<128x32xf32>
    %184 = arith.addf %143, %183 : vector<128x32xf32>
    %185 = vector.broadcast %20 : vector<1x32xf32> to vector<128x32xf32>
    %186 = arith.addf %184, %185 : vector<128x32xf32>
    %c0_53 = arith.constant 0 : index
    %c0_54 = arith.constant 0 : index
    %187 = vector.load %arg12[%c0_53, %c0_54] : memref<128x32xf32, #tpu.memory_space<vmem>>, vector<128x32xf32>
    tpu.vector_store %arg12[%c0_53, %c0_54], %186 {strides = array<i32>} : memref<128x32xf32, #tpu.memory_space<vmem>>, vector<128x32xf32>,
    %c1_i32 = arith.constant 1 : i32
    %188 = arith.cmpi eq, %arg1, %c1_i32 : i32
    %189 = arith.extui %188 : i1 to i32
    %c0_i32_55 = arith.constant 0 : i32
    %190 = arith.cmpi ne, %189, %c0_i32_55 : i32
    scf.if %190 {
      %c0_56 = arith.constant 0 : index
      %c0_57 = arith.constant 0 : index
      %191 = vector.load %arg9[%c0_56, %c0_57] : memref<2x32xf32, #tpu.memory_space<vmem>>, vector<2x32xf32>
      %c16_i32 = arith.constant 16 : i32
      %192 = arith.muli %arg0, %c16_i32 : i32
      %c0_i32_58 = arith.constant 0 : i32
      %193 = arith.addi %192, %c0_i32_58 : i32
      %194 = arith.index_cast %193 : i32 to index
      %195 = memref.load %arg2[%194] : memref<16xi32, #tpu.memory_space<smem>>
      %c0_i32_59 = arith.constant 0 : i32
      %196 = arith.addi %195, %c0_i32_59 : i32
      %197 = arith.index_cast %196 : i32 to index
      %c0_60 = arith.constant 0 : index
      %198 = vector.load %arg12[%197, %c0_60] : memref<128x32xf32, #tpu.memory_space<vmem>>, vector<1x32xf32>
      %c16_i32_61 = arith.constant 16 : i32
      %199 = arith.muli %arg0, %c16_i32_61 : i32
      %c1_i32_62 = arith.constant 1 : i32
      %200 = arith.addi %199, %c1_i32_62 : i32
      %201 = arith.index_cast %200 : i32 to index
      %202 = memref.load %arg2[%201] : memref<16xi32, #tpu.memory_space<smem>>
      %c8_i32 = arith.constant 8 : i32
      %203 = arith.addi %202, %c8_i32 : i32
      %204 = arith.index_cast %203 : i32 to index
      %c0_63 = arith.constant 0 : index
      %205 = vector.load %arg12[%204, %c0_63] : memref<128x32xf32, #tpu.memory_space<vmem>>, vector<1x32xf32>
      %c16_i32_64 = arith.constant 16 : i32
      %206 = arith.muli %arg0, %c16_i32_64 : i32
      %c2_i32 = arith.constant 2 : i32
      %207 = arith.addi %206, %c2_i32 : i32
      %208 = arith.index_cast %207 : i32 to index
      %209 = memref.load %arg2[%208] : memref<16xi32, #tpu.memory_space<smem>>
      %c16_i32_65 = arith.constant 16 : i32
      %210 = arith.addi %209, %c16_i32_65 : i32
      %211 = arith.index_cast %210 : i32 to index
      %c0_66 = arith.constant 0 : index
      %212 = vector.load %arg12[%211, %c0_66] : memref<128x32xf32, #tpu.memory_space<vmem>>, vector<1x32xf32>
      %c16_i32_67 = arith.constant 16 : i32
      %213 = arith.muli %arg0, %c16_i32_67 : i32
      %c3_i32 = arith.constant 3 : i32
      %214 = arith.addi %213, %c3_i32 : i32
      %215 = arith.index_cast %214 : i32 to index
      %216 = memref.load %arg2[%215] : memref<16xi32, #tpu.memory_space<smem>>
      %c24_i32 = arith.constant 24 : i32
      %217 = arith.addi %216, %c24_i32 : i32
      %218 = arith.index_cast %217 : i32 to index
      %c0_68 = arith.constant 0 : index
      %219 = vector.load %arg12[%218, %c0_68] : memref<128x32xf32, #tpu.memory_space<vmem>>, vector<1x32xf32>
      %c16_i32_69 = arith.constant 16 : i32
      %220 = arith.muli %arg0, %c16_i32_69 : i32
      %c4_i32 = arith.constant 4 : i32
      %221 = arith.addi %220, %c4_i32 : i32
      %222 = arith.index_cast %221 : i32 to index
      %223 = memref.load %arg2[%222] : memref<16xi32, #tpu.memory_space<smem>>
      %c32_i32 = arith.constant 32 : i32
      %224 = arith.addi %223, %c32_i32 : i32
      %225 = arith.index_cast %224 : i32 to index
      %c0_70 = arith.constant 0 : index
      %226 = vector.load %arg12[%225, %c0_70] : memref<128x32xf32, #tpu.memory_space<vmem>>, vector<1x32xf32>
      %c16_i32_71 = arith.constant 16 : i32
      %227 = arith.muli %arg0, %c16_i32_71 : i32
      %c5_i32 = arith.constant 5 : i32
      %228 = arith.addi %227, %c5_i32 : i32
      %229 = arith.index_cast %228 : i32 to index
      %230 = memref.load %arg2[%229] : memref<16xi32, #tpu.memory_space<smem>>
      %c40_i32 = arith.constant 40 : i32
      %231 = arith.addi %230, %c40_i32 : i32
      %232 = arith.index_cast %231 : i32 to index
      %c0_72 = arith.constant 0 : index
      %233 = vector.load %arg12[%232, %c0_72] : memref<128x32xf32, #tpu.memory_space<vmem>>, vector<1x32xf32>
      %c16_i32_73 = arith.constant 16 : i32
      %234 = arith.muli %arg0, %c16_i32_73 : i32
      %c6_i32 = arith.constant 6 : i32
      %235 = arith.addi %234, %c6_i32 : i32
      %236 = arith.index_cast %235 : i32 to index
      %237 = memref.load %arg2[%236] : memref<16xi32, #tpu.memory_space<smem>>
      %c48_i32 = arith.constant 48 : i32
      %238 = arith.addi %237, %c48_i32 : i32
      %239 = arith.index_cast %238 : i32 to index
      %c0_74 = arith.constant 0 : index
      %240 = vector.load %arg12[%239, %c0_74] : memref<128x32xf32, #tpu.memory_space<vmem>>, vector<1x32xf32>
      %c16_i32_75 = arith.constant 16 : i32
      %241 = arith.muli %arg0, %c16_i32_75 : i32
      %c7_i32 = arith.constant 7 : i32
      %242 = arith.addi %241, %c7_i32 : i32
      %243 = arith.index_cast %242 : i32 to index
      %244 = memref.load %arg2[%243] : memref<16xi32, #tpu.memory_space<smem>>
      %c56_i32 = arith.constant 56 : i32
      %245 = arith.addi %244, %c56_i32 : i32
      %246 = arith.index_cast %245 : i32 to index
      %c0_76 = arith.constant 0 : index
      %247 = vector.load %arg12[%246, %c0_76] : memref<128x32xf32, #tpu.memory_space<vmem>>, vector<1x32xf32>
      %c16_i32_77 = arith.constant 16 : i32
      %248 = arith.muli %arg0, %c16_i32_77 : i32
      %c8_i32_78 = arith.constant 8 : i32
      %249 = arith.addi %248, %c8_i32_78 : i32
      %250 = arith.index_cast %249 : i32 to index
      %251 = memref.load %arg2[%250] : memref<16xi32, #tpu.memory_space<smem>>
      %c64_i32 = arith.constant 64 : i32
      %252 = arith.addi %251, %c64_i32 : i32
      %253 = arith.index_cast %252 : i32 to index
      %c0_79 = arith.constant 0 : index
      %254 = vector.load %arg12[%253, %c0_79] : memref<128x32xf32, #tpu.memory_space<vmem>>, vector<1x32xf32>
      %c16_i32_80 = arith.constant 16 : i32
      %255 = arith.muli %arg0, %c16_i32_80 : i32
      %c9_i32 = arith.constant 9 : i32
      %256 = arith.addi %255, %c9_i32 : i32
      %257 = arith.index_cast %256 : i32 to index
      %258 = memref.load %arg2[%257] : memref<16xi32, #tpu.memory_space<smem>>
      %c72_i32 = arith.constant 72 : i32
      %259 = arith.addi %258, %c72_i32 : i32
      %260 = arith.index_cast %259 : i32 to index
      %c0_81 = arith.constant 0 : index
      %261 = vector.load %arg12[%260, %c0_81] : memref<128x32xf32, #tpu.memory_space<vmem>>, vector<1x32xf32>
      %c16_i32_82 = arith.constant 16 : i32
      %262 = arith.muli %arg0, %c16_i32_82 : i32
      %c10_i32 = arith.constant 10 : i32
      %263 = arith.addi %262, %c10_i32 : i32
      %264 = arith.index_cast %263 : i32 to index
      %265 = memref.load %arg2[%264] : memref<16xi32, #tpu.memory_space<smem>>
      %c80_i32 = arith.constant 80 : i32
      %266 = arith.addi %265, %c80_i32 : i32
      %267 = arith.index_cast %266 : i32 to index
      %c0_83 = arith.constant 0 : index
      %268 = vector.load %arg12[%267, %c0_83] : memref<128x32xf32, #tpu.memory_space<vmem>>, vector<1x32xf32>
      %c16_i32_84 = arith.constant 16 : i32
      %269 = arith.muli %arg0, %c16_i32_84 : i32
      %c11_i32 = arith.constant 11 : i32
      %270 = arith.addi %269, %c11_i32 : i32
      %271 = arith.index_cast %270 : i32 to index
      %272 = memref.load %arg2[%271] : memref<16xi32, #tpu.memory_space<smem>>
      %c88_i32 = arith.constant 88 : i32
      %273 = arith.addi %272, %c88_i32 : i32
      %274 = arith.index_cast %273 : i32 to index
      %c0_85 = arith.constant 0 : index
      %275 = vector.load %arg12[%274, %c0_85] : memref<128x32xf32, #tpu.memory_space<vmem>>, vector<1x32xf32>
      %c16_i32_86 = arith.constant 16 : i32
      %276 = arith.muli %arg0, %c16_i32_86 : i32
      %c12_i32 = arith.constant 12 : i32
      %277 = arith.addi %276, %c12_i32 : i32
      %278 = arith.index_cast %277 : i32 to index
      %279 = memref.load %arg2[%278] : memref<16xi32, #tpu.memory_space<smem>>
      %c96_i32 = arith.constant 96 : i32
      %280 = arith.addi %279, %c96_i32 : i32
      %281 = arith.index_cast %280 : i32 to index
      %c0_87 = arith.constant 0 : index
      %282 = vector.load %arg12[%281, %c0_87] : memref<128x32xf32, #tpu.memory_space<vmem>>, vector<1x32xf32>
      %c16_i32_88 = arith.constant 16 : i32
      %283 = arith.muli %arg0, %c16_i32_88 : i32
      %c13_i32 = arith.constant 13 : i32
      %284 = arith.addi %283, %c13_i32 : i32
      %285 = arith.index_cast %284 : i32 to index
      %286 = memref.load %arg2[%285] : memref<16xi32, #tpu.memory_space<smem>>
      %c104_i32 = arith.constant 104 : i32
      %287 = arith.addi %286, %c104_i32 : i32
      %288 = arith.index_cast %287 : i32 to index
      %c0_89 = arith.constant 0 : index
      %289 = vector.load %arg12[%288, %c0_89] : memref<128x32xf32, #tpu.memory_space<vmem>>, vector<1x32xf32>
      %c16_i32_90 = arith.constant 16 : i32
      %290 = arith.muli %arg0, %c16_i32_90 : i32
      %c14_i32 = arith.constant 14 : i32
      %291 = arith.addi %290, %c14_i32 : i32
      %292 = arith.index_cast %291 : i32 to index
      %293 = memref.load %arg2[%292] : memref<16xi32, #tpu.memory_space<smem>>
      %c112_i32 = arith.constant 112 : i32
      %294 = arith.addi %293, %c112_i32 : i32
      %295 = arith.index_cast %294 : i32 to index
      %c0_91 = arith.constant 0 : index
      %296 = vector.load %arg12[%295, %c0_91] : memref<128x32xf32, #tpu.memory_space<vmem>>, vector<1x32xf32>
      %c16_i32_92 = arith.constant 16 : i32
      %297 = arith.muli %arg0, %c16_i32_92 : i32
      %c15_i32 = arith.constant 15 : i32
      %298 = arith.addi %297, %c15_i32 : i32
      %299 = arith.index_cast %298 : i32 to index
      %300 = memref.load %arg2[%299] : memref<16xi32, #tpu.memory_space<smem>>
      %c120_i32 = arith.constant 120 : i32
      %301 = arith.addi %300, %c120_i32 : i32
      %302 = arith.index_cast %301 : i32 to index
      %c0_93 = arith.constant 0 : index
      %303 = vector.load %arg12[%302, %c0_93] : memref<128x32xf32, #tpu.memory_space<vmem>>, vector<1x32xf32>
      %304 = tpu.concatenate %198, %205, %212, %219, %226, %233, %240, %247, %254, %261, %268, %275, %282, %289, %296, %303 in 0 : vector<1x32xf32>, vector<1x32xf32>, vector<1x32xf32>, vector<1x32xf32>, vector<1x32xf32>, vector<1x32xf32>, vector<1x32xf32>, vector<1x32xf32>, vector<1x32xf32>, vector<1x32xf32>, vector<1x32xf32>, vector<1x32xf32>, vector<1x32xf32>, vector<1x32xf32>, vector<1x32xf32>, vector<1x32xf32> -> vector<16x32xf32>
      %305 = vector.extract_strided_slice %191 {offsets = [0, 0], sizes = [1, 32], strides = [1, 1]} : vector<2x32xf32> to vector<1x32xf32>
      %306 = vector.extract_strided_slice %191 {offsets = [1, 0], sizes = [1, 32], strides = [1, 1]} : vector<2x32xf32> to vector<1x32xf32>
      %cst_94 = arith.constant dense<0.000000e+00> : vector<16xf32>
      %307 = vector.multi_reduction <add>, %304, %cst_94 [1] : vector<16x32xf32> to vector<16xf32>
      %308 = vector.shape_cast %307 : vector<16xf32> to vector<16x1xf32>
      %cst_95 = arith.constant 3.200000e+01 : f32
      %309 = vector.broadcast %cst_95 : f32 to vector<16x1xf32>
      %310 = arith.divf %308, %309 : vector<16x1xf32>
      %311 = vector.broadcast %310 : vector<16x1xf32> to vector<16x32xf32>
      %312 = arith.subf %304, %311 : vector<16x32xf32>
      %313 = arith.mulf %312, %312 : vector<16x32xf32>
      %cst_96 = arith.constant dense<0.000000e+00> : vector<16xf32>
      %314 = vector.multi_reduction <add>, %313, %cst_96 [1] : vector<16x32xf32> to vector<16xf32>
      %315 = vector.shape_cast %314 : vector<16xf32> to vector<16x1xf32>
      %cst_97 = arith.constant 3.200000e+01 : f32
      %316 = vector.broadcast %cst_97 : f32 to vector<16x1xf32>
      %317 = arith.divf %315, %316 : vector<16x1xf32>
      %318 = vector.broadcast %310 : vector<16x1xf32> to vector<16x32xf32>
      %319 = arith.subf %304, %318 : vector<16x32xf32>
      %cst_98 = arith.constant 9.99999974E-6 : f32
      %320 = vector.broadcast %cst_98 : f32 to vector<16x1xf32>
      %321 = arith.addf %317, %320 : vector<16x1xf32>
      %322 = math.rsqrt %321 : vector<16x1xf32>
      %323 = vector.broadcast %322 : vector<16x1xf32> to vector<16x32xf32>
      %324 = arith.mulf %319, %323 : vector<16x32xf32>
      %325 = vector.broadcast %305 : vector<1x32xf32> to vector<16x32xf32>
      %326 = arith.mulf %324, %325 : vector<16x32xf32>
      %327 = vector.broadcast %306 : vector<1x32xf32> to vector<16x32xf32>
      %328 = arith.addf %326, %327 : vector<16x32xf32>
      %329 = arith.truncf %328 : vector<16x32xf32> to vector<16x32xbf16>
      %c0_99 = arith.constant 0 : index
      %c0_100 = arith.constant 0 : index
      %330 = vector.load %arg10[%c0_99, %c0_100] : memref<32x32xbf16, #tpu.memory_space<vmem>>, vector<32x32xbf16>
      %cst_101 = arith.constant dense<0.000000e+00> : vector<16x32xf32>
      %331 = tpu.matmul %329, %330, %cst_101 {dimension_numbers = #tpu.dot_dimension_numbers<[1], [0], [0], [1], [0, 0, 1, 1], [], []>} : vector<16x32xbf16>, vector<32x32xbf16>, vector<16x32xf32> -> vector<16x32xf32>
      %c0_102 = arith.constant 0 : index
      %c0_103 = arith.constant 0 : index
      %332 = vector.load %arg11[%c0_102, %c0_103] : memref<16x32xf32, #tpu.memory_space<vmem>>, vector<16x32xf32>
      tpu.vector_store %arg11[%c0_102, %c0_103], %331 {strides = array<i32>} : memref<16x32xf32, #tpu.memory_space<vmem>>, vector<16x32xf32>,
    } else {
    }
    return
  }
  func.func @transform_0(%arg0: i32, %arg1: i32, %arg2: memref<16xi32, #tpu.memory_space<smem>>) -> (i32, i32) {
    %c0_i32 = arith.constant 0 : i32
    %c0_i32_0 = arith.constant 0 : i32
    return %arg0, %c0_i32 : i32, i32
  }
  func.func @transform_1(%arg0: i32, %arg1: i32, %arg2: memref<16xi32, #tpu.memory_space<smem>>) -> (i32, i32, i32, i32) {
    %c0_i32 = arith.constant 0 : i32
    %c0_i32_0 = arith.constant 0 : i32
    %c0_i32_1 = arith.constant 0 : i32
    %c0_i32_2 = arith.constant 0 : i32
    return %arg1, %c0_i32, %c0_i32_0, %c0_i32_1 : i32, i32, i32, i32
  }
  func.func @transform_2(%arg0: i32, %arg1: i32, %arg2: memref<16xi32, #tpu.memory_space<smem>>) -> (i32, i32, i32, i32) {
    %c0_i32 = arith.constant 0 : i32
    %c0_i32_0 = arith.constant 0 : i32
    %c0_i32_1 = arith.constant 0 : i32
    %c0_i32_2 = arith.constant 0 : i32
    return %arg1, %c0_i32, %c0_i32_0, %c0_i32_1 : i32, i32, i32, i32
  }
  func.func @transform_3(%arg0: i32, %arg1: i32, %arg2: memref<16xi32, #tpu.memory_space<smem>>) -> (i32, i32, i32) {
    %c0_i32 = arith.constant 0 : i32
    %c0_i32_0 = arith.constant 0 : i32
    %c0_i32_1 = arith.constant 0 : i32
    return %arg1, %c0_i32, %c0_i32_0 : i32, i32, i32
  }
  func.func @transform_4(%arg0: i32, %arg1: i32, %arg2: memref<16xi32, #tpu.memory_space<smem>>) -> (i32, i32, i32) {
    %c0_i32 = arith.constant 0 : i32
    %c0_i32_0 = arith.constant 0 : i32
    %c0_i32_1 = arith.constant 0 : i32
    return %arg1, %c0_i32, %c0_i32_0 : i32, i32, i32
  }
  func.func @transform_5(%arg0: i32, %arg1: i32, %arg2: memref<16xi32, #tpu.memory_space<smem>>) -> (i32, i32, i32) {
    %c0_i32 = arith.constant 0 : i32
    %c0_i32_0 = arith.constant 0 : i32
    %c0_i32_1 = arith.constant 0 : i32
    return %arg1, %c0_i32, %c0_i32_0 : i32, i32, i32
  }
  func.func @transform_6(%arg0: i32, %arg1: i32, %arg2: memref<16xi32, #tpu.memory_space<smem>>) -> (i32, i32) {
    %c0_i32 = arith.constant 0 : i32
    %c0_i32_0 = arith.constant 0 : i32
    %c0_i32_1 = arith.constant 0 : i32
    return %c0_i32, %c0_i32_0 : i32, i32
  }
  func.func @transform_7(%arg0: i32, %arg1: i32, %arg2: memref<16xi32, #tpu.memory_space<smem>>) -> (i32, i32) {
    %c0_i32 = arith.constant 0 : i32
    %c0_i32_0 = arith.constant 0 : i32
    %c0_i32_1 = arith.constant 0 : i32
    return %c0_i32, %c0_i32_0 : i32, i32
  }
  func.func @transform_8(%arg0: i32, %arg1: i32, %arg2: memref<16xi32, #tpu.memory_space<smem>>) -> (i32, i32) {
    %c0_i32 = arith.constant 0 : i32
    %c0_i32_0 = arith.constant 0 : i32
    return %arg0, %c0_i32 : i32, i32
  }
}

</mosaic_0001>

<llo_original>
// kernel: clip_encode_text.1
$region0: #{clip_encode_text.1}
  #allocation0 [shape = 'u32[]', space=smem, size = 0x4, offset = 0x4, fixed_abs, tag = 'smem constant byte address 0x4 - core index']
  #allocation1 [shape = 'u32[144,128]{1,0:T(1,128)}', space=vmem, size = 0x12000, scoped, tag = 'internal scratch']
  #allocation2 [shape = 'f32[128,32]{1,0:T(8,128)}', space=vmem, size = 0x10000, scoped, tag = 'scratch operand']
  #allocation3 [shape = 'f32[8,8]{1,0:T(8,128)}', space=vmem, size = 0x1000, scoped, tag = 'scratch operand']
  #allocation4 [shape = 's32[1]{0}', space=sflag, size = 0x4, scoped, tag = 'scoped memory for clip_encode_text.1']
  #allocation5 [shape = 'u8[512]{0}', space=smem, size = 0x200, scoped, tag = 'prefetched SMEM operand 0']
  %s0 = inlined_call_operand.vmem [shape: s32[16], index: 0, kind: input, shape index: {}]
  %s1 = inlined_call_operand.vmem [shape: f32[128,32], index: 1, kind: input, shape index: {}]
  %s2 = inlined_call_operand.vmem [shape: bf16[2,6,32,16], index: 2, kind: input, shape index: {}]
  %s3 = inlined_call_operand.vmem [shape: bf16[2,2,16,32], index: 3, kind: input, shape index: {}]
  %s4 = inlined_call_operand.vmem [shape: bf16[2,32,128], index: 4, kind: input, shape index: {}]
  %s5 = inlined_call_operand.vmem [shape: bf16[2,128,32], index: 5, kind: input, shape index: {}]
  %s6 = inlined_call_operand.vmem [shape: f32[2,10,128], index: 6, kind: input, shape index: {}]
  %s7 = inlined_call_operand.vmem [shape: f32[2,32], index: 7, kind: input, shape index: {}]
  %s8 = inlined_call_operand.vmem [shape: bf16[32,32], index: 8, kind: input, shape index: {}]
  %s9 = inlined_call_operand.hbm [shape: f32[16,32], index: 9, kind: output, shape index: {}]
  %s10 = sld [smem:[#allocation0]]
  $region73: #{clip_encode_text.1} parent=0
    _
  %s12 = ssub.s32 1, %s10
  %s13 = scalar_select 0, %s12, %s10
  %s14 = sshll.u32 %s0, 4
  %s15 = int_to_ptr.vmem [resolvable:$true] %s14
  %17 = dma.vmem_to_smem %s15, 16, [#allocation5], [#allocation4]
  %18 = dma.done [#allocation4], 16
  %19 = sfence
  $region1: #{clip_encode_text.1} parent=0
    #allocation6 [shape = 'u8[8192]{0}', space=vmem, size = 0x2000, scoped, tag = 'output window, operand 0, single buffered']
    #allocation7 [shape = 's32[2]{0}', space=sflag, size = 0x8, scoped, tag = 'scoped memory for clip_encode_text.1']
    %20 = vsyncpa [#allocation7], 0
    loop: start=0, step=1, limit=4
    $region2: #{clip_encode_text.1} parent=1 // loop_pre_header
      _
    $region3: #{clip_encode_text.1} parent=1 // loop_header
      %s22 = sphi 0, %s26
      %p23 = scmp.ge.s32.totalorder %s22, 4
      %s29 = sphi 0, %s41
      %s30 = sphi 0, %s37
      %s31 = sphi 0, %s29
      %s32 = sphi 0, %s30
      %s33 = sphi 0, %s31
      %s34 = sphi 0, %s32
      %s44 = sphi 0, %s46
      %s47 = sphi 0, %s44
      %s48 = sphi 0, %s47
      %s64 = sphi 0, %s48
      %s70 = sphi 0, %s72
      %s73 = sphi 0, %s70
      %s74 = sphi 0, %s73
      %s90 = sphi 0, %s74
      %s96 = sphi 0, %s98
      %s99 = sphi 0, %s96
      %s100 = sphi 0, %s99
      %s116 = sphi 0, %s100
      %s122 = sphi 0, %s124
      %s125 = sphi 0, %s122
      %s126 = sphi 0, %s125
      %s142 = sphi 0, %s126
      %s148 = sphi 0, %s150
      %s151 = sphi 0, %s148
      %s152 = sphi 0, %s151
      %s168 = sphi 0, %s152
      %s174 = sphi 0, %s176
      %s177 = sphi 0, %s174
      %s178 = sphi 0, %s177
      %s194 = sphi 0, %s178
      %s198 = sphi 0, %s198
      %s200 = sphi 0, %s198
      %s201 = sphi 0, %s200
      %s215 = sphi 0, %s201
      %s219 = sphi 0, %s219
      %s221 = sphi 0, %s219
      %s222 = sphi 0, %s221
      %s236 = sphi 0, %s222
      %s242 = sphi 0, %s244
      %s245 = sphi 0, %s242
      %s246 = sphi 0, %s245
      %s262 = sphi 0, %s246
    $region4: #{clip_encode_text.1} parent=1 // loop_header_branch
      %25 = sbr.rel (%p23) target = $region8
    $region5: #{clip_encode_text.1} parent=1 // loop_body
      %s27 = ssub.s32 %s22, 1
      %s28 = ssub.s32 %s22, 2
      %s35 = sadd.s32 1, %s30
      %p36 = scmp.ge.s32.totalorder %s35, 2
      %s37 = scalar_select %p36, 0, %s35
      %s38 = sadd.s32 1, %s29
      %s39 = scalar_select %p36, %s38, %s29
      %p40 = scmp.ge.s32.totalorder %s39, 1
      %s41 = scalar_select %p40, 0, %s39
      %s42 = ssub.s32 %s29, %s41
      %p43 = scmp.eq.s32.totalorder %s42, 0
      %s45 = sadd.s32 %s44, 1
      %s46 = scalar_select %p43, %s44, %s45
      %p49 = pneg %p43
      %p50 = scmp.eq.s32.totalorder %s22, 1
      %p51 = por %p49, %p50
      %p52 = scmp.ne.s32.totalorder %s44, %s47
      %p53 = scmp.eq.s32.totalorder %s22, 0
      %p54 = por %p52, %p53
      %p55 = scmp.ne.s32.totalorder %s44, %s47
      %p56 = scmp.eq.s32.totalorder %s27, 1
      %p57 = por %p55, %p56
      %p58 = scmp.ne.s32.totalorder %s47, %s48
      %p59 = scmp.eq.s32.totalorder %s27, 0
      %p60 = por %p58, %p59
      %p61 = scmp.ne.s32.totalorder %s47, %s48
      %p62 = scmp.eq.s32.totalorder %s28, 1
      %p63 = por %p61, %p62
      %p65 = scmp.ne.s32.totalorder %s48, %s64
      %p66 = scmp.eq.s32.totalorder %s28, 0
      %p67 = por %p65, %p66
      %s68 = ssub.s32 %s30, %s37
      %p69 = scmp.eq.s32.totalorder %s68, 0
      %s71 = sadd.s32 %s70, 1
      %s72 = scalar_select %p69, %s70, %s71
      %p75 = pneg %p69
      %p76 = scmp.eq.s32.totalorder %s22, 1
      %p77 = por %p75, %p76
      %p78 = scmp.ne.s32.totalorder %s70, %s73
      %p79 = scmp.eq.s32.totalorder %s22, 0
      %p80 = por %p78, %p79
      %p81 = scmp.ne.s32.totalorder %s70, %s73
      %p82 = scmp.eq.s32.totalorder %s27, 1
      %p83 = por %p81, %p82
      %p84 = scmp.ne.s32.totalorder %s73, %s74
      %p85 = scmp.eq.s32.totalorder %s27, 0
      %p86 = por %p84, %p85
      %p87 = scmp.ne.s32.totalorder %s73, %s74
      %p88 = scmp.eq.s32.totalorder %s28, 1
      %p89 = por %p87, %p88
      %p91 = scmp.ne.s32.totalorder %s74, %s90
      %p92 = scmp.eq.s32.totalorder %s28, 0
      %p93 = por %p91, %p92
      %s94 = ssub.s32 %s30, %s37
      %p95 = scmp.eq.s32.totalorder %s94, 0
      %s97 = sadd.s32 %s96, 1
      %s98 = scalar_select %p95, %s96, %s97
      %p101 = pneg %p95
      %p102 = scmp.eq.s32.totalorder %s22, 1
      %p103 = por %p101, %p102
      %p104 = scmp.ne.s32.totalorder %s96, %s99
      %p105 = scmp.eq.s32.totalorder %s22, 0
      %p106 = por %p104, %p105
      %p107 = scmp.ne.s32.totalorder %s96, %s99
      %p108 = scmp.eq.s32.totalorder %s27, 1
      %p109 = por %p107, %p108
      %p110 = scmp.ne.s32.totalorder %s99, %s100
      %p111 = scmp.eq.s32.totalorder %s27, 0
      %p112 = por %p110, %p111
      %p113 = scmp.ne.s32.totalorder %s99, %s100
      %p114 = scmp.eq.s32.totalorder %s28, 1
      %p115 = por %p113, %p114
      %p117 = scmp.ne.s32.totalorder %s100, %s116
      %p118 = scmp.eq.s32.totalorder %s28, 0
      %p119 = por %p117, %p118
      %s120 = ssub.s32 %s30, %s37
      %p121 = scmp.eq.s32.totalorder %s120, 0
      %s123 = sadd.s32 %s122, 1
      %s124 = scalar_select %p121, %s122, %s123
      %p127 = pneg %p121
      %p128 = scmp.eq.s32.totalorder %s22, 1
      %p129 = por %p127, %p128
      %p130 = scmp.ne.s32.totalorder %s122, %s125
      %p131 = scmp.eq.s32.totalorder %s22, 0
      %p132 = por %p130, %p131
      %p133 = scmp.ne.s32.totalorder %s122, %s125
      %p134 = scmp.eq.s32.totalorder %s27, 1
      %p135 = por %p133, %p134
      %p136 = scmp.ne.s32.totalorder %s125, %s126
      %p137 = scmp.eq.s32.totalorder %s27, 0
      %p138 = por %p136, %p137
      %p139 = scmp.ne.s32.totalorder %s125, %s126
      %p140 = scmp.eq.s32.totalorder %s28, 1
      %p141 = por %p139, %p140
      %p143 = scmp.ne.s32.totalorder %s126, %s142
      %p144 = scmp.eq.s32.totalorder %s28, 0
      %p145 = por %p143, %p144
      %s146 = ssub.s32 %s30, %s37
      %p147 = scmp.eq.s32.totalorder %s146, 0
      %s149 = sadd.s32 %s148, 1
      %s150 = scalar_select %p147, %s148, %s149
      %p153 = pneg %p147
      %p154 = scmp.eq.s32.totalorder %s22, 1
      %p155 = por %p153, %p154
      %p156 = scmp.ne.s32.totalorder %s148, %s151
      %p157 = scmp.eq.s32.totalorder %s22, 0
      %p158 = por %p156, %p157
      %p159 = scmp.ne.s32.totalorder %s148, %s151
      %p160 = scmp.eq.s32.totalorder %s27, 1
      %p161 = por %p159, %p160
      %p162 = scmp.ne.s32.totalorder %s151, %s152
      %p163 = scmp.eq.s32.totalorder %s27, 0
      %p164 = por %p162, %p163
      %p165 = scmp.ne.s32.totalorder %s151, %s152
      %p166 = scmp.eq.s32.totalorder %s28, 1
      %p167 = por %p165, %p166
      %p169 = scmp.ne.s32.totalorder %s152, %s168
      %p170 = scmp.eq.s32.totalorder %s28, 0
      %p171 = por %p169, %p170
      %s172 = ssub.s32 %s30, %s37
      %p173 = scmp.eq.s32.totalorder %s172, 0
      %s175 = sadd.s32 %s174, 1
      %s176 = scalar_select %p173, %s174, %s175
      %p179 = pneg %p173
      %p180 = scmp.eq.s32.totalorder %s22, 1
      %p181 = por %p179, %p180
      %p182 = scmp.ne.s32.totalorder %s174, %s177
      %p183 = scmp.eq.s32.totalorder %s22, 0
      %p184 = por %p182, %p183
      %p185 = scmp.ne.s32.totalorder %s174, %s177
      %p186 = scmp.eq.s32.totalorder %s27, 1
      %p187 = por %p185, %p186
      %p188 = scmp.ne.s32.totalorder %s177, %s178
      %p189 = scmp.eq.s32.totalorder %s27, 0
      %p190 = por %p188, %p189
      %p191 = scmp.ne.s32.totalorder %s177, %s178
      %p192 = scmp.eq.s32.totalorder %s28, 1
      %p193 = por %p191, %p192
      %p195 = scmp.ne.s32.totalorder %s178, %s194
      %p196 = scmp.eq.s32.totalorder %s28, 0
      %p197 = por %p195, %p196
      %s199 = sadd.s32 %s198, 1
      %p202 = scmp.eq.s32.totalorder %s22, 1
      %p203 = scmp.ne.s32.totalorder %s198, %s200
      %p204 = scmp.eq.s32.totalorder %s22, 0
      %p205 = por %p203, %p204
      %p206 = scmp.ne.s32.totalorder %s198, %s200
      %p207 = scmp.eq.s32.totalorder %s27, 1
      %p208 = por %p206, %p207
      %p209 = scmp.ne.s32.totalorder %s200, %s201
      %p210 = scmp.eq.s32.totalorder %s27, 0
      %p211 = por %p209, %p210
      %p212 = scmp.ne.s32.totalorder %s200, %s201
      %p213 = scmp.eq.s32.totalorder %s28, 1
      %p214 = por %p212, %p213
      %p216 = scmp.ne.s32.totalorder %s201, %s215
      %p217 = scmp.eq.s32.totalorder %s28, 0
      %p218 = por %p216, %p217
      %s220 = sadd.s32 %s219, 1
      %p223 = scmp.eq.s32.totalorder %s22, 1
      %p224 = scmp.ne.s32.totalorder %s219, %s221
      %p225 = scmp.eq.s32.totalorder %s22, 0
      %p226 = por %p224, %p225
      %p227 = scmp.ne.s32.totalorder %s219, %s221
      %p228 = scmp.eq.s32.totalorder %s27, 1
      %p229 = por %p227, %p228
      %p230 = scmp.ne.s32.totalorder %s221, %s222
      %p231 = scmp.eq.s32.totalorder %s27, 0
      %p232 = por %p230, %p231
      %p233 = scmp.ne.s32.totalorder %s221, %s222
      %p234 = scmp.eq.s32.totalorder %s28, 1
      %p235 = por %p233, %p234
      %p237 = scmp.ne.s32.totalorder %s222, %s236
      %p238 = scmp.eq.s32.totalorder %s28, 0
      %p239 = por %p237, %p238
      %s240 = ssub.s32 %s29, %s41
      %p241 = scmp.eq.s32.totalorder %s240, 0
      %s243 = sadd.s32 %s242, 1
      %s244 = scalar_select %p241, %s242, %s243
      %p247 = pneg %p241
      %p248 = scmp.eq.s32.totalorder %s22, 1
      %p249 = por %p247, %p248
      %p250 = scmp.ne.s32.totalorder %s242, %s245
      %p251 = scmp.eq.s32.totalorder %s22, 0
      %p252 = por %p250, %p251
      %p253 = scmp.ne.s32.totalorder %s242, %s245
      %p254 = scmp.eq.s32.totalorder %s27, 1
      %p255 = por %p253, %p254
      %p256 = scmp.ne.s32.totalorder %s245, %s246
      %p257 = scmp.eq.s32.totalorder %s27, 0
      %p258 = por %p256, %p257
      %p259 = scmp.ne.s32.totalorder %s245, %s246
      %p260 = scmp.eq.s32.totalorder %s28, 1
      %p261 = por %p259, %p260
      %p263 = scmp.ne.s32.totalorder %s246, %s262
      %p264 = scmp.eq.s32.totalorder %s28, 0
      %p265 = por %p263, %p264
      %p266 = scmp.le.s32.totalorder 1, %s22
      %p267 = scmp.lt.s32.totalorder %s22, 3
      %p268 = pnand %p266, %p267
      %p269 = pneg %p268
      // Predicated region
      $region9: #{clip_encode_text.1} parent=5 // pred_check
        _
      $region10: #{clip_encode_text.1} parent=5 // pred_check_branch
        %271 = sbr.rel (%p268) target = $region12
      $region11: #{clip_encode_text.1} parent=5 // pred_region
        %s272 = ssub.s32 %s22, 1
        // Predicated region
        $region13: #{clip_encode_text.1} parent=11 // pred_check
          %p273 = pneg %p60
        $region14: #{clip_encode_text.1} parent=11 // pred_check_branch
          %275 = sbr.rel (%p273) target = $region16
        $region15: #{clip_encode_text.1} parent=11 // pred_region
          %s276 = smul.u32 16, %s31
          %p277 = scmp.lt.s32.totalorder %s276, 15
          %s278 = scalar_select %p277, %s276, 15
          %s279 = smul.addr %s278, 8
          %s280 = scalar_lea.vmem %s1, %s279
          %s281 = smul.u32 16, %s31
        $region16: #{clip_encode_text.1} parent=11 // pred_fallthru
          _
        // Predicated region
        $region17: #{clip_encode_text.1} parent=11 // pred_check
          %p282 = pneg %p211
        $region18: #{clip_encode_text.1} parent=11 // pred_check_branch
          %284 = sbr.rel (%p282) target = $region20
        $region19: #{clip_encode_text.1} parent=11 // pred_region
          _
        $region20: #{clip_encode_text.1} parent=11 // pred_fallthru
          _
        // Predicated region
        $region21: #{clip_encode_text.1} parent=11 // pred_check
          %p285 = pneg %p232
        $region22: #{clip_encode_text.1} parent=11 // pred_check_branch
          %287 = sbr.rel (%p285) target = $region24
        $region23: #{clip_encode_text.1} parent=11 // pred_region
          _
        $region24: #{clip_encode_text.1} parent=11 // pred_fallthru
          _
      $region12: #{clip_encode_text.1} parent=5 // pred_fallthru
        _
      %p288 = scmp.lt.s32.totalorder %s22, 2
      // Predicated region
      $region25: #{clip_encode_text.1} parent=5 // pred_check
        %p289 = pneg %p288
      $region26: #{clip_encode_text.1} parent=5 // pred_check_branch
        %291 = sbr.rel (%p289) target = $region28
      $region27: #{clip_encode_text.1} parent=5 // pred_region
        // Predicated region
        $region29: #{clip_encode_text.1} parent=27 // pred_check
          %p292 = pneg %p80
        $region30: #{clip_encode_text.1} parent=27 // pred_check_branch
          %294 = sbr.rel (%p292) target = $region32
        $region31: #{clip_encode_text.1} parent=27 // pred_region
          %p295 = scmp.lt.s32.totalorder %s30, 1
          %s296 = scalar_select %p295, %s30, 1
          %s297 = smul.addr %s296, 24
          %s298 = smul.addr %s297, 4
          %s299 = scalar_lea.vmem %s2, %s298
        $region32: #{clip_encode_text.1} parent=27 // pred_fallthru
          _
        // Predicated region
        $region33: #{clip_encode_text.1} parent=27 // pred_check
          %p300 = pneg %p106
        $region34: #{clip_encode_text.1} parent=27 // pred_check_branch
          %302 = sbr.rel (%p300) target = $region36
        $region35: #{clip_encode_text.1} parent=27 // pred_region
          %p303 = scmp.lt.s32.totalorder %s30, 1
          %s304 = scalar_select %p303, %s30, 1
          %s305 = smul.addr %s304, 4
          %s306 = smul.addr %s305, 4
          %s307 = scalar_lea.vmem %s3, %s306
        $region36: #{clip_encode_text.1} parent=27 // pred_fallthru
          _
        // Predicated region
        $region37: #{clip_encode_text.1} parent=27 // pred_check
          %p308 = pneg %p132
        $region38: #{clip_encode_text.1} parent=27 // pred_check_branch
          %310 = sbr.rel (%p308) target = $region40
        $region39: #{clip_encode_text.1} parent=27 // pred_region
          %p311 = scmp.lt.s32.totalorder %s30, 1
          %s312 = scalar_select %p311, %s30, 1
          %s313 = smul.addr %s312, 4
          %s314 = smul.addr %s313, 4
          %s315 = scalar_lea.vmem %s4, %s314
        $region40: #{clip_encode_text.1} parent=27 // pred_fallthru
          _
        // Predicated region
        $region41: #{clip_encode_text.1} parent=27 // pred_check
          %p316 = pneg %p158
        $region42: #{clip_encode_text.1} parent=27 // pred_check_branch
          %318 = sbr.rel (%p316) target = $region44
        $region43: #{clip_encode_text.1} parent=27 // pred_region
          %p319 = scmp.lt.s32.totalorder %s30, 1
          %s320 = scalar_select %p319, %s30, 1
          %s321 = smul.addr %s320, 16
          %s322 = smul.addr %s321, 4
          %s323 = scalar_lea.vmem %s5, %s322
        $region44: #{clip_encode_text.1} parent=27 // pred_fallthru
          _
        // Predicated region
        $region45: #{clip_encode_text.1} parent=27 // pred_check
          %p324 = pneg %p184
        $region46: #{clip_encode_text.1} parent=27 // pred_check_branch
          %326 = sbr.rel (%p324) target = $region48
        $region47: #{clip_encode_text.1} parent=27 // pred_region
          %p327 = scmp.lt.s32.totalorder %s30, 1
          %s328 = scalar_select %p327, %s30, 1
          %s329 = smul.addr %s328, 2
          %s330 = smul.addr %s329, 8
          %s331 = scalar_lea.vmem %s6, %s330
        $region48: #{clip_encode_text.1} parent=27 // pred_fallthru
          _
      $region28: #{clip_encode_text.1} parent=5 // pred_fallthru
        _
      %p332 = scmp.le.s32.totalorder 1, %s22
      %p333 = scmp.lt.s32.totalorder %s22, 3
      %p334 = pnand %p332, %p333
      %p335 = pneg %p334
      // Predicated region
      $region49: #{clip_encode_text.1} parent=5 // pred_check
        _
      $region50: #{clip_encode_text.1} parent=5 // pred_check_branch
        %337 = sbr.rel (%p334) target = $region52
      $region51: #{clip_encode_text.1} parent=5 // pred_region
        %s338 = ssub.s32 %s22, 1
        %s339 = smul.u32 16, %s31
        %p340 = scmp.lt.s32.totalorder %s339, 15
        %s341 = scalar_select %p340, %s339, 15
        %s342 = smul.addr %s341, 8
        %s343 = scalar_lea.vmem %s1, %s342
        %p344 = pneg %p60
        %p345 = pneg %p57
        %p346 = scmp.lt.s32.totalorder %s32, 1
        %s347 = scalar_select %p346, %s32, 1
        %s348 = smul.addr %s347, 24
        %s349 = smul.addr %s348, 4
        %s350 = scalar_lea.vmem %s2, %s349
        %p351 = pneg %p86
        %p352 = pneg %p83
        %p353 = scmp.lt.s32.totalorder %s32, 1
        %s354 = scalar_select %p353, %s32, 1
        %s355 = smul.addr %s354, 4
        %s356 = smul.addr %s355, 4
        %s357 = scalar_lea.vmem %s3, %s356
        %p358 = pneg %p112
        %p359 = pneg %p109
        %p360 = scmp.lt.s32.totalorder %s32, 1
        %s361 = scalar_select %p360, %s32, 1
        %s362 = smul.addr %s361, 4
        %s363 = smul.addr %s362, 4
        %s364 = scalar_lea.vmem %s4, %s363
        %p365 = pneg %p138
        %p366 = pneg %p135
        %p367 = scmp.lt.s32.totalorder %s32, 1
        %s368 = scalar_select %p367, %s32, 1
        %s369 = smul.addr %s368, 16
        %s370 = smul.addr %s369, 4
        %s371 = scalar_lea.vmem %s5, %s370
        %p372 = pneg %p164
        %p373 = pneg %p161
        %p374 = scmp.lt.s32.totalorder %s32, 1
        %s375 = scalar_select %p374, %s32, 1
        %s376 = smul.addr %s375, 2
        %s377 = smul.addr %s376, 8
        %s378 = scalar_lea.vmem %s6, %s377
        %p379 = pneg %p190
        %p380 = pneg %p187
        %p381 = pneg %p211
        %p382 = pneg %p208
        %p383 = pneg %p232
        %p384 = pneg %p229
        %p385 = pneg %p258
        %p386 = pneg %p255
        %s387 = smul.u32 16, %s31
        %p388 = scmp.lt.s32.totalorder %s387, 15
        %s389 = scalar_select %p388, %s387, 15
        %s390 = smul.addr %s389, 8
        %s391 = scalar_lea.vmem %s1, %s390
        %s392 = smul.u32 16, %s31
        %p393 = scmp.lt.s32.totalorder %s32, 1
        %s394 = scalar_select %p393, %s32, 1
        %s395 = smul.addr %s394, 24
        %s396 = smul.addr %s395, 4
        %s397 = scalar_lea.vmem %s2, %s396
        %p398 = scmp.lt.s32.totalorder %s32, 1
        %s399 = scalar_select %p398, %s32, 1
        %s400 = smul.addr %s399, 4
        %s401 = smul.addr %s400, 4
        %s402 = scalar_lea.vmem %s3, %s401
        %p403 = scmp.lt.s32.totalorder %s32, 1
        %s404 = scalar_select %p403, %s32, 1
        %s405 = smul.addr %s404, 4
        %s406 = smul.addr %s405, 4
        %s407 = scalar_lea.vmem %s4, %s406
        %p408 = scmp.lt.s32.totalorder %s32, 1
        %s409 = scalar_select %p408, %s32, 1
        %s410 = smul.addr %s409, 16
        %s411 = smul.addr %s410, 4
        %s412 = scalar_lea.vmem %s5, %s411
        %p413 = scmp.lt.s32.totalorder %s32, 1
        %s414 = scalar_select %p413, %s32, 1
        %s415 = smul.addr %s414, 2
        %s416 = smul.addr %s415, 8
        %s417 = scalar_lea.vmem %s6, %s416
        %s418 = smul.u32 2, %s31
        %p420 = scmp.eq.s32.totalorder %s32, 0
        // Predicated region
        $region53: #{clip_encode_text.1} parent=51 // pred_check
          %p421 = pneg %p420
        $region54: #{clip_encode_text.1} parent=51 // pred_check_branch
          %423 = sbr.rel (%p421) target = $region56
        $region55: #{clip_encode_text.1} parent=51 // pred_region
          %v424 = vld [vmem:[%s391] sm:$0xff]
          %v425 = vld [vmem:[%s391 + $0x8] sm:$0xff]
          %v426 = vld [vmem:[%s391 + $0x10] sm:$0xff]
          %v427 = vld [vmem:[%s391 + $0x18] sm:$0xff]
          %v428 = vld [vmem:[%s391 + $0x20] sm:$0xff]
          %v429 = vld [vmem:[%s391 + $0x28] sm:$0xff]
          %v430 = vld [vmem:[%s391 + $0x30] sm:$0xff]
          %v431 = vld [vmem:[%s391 + $0x38] sm:$0xff]
          %v432 = vld [vmem:[%s391 + $0x40] sm:$0xff]
          %v433 = vld [vmem:[%s391 + $0x48] sm:$0xff]
          %v434 = vld [vmem:[%s391 + $0x50] sm:$0xff]
          %v435 = vld [vmem:[%s391 + $0x58] sm:$0xff]
          %v436 = vld [vmem:[%s391 + $0x60] sm:$0xff]
          %v437 = vld [vmem:[%s391 + $0x68] sm:$0xff]
          %v438 = vld [vmem:[%s391 + $0x70] sm:$0xff]
          %v439 = vld [vmem:[%s391 + $0x78] sm:$0xff]
          %vm440 = vcmask 261120
          %441 = vst.msk [vmem:[#allocation2] sm:$0xff] %vm440, %v424
          %442 = vst.msk [vmem:[#allocation2 + $0x8] sm:$0xff] %vm440, %v425
          %443 = vst.msk [vmem:[#allocation2 + $0x10] sm:$0xff] %vm440, %v426
          %444 = vst.msk [vmem:[#allocation2 + $0x18] sm:$0xff] %vm440, %v427
          %445 = vst.msk [vmem:[#allocation2 + $0x20] sm:$0xff] %vm440, %v428
          %446 = vst.msk [vmem:[#allocation2 + $0x28] sm:$0xff] %vm440, %v429
          %447 = vst.msk [vmem:[#allocation2 + $0x30] sm:$0xff] %vm440, %v430
          %448 = vst.msk [vmem:[#allocation2 + $0x38] sm:$0xff] %vm440, %v431
          %449 = vst.msk [vmem:[#allocation2 + $0x40] sm:$0xff] %vm440, %v432
          %450 = vst.msk [vmem:[#allocation2 + $0x48] sm:$0xff] %vm440, %v433
          %451 = vst.msk [vmem:[#allocation2 + $0x50] sm:$0xff] %vm440, %v434
          %452 = vst.msk [vmem:[#allocation2 + $0x58] sm:$0xff] %vm440, %v435
          %453 = vst.msk [vmem:[#allocation2 + $0x60] sm:$0xff] %vm440, %v436
          %454 = vst.msk [vmem:[#allocation2 + $0x68] sm:$0xff] %vm440, %v437
          %455 = vst.msk [vmem:[#allocation2 + $0x70] sm:$0xff] %vm440, %v438
          %456 = vst.msk [vmem:[#allocation2 + $0x78] sm:$0xff] %vm440, %v439
          %v457 = vlaneseq
          %v458 = vshrl.u32 %v457, 7
          %v459 = vlaneseq
          %v460 = vand.u32 %v459, 127
          %vm461 = vcmp.le.s32.totalorder %v460, %v458
          %v462 = vsel %vm461, 0.0, -1e+30
          %vm463 = vcmask 64512
          %464 = vst.msk [vmem:[#allocation3] sm:$0xff] %vm463, %v462
        $region56: #{clip_encode_text.1} parent=51 // pred_fallthru
          _
        %v465 = vld [vmem:[#allocation2] sm:$0xff]
        %v466 = vld [vmem:[#allocation2 + $0x8] sm:$0xff]
        %v467 = vld [vmem:[#allocation2 + $0x10] sm:$0xff]
        %v468 = vld [vmem:[#allocation2 + $0x18] sm:$0xff]
        %v469 = vld [vmem:[#allocation2 + $0x20] sm:$0xff]
        %v470 = vld [vmem:[#allocation2 + $0x28] sm:$0xff]
        %v471 = vld [vmem:[#allocation2 + $0x30] sm:$0xff]
        %v472 = vld [vmem:[#allocation2 + $0x38] sm:$0xff]
        %v473 = vld [vmem:[#allocation2 + $0x40] sm:$0xff]
        %v474 = vld [vmem:[#allocation2 + $0x48] sm:$0xff]
        %v475 = vld [vmem:[#allocation2 + $0x50] sm:$0xff]
        %v476 = vld [vmem:[#allocation2 + $0x58] sm:$0xff]
        %v477 = vld [vmem:[#allocation2 + $0x60] sm:$0xff]
        %v478 = vld [vmem:[#allocation2 + $0x68] sm:$0xff]
        %v479 = vld [vmem:[#allocation2 + $0x70] sm:$0xff]
        %v480 = vld [vmem:[#allocation2 + $0x78] sm:$0xff]
        %v481 = vld [vmem:[%s417] sm:$0xff]
        %v482 = vld [vmem:[%s417 + $0x8] sm:$0x3]
        %v483 = vld [vmem:[%s397] sm:$0xf]
        %v484 = vld [vmem:[%s397 + $0x4] sm:$0xf]
        %v485 = vld [vmem:[%s397 + $0x8] sm:$0xf]
        %v486 = vld [vmem:[%s397 + $0xc] sm:$0xf]
        %v487 = vld [vmem:[%s397 + $0x10] sm:$0xf]
        %v488 = vld [vmem:[%s397 + $0x14] sm:$0xf]
        %v489 = vld [vmem:[%s397 + $0x18] sm:$0xf]
        %v490 = vld [vmem:[%s397 + $0x1c] sm:$0xf]
        %v491 = vld [vmem:[%s397 + $0x20] sm:$0xf]
        %v492 = vld [vmem:[%s397 + $0x24] sm:$0xf]
        %v493 = vld [vmem:[%s397 + $0x28] sm:$0xf]
        %v494 = vld [vmem:[%s397 + $0x2c] sm:$0xf]
        %v495 = vld [vmem:[%s397 + $0x30] sm:$0xf]
        %v496 = vld [vmem:[%s397 + $0x34] sm:$0xf]
        %v497 = vld [vmem:[%s397 + $0x38] sm:$0xf]
        %v498 = vld [vmem:[%s397 + $0x3c] sm:$0xf]
        %v499 = vld [vmem:[%s397 + $0x40] sm:$0xf]
        %v500 = vld [vmem:[%s397 + $0x44] sm:$0xf]
        %v501 = vld [vmem:[%s397 + $0x48] sm:$0xf]
        %v502 = vld [vmem:[%s397 + $0x4c] sm:$0xf]
        %v503 = vld [vmem:[%s397 + $0x50] sm:$0xf]
        %v504 = vld [vmem:[%s397 + $0x54] sm:$0xf]
        %v505 = vld [vmem:[%s397 + $0x58] sm:$0xf]
        %v506 = vld [vmem:[%s397 + $0x5c] sm:$0xf]
        %v507 = vld [vmem:[%s402] sm:$0xf]
        %v508 = vld [vmem:[%s402 + $0x4] sm:$0xf]
        %v509 = vld [vmem:[%s402 + $0x8] sm:$0xf]
        %v510 = vld [vmem:[%s402 + $0xc] sm:$0xf]
        %v511 = vld [vmem:[#allocation3] sm:$0xff]
        %vm512 = vcmask 261120
        %v513 = vsel %vm512, %v465, 0.0
        %514 = vadd.xlane.f32.xlu0 %v513
        %v515 = vpop.xlane.xlu0 %514
        %v516 = vsel %vm512, %v466, 0.0
        %517 = vadd.xlane.f32.xlu0 %v516
        %v518 = vpop.xlane.xlu0 %517
        %v519 = vsel %vm512, %v467, 0.0
        %520 = vadd.xlane.f32.xlu0 %v519
        %v521 = vpop.xlane.xlu0 %520
        %v522 = vsel %vm512, %v468, 0.0
        %523 = vadd.xlane.f32.xlu0 %v522
        %v524 = vpop.xlane.xlu0 %523
        %v525 = vsel %vm512, %v469, 0.0
        %526 = vadd.xlane.f32.xlu0 %v525
        %v527 = vpop.xlane.xlu0 %526
        %v528 = vsel %vm512, %v470, 0.0
        %529 = vadd.xlane.f32.xlu0 %v528
        %v530 = vpop.xlane.xlu0 %529
        %v531 = vsel %vm512, %v471, 0.0
        %532 = vadd.xlane.f32.xlu0 %v531
        %v533 = vpop.xlane.xlu0 %532
        %v534 = vsel %vm512, %v472, 0.0
        %535 = vadd.xlane.f32.xlu0 %v534
        %v536 = vpop.xlane.xlu0 %535
        %v537 = vsel %vm512, %v473, 0.0
        %538 = vadd.xlane.f32.xlu0 %v537
        %v539 = vpop.xlane.xlu0 %538
        %v540 = vsel %vm512, %v474, 0.0
        %541 = vadd.xlane.f32.xlu0 %v540
        %v542 = vpop.xlane.xlu0 %541
        %v543 = vsel %vm512, %v475, 0.0
        %544 = vadd.xlane.f32.xlu0 %v543
        %v545 = vpop.xlane.xlu0 %544
        %v546 = vsel %vm512, %v476, 0.0
        %547 = vadd.xlane.f32.xlu0 %v546
        %v548 = vpop.xlane.xlu0 %547
        %v549 = vsel %vm512, %v477, 0.0
        %550 = vadd.xlane.f32.xlu0 %v549
        %v551 = vpop.xlane.xlu0 %550
        %v552 = vsel %vm512, %v478, 0.0
        %553 = vadd.xlane.f32.xlu0 %v552
        %v554 = vpop.xlane.xlu0 %553
        %v555 = vsel %vm512, %v479, 0.0
        %556 = vadd.xlane.f32.xlu0 %v555
        %v557 = vpop.xlane.xlu0 %556
        %v558 = vsel %vm512, %v480, 0.0
        %559 = vadd.xlane.f32.xlu0 %v558
        %v560 = vpop.xlane.xlu0 %559
        %v561 = vrcp.pop 32.0
        %v562 = vmul.f32 %v515, %v561
        %v563 = vmul.f32 %v518, %v561
        %v564 = vmul.f32 %v521, %v561
        %v565 = vmul.f32 %v524, %v561
        %v566 = vmul.f32 %v527, %v561
        %v567 = vmul.f32 %v530, %v561
        %v568 = vmul.f32 %v533, %v561
        %v569 = vmul.f32 %v536, %v561
        %v570 = vmul.f32 %v539, %v561
        %v571 = vmul.f32 %v542, %v561
        %v572 = vmul.f32 %v545, %v561
        %v573 = vmul.f32 %v548, %v561
        %v574 = vmul.f32 %v551, %v561
        %v575 = vmul.f32 %v554, %v561
        %v576 = vmul.f32 %v557, %v561
        %v577 = vmul.f32 %v560, %v561
        %v578 = vsub.f32 %v465, %v562
        %v579 = vsub.f32 %v466, %v563
        %v580 = vsub.f32 %v467, %v564
        %v581 = vsub.f32 %v468, %v565
        %v582 = vsub.f32 %v469, %v566
        %v583 = vsub.f32 %v470, %v567
        %v584 = vsub.f32 %v471, %v568
        %v585 = vsub.f32 %v472, %v569
        %v586 = vsub.f32 %v473, %v570
        %v587 = vsub.f32 %v474, %v571
        %v588 = vsub.f32 %v475, %v572
        %v589 = vsub.f32 %v476, %v573
        %v590 = vsub.f32 %v477, %v574
        %v591 = vsub.f32 %v478, %v575
        %v592 = vsub.f32 %v479, %v576
        %v593 = vsub.f32 %v480, %v577
        %v594 = vmul.f32 %v578, %v578
        %v595 = vmul.f32 %v579, %v579
        %v596 = vmul.f32 %v580, %v580
        %v597 = vmul.f32 %v581, %v581
        %v598 = vmul.f32 %v582, %v582
        %v599 = vmul.f32 %v583, %v583
        %v600 = vmul.f32 %v584, %v584
        %v601 = vmul.f32 %v585, %v585
        %v602 = vmul.f32 %v586, %v586
        %v603 = vmul.f32 %v587, %v587
        %v604 = vmul.f32 %v588, %v588
        %v605 = vmul.f32 %v589, %v589
        %v606 = vmul.f32 %v590, %v590
        %v607 = vmul.f32 %v591, %v591
        %v608 = vmul.f32 %v592, %v592
        %v609 = vmul.f32 %v593, %v593
        %v610 = vsel %vm512, %v594, 0.0
        %611 = vadd.xlane.f32.xlu0 %v610
        %v612 = vpop.xlane.xlu0 %611
        %v613 = vsel %vm512, %v595, 0.0
        %614 = vadd.xlane.f32.xlu0 %v613
        %v615 = vpop.xlane.xlu0 %614
        %v616 = vsel %vm512, %v596, 0.0
        %617 = vadd.xlane.f32.xlu0 %v616
        %v618 = vpop.xlane.xlu0 %617
        %v619 = vsel %vm512, %v597, 0.0
        %620 = vadd.xlane.f32.xlu0 %v619
        %v621 = vpop.xlane.xlu0 %620
        %v622 = vsel %vm512, %v598, 0.0
        %623 = vadd.xlane.f32.xlu0 %v622
        %v624 = vpop.xlane.xlu0 %623
        %v625 = vsel %vm512, %v599, 0.0
        %626 = vadd.xlane.f32.xlu0 %v625
        %v627 = vpop.xlane.xlu0 %626
        %v628 = vsel %vm512, %v600, 0.0
        %629 = vadd.xlane.f32.xlu0 %v628
        %v630 = vpop.xlane.xlu0 %629
        %v631 = vsel %vm512, %v601, 0.0
        %632 = vadd.xlane.f32.xlu0 %v631
        %v633 = vpop.xlane.xlu0 %632
        %v634 = vsel %vm512, %v602, 0.0
        %635 = vadd.xlane.f32.xlu0 %v634
        %v636 = vpop.xlane.xlu0 %635
        %v637 = vsel %vm512, %v603, 0.0
        %638 = vadd.xlane.f32.xlu0 %v637
        %v639 = vpop.xlane.xlu0 %638
        %v640 = vsel %vm512, %v604, 0.0
        %641 = vadd.xlane.f32.xlu0 %v640
        %v642 = vpop.xlane.xlu0 %641
        %v643 = vsel %vm512, %v605, 0.0
        %644 = vadd.xlane.f32.xlu0 %v643
        %v645 = vpop.xlane.xlu0 %644
        %v646 = vsel %vm512, %v606, 0.0
        %647 = vadd.xlane.f32.xlu0 %v646
        %v648 = vpop.xlane.xlu0 %647
        %v649 = vsel %vm512, %v607, 0.0
        %650 = vadd.xlane.f32.xlu0 %v649
        %v651 = vpop.xlane.xlu0 %650
        %v652 = vsel %vm512, %v608, 0.0
        %653 = vadd.xlane.f32.xlu0 %v652
        %v654 = vpop.xlane.xlu0 %653
        %v655 = vsel %vm512, %v609, 0.0
        %656 = vadd.xlane.f32.xlu0 %v655
        %v657 = vpop.xlane.xlu0 %656
        %v658 = vmul.f32 %v612, %v561
        %v659 = vmul.f32 %v615, %v561
        %v660 = vmul.f32 %v618, %v561
        %v661 = vmul.f32 %v621, %v561
        %v662 = vmul.f32 %v624, %v561
        %v663 = vmul.f32 %v627, %v561
        %v664 = vmul.f32 %v630, %v561
        %v665 = vmul.f32 %v633, %v561
        %v666 = vmul.f32 %v636, %v561
        %v667 = vmul.f32 %v639, %v561
        %v668 = vmul.f32 %v642, %v561
        %v669 = vmul.f32 %v645, %v561
        %v670 = vmul.f32 %v648, %v561
        %v671 = vmul.f32 %v651, %v561
        %v672 = vmul.f32 %v654, %v561
        %v673 = vmul.f32 %v657, %v561
        %v674 = vadd.f32 %v658, 1e-05
        %v675 = vadd.f32 %v659, 1e-05
        %v676 = vadd.f32 %v660, 1e-05
        %v677 = vadd.f32 %v661, 1e-05
        %v678 = vadd.f32 %v662, 1e-05
        %v679 = vadd.f32 %v663, 1e-05
        %v680 = vadd.f32 %v664, 1e-05
        %v681 = vadd.f32 %v665, 1e-05
        %v682 = vadd.f32 %v666, 1e-05
        %v683 = vadd.f32 %v667, 1e-05
        %v684 = vadd.f32 %v668, 1e-05
        %v685 = vadd.f32 %v669, 1e-05
        %v686 = vadd.f32 %v670, 1e-05
        %v687 = vadd.f32 %v671, 1e-05
        %v688 = vadd.f32 %v672, 1e-05
        %v689 = vadd.f32 %v673, 1e-05
        %v690 = vrsqrt.pop %v674
        %v691 = vrsqrt.pop %v675
        %v692 = vrsqrt.pop %v676
        %v693 = vrsqrt.pop %v677
        %v694 = vrsqrt.pop %v678
        %v695 = vrsqrt.pop %v679
        %v696 = vrsqrt.pop %v680
        %v697 = vrsqrt.pop %v681
        %v698 = vrsqrt.pop %v682
        %v699 = vrsqrt.pop %v683
        %v700 = vrsqrt.pop %v684
        %v701 = vrsqrt.pop %v685
        %v702 = vrsqrt.pop %v686
        %v703 = vrsqrt.pop %v687
        %v704 = vrsqrt.pop %v688
        %v705 = vrsqrt.pop %v689
        %v706 = vmul.f32 %v578, %v690
        %v707 = vmul.f32 %v579, %v691
        %v708 = vmul.f32 %v580, %v692
        %v709 = vmul.f32 %v581, %v693
        %v710 = vmul.f32 %v582, %v694
        %v711 = vmul.f32 %v583, %v695
        %v712 = vmul.f32 %v584, %v696
        %v713 = vmul.f32 %v585, %v697
        %v714 = vmul.f32 %v586, %v698
        %v715 = vmul.f32 %v587, %v699
        %v716 = vmul.f32 %v588, %v700
        %v717 = vmul.f32 %v589, %v701
        %v718 = vmul.f32 %v590, %v702
        %v719 = vmul.f32 %v591, %v703
        %v720 = vmul.f32 %v592, %v704
        %v721 = vmul.f32 %v593, %v705
        %v722 = vlaneseq
        %v723 = vshrl.u32 %v722, 7
        %v724 = vsub.s32 0, %v723
        %v725 = vrot.slane %v481, %v724
        %v726 = vmul.f32 %v706, %v725
        %v727 = vmul.f32 %v707, %v725
        %v728 = vmul.f32 %v708, %v725
        %v729 = vmul.f32 %v709, %v725
        %v730 = vmul.f32 %v710, %v725
        %v731 = vmul.f32 %v711, %v725
        %v732 = vmul.f32 %v712, %v725
        %v733 = vmul.f32 %v713, %v725
        %v734 = vmul.f32 %v714, %v725
        %v735 = vmul.f32 %v715, %v725
        %v736 = vmul.f32 %v716, %v725
        %v737 = vmul.f32 %v717, %v725
        %v738 = vmul.f32 %v718, %v725
        %v739 = vmul.f32 %v719, %v725
        %v740 = vmul.f32 %v720, %v725
        %v741 = vmul.f32 %v721, %v725
        %v742 = vlaneseq
        %v743 = vshrl.u32 %v742, 7
        %v744 = vsub.s32 1, %v743
        %v745 = vrot.slane %v481, %v744
        %v746 = vadd.f32 %v726, %v745
        %v747 = vadd.f32 %v727, %v745
        %v748 = vadd.f32 %v728, %v745
        %v749 = vadd.f32 %v729, %v745
        %v750 = vadd.f32 %v730, %v745
        %v751 = vadd.f32 %v731, %v745
        %v752 = vadd.f32 %v732, %v745
        %v753 = vadd.f32 %v733, %v745
        %v754 = vadd.f32 %v734, %v745
        %v755 = vadd.f32 %v735, %v745
        %v756 = vadd.f32 %v736, %v745
        %v757 = vadd.f32 %v737, %v745
        %v758 = vadd.f32 %v738, %v745
        %v759 = vadd.f32 %v739, %v745
        %v760 = vadd.f32 %v740, %v745
        %v761 = vadd.f32 %v741, %v745
        %v762 = vpack.c.bf16 %v747, %v746
        %v763 = vpack.c.bf16 %v749, %v748
        %v764 = vpack.c.bf16 %v751, %v750
        %v765 = vpack.c.bf16 %v753, %v752
        %v766 = vpack.c.bf16 %v755, %v754
        %v767 = vpack.c.bf16 %v757, %v756
        %v768 = vpack.c.bf16 %v759, %v758
        %v769 = vpack.c.bf16 %v761, %v760
        %v770 = vlaneseq
        %v771 = vshrl.u32 %v770, 7
        %v772 = vsub.s32 2, %v771
        %v773 = vrot.slane %v481, %v772
        %v778 = vunpack.c.l.b16 %v483
        %v779 = vunpack.c.l.b16 %v484
        %v780 = vunpack.c.l.b16 %v485
        %v781 = vunpack.c.l.b16 %v486
        %v782 = vpack.c.b16 %v779, %v778
        %v783 = vpack.c.b16 %v781, %v780
        %v787 = vsel %vm512, %v762, 0
        %v790 = vsel %vm512, %v763, 0
        %v793 = vsel %vm512, %v764, 0
        %v796 = vsel %vm512, %v765, 0
        %v799 = vsel %vm512, %v766, 0
        %v802 = vsel %vm512, %v767, 0
        %v805 = vsel %vm512, %v768, 0
        %v808 = vsel %vm512, %v769, 0
        %810 = vmatprep.subr.bf16.mxu0 0
        %811 = vmatpush1.bf16.msra.mxu0 0
        %812 = vmatprep.subr.bf16.mxu0 0
        %813 = vmatpush1.bf16.msra.mxu0 0
        %814 = vmatprep.subr.bf16.mxu0 0
        %815 = vmatpush1.bf16.msra.mxu0 0
        %816 = vmatprep.subr.bf16.mxu0 0
        %817 = vmatpush1.bf16.msra.mxu0 0
        %818 = vmatprep.subr.bf16.mxu0 0
        %819 = vmatpush1.bf16.msra.mxu0 0
        %820 = vmatprep.subr.bf16.mxu0 0
        %821 = vmatpush1.bf16.msra.mxu0 0
        %822 = vmatprep.subr.bf16.mxu0 0
        %823 = vmatpush1.bf16.msra.mxu0 %v783
        %824 = vmatprep.subr.bf16.mxu0 0
        %825 = vmatpush1.bf16.msra.mxu0 %v782
        %826 = vmatprep.subr.bf16.mxu0 0
        %827 = vmatpush2.bf16.msra.mxu0 0
        %828 = vmatprep.subr.bf16.mxu0 0
        %829 = vmatpush2.bf16.msra.mxu0 0
        %830 = vmatprep.subr.bf16.mxu0 0
        %831 = vmatpush2.bf16.msra.mxu0 0
        %832 = vmatprep.subr.bf16.mxu0 0
        %833 = vmatpush2.bf16.msra.mxu0 0
        %834 = vmatprep.subr.bf16.mxu0 0
        %835 = vmatpush2.bf16.msra.mxu0 0
        %836 = vmatprep.subr.bf16.mxu0 0
        %837 = vmatpush2.bf16.msra.mxu0 0
        %838 = vmatprep.subr.bf16.mxu0 0
        %839 = vmatpush2.bf16.msra.mxu0 0
        %840 = vmatprep.subr.bf16.mxu0 0
        %841 = vmatpush2.bf16.msra.mxu0 0
        %842 = vmatprep.mubr.bf16.mxu0 0
        %843 = vmatmul.mubr.bf16.gmra.mxu0 %v787
        %v844 = vpop.f32.mrf.mxu0
        %v845 = vadd.f32 %v773, %v844
        %v846 = vpop.f32.mrf.mxu0
        %v847 = vpop.f32.mrf.mxu0
        %v848 = vadd.f32 %v773, %v847
        %v849 = vpop.f32.mrf.mxu0
        %850 = vmatprep.mubr.bf16.mxu0 0
        %851 = vmatmul.mubr.bf16.gmra.mxu0 %v790
        %v852 = vpop.f32.mrf.mxu0
        %v853 = vadd.f32 %v773, %v852
        %v854 = vpop.f32.mrf.mxu0
        %v855 = vpop.f32.mrf.mxu0
        %v856 = vadd.f32 %v773, %v855
        %v857 = vpop.f32.mrf.mxu0
        %858 = vmatprep.mubr.bf16.mxu0 0
        %859 = vmatmul.mubr.bf16.gmra.mxu0 %v793
        %v860 = vpop.f32.mrf.mxu0
        %v861 = vadd.f32 %v773, %v860
        %v862 = vpop.f32.mrf.mxu0
        %v863 = vpop.f32.mrf.mxu0
        %v864 = vadd.f32 %v773, %v863
        %v865 = vpop.f32.mrf.mxu0
        %866 = vmatprep.mubr.bf16.mxu0 0
        %867 = vmatmul.mubr.bf16.gmra.mxu0 %v796
        %v868 = vpop.f32.mrf.mxu0
        %v869 = vadd.f32 %v773, %v868
        %v870 = vpop.f32.mrf.mxu0
        %v871 = vpop.f32.mrf.mxu0
        %v872 = vadd.f32 %v773, %v871
        %v873 = vpop.f32.mrf.mxu0
        %874 = vmatprep.mubr.bf16.mxu0 0
        %875 = vmatmul.mubr.bf16.gmra.mxu0 %v799
        %v876 = vpop.f32.mrf.mxu0
        %v877 = vadd.f32 %v773, %v876
        %v878 = vpop.f32.mrf.mxu0
        %v879 = vpop.f32.mrf.mxu0
        %v880 = vadd.f32 %v773, %v879
        %v881 = vpop.f32.mrf.mxu0
        %882 = vmatprep.mubr.bf16.mxu0 0
        %883 = vmatmul.mubr.bf16.gmra.mxu0 %v802
        %v884 = vpop.f32.mrf.mxu0
        %v885 = vadd.f32 %v773, %v884
        %v886 = vpop.f32.mrf.mxu0
        %v887 = vpop.f32.mrf.mxu0
        %v888 = vadd.f32 %v773, %v887
        %v889 = vpop.f32.mrf.mxu0
        %890 = vmatprep.mubr.bf16.mxu0 0
        %891 = vmatmul.mubr.bf16.gmra.mxu0 %v805
        %v892 = vpop.f32.mrf.mxu0
        %v893 = vadd.f32 %v773, %v892
        %v894 = vpop.f32.mrf.mxu0
        %v895 = vpop.f32.mrf.mxu0
        %v896 = vadd.f32 %v773, %v895
        %v897 = vpop.f32.mrf.mxu0
        %898 = vmatprep.mubr.bf16.mxu0 0
        %899 = vmatmul.mubr.bf16.gmra.mxu0 %v808
        %v900 = vpop.f32.mrf.mxu0
        %v901 = vadd.f32 %v773, %v900
        %v902 = vpop.f32.mrf.mxu0
        %v903 = vpop.f32.mrf.mxu0
        %v904 = vadd.f32 %v773, %v903
        %v905 = vpop.f32.mrf.mxu0
        %906 = vdwg.mxu0
        %v907 = vlaneseq
        %v908 = vshrl.u32 %v907, 7
        %v909 = vsub.s32 3, %v908
        %v910 = vrot.slane %v481, %v909
        %v915 = vunpack.c.l.b16 %v491
        %v916 = vunpack.c.l.b16 %v492
        %v917 = vunpack.c.l.b16 %v493
        %v918 = vunpack.c.l.b16 %v494
        %v919 = vpack.c.b16 %v916, %v915
        %v920 = vpack.c.b16 %v918, %v917
        %923 = vmatprep.subr.bf16.mxu0 0
        %924 = vmatpush1.bf16.msra.mxu0 0
        %925 = vmatprep.subr.bf16.mxu0 0
        %926 = vmatpush1.bf16.msra.mxu0 0
        %927 = vmatprep.subr.bf16.mxu0 0
        %928 = vmatpush1.bf16.msra.mxu0 0
        %929 = vmatprep.subr.bf16.mxu0 0
        %930 = vmatpush1.bf16.msra.mxu0 0
        %931 = vmatprep.subr.bf16.mxu0 0
        %932 = vmatpush1.bf16.msra.mxu0 0
        %933 = vmatprep.subr.bf16.mxu0 0
        %934 = vmatpush1.bf16.msra.mxu0 0
        %935 = vmatprep.subr.bf16.mxu0 0
        %936 = vmatpush1.bf16.msra.mxu0 %v920
        %937 = vmatprep.subr.bf16.mxu0 0
        %938 = vmatpush1.bf16.msra.mxu0 %v919
        %939 = vmatprep.subr.bf16.mxu0 0
        %940 = vmatpush2.bf16.msra.mxu0 0
        %941 = vmatprep.subr.bf16.mxu0 0
        %942 = vmatpush2.bf16.msra.mxu0 0
        %943 = vmatprep.subr.bf16.mxu0 0
        %944 = vmatpush2.bf16.msra.mxu0 0
        %945 = vmatprep.subr.bf16.mxu0 0
        %946 = vmatpush2.bf16.msra.mxu0 0
        %947 = vmatprep.subr.bf16.mxu0 0
        %948 = vmatpush2.bf16.msra.mxu0 0
        %949 = vmatprep.subr.bf16.mxu0 0
        %950 = vmatpush2.bf16.msra.mxu0 0
        %951 = vmatprep.subr.bf16.mxu0 0
        %952 = vmatpush2.bf16.msra.mxu0 0
        %953 = vmatprep.subr.bf16.mxu0 0
        %954 = vmatpush2.bf16.msra.mxu0 0
        %955 = vmatprep.mubr.bf16.mxu0 0
        %956 = vmatmul.mubr.bf16.gmra.mxu0 %v787
        %v957 = vpop.f32.mrf.mxu0
        %v958 = vadd.f32 %v910, %v957
        %v959 = vpop.f32.mrf.mxu0
        %v960 = vpop.f32.mrf.mxu0
        %v961 = vadd.f32 %v910, %v960
        %v962 = vpop.f32.mrf.mxu0
        %963 = vmatprep.mubr.bf16.mxu0 0
        %964 = vmatmul.mubr.bf16.gmra.mxu0 %v790
        %v965 = vpop.f32.mrf.mxu0
        %v966 = vadd.f32 %v910, %v965
        %v967 = vpop.f32.mrf.mxu0
        %v968 = vpop.f32.mrf.mxu0
        %v969 = vadd.f32 %v910, %v968
        %v970 = vpop.f32.mrf.mxu0
        %971 = vmatprep.mubr.bf16.mxu0 0
        %972 = vmatmul.mubr.bf16.gmra.mxu0 %v793
        %v973 = vpop.f32.mrf.mxu0
        %v974 = vadd.f32 %v910, %v973
        %v975 = vpop.f32.mrf.mxu0
        %v976 = vpop.f32.mrf.mxu0
        %v977 = vadd.f32 %v910, %v976
        %v978 = vpop.f32.mrf.mxu0
        %979 = vmatprep.mubr.bf16.mxu0 0
        %980 = vmatmul.mubr.bf16.gmra.mxu0 %v796
        %v981 = vpop.f32.mrf.mxu0
        %v982 = vadd.f32 %v910, %v981
        %v983 = vpop.f32.mrf.mxu0
        %v984 = vpop.f32.mrf.mxu0
        %v985 = vadd.f32 %v910, %v984
        %v986 = vpop.f32.mrf.mxu0
        %987 = vmatprep.mubr.bf16.mxu0 0
        %988 = vmatmul.mubr.bf16.gmra.mxu0 %v799
        %v989 = vpop.f32.mrf.mxu0
        %v990 = vadd.f32 %v910, %v989
        %v991 = vpop.f32.mrf.mxu0
        %v992 = vpop.f32.mrf.mxu0
        %v993 = vadd.f32 %v910, %v992
        %v994 = vpop.f32.mrf.mxu0
        %995 = vmatprep.mubr.bf16.mxu0 0
        %996 = vmatmul.mubr.bf16.gmra.mxu0 %v802
        %v997 = vpop.f32.mrf.mxu0
        %v998 = vadd.f32 %v910, %v997
        %v999 = vpop.f32.mrf.mxu0
        %v1000 = vpop.f32.mrf.mxu0
        %v1001 = vadd.f32 %v910, %v1000
        %v1002 = vpop.f32.mrf.mxu0
        %1003 = vmatprep.mubr.bf16.mxu0 0
        %1004 = vmatmul.mubr.bf16.gmra.mxu0 %v805
        %v1005 = vpop.f32.mrf.mxu0
        %v1006 = vadd.f32 %v910, %v1005
        %v1007 = vpop.f32.mrf.mxu0
        %v1008 = vpop.f32.mrf.mxu0
        %v1009 = vadd.f32 %v910, %v1008
        %v1010 = vpop.f32.mrf.mxu0
        %1011 = vmatprep.mubr.bf16.mxu0 0
        %1012 = vmatmul.mubr.bf16.gmra.mxu0 %v808
        %v1013 = vpop.f32.mrf.mxu0
        %v1014 = vadd.f32 %v910, %v1013
        %v1015 = vpop.f32.mrf.mxu0
        %v1016 = vpop.f32.mrf.mxu0
        %v1017 = vadd.f32 %v910, %v1016
        %v1018 = vpop.f32.mrf.mxu0
        %1019 = vdwg.mxu0
        %v1020 = vlaneseq
        %v1021 = vshrl.u32 %v1020, 7
        %v1022 = vsub.s32 4, %v1021
        %v1023 = vrot.slane %v481, %v1022
        %v1028 = vunpack.c.l.b16 %v499
        %v1029 = vunpack.c.l.b16 %v500
        %v1030 = vunpack.c.l.b16 %v501
        %v1031 = vunpack.c.l.b16 %v502
        %v1032 = vpack.c.b16 %v1029, %v1028
        %v1033 = vpack.c.b16 %v1031, %v1030
        %1036 = vmatprep.subr.bf16.mxu0 0
        %1037 = vmatpush1.bf16.msra.mxu0 0
        %1038 = vmatprep.subr.bf16.mxu0 0
        %1039 = vmatpush1.bf16.msra.mxu0 0
        %1040 = vmatprep.subr.bf16.mxu0 0
        %1041 = vmatpush1.bf16.msra.mxu0 0
        %1042 = vmatprep.subr.bf16.mxu0 0
        %1043 = vmatpush1.bf16.msra.mxu0 0
        %1044 = vmatprep.subr.bf16.mxu0 0
        %1045 = vmatpush1.bf16.msra.mxu0 0
        %1046 = vmatprep.subr.bf16.mxu0 0
        %1047 = vmatpush1.bf16.msra.mxu0 0
        %1048 = vmatprep.subr.bf16.mxu0 0
        %1049 = vmatpush1.bf16.msra.mxu0 %v1033
        %1050 = vmatprep.subr.bf16.mxu0 0
        %1051 = vmatpush1.bf16.msra.mxu0 %v1032
        %1052 = vmatprep.subr.bf16.mxu0 0
        %1053 = vmatpush2.bf16.msra.mxu0 0
        %1054 = vmatprep.subr.bf16.mxu0 0
        %1055 = vmatpush2.bf16.msra.mxu0 0
        %1056 = vmatprep.subr.bf16.mxu0 0
        %1057 = vmatpush2.bf16.msra.mxu0 0
        %1058 = vmatprep.subr.bf16.mxu0 0
        %1059 = vmatpush2.bf16.msra.mxu0 0
        %1060 = vmatprep.subr.bf16.mxu0 0
        %1061 = vmatpush2.bf16.msra.mxu0 0
        %1062 = vmatprep.subr.bf16.mxu0 0
        %1063 = vmatpush2.bf16.msra.mxu0 0
        %1064 = vmatprep.subr.bf16.mxu0 0
        %1065 = vmatpush2.bf16.msra.mxu0 0
        %1066 = vmatprep.subr.bf16.mxu0 0
        %1067 = vmatpush2.bf16.msra.mxu0 0
        %1068 = vmatprep.mubr.bf16.mxu0 0
        %1069 = vmatmul.mubr.bf16.gmra.mxu0 %v787
        %v1070 = vpop.f32.mrf.mxu0
        %v1071 = vadd.f32 %v1023, %v1070
        %v1072 = vpop.f32.mrf.mxu0
        %v1073 = vpop.f32.mrf.mxu0
        %v1074 = vadd.f32 %v1023, %v1073
        %v1075 = vpop.f32.mrf.mxu0
        %1076 = vmatprep.mubr.bf16.mxu0 0
        %1077 = vmatmul.mubr.bf16.gmra.mxu0 %v790
        %v1078 = vpop.f32.mrf.mxu0
        %v1079 = vadd.f32 %v1023, %v1078
        %v1080 = vpop.f32.mrf.mxu0
        %v1081 = vpop.f32.mrf.mxu0
        %v1082 = vadd.f32 %v1023, %v1081
        %v1083 = vpop.f32.mrf.mxu0
        %1084 = vmatprep.mubr.bf16.mxu0 0
        %1085 = vmatmul.mubr.bf16.gmra.mxu0 %v793
        %v1086 = vpop.f32.mrf.mxu0
        %v1087 = vadd.f32 %v1023, %v1086
        %v1088 = vpop.f32.mrf.mxu0
        %v1089 = vpop.f32.mrf.mxu0
        %v1090 = vadd.f32 %v1023, %v1089
        %v1091 = vpop.f32.mrf.mxu0
        %1092 = vmatprep.mubr.bf16.mxu0 0
        %1093 = vmatmul.mubr.bf16.gmra.mxu0 %v796
        %v1094 = vpop.f32.mrf.mxu0
        %v1095 = vadd.f32 %v1023, %v1094
        %v1096 = vpop.f32.mrf.mxu0
        %v1097 = vpop.f32.mrf.mxu0
        %v1098 = vadd.f32 %v1023, %v1097
        %v1099 = vpop.f32.mrf.mxu0
        %1100 = vmatprep.mubr.bf16.mxu0 0
        %1101 = vmatmul.mubr.bf16.gmra.mxu0 %v799
        %v1102 = vpop.f32.mrf.mxu0
        %v1103 = vadd.f32 %v1023, %v1102
        %v1104 = vpop.f32.mrf.mxu0
        %v1105 = vpop.f32.mrf.mxu0
        %v1106 = vadd.f32 %v1023, %v1105
        %v1107 = vpop.f32.mrf.mxu0
        %1108 = vmatprep.mubr.bf16.mxu0 0
        %1109 = vmatmul.mubr.bf16.gmra.mxu0 %v802
        %v1110 = vpop.f32.mrf.mxu0
        %v1111 = vadd.f32 %v1023, %v1110
        %v1112 = vpop.f32.mrf.mxu0
        %v1113 = vpop.f32.mrf.mxu0
        %v1114 = vadd.f32 %v1023, %v1113
        %v1115 = vpop.f32.mrf.mxu0
        %1116 = vmatprep.mubr.bf16.mxu0 0
        %1117 = vmatmul.mubr.bf16.gmra.mxu0 %v805
        %v1118 = vpop.f32.mrf.mxu0
        %v1119 = vadd.f32 %v1023, %v1118
        %v1120 = vpop.f32.mrf.mxu0
        %v1121 = vpop.f32.mrf.mxu0
        %v1122 = vadd.f32 %v1023, %v1121
        %v1123 = vpop.f32.mrf.mxu0
        %1124 = vmatprep.mubr.bf16.mxu0 0
        %1125 = vmatmul.mubr.bf16.gmra.mxu0 %v808
        %v1126 = vpop.f32.mrf.mxu0
        %v1127 = vadd.f32 %v1023, %v1126
        %v1128 = vpop.f32.mrf.mxu0
        %v1129 = vpop.f32.mrf.mxu0
        %v1130 = vadd.f32 %v1023, %v1129
        %v1131 = vpop.f32.mrf.mxu0
        %1132 = vdwg.mxu0
        %v1133 = vpack.c.bf16 %v845, %v845
        %v1134 = vpack.c.bf16 %v848, %v848
        %v1135 = vpack.c.bf16 %v853, %v853
        %v1136 = vpack.c.bf16 %v856, %v856
        %v1137 = vpack.c.bf16 %v861, %v861
        %v1138 = vpack.c.bf16 %v864, %v864
        %v1139 = vpack.c.bf16 %v869, %v869
        %v1140 = vpack.c.bf16 %v872, %v872
        %v1141 = vpack.c.bf16 %v877, %v877
        %v1142 = vpack.c.bf16 %v880, %v880
        %v1143 = vpack.c.bf16 %v885, %v885
        %v1144 = vpack.c.bf16 %v888, %v888
        %v1145 = vpack.c.bf16 %v893, %v893
        %v1146 = vpack.c.bf16 %v896, %v896
        %v1147 = vpack.c.bf16 %v901, %v901
        %v1148 = vpack.c.bf16 %v904, %v904
        %v1149 = vpack.c.bf16 %v958, %v958
        %v1150 = vpack.c.bf16 %v961, %v961
        %v1151 = vpack.c.bf16 %v966, %v966
        %v1152 = vpack.c.bf16 %v969, %v969
        %v1153 = vpack.c.bf16 %v974, %v974
        %v1154 = vpack.c.bf16 %v977, %v977
        %v1155 = vpack.c.bf16 %v982, %v982
        %v1156 = vpack.c.bf16 %v985, %v985
        %v1157 = vpack.c.bf16 %v990, %v990
        %v1158 = vpack.c.bf16 %v993, %v993
        %v1159 = vpack.c.bf16 %v998, %v998
        %v1160 = vpack.c.bf16 %v1001, %v1001
        %v1161 = vpack.c.bf16 %v1006, %v1006
        %v1162 = vpack.c.bf16 %v1009, %v1009
        %v1163 = vpack.c.bf16 %v1014, %v1014
        %v1164 = vpack.c.bf16 %v1017, %v1017
        %vm1165 = vcmask 130048
        %v1167 = vsel %vm1165, %v1133, 0
        %v1170 = vsel %vm1165, %v1149, 0
        %1172 = vmatprep.subr.bf16.mxu0 0
        %1173 = vmatpush1.bf16.xpose.msra.mxu0 0
        %1174 = vmatprep.subr.bf16.mxu0 0
        %1175 = vmatpush1.bf16.xpose.msra.mxu0 0
        %1176 = vmatprep.subr.bf16.mxu0 0
        %1177 = vmatpush1.bf16.xpose.msra.mxu0 0
        %1178 = vmatprep.subr.bf16.mxu0 0
        %1179 = vmatpush1.bf16.xpose.msra.mxu0 0
        %1180 = vmatprep.subr.bf16.mxu0 0
        %1181 = vmatpush1.bf16.xpose.msra.mxu0 0
        %1182 = vmatprep.subr.bf16.mxu0 0
        %1183 = vmatpush1.bf16.xpose.msra.mxu0 0
        %1184 = vmatprep.subr.bf16.mxu0 0
        %1185 = vmatpush1.bf16.xpose.msra.mxu0 0
        %1186 = vmatprep.subr.bf16.mxu0 0
        %1187 = vmatpush1.bf16.xpose.msra.mxu0 %v1170
        %1188 = vmatprep.subr.bf16.mxu0 0
        %1189 = vmatpush2.bf16.xpose.msra.mxu0 0
        %1190 = vmatprep.subr.bf16.mxu0 0
        %1191 = vmatpush2.bf16.xpose.msra.mxu0 0
        %1192 = vmatprep.subr.bf16.mxu0 0
        %1193 = vmatpush2.bf16.xpose.msra.mxu0 0
        %1194 = vmatprep.subr.bf16.mxu0 0
        %1195 = vmatpush2.bf16.xpose.msra.mxu0 0
        %1196 = vmatprep.subr.bf16.mxu0 0
        %1197 = vmatpush2.bf16.xpose.msra.mxu0 0
        %1198 = vmatprep.subr.bf16.mxu0 0
        %1199 = vmatpush2.bf16.xpose.msra.mxu0 0
        %1200 = vmatprep.subr.bf16.mxu0 0
        %1201 = vmatpush2.bf16.xpose.msra.mxu0 0
        %1202 = vmatprep.subr.bf16.mxu0 0
        %1203 = vmatpush2.bf16.xpose.msra.mxu0 0
        %1204 = vmatprep.mubr.bf16.mxu0 0
        %1205 = vmatmul.mubr.bf16.gmra.mxu0 %v1167
        %v1206 = vpop.f32.mrf.mxu0
        %v1207 = vadd.f32 0.0, %v1206
        %v1208 = vpop.f32.mrf.mxu0
        %v1209 = vpop.f32.mrf.mxu0
        %v1210 = vpop.f32.mrf.mxu0
        %1211 = vdwg.mxu0
        %v1213 = vsel %vm1165, %v1134, 0
        %v1216 = vsel %vm1165, %v1150, 0
        %1218 = vmatprep.subr.bf16.mxu0 0
        %1219 = vmatpush1.bf16.xpose.msra.mxu0 0
        %1220 = vmatprep.subr.bf16.mxu0 0
        %1221 = vmatpush1.bf16.xpose.msra.mxu0 0
        %1222 = vmatprep.subr.bf16.mxu0 0
        %1223 = vmatpush1.bf16.xpose.msra.mxu0 0
        %1224 = vmatprep.subr.bf16.mxu0 0
        %1225 = vmatpush1.bf16.xpose.msra.mxu0 0
        %1226 = vmatprep.subr.bf16.mxu0 0
        %1227 = vmatpush1.bf16.xpose.msra.mxu0 0
        %1228 = vmatprep.subr.bf16.mxu0 0
        %1229 = vmatpush1.bf16.xpose.msra.mxu0 0
        %1230 = vmatprep.subr.bf16.mxu0 0
        %1231 = vmatpush1.bf16.xpose.msra.mxu0 0
        %1232 = vmatprep.subr.bf16.mxu0 0
        %1233 = vmatpush1.bf16.xpose.msra.mxu0 %v1216
        %1234 = vmatprep.subr.bf16.mxu0 0
        %1235 = vmatpush2.bf16.xpose.msra.mxu0 0
        %1236 = vmatprep.subr.bf16.mxu0 0
        %1237 = vmatpush2.bf16.xpose.msra.mxu0 0
        %1238 = vmatprep.subr.bf16.mxu0 0
        %1239 = vmatpush2.bf16.xpose.msra.mxu0 0
        %1240 = vmatprep.subr.bf16.mxu0 0
        %1241 = vmatpush2.bf16.xpose.msra.mxu0 0
        %1242 = vmatprep.subr.bf16.mxu0 0
        %1243 = vmatpush2.bf16.xpose.msra.mxu0 0
        %1244 = vmatprep.subr.bf16.mxu0 0
        %1245 = vmatpush2.bf16.xpose.msra.mxu0 0
        %1246 = vmatprep.subr.bf16.mxu0 0
        %1247 = vmatpush2.bf16.xpose.msra.mxu0 0
        %1248 = vmatprep.subr.bf16.mxu0 0
        %1249 = vmatpush2.bf16.xpose.msra.mxu0 0
        %1250 = vmatprep.mubr.bf16.mxu0 0
        %1251 = vmatmul.mubr.bf16.gmra.mxu0 %v1213
        %v1252 = vpop.f32.mrf.mxu0
        %v1253 = vadd.f32 0.0, %v1252
        %v1254 = vpop.f32.mrf.mxu0
        %v1255 = vpop.f32.mrf.mxu0
        %v1256 = vpop.f32.mrf.mxu0
        %1257 = vdwg.mxu0
        %v1259 = vsel %vm1165, %v1135, 0
        %v1262 = vsel %vm1165, %v1151, 0
        %1264 = vmatprep.subr.bf16.mxu0 0
        %1265 = vmatpush1.bf16.xpose.msra.mxu0 0
        %1266 = vmatprep.subr.bf16.mxu0 0
        %1267 = vmatpush1.bf16.xpose.msra.mxu0 0
        %1268 = vmatprep.subr.bf16.mxu0 0
        %1269 = vmatpush1.bf16.xpose.msra.mxu0 0
        %1270 = vmatprep.subr.bf16.mxu0 0
        %1271 = vmatpush1.bf16.xpose.msra.mxu0 0
        %1272 = vmatprep.subr.bf16.mxu0 0
        %1273 = vmatpush1.bf16.xpose.msra.mxu0 0
        %1274 = vmatprep.subr.bf16.mxu0 0
        %1275 = vmatpush1.bf16.xpose.msra.mxu0 0
        %1276 = vmatprep.subr.bf16.mxu0 0
        %1277 = vmatpush1.bf16.xpose.msra.mxu0 0
        %1278 = vmatprep.subr.bf16.mxu0 0
        %1279 = vmatpush1.bf16.xpose.msra.mxu0 %v1262
        %1280 = vmatprep.subr.bf16.mxu0 0
        %1281 = vmatpush2.bf16.xpose.msra.mxu0 0
        %1282 = vmatprep.subr.bf16.mxu0 0
        %1283 = vmatpush2.bf16.xpose.msra.mxu0 0
        %1284 = vmatprep.subr.bf16.mxu0 0
        %1285 = vmatpush2.bf16.xpose.msra.mxu0 0
        %1286 = vmatprep.subr.bf16.mxu0 0
        %1287 = vmatpush2.bf16.xpose.msra.mxu0 0
        %1288 = vmatprep.subr.bf16.mxu0 0
        %1289 = vmatpush2.bf16.xpose.msra.mxu0 0
        %1290 = vmatprep.subr.bf16.mxu0 0
        %1291 = vmatpush2.bf16.xpose.msra.mxu0 0
        %1292 = vmatprep.subr.bf16.mxu0 0
        %1293 = vmatpush2.bf16.xpose.msra.mxu0 0
        %1294 = vmatprep.subr.bf16.mxu0 0
        %1295 = vmatpush2.bf16.xpose.msra.mxu0 0
        %1296 = vmatprep.mubr.bf16.mxu0 0
        %1297 = vmatmul.mubr.bf16.gmra.mxu0 %v1259
        %v1298 = vpop.f32.mrf.mxu0
        %v1299 = vadd.f32 0.0, %v1298
        %v1300 = vpop.f32.mrf.mxu0
        %v1301 = vpop.f32.mrf.mxu0
        %v1302 = vpop.f32.mrf.mxu0
        %1303 = vdwg.mxu0
        %v1305 = vsel %vm1165, %v1136, 0
        %v1308 = vsel %vm1165, %v1152, 0
        %1310 = vmatprep.subr.bf16.mxu0 0
        %1311 = vmatpush1.bf16.xpose.msra.mxu0 0
        %1312 = vmatprep.subr.bf16.mxu0 0
        %1313 = vmatpush1.bf16.xpose.msra.mxu0 0
        %1314 = vmatprep.subr.bf16.mxu0 0
        %1315 = vmatpush1.bf16.xpose.msra.mxu0 0
        %1316 = vmatprep.subr.bf16.mxu0 0
        %1317 = vmatpush1.bf16.xpose.msra.mxu0 0
        %1318 = vmatprep.subr.bf16.mxu0 0
        %1319 = vmatpush1.bf16.xpose.msra.mxu0 0
        %1320 = vmatprep.subr.bf16.mxu0 0
        %1321 = vmatpush1.bf16.xpose.msra.mxu0 0
        %1322 = vmatprep.subr.bf16.mxu0 0
        %1323 = vmatpush1.bf16.xpose.msra.mxu0 0
        %1324 = vmatprep.subr.bf16.mxu0 0
        %1325 = vmatpush1.bf16.xpose.msra.mxu0 %v1308
        %1326 = vmatprep.subr.bf16.mxu0 0
        %1327 = vmatpush2.bf16.xpose.msra.mxu0 0
        %1328 = vmatprep.subr.bf16.mxu0 0
        %1329 = vmatpush2.bf16.xpose.msra.mxu0 0
        %1330 = vmatprep.subr.bf16.mxu0 0
        %1331 = vmatpush2.bf16.xpose.msra.mxu0 0
        %1332 = vmatprep.subr.bf16.mxu0 0
        %1333 = vmatpush2.bf16.xpose.msra.mxu0 0
        %1334 = vmatprep.subr.bf16.mxu0 0
        %1335 = vmatpush2.bf16.xpose.msra.mxu0 0
        %1336 = vmatprep.subr.bf16.mxu0 0
        %1337 = vmatpush2.bf16.xpose.msra.mxu0 0
        %1338 = vmatprep.subr.bf16.mxu0 0
        %1339 = vmatpush2.bf16.xpose.msra.mxu0 0
        %1340 = vmatprep.subr.bf16.mxu0 0
        %1341 = vmatpush2.bf16.xpose.msra.mxu0 0
        %1342 = vmatprep.mubr.bf16.mxu0 0
        %1343 = vmatmul.mubr.bf16.gmra.mxu0 %v1305
        %v1344 = vpop.f32.mrf.mxu0
        %v1345 = vadd.f32 0.0, %v1344
        %v1346 = vpop.f32.mrf.mxu0
        %v1347 = vpop.f32.mrf.mxu0
        %v1348 = vpop.f32.mrf.mxu0
        %1349 = vdwg.mxu0
        %v1351 = vsel %vm1165, %v1137, 0
        %v1354 = vsel %vm1165, %v1153, 0
        %1356 = vmatprep.subr.bf16.mxu0 0
        %1357 = vmatpush1.bf16.xpose.msra.mxu0 0
        %1358 = vmatprep.subr.bf16.mxu0 0
        %1359 = vmatpush1.bf16.xpose.msra.mxu0 0
        %1360 = vmatprep.subr.bf16.mxu0 0
        %1361 = vmatpush1.bf16.xpose.msra.mxu0 0
        %1362 = vmatprep.subr.bf16.mxu0 0
        %1363 = vmatpush1.bf16.xpose.msra.mxu0 0
        %1364 = vmatprep.subr.bf16.mxu0 0
        %1365 = vmatpush1.bf16.xpose.msra.mxu0 0
        %1366 = vmatprep.subr.bf16.mxu0 0
        %1367 = vmatpush1.bf16.xpose.msra.mxu0 0
        %1368 = vmatprep.subr.bf16.mxu0 0
        %1369 = vmatpush1.bf16.xpose.msra.mxu0 0
        %1370 = vmatprep.subr.bf16.mxu0 0
        %1371 = vmatpush1.bf16.xpose.msra.mxu0 %v1354
        %1372 = vmatprep.subr.bf16.mxu0 0
        %1373 = vmatpush2.bf16.xpose.msra.mxu0 0
        %1374 = vmatprep.subr.bf16.mxu0 0
        %1375 = vmatpush2.bf16.xpose.msra.mxu0 0
        %1376 = vmatprep.subr.bf16.mxu0 0
        %1377 = vmatpush2.bf16.xpose.msra.mxu0 0
        %1378 = vmatprep.subr.bf16.mxu0 0
        %1379 = vmatpush2.bf16.xpose.msra.mxu0 0
        %1380 = vmatprep.subr.bf16.mxu0 0
        %1381 = vmatpush2.bf16.xpose.msra.mxu0 0
        %1382 = vmatprep.subr.bf16.mxu0 0
        %1383 = vmatpush2.bf16.xpose.msra.mxu0 0
        %1384 = vmatprep.subr.bf16.mxu0 0
        %1385 = vmatpush2.bf16.xpose.msra.mxu0 0
        %1386 = vmatprep.subr.bf16.mxu0 0
        %1387 = vmatpush2.bf16.xpose.msra.mxu0 0
        %1388 = vmatprep.mubr.bf16.mxu0 0
        %1389 = vmatmul.mubr.bf16.gmra.mxu0 %v1351
        %v1390 = vpop.f32.mrf.mxu0
        %v1391 = vadd.f32 0.0, %v1390
        %v1392 = vpop.f32.mrf.mxu0
        %v1393 = vpop.f32.mrf.mxu0
        %v1394 = vpop.f32.mrf.mxu0
        %1395 = vdwg.mxu0
        %v1397 = vsel %vm1165, %v1138, 0
        %v1400 = vsel %vm1165, %v1154, 0
        %1402 = vmatprep.subr.bf16.mxu0 0
        %1403 = vmatpush1.bf16.xpose.msra.mxu0 0
        %1404 = vmatprep.subr.bf16.mxu0 0
        %1405 = vmatpush1.bf16.xpose.msra.mxu0 0
        %1406 = vmatprep.subr.bf16.mxu0 0
        %1407 = vmatpush1.bf16.xpose.msra.mxu0 0
        %1408 = vmatprep.subr.bf16.mxu0 0
        %1409 = vmatpush1.bf16.xpose.msra.mxu0 0
        %1410 = vmatprep.subr.bf16.mxu0 0
        %1411 = vmatpush1.bf16.xpose.msra.mxu0 0
        %1412 = vmatprep.subr.bf16.mxu0 0
        %1413 = vmatpush1.bf16.xpose.msra.mxu0 0
        %1414 = vmatprep.subr.bf16.mxu0 0
        %1415 = vmatpush1.bf16.xpose.msra.mxu0 0
        %1416 = vmatprep.subr.bf16.mxu0 0
        %1417 = vmatpush1.bf16.xpose.msra.mxu0 %v1400
        %1418 = vmatprep.subr.bf16.mxu0 0
        %1419 = vmatpush2.bf16.xpose.msra.mxu0 0
        %1420 = vmatprep.subr.bf16.mxu0 0
        %1421 = vmatpush2.bf16.xpose.msra.mxu0 0
        %1422 = vmatprep.subr.bf16.mxu0 0
        %1423 = vmatpush2.bf16.xpose.msra.mxu0 0
        %1424 = vmatprep.subr.bf16.mxu0 0
        %1425 = vmatpush2.bf16.xpose.msra.mxu0 0
        %1426 = vmatprep.subr.bf16.mxu0 0
        %1427 = vmatpush2.bf16.xpose.msra.mxu0 0
        %1428 = vmatprep.subr.bf16.mxu0 0
        %1429 = vmatpush2.bf16.xpose.msra.mxu0 0
        %1430 = vmatprep.subr.bf16.mxu0 0
        %1431 = vmatpush2.bf16.xpose.msra.mxu0 0
        %1432 = vmatprep.subr.bf16.mxu0 0
        %1433 = vmatpush2.bf16.xpose.msra.mxu0 0
        %1434 = vmatprep.mubr.bf16.mxu0 0
        %1435 = vmatmul.mubr.bf16.gmra.mxu0 %v1397
        %v1436 = vpop.f32.mrf.mxu0
        %v1437 = vadd.f32 0.0, %v1436
        %v1438 = vpop.f32.mrf.mxu0
        %v1439 = vpop.f32.mrf.mxu0
        %v1440 = vpop.f32.mrf.mxu0
        %1441 = vdwg.mxu0
        %v1443 = vsel %vm1165, %v1139, 0
        %v1446 = vsel %vm1165, %v1155, 0
        %1448 = vmatprep.subr.bf16.mxu0 0
        %1449 = vmatpush1.bf16.xpose.msra.mxu0 0
        %1450 = vmatprep.subr.bf16.mxu0 0
        %1451 = vmatpush1.bf16.xpose.msra.mxu0 0
        %1452 = vmatprep.subr.bf16.mxu0 0
        %1453 = vmatpush1.bf16.xpose.msra.mxu0 0
        %1454 = vmatprep.subr.bf16.mxu0 0
        %1455 = vmatpush1.bf16.xpose.msra.mxu0 0
        %1456 = vmatprep.subr.bf16.mxu0 0
        %1457 = vmatpush1.bf16.xpose.msra.mxu0 0
        %1458 = vmatprep.subr.bf16.mxu0 0
        %1459 = vmatpush1.bf16.xpose.msra.mxu0 0
        %1460 = vmatprep.subr.bf16.mxu0 0
        %1461 = vmatpush1.bf16.xpose.msra.mxu0 0
        %1462 = vmatprep.subr.bf16.mxu0 0
        %1463 = vmatpush1.bf16.xpose.msra.mxu0 %v1446
        %1464 = vmatprep.subr.bf16.mxu0 0
        %1465 = vmatpush2.bf16.xpose.msra.mxu0 0
        %1466 = vmatprep.subr.bf16.mxu0 0
        %1467 = vmatpush2.bf16.xpose.msra.mxu0 0
        %1468 = vmatprep.subr.bf16.mxu0 0
        %1469 = vmatpush2.bf16.xpose.msra.mxu0 0
        %1470 = vmatprep.subr.bf16.mxu0 0
        %1471 = vmatpush2.bf16.xpose.msra.mxu0 0
        %1472 = vmatprep.subr.bf16.mxu0 0
        %1473 = vmatpush2.bf16.xpose.msra.mxu0 0
        %1474 = vmatprep.subr.bf16.mxu0 0
        %1475 = vmatpush2.bf16.xpose.msra.mxu0 0
        %1476 = vmatprep.subr.bf16.mxu0 0
        %1477 = vmatpush2.bf16.xpose.msra.mxu0 0
        %1478 = vmatprep.subr.bf16.mxu0 0
        %1479 = vmatpush2.bf16.xpose.msra.mxu0 0
        %1480 = vmatprep.mubr.bf16.mxu0 0
        %1481 = vmatmul.mubr.bf16.gmra.mxu0 %v1443
        %v1482 = vpop.f32.mrf.mxu0
        %v1483 = vadd.f32 0.0, %v1482
        %v1484 = vpop.f32.mrf.mxu0
        %v1485 = vpop.f32.mrf.mxu0
        %v1486 = vpop.f32.mrf.mxu0
        %1487 = vdwg.mxu0
        %v1489 = vsel %vm1165, %v1140, 0
        %v1492 = vsel %vm1165, %v1156, 0
        %1494 = vmatprep.subr.bf16.mxu0 0
        %1495 = vmatpush1.bf16.xpose.msra.mxu0 0
        %1496 = vmatprep.subr.bf16.mxu0 0
        %1497 = vmatpush1.bf16.xpose.msra.mxu0 0
        %1498 = vmatprep.subr.bf16.mxu0 0
        %1499 = vmatpush1.bf16.xpose.msra.mxu0 0
        %1500 = vmatprep.subr.bf16.mxu0 0
        %1501 = vmatpush1.bf16.xpose.msra.mxu0 0
        %1502 = vmatprep.subr.bf16.mxu0 0
        %1503 = vmatpush1.bf16.xpose.msra.mxu0 0
        %1504 = vmatprep.subr.bf16.mxu0 0
        %1505 = vmatpush1.bf16.xpose.msra.mxu0 0
        %1506 = vmatprep.subr.bf16.mxu0 0
        %1507 = vmatpush1.bf16.xpose.msra.mxu0 0
        %1508 = vmatprep.subr.bf16.mxu0 0
        %1509 = vmatpush1.bf16.xpose.msra.mxu0 %v1492
        %1510 = vmatprep.subr.bf16.mxu0 0
        %1511 = vmatpush2.bf16.xpose.msra.mxu0 0
        %1512 = vmatprep.subr.bf16.mxu0 0
        %1513 = vmatpush2.bf16.xpose.msra.mxu0 0
        %1514 = vmatprep.subr.bf16.mxu0 0
        %1515 = vmatpush2.bf16.xpose.msra.mxu0 0
        %1516 = vmatprep.subr.bf16.mxu0 0
        %1517 = vmatpush2.bf16.xpose.msra.mxu0 0
        %1518 = vmatprep.subr.bf16.mxu0 0
        %1519 = vmatpush2.bf16.xpose.msra.mxu0 0
        %1520 = vmatprep.subr.bf16.mxu0 0
        %1521 = vmatpush2.bf16.xpose.msra.mxu0 0
        %1522 = vmatprep.subr.bf16.mxu0 0
        %1523 = vmatpush2.bf16.xpose.msra.mxu0 0
        %1524 = vmatprep.subr.bf16.mxu0 0
        %1525 = vmatpush2.bf16.xpose.msra.mxu0 0
        %1526 = vmatprep.mubr.bf16.mxu0 0
        %1527 = vmatmul.mubr.bf16.gmra.mxu0 %v1489
        %v1528 = vpop.f32.mrf.mxu0
        %v1529 = vadd.f32 0.0, %v1528
        %v1530 = vpop.f32.mrf.mxu0
        %v1531 = vpop.f32.mrf.mxu0
        %v1532 = vpop.f32.mrf.mxu0
        %1533 = vdwg.mxu0
        %v1535 = vsel %vm1165, %v1141, 0
        %v1538 = vsel %vm1165, %v1157, 0
        %1540 = vmatprep.subr.bf16.mxu0 0
        %1541 = vmatpush1.bf16.xpose.msra.mxu0 0
        %1542 = vmatprep.subr.bf16.mxu0 0
        %1543 = vmatpush1.bf16.xpose.msra.mxu0 0
        %1544 = vmatprep.subr.bf16.mxu0 0
        %1545 = vmatpush1.bf16.xpose.msra.mxu0 0
        %1546 = vmatprep.subr.bf16.mxu0 0
        %1547 = vmatpush1.bf16.xpose.msra.mxu0 0
        %1548 = vmatprep.subr.bf16.mxu0 0
        %1549 = vmatpush1.bf16.xpose.msra.mxu0 0
        %1550 = vmatprep.subr.bf16.mxu0 0
        %1551 = vmatpush1.bf16.xpose.msra.mxu0 0
        %1552 = vmatprep.subr.bf16.mxu0 0
        %1553 = vmatpush1.bf16.xpose.msra.mxu0 0
        %1554 = vmatprep.subr.bf16.mxu0 0
        %1555 = vmatpush1.bf16.xpose.msra.mxu0 %v1538
        %1556 = vmatprep.subr.bf16.mxu0 0
        %1557 = vmatpush2.bf16.xpose.msra.mxu0 0
        %1558 = vmatprep.subr.bf16.mxu0 0
        %1559 = vmatpush2.bf16.xpose.msra.mxu0 0
        %1560 = vmatprep.subr.bf16.mxu0 0
        %1561 = vmatpush2.bf16.xpose.msra.mxu0 0
        %1562 = vmatprep.subr.bf16.mxu0 0
        %1563 = vmatpush2.bf16.xpose.msra.mxu0 0
        %1564 = vmatprep.subr.bf16.mxu0 0
        %1565 = vmatpush2.bf16.xpose.msra.mxu0 0
        %1566 = vmatprep.subr.bf16.mxu0 0
        %1567 = vmatpush2.bf16.xpose.msra.mxu0 0
        %1568 = vmatprep.subr.bf16.mxu0 0
        %1569 = vmatpush2.bf16.xpose.msra.mxu0 0
        %1570 = vmatprep.subr.bf16.mxu0 0
        %1571 = vmatpush2.bf16.xpose.msra.mxu0 0
        %1572 = vmatprep.mubr.bf16.mxu0 0
        %1573 = vmatmul.mubr.bf16.gmra.mxu0 %v1535
        %v1574 = vpop.f32.mrf.mxu0
        %v1575 = vadd.f32 0.0, %v1574
        %v1576 = vpop.f32.mrf.mxu0
        %v1577 = vpop.f32.mrf.mxu0
        %v1578 = vpop.f32.mrf.mxu0
        %1579 = vdwg.mxu0
        %v1581 = vsel %vm1165, %v1142, 0
        %v1584 = vsel %vm1165, %v1158, 0
        %1586 = vmatprep.subr.bf16.mxu0 0
        %1587 = vmatpush1.bf16.xpose.msra.mxu0 0
        %1588 = vmatprep.subr.bf16.mxu0 0
        %1589 = vmatpush1.bf16.xpose.msra.mxu0 0
        %1590 = vmatprep.subr.bf16.mxu0 0
        %1591 = vmatpush1.bf16.xpose.msra.mxu0 0
        %1592 = vmatprep.subr.bf16.mxu0 0
        %1593 = vmatpush1.bf16.xpose.msra.mxu0 0
        %1594 = vmatprep.subr.bf16.mxu0 0
        %1595 = vmatpush1.bf16.xpose.msra.mxu0 0
        %1596 = vmatprep.subr.bf16.mxu0 0
        %1597 = vmatpush1.bf16.xpose.msra.mxu0 0
        %1598 = vmatprep.subr.bf16.mxu0 0
        %1599 = vmatpush1.bf16.xpose.msra.mxu0 0
        %1600 = vmatprep.subr.bf16.mxu0 0
        %1601 = vmatpush1.bf16.xpose.msra.mxu0 %v1584
        %1602 = vmatprep.subr.bf16.mxu0 0
        %1603 = vmatpush2.bf16.xpose.msra.mxu0 0
        %1604 = vmatprep.subr.bf16.mxu0 0
        %1605 = vmatpush2.bf16.xpose.msra.mxu0 0
        %1606 = vmatprep.subr.bf16.mxu0 0
        %1607 = vmatpush2.bf16.xpose.msra.mxu0 0
        %1608 = vmatprep.subr.bf16.mxu0 0
        %1609 = vmatpush2.bf16.xpose.msra.mxu0 0
        %1610 = vmatprep.subr.bf16.mxu0 0
        %1611 = vmatpush2.bf16.xpose.msra.mxu0 0
        %1612 = vmatprep.subr.bf16.mxu0 0
        %1613 = vmatpush2.bf16.xpose.msra.mxu0 0
        %1614 = vmatprep.subr.bf16.mxu0 0
        %1615 = vmatpush2.bf16.xpose.msra.mxu0 0
        %1616 = vmatprep.subr.bf16.mxu0 0
        %1617 = vmatpush2.bf16.xpose.msra.mxu0 0
        %1618 = vmatprep.mubr.bf16.mxu0 0
        %1619 = vmatmul.mubr.bf16.gmra.mxu0 %v1581
        %v1620 = vpop.f32.mrf.mxu0
        %v1621 = vadd.f32 0.0, %v1620
        %v1622 = vpop.f32.mrf.mxu0
        %v1623 = vpop.f32.mrf.mxu0
        %v1624 = vpop.f32.mrf.mxu0
        %1625 = vdwg.mxu0
        %v1627 = vsel %vm1165, %v1143, 0
        %v1630 = vsel %vm1165, %v1159, 0
        %1632 = vmatprep.subr.bf16.mxu0 0
        %1633 = vmatpush1.bf16.xpose.msra.mxu0 0
        %1634 = vmatprep.subr.bf16.mxu0 0
        %1635 = vmatpush1.bf16.xpose.msra.mxu0 0
        %1636 = vmatprep.subr.bf16.mxu0 0
        %1637 = vmatpush1.bf16.xpose.msra.mxu0 0
        %1638 = vmatprep.subr.bf16.mxu0 0
        %1639 = vmatpush1.bf16.xpose.msra.mxu0 0
        %1640 = vmatprep.subr.bf16.mxu0 0
        %1641 = vmatpush1.bf16.xpose.msra.mxu0 0
        %1642 = vmatprep.subr.bf16.mxu0 0
        %1643 = vmatpush1.bf16.xpose.msra.mxu0 0
        %1644 = vmatprep.subr.bf16.mxu0 0
        %1645 = vmatpush1.bf16.xpose.msra.mxu0 0
        %1646 = vmatprep.subr.bf16.mxu0 0
        %1647 = vmatpush1.bf16.xpose.msra.mxu0 %v1630
        %1648 = vmatprep.subr.bf16.mxu0 0
        %1649 = vmatpush2.bf16.xpose.msra.mxu0 0
        %1650 = vmatprep.subr.bf16.mxu0 0
        %1651 = vmatpush2.bf16.xpose.msra.mxu0 0
        %1652 = vmatprep.subr.bf16.mxu0 0
        %1653 = vmatpush2.bf16.xpose.msra.mxu0 0
        %1654 = vmatprep.subr.bf16.mxu0 0
        %1655 = vmatpush2.bf16.xpose.msra.mxu0 0
        %1656 = vmatprep.subr.bf16.mxu0 0
        %1657 = vmatpush2.bf16.xpose.msra.mxu0 0
        %1658 = vmatprep.subr.bf16.mxu0 0
        %1659 = vmatpush2.bf16.xpose.msra.mxu0 0
        %1660 = vmatprep.subr.bf16.mxu0 0
        %1661 = vmatpush2.bf16.xpose.msra.mxu0 0
        %1662 = vmatprep.subr.bf16.mxu0 0
        %1663 = vmatpush2.bf16.xpose.msra.mxu0 0
        %1664 = vmatprep.mubr.bf16.mxu0 0
        %1665 = vmatmul.mubr.bf16.gmra.mxu0 %v1627
        %v1666 = vpop.f32.mrf.mxu0
        %v1667 = vadd.f32 0.0, %v1666
        %v1668 = vpop.f32.mrf.mxu0
        %v1669 = vpop.f32.mrf.mxu0
        %v1670 = vpop.f32.mrf.mxu0
        %1671 = vdwg.mxu0
        %v1673 = vsel %vm1165, %v1144, 0
        %v1676 = vsel %vm1165, %v1160, 0
        %1678 = vmatprep.subr.bf16.mxu0 0
        %1679 = vmatpush1.bf16.xpose.msra.mxu0 0
        %1680 = vmatprep.subr.bf16.mxu0 0
        %1681 = vmatpush1.bf16.xpose.msra.mxu0 0
        %1682 = vmatprep.subr.bf16.mxu0 0
        %1683 = vmatpush1.bf16.xpose.msra.mxu0 0
        %1684 = vmatprep.subr.bf16.mxu0 0
        %1685 = vmatpush1.bf16.xpose.msra.mxu0 0
        %1686 = vmatprep.subr.bf16.mxu0 0
        %1687 = vmatpush1.bf16.xpose.msra.mxu0 0
        %1688 = vmatprep.subr.bf16.mxu0 0
        %1689 = vmatpush1.bf16.xpose.msra.mxu0 0
        %1690 = vmatprep.subr.bf16.mxu0 0
        %1691 = vmatpush1.bf16.xpose.msra.mxu0 0
        %1692 = vmatprep.subr.bf16.mxu0 0
        %1693 = vmatpush1.bf16.xpose.msra.mxu0 %v1676
        %1694 = vmatprep.subr.bf16.mxu0 0
        %1695 = vmatpush2.bf16.xpose.msra.mxu0 0
        %1696 = vmatprep.subr.bf16.mxu0 0
        %1697 = vmatpush2.bf16.xpose.msra.mxu0 0
        %1698 = vmatprep.subr.bf16.mxu0 0
        %1699 = vmatpush2.bf16.xpose.msra.mxu0 0
        %1700 = vmatprep.subr.bf16.mxu0 0
        %1701 = vmatpush2.bf16.xpose.msra.mxu0 0
        %1702 = vmatprep.subr.bf16.mxu0 0
        %1703 = vmatpush2.bf16.xpose.msra.mxu0 0
        %1704 = vmatprep.subr.bf16.mxu0 0
        %1705 = vmatpush2.bf16.xpose.msra.mxu0 0
        %1706 = vmatprep.subr.bf16.mxu0 0
        %1707 = vmatpush2.bf16.xpose.msra.mxu0 0
        %1708 = vmatprep.subr.bf16.mxu0 0
        %1709 = vmatpush2.bf16.xpose.msra.mxu0 0
        %1710 = vmatprep.mubr.bf16.mxu0 0
        %1711 = vmatmul.mubr.bf16.gmra.mxu0 %v1673
        %v1712 = vpop.f32.mrf.mxu0
        %v1713 = vadd.f32 0.0, %v1712
        %v1714 = vpop.f32.mrf.mxu0
        %v1715 = vpop.f32.mrf.mxu0
        %v1716 = vpop.f32.mrf.mxu0
        %1717 = vdwg.mxu0
        %v1719 = vsel %vm1165, %v1145, 0
        %v1722 = vsel %vm1165, %v1161, 0
        %1724 = vmatprep.subr.bf16.mxu0 0
        %1725 = vmatpush1.bf16.xpose.msra.mxu0 0
        %1726 = vmatprep.subr.bf16.mxu0 0
        %1727 = vmatpush1.bf16.xpose.msra.mxu0 0
        %1728 = vmatprep.subr.bf16.mxu0 0
        %1729 = vmatpush1.bf16.xpose.msra.mxu0 0
        %1730 = vmatprep.subr.bf16.mxu0 0
        %1731 = vmatpush1.bf16.xpose.msra.mxu0 0
        %1732 = vmatprep.subr.bf16.mxu0 0
        %1733 = vmatpush1.bf16.xpose.msra.mxu0 0
        %1734 = vmatprep.subr.bf16.mxu0 0
        %1735 = vmatpush1.bf16.xpose.msra.mxu0 0
        %1736 = vmatprep.subr.bf16.mxu0 0
        %1737 = vmatpush1.bf16.xpose.msra.mxu0 0
        %1738 = vmatprep.subr.bf16.mxu0 0
        %1739 = vmatpush1.bf16.xpose.msra.mxu0 %v1722
        %1740 = vmatprep.subr.bf16.mxu0 0
        %1741 = vmatpush2.bf16.xpose.msra.mxu0 0
        %1742 = vmatprep.subr.bf16.mxu0 0
        %1743 = vmatpush2.bf16.xpose.msra.mxu0 0
        %1744 = vmatprep.subr.bf16.mxu0 0
        %1745 = vmatpush2.bf16.xpose.msra.mxu0 0
        %1746 = vmatprep.subr.bf16.mxu0 0
        %1747 = vmatpush2.bf16.xpose.msra.mxu0 0
        %1748 = vmatprep.subr.bf16.mxu0 0
        %1749 = vmatpush2.bf16.xpose.msra.mxu0 0
        %1750 = vmatprep.subr.bf16.mxu0 0
        %1751 = vmatpush2.bf16.xpose.msra.mxu0 0
        %1752 = vmatprep.subr.bf16.mxu0 0
        %1753 = vmatpush2.bf16.xpose.msra.mxu0 0
        %1754 = vmatprep.subr.bf16.mxu0 0
        %1755 = vmatpush2.bf16.xpose.msra.mxu0 0
        %1756 = vmatprep.mubr.bf16.mxu0 0
        %1757 = vmatmul.mubr.bf16.gmra.mxu0 %v1719
        %v1758 = vpop.f32.mrf.mxu0
        %v1759 = vadd.f32 0.0, %v1758
        %v1760 = vpop.f32.mrf.mxu0
        %v1761 = vpop.f32.mrf.mxu0
        %v1762 = vpop.f32.mrf.mxu0
        %1763 = vdwg.mxu0
        %v1765 = vsel %vm1165, %v1146, 0
        %v1768 = vsel %vm1165, %v1162, 0
        %1770 = vmatprep.subr.bf16.mxu0 0
        %1771 = vmatpush1.bf16.xpose.msra.mxu0 0
        %1772 = vmatprep.subr.bf16.mxu0 0
        %1773 = vmatpush1.bf16.xpose.msra.mxu0 0
        %1774 = vmatprep.subr.bf16.mxu0 0
        %1775 = vmatpush1.bf16.xpose.msra.mxu0 0
        %1776 = vmatprep.subr.bf16.mxu0 0
        %1777 = vmatpush1.bf16.xpose.msra.mxu0 0
        %1778 = vmatprep.subr.bf16.mxu0 0
        %1779 = vmatpush1.bf16.xpose.msra.mxu0 0
        %1780 = vmatprep.subr.bf16.mxu0 0
        %1781 = vmatpush1.bf16.xpose.msra.mxu0 0
        %1782 = vmatprep.subr.bf16.mxu0 0
        %1783 = vmatpush1.bf16.xpose.msra.mxu0 0
        %1784 = vmatprep.subr.bf16.mxu0 0
        %1785 = vmatpush1.bf16.xpose.msra.mxu0 %v1768
        %1786 = vmatprep.subr.bf16.mxu0 0
        %1787 = vmatpush2.bf16.xpose.msra.mxu0 0
        %1788 = vmatprep.subr.bf16.mxu0 0
        %1789 = vmatpush2.bf16.xpose.msra.mxu0 0
        %1790 = vmatprep.subr.bf16.mxu0 0
        %1791 = vmatpush2.bf16.xpose.msra.mxu0 0
        %1792 = vmatprep.subr.bf16.mxu0 0
        %1793 = vmatpush2.bf16.xpose.msra.mxu0 0
        %1794 = vmatprep.subr.bf16.mxu0 0
        %1795 = vmatpush2.bf16.xpose.msra.mxu0 0
        %1796 = vmatprep.subr.bf16.mxu0 0
        %1797 = vmatpush2.bf16.xpose.msra.mxu0 0
        %1798 = vmatprep.subr.bf16.mxu0 0
        %1799 = vmatpush2.bf16.xpose.msra.mxu0 0
        %1800 = vmatprep.subr.bf16.mxu0 0
        %1801 = vmatpush2.bf16.xpose.msra.mxu0 0
        %1802 = vmatprep.mubr.bf16.mxu0 0
        %1803 = vmatmul.mubr.bf16.gmra.mxu0 %v1765
        %v1804 = vpop.f32.mrf.mxu0
        %v1805 = vadd.f32 0.0, %v1804
        %v1806 = vpop.f32.mrf.mxu0
        %v1807 = vpop.f32.mrf.mxu0
        %v1808 = vpop.f32.mrf.mxu0
        %1809 = vdwg.mxu0
        %v1811 = vsel %vm1165, %v1147, 0
        %v1814 = vsel %vm1165, %v1163, 0
        %1816 = vmatprep.subr.bf16.mxu0 0
        %1817 = vmatpush1.bf16.xpose.msra.mxu0 0
        %1818 = vmatprep.subr.bf16.mxu0 0
        %1819 = vmatpush1.bf16.xpose.msra.mxu0 0
        %1820 = vmatprep.subr.bf16.mxu0 0
        %1821 = vmatpush1.bf16.xpose.msra.mxu0 0
        %1822 = vmatprep.subr.bf16.mxu0 0
        %1823 = vmatpush1.bf16.xpose.msra.mxu0 0
        %1824 = vmatprep.subr.bf16.mxu0 0
        %1825 = vmatpush1.bf16.xpose.msra.mxu0 0
        %1826 = vmatprep.subr.bf16.mxu0 0
        %1827 = vmatpush1.bf16.xpose.msra.mxu0 0
        %1828 = vmatprep.subr.bf16.mxu0 0
        %1829 = vmatpush1.bf16.xpose.msra.mxu0 0
        %1830 = vmatprep.subr.bf16.mxu0 0
        %1831 = vmatpush1.bf16.xpose.msra.mxu0 %v1814
        %1832 = vmatprep.subr.bf16.mxu0 0
        %1833 = vmatpush2.bf16.xpose.msra.mxu0 0
        %1834 = vmatprep.subr.bf16.mxu0 0
        %1835 = vmatpush2.bf16.xpose.msra.mxu0 0
        %1836 = vmatprep.subr.bf16.mxu0 0
        %1837 = vmatpush2.bf16.xpose.msra.mxu0 0
        %1838 = vmatprep.subr.bf16.mxu0 0
        %1839 = vmatpush2.bf16.xpose.msra.mxu0 0
        %1840 = vmatprep.subr.bf16.mxu0 0
        %1841 = vmatpush2.bf16.xpose.msra.mxu0 0
        %1842 = vmatprep.subr.bf16.mxu0 0
        %1843 = vmatpush2.bf16.xpose.msra.mxu0 0
        %1844 = vmatprep.subr.bf16.mxu0 0
        %1845 = vmatpush2.bf16.xpose.msra.mxu0 0
        %1846 = vmatprep.subr.bf16.mxu0 0
        %1847 = vmatpush2.bf16.xpose.msra.mxu0 0
        %1848 = vmatprep.mubr.bf16.mxu0 0
        %1849 = vmatmul.mubr.bf16.gmra.mxu0 %v1811
        %v1850 = vpop.f32.mrf.mxu0
        %v1851 = vadd.f32 0.0, %v1850
        %v1852 = vpop.f32.mrf.mxu0
        %v1853 = vpop.f32.mrf.mxu0
        %v1854 = vpop.f32.mrf.mxu0
        %1855 = vdwg.mxu0
        %v1857 = vsel %vm1165, %v1148, 0
        %v1860 = vsel %vm1165, %v1164, 0
        %1862 = vmatprep.subr.bf16.mxu0 0
        %1863 = vmatpush1.bf16.xpose.msra.mxu0 0
        %1864 = vmatprep.subr.bf16.mxu0 0
        %1865 = vmatpush1.bf16.xpose.msra.mxu0 0
        %1866 = vmatprep.subr.bf16.mxu0 0
        %1867 = vmatpush1.bf16.xpose.msra.mxu0 0
        %1868 = vmatprep.subr.bf16.mxu0 0
        %1869 = vmatpush1.bf16.xpose.msra.mxu0 0
        %1870 = vmatprep.subr.bf16.mxu0 0
        %1871 = vmatpush1.bf16.xpose.msra.mxu0 0
        %1872 = vmatprep.subr.bf16.mxu0 0
        %1873 = vmatpush1.bf16.xpose.msra.mxu0 0
        %1874 = vmatprep.subr.bf16.mxu0 0
        %1875 = vmatpush1.bf16.xpose.msra.mxu0 0
        %1876 = vmatprep.subr.bf16.mxu0 0
        %1877 = vmatpush1.bf16.xpose.msra.mxu0 %v1860
        %1878 = vmatprep.subr.bf16.mxu0 0
        %1879 = vmatpush2.bf16.xpose.msra.mxu0 0
        %1880 = vmatprep.subr.bf16.mxu0 0
        %1881 = vmatpush2.bf16.xpose.msra.mxu0 0
        %1882 = vmatprep.subr.bf16.mxu0 0
        %1883 = vmatpush2.bf16.xpose.msra.mxu0 0
        %1884 = vmatprep.subr.bf16.mxu0 0
        %1885 = vmatpush2.bf16.xpose.msra.mxu0 0
        %1886 = vmatprep.subr.bf16.mxu0 0
        %1887 = vmatpush2.bf16.xpose.msra.mxu0 0
        %1888 = vmatprep.subr.bf16.mxu0 0
        %1889 = vmatpush2.bf16.xpose.msra.mxu0 0
        %1890 = vmatprep.subr.bf16.mxu0 0
        %1891 = vmatpush2.bf16.xpose.msra.mxu0 0
        %1892 = vmatprep.subr.bf16.mxu0 0
        %1893 = vmatpush2.bf16.xpose.msra.mxu0 0
        %1894 = vmatprep.mubr.bf16.mxu0 0
        %1895 = vmatmul.mubr.bf16.gmra.mxu0 %v1857
        %v1896 = vpop.f32.mrf.mxu0
        %v1897 = vadd.f32 0.0, %v1896
        %v1898 = vpop.f32.mrf.mxu0
        %v1899 = vpop.f32.mrf.mxu0
        %v1900 = vpop.f32.mrf.mxu0
        %1901 = vdwg.mxu0
        %v1902 = vmul.f32 %v1207, 0.25
        %v1903 = vmul.f32 %v1253, 0.25
        %v1904 = vmul.f32 %v1299, 0.25
        %v1905 = vmul.f32 %v1345, 0.25
        %v1906 = vmul.f32 %v1391, 0.25
        %v1907 = vmul.f32 %v1437, 0.25
        %v1908 = vmul.f32 %v1483, 0.25
        %v1909 = vmul.f32 %v1529, 0.25
        %v1910 = vmul.f32 %v1575, 0.25
        %v1911 = vmul.f32 %v1621, 0.25
        %v1912 = vmul.f32 %v1667, 0.25
        %v1913 = vmul.f32 %v1713, 0.25
        %v1914 = vmul.f32 %v1759, 0.25
        %v1915 = vmul.f32 %v1805, 0.25
        %v1916 = vmul.f32 %v1851, 0.25
        %v1917 = vmul.f32 %v1897, 0.25
        %v1918 = vadd.f32 %v1902, %v511
        %v1919 = vadd.f32 %v1903, %v511
        %v1920 = vadd.f32 %v1904, %v511
        %v1921 = vadd.f32 %v1905, %v511
        %v1922 = vadd.f32 %v1906, %v511
        %v1923 = vadd.f32 %v1907, %v511
        %v1924 = vadd.f32 %v1908, %v511
        %v1925 = vadd.f32 %v1909, %v511
        %v1926 = vadd.f32 %v1910, %v511
        %v1927 = vadd.f32 %v1911, %v511
        %v1928 = vadd.f32 %v1912, %v511
        %v1929 = vadd.f32 %v1913, %v511
        %v1930 = vadd.f32 %v1914, %v511
        %v1931 = vadd.f32 %v1915, %v511
        %v1932 = vadd.f32 %v1916, %v511
        %v1933 = vadd.f32 %v1917, %v511
        %vm1934 = vcmask 64512
        %v1935 = vsel %vm1934, %v1918, -inf
        %1936 = vmax.xlane.f32.xlu0 %v1935
        %v1937 = vpop.xlane.xlu0 %1936
        %v1938 = vsel %vm1934, %v1919, -inf
        %1939 = vmax.xlane.f32.xlu0 %v1938
        %v1940 = vpop.xlane.xlu0 %1939
        %v1941 = vsel %vm1934, %v1920, -inf
        %1942 = vmax.xlane.f32.xlu0 %v1941
        %v1943 = vpop.xlane.xlu0 %1942
        %v1944 = vsel %vm1934, %v1921, -inf
        %1945 = vmax.xlane.f32.xlu0 %v1944
        %v1946 = vpop.xlane.xlu0 %1945
        %v1947 = vsel %vm1934, %v1922, -inf
        %1948 = vmax.xlane.f32.xlu0 %v1947
        %v1949 = vpop.xlane.xlu0 %1948
        %v1950 = vsel %vm1934, %v1923, -inf
        %1951 = vmax.xlane.f32.xlu0 %v1950
        %v1952 = vpop.xlane.xlu0 %1951
        %v1953 = vsel %vm1934, %v1924, -inf
        %1954 = vmax.xlane.f32.xlu0 %v1953
        %v1955 = vpop.xlane.xlu0 %1954
        %v1956 = vsel %vm1934, %v1925, -inf
        %1957 = vmax.xlane.f32.xlu0 %v1956
        %v1958 = vpop.xlane.xlu0 %1957
        %v1959 = vsel %vm1934, %v1926, -inf
        %1960 = vmax.xlane.f32.xlu0 %v1959
        %v1961 = vpop.xlane.xlu0 %1960
        %v1962 = vsel %vm1934, %v1927, -inf
        %1963 = vmax.xlane.f32.xlu0 %v1962
        %v1964 = vpop.xlane.xlu0 %1963
        %v1965 = vsel %vm1934, %v1928, -inf
        %1966 = vmax.xlane.f32.xlu0 %v1965
        %v1967 = vpop.xlane.xlu0 %1966
        %v1968 = vsel %vm1934, %v1929, -inf
        %1969 = vmax.xlane.f32.xlu0 %v1968
        %v1970 = vpop.xlane.xlu0 %1969
        %v1971 = vsel %vm1934, %v1930, -inf
        %1972 = vmax.xlane.f32.xlu0 %v1971
        %v1973 = vpop.xlane.xlu0 %1972
        %v1974 = vsel %vm1934, %v1931, -inf
        %1975 = vmax.xlane.f32.xlu0 %v1974
        %v1976 = vpop.xlane.xlu0 %1975
        %v1977 = vsel %vm1934, %v1932, -inf
        %1978 = vmax.xlane.f32.xlu0 %v1977
        %v1979 = vpop.xlane.xlu0 %1978
        %v1980 = vsel %vm1934, %v1933, -inf
        %1981 = vmax.xlane.f32.xlu0 %v1980
        %v1982 = vpop.xlane.xlu0 %1981
        %v1983 = vsub.f32 %v1918, %v1937
        %v1984 = vsub.f32 %v1919, %v1940
        %v1985 = vsub.f32 %v1920, %v1943
        %v1986 = vsub.f32 %v1921, %v1946
        %v1987 = vsub.f32 %v1922, %v1949
        %v1988 = vsub.f32 %v1923, %v1952
        %v1989 = vsub.f32 %v1924, %v1955
        %v1990 = vsub.f32 %v1925, %v1958
        %v1991 = vsub.f32 %v1926, %v1961
        %v1992 = vsub.f32 %v1927, %v1964
        %v1993 = vsub.f32 %v1928, %v1967
        %v1994 = vsub.f32 %v1929, %v1970
        %v1995 = vsub.f32 %v1930, %v1973
        %v1996 = vsub.f32 %v1931, %v1976
        %v1997 = vsub.f32 %v1932, %v1979
        %v1998 = vsub.f32 %v1933, %v1982
        %v1999 = vmul.f32 %v1983, 1.442695
        %v2000 = vpow.pop %v1999
        %v2001 = vmul.f32 %v1984, 1.442695
        %v2002 = vpow.pop %v2001
        %v2003 = vmul.f32 %v1985, 1.442695
        %v2004 = vpow.pop %v2003
        %v2005 = vmul.f32 %v1986, 1.442695
        %v2006 = vpow.pop %v2005
        %v2007 = vmul.f32 %v1987, 1.442695
        %v2008 = vpow.pop %v2007
        %v2009 = vmul.f32 %v1988, 1.442695
        %v2010 = vpow.pop %v2009
        %v2011 = vmul.f32 %v1989, 1.442695
        %v2012 = vpow.pop %v2011
        %v2013 = vmul.f32 %v1990, 1.442695
        %v2014 = vpow.pop %v2013
        %v2015 = vmul.f32 %v1991, 1.442695
        %v2016 = vpow.pop %v2015
        %v2017 = vmul.f32 %v1992, 1.442695
        %v2018 = vpow.pop %v2017
        %v2019 = vmul.f32 %v1993, 1.442695
        %v2020 = vpow.pop %v2019
        %v2021 = vmul.f32 %v1994, 1.442695
        %v2022 = vpow.pop %v2021
        %v2023 = vmul.f32 %v1995, 1.442695
        %v2024 = vpow.pop %v2023
        %v2025 = vmul.f32 %v1996, 1.442695
        %v2026 = vpow.pop %v2025
        %v2027 = vmul.f32 %v1997, 1.442695
        %v2028 = vpow.pop %v2027
        %v2029 = vmul.f32 %v1998, 1.442695
        %v2030 = vpow.pop %v2029
        %v2031 = vsel %vm1934, %v2000, 0.0
        %2032 = vadd.xlane.f32.xlu0 %v2031
        %v2033 = vpop.xlane.xlu0 %2032
        %v2034 = vsel %vm1934, %v2002, 0.0
        %2035 = vadd.xlane.f32.xlu0 %v2034
        %v2036 = vpop.xlane.xlu0 %2035
        %v2037 = vsel %vm1934, %v2004, 0.0
        %2038 = vadd.xlane.f32.xlu0 %v2037
        %v2039 = vpop.xlane.xlu0 %2038
        %v2040 = vsel %vm1934, %v2006, 0.0
        %2041 = vadd.xlane.f32.xlu0 %v2040
        %v2042 = vpop.xlane.xlu0 %2041
        %v2043 = vsel %vm1934, %v2008, 0.0
        %2044 = vadd.xlane.f32.xlu0 %v2043
        %v2045 = vpop.xlane.xlu0 %2044
        %v2046 = vsel %vm1934, %v2010, 0.0
        %2047 = vadd.xlane.f32.xlu0 %v2046
        %v2048 = vpop.xlane.xlu0 %2047
        %v2049 = vsel %vm1934, %v2012, 0.0
        %2050 = vadd.xlane.f32.xlu0 %v2049
        %v2051 = vpop.xlane.xlu0 %2050
        %v2052 = vsel %vm1934, %v2014, 0.0
        %2053 = vadd.xlane.f32.xlu0 %v2052
        %v2054 = vpop.xlane.xlu0 %2053
        %v2055 = vsel %vm1934, %v2016, 0.0
        %2056 = vadd.xlane.f32.xlu0 %v2055
        %v2057 = vpop.xlane.xlu0 %2056
        %v2058 = vsel %vm1934, %v2018, 0.0
        %2059 = vadd.xlane.f32.xlu0 %v2058
        %v2060 = vpop.xlane.xlu0 %2059
        %v2061 = vsel %vm1934, %v2020, 0.0
        %2062 = vadd.xlane.f32.xlu0 %v2061
        %v2063 = vpop.xlane.xlu0 %2062
        %v2064 = vsel %vm1934, %v2022, 0.0
        %2065 = vadd.xlane.f32.xlu0 %v2064
        %v2066 = vpop.xlane.xlu0 %2065
        %v2067 = vsel %vm1934, %v2024, 0.0
        %2068 = vadd.xlane.f32.xlu0 %v2067
        %v2069 = vpop.xlane.xlu0 %2068
        %v2070 = vsel %vm1934, %v2026, 0.0
        %2071 = vadd.xlane.f32.xlu0 %v2070
        %v2072 = vpop.xlane.xlu0 %2071
        %v2073 = vsel %vm1934, %v2028, 0.0
        %2074 = vadd.xlane.f32.xlu0 %v2073
        %v2075 = vpop.xlane.xlu0 %2074
        %v2076 = vsel %vm1934, %v2030, 0.0
        %2077 = vadd.xlane.f32.xlu0 %v2076
        %v2078 = vpop.xlane.xlu0 %2077
        %v2079 = vrcp.pop %v2033
        %v2080 = vrcp.pop %v2036
        %v2081 = vrcp.pop %v2039
        %v2082 = vrcp.pop %v2042
        %v2083 = vrcp.pop %v2045
        %v2084 = vrcp.pop %v2048
        %v2085 = vrcp.pop %v2051
        %v2086 = vrcp.pop %v2054
        %v2087 = vrcp.pop %v2057
        %v2088 = vrcp.pop %v2060
        %v2089 = vrcp.pop %v2063
        %v2090 = vrcp.pop %v2066
        %v2091 = vrcp.pop %v2069
        %v2092 = vrcp.pop %v2072
        %v2093 = vrcp.pop %v2075
        %v2094 = vrcp.pop %v2078
        %v2095 = vmul.f32 %v2000, %v2079
        %v2096 = vmul.f32 %v2002, %v2080
        %v2097 = vmul.f32 %v2004, %v2081
        %v2098 = vmul.f32 %v2006, %v2082
        %v2099 = vmul.f32 %v2008, %v2083
        %v2100 = vmul.f32 %v2010, %v2084
        %v2101 = vmul.f32 %v2012, %v2085
        %v2102 = vmul.f32 %v2014, %v2086
        %v2103 = vmul.f32 %v2016, %v2087
        %v2104 = vmul.f32 %v2018, %v2088
        %v2105 = vmul.f32 %v2020, %v2089
        %v2106 = vmul.f32 %v2022, %v2090
        %v2107 = vmul.f32 %v2024, %v2091
        %v2108 = vmul.f32 %v2026, %v2092
        %v2109 = vmul.f32 %v2028, %v2093
        %v2110 = vmul.f32 %v2030, %v2094
        %v2111 = vpack.c.bf16 %v2095, %v2095
        %v2112 = vpack.c.bf16 %v2096, %v2096
        %v2113 = vpack.c.bf16 %v2097, %v2097
        %v2114 = vpack.c.bf16 %v2098, %v2098
        %v2115 = vpack.c.bf16 %v2099, %v2099
        %v2116 = vpack.c.bf16 %v2100, %v2100
        %v2117 = vpack.c.bf16 %v2101, %v2101
        %v2118 = vpack.c.bf16 %v2102, %v2102
        %v2119 = vpack.c.bf16 %v2103, %v2103
        %v2120 = vpack.c.bf16 %v2104, %v2104
        %v2121 = vpack.c.bf16 %v2105, %v2105
        %v2122 = vpack.c.bf16 %v2106, %v2106
        %v2123 = vpack.c.bf16 %v2107, %v2107
        %v2124 = vpack.c.bf16 %v2108, %v2108
        %v2125 = vpack.c.bf16 %v2109, %v2109
        %v2126 = vpack.c.bf16 %v2110, %v2110
        %v2127 = vpack.c.bf16 %v1071, %v1071
        %v2128 = vpack.c.bf16 %v1074, %v1074
        %v2129 = vpack.c.bf16 %v1079, %v1079
        %v2130 = vpack.c.bf16 %v1082, %v1082
        %v2131 = vpack.c.bf16 %v1087, %v1087
        %v2132 = vpack.c.bf16 %v1090, %v1090
        %v2133 = vpack.c.bf16 %v1095, %v1095
        %v2134 = vpack.c.bf16 %v1098, %v1098
        %v2135 = vpack.c.bf16 %v1103, %v1103
        %v2136 = vpack.c.bf16 %v1106, %v1106
        %v2137 = vpack.c.bf16 %v1111, %v1111
        %v2138 = vpack.c.bf16 %v1114, %v1114
        %v2139 = vpack.c.bf16 %v1119, %v1119
        %v2140 = vpack.c.bf16 %v1122, %v1122
        %v2141 = vpack.c.bf16 %v1127, %v1127
        %v2142 = vpack.c.bf16 %v1130, %v1130
        %v2144 = vsel %vm1934, %v2111, 0
        %vm2146 = vcmask 1043456
        %v2148 = vsel %vm2146, %v2127, 0
        %2150 = vmatprep.subr.bf16.mxu0 0
        %2151 = vmatpush1.bf16.msra.mxu0 0
        %2152 = vmatprep.subr.bf16.mxu0 0
        %2153 = vmatpush1.bf16.msra.mxu0 0
        %2154 = vmatprep.subr.bf16.mxu0 0
        %2155 = vmatpush1.bf16.msra.mxu0 0
        %2156 = vmatprep.subr.bf16.mxu0 0
        %2157 = vmatpush1.bf16.msra.mxu0 0
        %2158 = vmatprep.subr.bf16.mxu0 0
        %2159 = vmatpush1.bf16.msra.mxu0 0
        %2160 = vmatprep.subr.bf16.mxu0 0
        %2161 = vmatpush1.bf16.msra.mxu0 0
        %2162 = vmatprep.subr.bf16.mxu0 0
        %2163 = vmatpush1.bf16.msra.mxu0 0
        %2164 = vmatprep.subr.bf16.mxu0 0
        %2165 = vmatpush1.bf16.msra.mxu0 %v2148
        %2166 = vmatprep.subr.bf16.mxu0 0
        %2167 = vmatpush2.bf16.msra.mxu0 0
        %2168 = vmatprep.subr.bf16.mxu0 0
        %2169 = vmatpush2.bf16.msra.mxu0 0
        %2170 = vmatprep.subr.bf16.mxu0 0
        %2171 = vmatpush2.bf16.msra.mxu0 0
        %2172 = vmatprep.subr.bf16.mxu0 0
        %2173 = vmatpush2.bf16.msra.mxu0 0
        %2174 = vmatprep.subr.bf16.mxu0 0
        %2175 = vmatpush2.bf16.msra.mxu0 0
        %2176 = vmatprep.subr.bf16.mxu0 0
        %2177 = vmatpush2.bf16.msra.mxu0 0
        %2178 = vmatprep.subr.bf16.mxu0 0
        %2179 = vmatpush2.bf16.msra.mxu0 0
        %2180 = vmatprep.subr.bf16.mxu0 0
        %2181 = vmatpush2.bf16.msra.mxu0 0
        %2182 = vmatprep.mubr.bf16.mxu0 0
        %2183 = vmatmul.mubr.bf16.gmra.mxu0 %v2144
        %v2184 = vpop.f32.mrf.mxu0
        %v2185 = vadd.f32 0.0, %v2184
        %v2186 = vpop.f32.mrf.mxu0
        %v2187 = vpop.f32.mrf.mxu0
        %v2188 = vpop.f32.mrf.mxu0
        %2189 = vdwg.mxu0
        %v2191 = vsel %vm1934, %v2112, 0
        %v2194 = vsel %vm2146, %v2128, 0
        %2196 = vmatprep.subr.bf16.mxu0 0
        %2197 = vmatpush1.bf16.msra.mxu0 0
        %2198 = vmatprep.subr.bf16.mxu0 0
        %2199 = vmatpush1.bf16.msra.mxu0 0
        %2200 = vmatprep.subr.bf16.mxu0 0
        %2201 = vmatpush1.bf16.msra.mxu0 0
        %2202 = vmatprep.subr.bf16.mxu0 0
        %2203 = vmatpush1.bf16.msra.mxu0 0
        %2204 = vmatprep.subr.bf16.mxu0 0
        %2205 = vmatpush1.bf16.msra.mxu0 0
        %2206 = vmatprep.subr.bf16.mxu0 0
        %2207 = vmatpush1.bf16.msra.mxu0 0
        %2208 = vmatprep.subr.bf16.mxu0 0
        %2209 = vmatpush1.bf16.msra.mxu0 0
        %2210 = vmatprep.subr.bf16.mxu0 0
        %2211 = vmatpush1.bf16.msra.mxu0 %v2194
        %2212 = vmatprep.subr.bf16.mxu0 0
        %2213 = vmatpush2.bf16.msra.mxu0 0
        %2214 = vmatprep.subr.bf16.mxu0 0
        %2215 = vmatpush2.bf16.msra.mxu0 0
        %2216 = vmatprep.subr.bf16.mxu0 0
        %2217 = vmatpush2.bf16.msra.mxu0 0
        %2218 = vmatprep.subr.bf16.mxu0 0
        %2219 = vmatpush2.bf16.msra.mxu0 0
        %2220 = vmatprep.subr.bf16.mxu0 0
        %2221 = vmatpush2.bf16.msra.mxu0 0
        %2222 = vmatprep.subr.bf16.mxu0 0
        %2223 = vmatpush2.bf16.msra.mxu0 0
        %2224 = vmatprep.subr.bf16.mxu0 0
        %2225 = vmatpush2.bf16.msra.mxu0 0
        %2226 = vmatprep.subr.bf16.mxu0 0
        %2227 = vmatpush2.bf16.msra.mxu0 0
        %2228 = vmatprep.mubr.bf16.mxu0 0
        %2229 = vmatmul.mubr.bf16.gmra.mxu0 %v2191
        %v2230 = vpop.f32.mrf.mxu0
        %v2231 = vadd.f32 0.0, %v2230
        %v2232 = vpop.f32.mrf.mxu0
        %v2233 = vpop.f32.mrf.mxu0
        %v2234 = vpop.f32.mrf.mxu0
        %2235 = vdwg.mxu0
        %v2237 = vsel %vm1934, %v2113, 0
        %v2240 = vsel %vm2146, %v2129, 0
        %2242 = vmatprep.subr.bf16.mxu0 0
        %2243 = vmatpush1.bf16.msra.mxu0 0
        %2244 = vmatprep.subr.bf16.mxu0 0
        %2245 = vmatpush1.bf16.msra.mxu0 0
        %2246 = vmatprep.subr.bf16.mxu0 0
        %2247 = vmatpush1.bf16.msra.mxu0 0
        %2248 = vmatprep.subr.bf16.mxu0 0
        %2249 = vmatpush1.bf16.msra.mxu0 0
        %2250 = vmatprep.subr.bf16.mxu0 0
        %2251 = vmatpush1.bf16.msra.mxu0 0
        %2252 = vmatprep.subr.bf16.mxu0 0
        %2253 = vmatpush1.bf16.msra.mxu0 0
        %2254 = vmatprep.subr.bf16.mxu0 0
        %2255 = vmatpush1.bf16.msra.mxu0 0
        %2256 = vmatprep.subr.bf16.mxu0 0
        %2257 = vmatpush1.bf16.msra.mxu0 %v2240
        %2258 = vmatprep.subr.bf16.mxu0 0
        %2259 = vmatpush2.bf16.msra.mxu0 0
        %2260 = vmatprep.subr.bf16.mxu0 0
        %2261 = vmatpush2.bf16.msra.mxu0 0
        %2262 = vmatprep.subr.bf16.mxu0 0
        %2263 = vmatpush2.bf16.msra.mxu0 0
        %2264 = vmatprep.subr.bf16.mxu0 0
        %2265 = vmatpush2.bf16.msra.mxu0 0
        %2266 = vmatprep.subr.bf16.mxu0 0
        %2267 = vmatpush2.bf16.msra.mxu0 0
        %2268 = vmatprep.subr.bf16.mxu0 0
        %2269 = vmatpush2.bf16.msra.mxu0 0
        %2270 = vmatprep.subr.bf16.mxu0 0
        %2271 = vmatpush2.bf16.msra.mxu0 0
        %2272 = vmatprep.subr.bf16.mxu0 0
        %2273 = vmatpush2.bf16.msra.mxu0 0
        %2274 = vmatprep.mubr.bf16.mxu0 0
        %2275 = vmatmul.mubr.bf16.gmra.mxu0 %v2237
        %v2276 = vpop.f32.mrf.mxu0
        %v2277 = vadd.f32 0.0, %v2276
        %v2278 = vpop.f32.mrf.mxu0
        %v2279 = vpop.f32.mrf.mxu0
        %v2280 = vpop.f32.mrf.mxu0
        %2281 = vdwg.mxu0
        %v2283 = vsel %vm1934, %v2114, 0
        %v2286 = vsel %vm2146, %v2130, 0
        %2288 = vmatprep.subr.bf16.mxu0 0
        %2289 = vmatpush1.bf16.msra.mxu0 0
        %2290 = vmatprep.subr.bf16.mxu0 0
        %2291 = vmatpush1.bf16.msra.mxu0 0
        %2292 = vmatprep.subr.bf16.mxu0 0
        %2293 = vmatpush1.bf16.msra.mxu0 0
        %2294 = vmatprep.subr.bf16.mxu0 0
        %2295 = vmatpush1.bf16.msra.mxu0 0
        %2296 = vmatprep.subr.bf16.mxu0 0
        %2297 = vmatpush1.bf16.msra.mxu0 0
        %2298 = vmatprep.subr.bf16.mxu0 0
        %2299 = vmatpush1.bf16.msra.mxu0 0
        %2300 = vmatprep.subr.bf16.mxu0 0
        %2301 = vmatpush1.bf16.msra.mxu0 0
        %2302 = vmatprep.subr.bf16.mxu0 0
        %2303 = vmatpush1.bf16.msra.mxu0 %v2286
        %2304 = vmatprep.subr.bf16.mxu0 0
        %2305 = vmatpush2.bf16.msra.mxu0 0
        %2306 = vmatprep.subr.bf16.mxu0 0
        %2307 = vmatpush2.bf16.msra.mxu0 0
        %2308 = vmatprep.subr.bf16.mxu0 0
        %2309 = vmatpush2.bf16.msra.mxu0 0
        %2310 = vmatprep.subr.bf16.mxu0 0
        %2311 = vmatpush2.bf16.msra.mxu0 0
        %2312 = vmatprep.subr.bf16.mxu0 0
        %2313 = vmatpush2.bf16.msra.mxu0 0
        %2314 = vmatprep.subr.bf16.mxu0 0
        %2315 = vmatpush2.bf16.msra.mxu0 0
        %2316 = vmatprep.subr.bf16.mxu0 0
        %2317 = vmatpush2.bf16.msra.mxu0 0
        %2318 = vmatprep.subr.bf16.mxu0 0
        %2319 = vmatpush2.bf16.msra.mxu0 0
        %2320 = vmatprep.mubr.bf16.mxu0 0
        %2321 = vmatmul.mubr.bf16.gmra.mxu0 %v2283
        %v2322 = vpop.f32.mrf.mxu0
        %v2323 = vadd.f32 0.0, %v2322
        %v2324 = vpop.f32.mrf.mxu0
        %v2325 = vpop.f32.mrf.mxu0
        %v2326 = vpop.f32.mrf.mxu0
        %2327 = vdwg.mxu0
        %v2329 = vsel %vm1934, %v2115, 0
        %v2332 = vsel %vm2146, %v2131, 0
        %2334 = vmatprep.subr.bf16.mxu0 0
        %2335 = vmatpush1.bf16.msra.mxu0 0
        %2336 = vmatprep.subr.bf16.mxu0 0
        %2337 = vmatpush1.bf16.msra.mxu0 0
        %2338 = vmatprep.subr.bf16.mxu0 0
        %2339 = vmatpush1.bf16.msra.mxu0 0
        %2340 = vmatprep.subr.bf16.mxu0 0
        %2341 = vmatpush1.bf16.msra.mxu0 0
        %2342 = vmatprep.subr.bf16.mxu0 0
        %2343 = vmatpush1.bf16.msra.mxu0 0
        %2344 = vmatprep.subr.bf16.mxu0 0
        %2345 = vmatpush1.bf16.msra.mxu0 0
        %2346 = vmatprep.subr.bf16.mxu0 0
        %2347 = vmatpush1.bf16.msra.mxu0 0
        %2348 = vmatprep.subr.bf16.mxu0 0
        %2349 = vmatpush1.bf16.msra.mxu0 %v2332
        %2350 = vmatprep.subr.bf16.mxu0 0
        %2351 = vmatpush2.bf16.msra.mxu0 0
        %2352 = vmatprep.subr.bf16.mxu0 0
        %2353 = vmatpush2.bf16.msra.mxu0 0
        %2354 = vmatprep.subr.bf16.mxu0 0
        %2355 = vmatpush2.bf16.msra.mxu0 0
        %2356 = vmatprep.subr.bf16.mxu0 0
        %2357 = vmatpush2.bf16.msra.mxu0 0
        %2358 = vmatprep.subr.bf16.mxu0 0
        %2359 = vmatpush2.bf16.msra.mxu0 0
        %2360 = vmatprep.subr.bf16.mxu0 0
        %2361 = vmatpush2.bf16.msra.mxu0 0
        %2362 = vmatprep.subr.bf16.mxu0 0
        %2363 = vmatpush2.bf16.msra.mxu0 0
        %2364 = vmatprep.subr.bf16.mxu0 0
        %2365 = vmatpush2.bf16.msra.mxu0 0
        %2366 = vmatprep.mubr.bf16.mxu0 0
        %2367 = vmatmul.mubr.bf16.gmra.mxu0 %v2329
        %v2368 = vpop.f32.mrf.mxu0
        %v2369 = vadd.f32 0.0, %v2368
        %v2370 = vpop.f32.mrf.mxu0
        %v2371 = vpop.f32.mrf.mxu0
        %v2372 = vpop.f32.mrf.mxu0
        %2373 = vdwg.mxu0
        %v2375 = vsel %vm1934, %v2116, 0
        %v2378 = vsel %vm2146, %v2132, 0
        %2380 = vmatprep.subr.bf16.mxu0 0
        %2381 = vmatpush1.bf16.msra.mxu0 0
        %2382 = vmatprep.subr.bf16.mxu0 0
        %2383 = vmatpush1.bf16.msra.mxu0 0
        %2384 = vmatprep.subr.bf16.mxu0 0
        %2385 = vmatpush1.bf16.msra.mxu0 0
        %2386 = vmatprep.subr.bf16.mxu0 0
        %2387 = vmatpush1.bf16.msra.mxu0 0
        %2388 = vmatprep.subr.bf16.mxu0 0
        %2389 = vmatpush1.bf16.msra.mxu0 0
        %2390 = vmatprep.subr.bf16.mxu0 0
        %2391 = vmatpush1.bf16.msra.mxu0 0
        %2392 = vmatprep.subr.bf16.mxu0 0
        %2393 = vmatpush1.bf16.msra.mxu0 0
        %2394 = vmatprep.subr.bf16.mxu0 0
        %2395 = vmatpush1.bf16.msra.mxu0 %v2378
        %2396 = vmatprep.subr.bf16.mxu0 0
        %2397 = vmatpush2.bf16.msra.mxu0 0
        %2398 = vmatprep.subr.bf16.mxu0 0
        %2399 = vmatpush2.bf16.msra.mxu0 0
        %2400 = vmatprep.subr.bf16.mxu0 0
        %2401 = vmatpush2.bf16.msra.mxu0 0
        %2402 = vmatprep.subr.bf16.mxu0 0
        %2403 = vmatpush2.bf16.msra.mxu0 0
        %2404 = vmatprep.subr.bf16.mxu0 0
        %2405 = vmatpush2.bf16.msra.mxu0 0
        %2406 = vmatprep.subr.bf16.mxu0 0
        %2407 = vmatpush2.bf16.msra.mxu0 0
        %2408 = vmatprep.subr.bf16.mxu0 0
        %2409 = vmatpush2.bf16.msra.mxu0 0
        %2410 = vmatprep.subr.bf16.mxu0 0
        %2411 = vmatpush2.bf16.msra.mxu0 0
        %2412 = vmatprep.mubr.bf16.mxu0 0
        %2413 = vmatmul.mubr.bf16.gmra.mxu0 %v2375
        %v2414 = vpop.f32.mrf.mxu0
        %v2415 = vadd.f32 0.0, %v2414
        %v2416 = vpop.f32.mrf.mxu0
        %v2417 = vpop.f32.mrf.mxu0
        %v2418 = vpop.f32.mrf.mxu0
        %2419 = vdwg.mxu0
        %v2421 = vsel %vm1934, %v2117, 0
        %v2424 = vsel %vm2146, %v2133, 0
        %2426 = vmatprep.subr.bf16.mxu0 0
        %2427 = vmatpush1.bf16.msra.mxu0 0
        %2428 = vmatprep.subr.bf16.mxu0 0
        %2429 = vmatpush1.bf16.msra.mxu0 0
        %2430 = vmatprep.subr.bf16.mxu0 0
        %2431 = vmatpush1.bf16.msra.mxu0 0
        %2432 = vmatprep.subr.bf16.mxu0 0
        %2433 = vmatpush1.bf16.msra.mxu0 0
        %2434 = vmatprep.subr.bf16.mxu0 0
        %2435 = vmatpush1.bf16.msra.mxu0 0
        %2436 = vmatprep.subr.bf16.mxu0 0
        %2437 = vmatpush1.bf16.msra.mxu0 0
        %2438 = vmatprep.subr.bf16.mxu0 0
        %2439 = vmatpush1.bf16.msra.mxu0 0
        %2440 = vmatprep.subr.bf16.mxu0 0
        %2441 = vmatpush1.bf16.msra.mxu0 %v2424
        %2442 = vmatprep.subr.bf16.mxu0 0
        %2443 = vmatpush2.bf16.msra.mxu0 0
        %2444 = vmatprep.subr.bf16.mxu0 0
        %2445 = vmatpush2.bf16.msra.mxu0 0
        %2446 = vmatprep.subr.bf16.mxu0 0
        %2447 = vmatpush2.bf16.msra.mxu0 0
        %2448 = vmatprep.subr.bf16.mxu0 0
        %2449 = vmatpush2.bf16.msra.mxu0 0
        %2450 = vmatprep.subr.bf16.mxu0 0
        %2451 = vmatpush2.bf16.msra.mxu0 0
        %2452 = vmatprep.subr.bf16.mxu0 0
        %2453 = vmatpush2.bf16.msra.mxu0 0
        %2454 = vmatprep.subr.bf16.mxu0 0
        %2455 = vmatpush2.bf16.msra.mxu0 0
        %2456 = vmatprep.subr.bf16.mxu0 0
        %2457 = vmatpush2.bf16.msra.mxu0 0
        %2458 = vmatprep.mubr.bf16.mxu0 0
        %2459 = vmatmul.mubr.bf16.gmra.mxu0 %v2421
        %v2460 = vpop.f32.mrf.mxu0
        %v2461 = vadd.f32 0.0, %v2460
        %v2462 = vpop.f32.mrf.mxu0
        %v2463 = vpop.f32.mrf.mxu0
        %v2464 = vpop.f32.mrf.mxu0
        %2465 = vdwg.mxu0
        %v2467 = vsel %vm1934, %v2118, 0
        %v2470 = vsel %vm2146, %v2134, 0
        %2472 = vmatprep.subr.bf16.mxu0 0
        %2473 = vmatpush1.bf16.msra.mxu0 0
        %2474 = vmatprep.subr.bf16.mxu0 0
        %2475 = vmatpush1.bf16.msra.mxu0 0
        %2476 = vmatprep.subr.bf16.mxu0 0
        %2477 = vmatpush1.bf16.msra.mxu0 0
        %2478 = vmatprep.subr.bf16.mxu0 0
        %2479 = vmatpush1.bf16.msra.mxu0 0
        %2480 = vmatprep.subr.bf16.mxu0 0
        %2481 = vmatpush1.bf16.msra.mxu0 0
        %2482 = vmatprep.subr.bf16.mxu0 0
        %2483 = vmatpush1.bf16.msra.mxu0 0
        %2484 = vmatprep.subr.bf16.mxu0 0
        %2485 = vmatpush1.bf16.msra.mxu0 0
        %2486 = vmatprep.subr.bf16.mxu0 0
        %2487 = vmatpush1.bf16.msra.mxu0 %v2470
        %2488 = vmatprep.subr.bf16.mxu0 0
        %2489 = vmatpush2.bf16.msra.mxu0 0
        %2490 = vmatprep.subr.bf16.mxu0 0
        %2491 = vmatpush2.bf16.msra.mxu0 0
        %2492 = vmatprep.subr.bf16.mxu0 0
        %2493 = vmatpush2.bf16.msra.mxu0 0
        %2494 = vmatprep.subr.bf16.mxu0 0
        %2495 = vmatpush2.bf16.msra.mxu0 0
        %2496 = vmatprep.subr.bf16.mxu0 0
        %2497 = vmatpush2.bf16.msra.mxu0 0
        %2498 = vmatprep.subr.bf16.mxu0 0
        %2499 = vmatpush2.bf16.msra.mxu0 0
        %2500 = vmatprep.subr.bf16.mxu0 0
        %2501 = vmatpush2.bf16.msra.mxu0 0
        %2502 = vmatprep.subr.bf16.mxu0 0
        %2503 = vmatpush2.bf16.msra.mxu0 0
        %2504 = vmatprep.mubr.bf16.mxu0 0
        %2505 = vmatmul.mubr.bf16.gmra.mxu0 %v2467
        %v2506 = vpop.f32.mrf.mxu0
        %v2507 = vadd.f32 0.0, %v2506
        %v2508 = vpop.f32.mrf.mxu0
        %v2509 = vpop.f32.mrf.mxu0
        %v2510 = vpop.f32.mrf.mxu0
        %2511 = vdwg.mxu0
        %v2513 = vsel %vm1934, %v2119, 0
        %v2516 = vsel %vm2146, %v2135, 0
        %2518 = vmatprep.subr.bf16.mxu0 0
        %2519 = vmatpush1.bf16.msra.mxu0 0
        %2520 = vmatprep.subr.bf16.mxu0 0
        %2521 = vmatpush1.bf16.msra.mxu0 0
        %2522 = vmatprep.subr.bf16.mxu0 0
        %2523 = vmatpush1.bf16.msra.mxu0 0
        %2524 = vmatprep.subr.bf16.mxu0 0
        %2525 = vmatpush1.bf16.msra.mxu0 0
        %2526 = vmatprep.subr.bf16.mxu0 0
        %2527 = vmatpush1.bf16.msra.mxu0 0
        %2528 = vmatprep.subr.bf16.mxu0 0
        %2529 = vmatpush1.bf16.msra.mxu0 0
        %2530 = vmatprep.subr.bf16.mxu0 0
        %2531 = vmatpush1.bf16.msra.mxu0 0
        %2532 = vmatprep.subr.bf16.mxu0 0
        %2533 = vmatpush1.bf16.msra.mxu0 %v2516
        %2534 = vmatprep.subr.bf16.mxu0 0
        %2535 = vmatpush2.bf16.msra.mxu0 0
        %2536 = vmatprep.subr.bf16.mxu0 0
        %2537 = vmatpush2.bf16.msra.mxu0 0
        %2538 = vmatprep.subr.bf16.mxu0 0
        %2539 = vmatpush2.bf16.msra.mxu0 0
        %2540 = vmatprep.subr.bf16.mxu0 0
        %2541 = vmatpush2.bf16.msra.mxu0 0
        %2542 = vmatprep.subr.bf16.mxu0 0
        %2543 = vmatpush2.bf16.msra.mxu0 0
        %2544 = vmatprep.subr.bf16.mxu0 0
        %2545 = vmatpush2.bf16.msra.mxu0 0
        %2546 = vmatprep.subr.bf16.mxu0 0
        %2547 = vmatpush2.bf16.msra.mxu0 0
        %2548 = vmatprep.subr.bf16.mxu0 0
        %2549 = vmatpush2.bf16.msra.mxu0 0
        %2550 = vmatprep.mubr.bf16.mxu0 0
        %2551 = vmatmul.mubr.bf16.gmra.mxu0 %v2513
        %v2552 = vpop.f32.mrf.mxu0
        %v2553 = vadd.f32 0.0, %v2552
        %v2554 = vpop.f32.mrf.mxu0
        %v2555 = vpop.f32.mrf.mxu0
        %v2556 = vpop.f32.mrf.mxu0
        %2557 = vdwg.mxu0
        %v2559 = vsel %vm1934, %v2120, 0
        %v2562 = vsel %vm2146, %v2136, 0
        %2564 = vmatprep.subr.bf16.mxu0 0
        %2565 = vmatpush1.bf16.msra.mxu0 0
        %2566 = vmatprep.subr.bf16.mxu0 0
        %2567 = vmatpush1.bf16.msra.mxu0 0
        %2568 = vmatprep.subr.bf16.mxu0 0
        %2569 = vmatpush1.bf16.msra.mxu0 0
        %2570 = vmatprep.subr.bf16.mxu0 0
        %2571 = vmatpush1.bf16.msra.mxu0 0
        %2572 = vmatprep.subr.bf16.mxu0 0
        %2573 = vmatpush1.bf16.msra.mxu0 0
        %2574 = vmatprep.subr.bf16.mxu0 0
        %2575 = vmatpush1.bf16.msra.mxu0 0
        %2576 = vmatprep.subr.bf16.mxu0 0
        %2577 = vmatpush1.bf16.msra.mxu0 0
        %2578 = vmatprep.subr.bf16.mxu0 0
        %2579 = vmatpush1.bf16.msra.mxu0 %v2562
        %2580 = vmatprep.subr.bf16.mxu0 0
        %2581 = vmatpush2.bf16.msra.mxu0 0
        %2582 = vmatprep.subr.bf16.mxu0 0
        %2583 = vmatpush2.bf16.msra.mxu0 0
        %2584 = vmatprep.subr.bf16.mxu0 0
        %2585 = vmatpush2.bf16.msra.mxu0 0
        %2586 = vmatprep.subr.bf16.mxu0 0
        %2587 = vmatpush2.bf16.msra.mxu0 0
        %2588 = vmatprep.subr.bf16.mxu0 0
        %2589 = vmatpush2.bf16.msra.mxu0 0
        %2590 = vmatprep.subr.bf16.mxu0 0
        %2591 = vmatpush2.bf16.msra.mxu0 0
        %2592 = vmatprep.subr.bf16.mxu0 0
        %2593 = vmatpush2.bf16.msra.mxu0 0
        %2594 = vmatprep.subr.bf16.mxu0 0
        %2595 = vmatpush2.bf16.msra.mxu0 0
        %2596 = vmatprep.mubr.bf16.mxu0 0
        %2597 = vmatmul.mubr.bf16.gmra.mxu0 %v2559
        %v2598 = vpop.f32.mrf.mxu0
        %v2599 = vadd.f32 0.0, %v2598
        %v2600 = vpop.f32.mrf.mxu0
        %v2601 = vpop.f32.mrf.mxu0
        %v2602 = vpop.f32.mrf.mxu0
        %2603 = vdwg.mxu0
        %v2605 = vsel %vm1934, %v2121, 0
        %v2608 = vsel %vm2146, %v2137, 0
        %2610 = vmatprep.subr.bf16.mxu0 0
        %2611 = vmatpush1.bf16.msra.mxu0 0
        %2612 = vmatprep.subr.bf16.mxu0 0
        %2613 = vmatpush1.bf16.msra.mxu0 0
        %2614 = vmatprep.subr.bf16.mxu0 0
        %2615 = vmatpush1.bf16.msra.mxu0 0
        %2616 = vmatprep.subr.bf16.mxu0 0
        %2617 = vmatpush1.bf16.msra.mxu0 0
        %2618 = vmatprep.subr.bf16.mxu0 0
        %2619 = vmatpush1.bf16.msra.mxu0 0
        %2620 = vmatprep.subr.bf16.mxu0 0
        %2621 = vmatpush1.bf16.msra.mxu0 0
        %2622 = vmatprep.subr.bf16.mxu0 0
        %2623 = vmatpush1.bf16.msra.mxu0 0
        %2624 = vmatprep.subr.bf16.mxu0 0
        %2625 = vmatpush1.bf16.msra.mxu0 %v2608
        %2626 = vmatprep.subr.bf16.mxu0 0
        %2627 = vmatpush2.bf16.msra.mxu0 0
        %2628 = vmatprep.subr.bf16.mxu0 0
        %2629 = vmatpush2.bf16.msra.mxu0 0
        %2630 = vmatprep.subr.bf16.mxu0 0
        %2631 = vmatpush2.bf16.msra.mxu0 0
        %2632 = vmatprep.subr.bf16.mxu0 0
        %2633 = vmatpush2.bf16.msra.mxu0 0
        %2634 = vmatprep.subr.bf16.mxu0 0
        %2635 = vmatpush2.bf16.msra.mxu0 0
        %2636 = vmatprep.subr.bf16.mxu0 0
        %2637 = vmatpush2.bf16.msra.mxu0 0
        %2638 = vmatprep.subr.bf16.mxu0 0
        %2639 = vmatpush2.bf16.msra.mxu0 0
        %2640 = vmatprep.subr.bf16.mxu0 0
        %2641 = vmatpush2.bf16.msra.mxu0 0
        %2642 = vmatprep.mubr.bf16.mxu0 0
        %2643 = vmatmul.mubr.bf16.gmra.mxu0 %v2605
        %v2644 = vpop.f32.mrf.mxu0
        %v2645 = vadd.f32 0.0, %v2644
        %v2646 = vpop.f32.mrf.mxu0
        %v2647 = vpop.f32.mrf.mxu0
        %v2648 = vpop.f32.mrf.mxu0
        %2649 = vdwg.mxu0
        %v2651 = vsel %vm1934, %v2122, 0
        %v2654 = vsel %vm2146, %v2138, 0
        %2656 = vmatprep.subr.bf16.mxu0 0
        %2657 = vmatpush1.bf16.msra.mxu0 0
        %2658 = vmatprep.subr.bf16.mxu0 0
        %2659 = vmatpush1.bf16.msra.mxu0 0
        %2660 = vmatprep.subr.bf16.mxu0 0
        %2661 = vmatpush1.bf16.msra.mxu0 0
        %2662 = vmatprep.subr.bf16.mxu0 0
        %2663 = vmatpush1.bf16.msra.mxu0 0
        %2664 = vmatprep.subr.bf16.mxu0 0
        %2665 = vmatpush1.bf16.msra.mxu0 0
        %2666 = vmatprep.subr.bf16.mxu0 0
        %2667 = vmatpush1.bf16.msra.mxu0 0
        %2668 = vmatprep.subr.bf16.mxu0 0
        %2669 = vmatpush1.bf16.msra.mxu0 0
        %2670 = vmatprep.subr.bf16.mxu0 0
        %2671 = vmatpush1.bf16.msra.mxu0 %v2654
        %2672 = vmatprep.subr.bf16.mxu0 0
        %2673 = vmatpush2.bf16.msra.mxu0 0
        %2674 = vmatprep.subr.bf16.mxu0 0
        %2675 = vmatpush2.bf16.msra.mxu0 0
        %2676 = vmatprep.subr.bf16.mxu0 0
        %2677 = vmatpush2.bf16.msra.mxu0 0
        %2678 = vmatprep.subr.bf16.mxu0 0
        %2679 = vmatpush2.bf16.msra.mxu0 0
        %2680 = vmatprep.subr.bf16.mxu0 0
        %2681 = vmatpush2.bf16.msra.mxu0 0
        %2682 = vmatprep.subr.bf16.mxu0 0
        %2683 = vmatpush2.bf16.msra.mxu0 0
        %2684 = vmatprep.subr.bf16.mxu0 0
        %2685 = vmatpush2.bf16.msra.mxu0 0
        %2686 = vmatprep.subr.bf16.mxu0 0
        %2687 = vmatpush2.bf16.msra.mxu0 0
        %2688 = vmatprep.mubr.bf16.mxu0 0
        %2689 = vmatmul.mubr.bf16.gmra.mxu0 %v2651
        %v2690 = vpop.f32.mrf.mxu0
        %v2691 = vadd.f32 0.0, %v2690
        %v2692 = vpop.f32.mrf.mxu0
        %v2693 = vpop.f32.mrf.mxu0
        %v2694 = vpop.f32.mrf.mxu0
        %2695 = vdwg.mxu0
        %v2697 = vsel %vm1934, %v2123, 0
        %v2700 = vsel %vm2146, %v2139, 0
        %2702 = vmatprep.subr.bf16.mxu0 0
        %2703 = vmatpush1.bf16.msra.mxu0 0
        %2704 = vmatprep.subr.bf16.mxu0 0
        %2705 = vmatpush1.bf16.msra.mxu0 0
        %2706 = vmatprep.subr.bf16.mxu0 0
        %2707 = vmatpush1.bf16.msra.mxu0 0
        %2708 = vmatprep.subr.bf16.mxu0 0
        %2709 = vmatpush1.bf16.msra.mxu0 0
        %2710 = vmatprep.subr.bf16.mxu0 0
        %2711 = vmatpush1.bf16.msra.mxu0 0
        %2712 = vmatprep.subr.bf16.mxu0 0
        %2713 = vmatpush1.bf16.msra.mxu0 0
        %2714 = vmatprep.subr.bf16.mxu0 0
        %2715 = vmatpush1.bf16.msra.mxu0 0
        %2716 = vmatprep.subr.bf16.mxu0 0
        %2717 = vmatpush1.bf16.msra.mxu0 %v2700
        %2718 = vmatprep.subr.bf16.mxu0 0
        %2719 = vmatpush2.bf16.msra.mxu0 0
        %2720 = vmatprep.subr.bf16.mxu0 0
        %2721 = vmatpush2.bf16.msra.mxu0 0
        %2722 = vmatprep.subr.bf16.mxu0 0
        %2723 = vmatpush2.bf16.msra.mxu0 0
        %2724 = vmatprep.subr.bf16.mxu0 0
        %2725 = vmatpush2.bf16.msra.mxu0 0
        %2726 = vmatprep.subr.bf16.mxu0 0
        %2727 = vmatpush2.bf16.msra.mxu0 0
        %2728 = vmatprep.subr.bf16.mxu0 0
        %2729 = vmatpush2.bf16.msra.mxu0 0
        %2730 = vmatprep.subr.bf16.mxu0 0
        %2731 = vmatpush2.bf16.msra.mxu0 0
        %2732 = vmatprep.subr.bf16.mxu0 0
        %2733 = vmatpush2.bf16.msra.mxu0 0
        %2734 = vmatprep.mubr.bf16.mxu0 0
        %2735 = vmatmul.mubr.bf16.gmra.mxu0 %v2697
        %v2736 = vpop.f32.mrf.mxu0
        %v2737 = vadd.f32 0.0, %v2736
        %v2738 = vpop.f32.mrf.mxu0
        %v2739 = vpop.f32.mrf.mxu0
        %v2740 = vpop.f32.mrf.mxu0
        %2741 = vdwg.mxu0
        %v2743 = vsel %vm1934, %v2124, 0
        %v2746 = vsel %vm2146, %v2140, 0
        %2748 = vmatprep.subr.bf16.mxu0 0
        %2749 = vmatpush1.bf16.msra.mxu0 0
        %2750 = vmatprep.subr.bf16.mxu0 0
        %2751 = vmatpush1.bf16.msra.mxu0 0
        %2752 = vmatprep.subr.bf16.mxu0 0
        %2753 = vmatpush1.bf16.msra.mxu0 0
        %2754 = vmatprep.subr.bf16.mxu0 0
        %2755 = vmatpush1.bf16.msra.mxu0 0
        %2756 = vmatprep.subr.bf16.mxu0 0
        %2757 = vmatpush1.bf16.msra.mxu0 0
        %2758 = vmatprep.subr.bf16.mxu0 0
        %2759 = vmatpush1.bf16.msra.mxu0 0
        %2760 = vmatprep.subr.bf16.mxu0 0
        %2761 = vmatpush1.bf16.msra.mxu0 0
        %2762 = vmatprep.subr.bf16.mxu0 0
        %2763 = vmatpush1.bf16.msra.mxu0 %v2746
        %2764 = vmatprep.subr.bf16.mxu0 0
        %2765 = vmatpush2.bf16.msra.mxu0 0
        %2766 = vmatprep.subr.bf16.mxu0 0
        %2767 = vmatpush2.bf16.msra.mxu0 0
        %2768 = vmatprep.subr.bf16.mxu0 0
        %2769 = vmatpush2.bf16.msra.mxu0 0
        %2770 = vmatprep.subr.bf16.mxu0 0
        %2771 = vmatpush2.bf16.msra.mxu0 0
        %2772 = vmatprep.subr.bf16.mxu0 0
        %2773 = vmatpush2.bf16.msra.mxu0 0
        %2774 = vmatprep.subr.bf16.mxu0 0
        %2775 = vmatpush2.bf16.msra.mxu0 0
        %2776 = vmatprep.subr.bf16.mxu0 0
        %2777 = vmatpush2.bf16.msra.mxu0 0
        %2778 = vmatprep.subr.bf16.mxu0 0
        %2779 = vmatpush2.bf16.msra.mxu0 0
        %2780 = vmatprep.mubr.bf16.mxu0 0
        %2781 = vmatmul.mubr.bf16.gmra.mxu0 %v2743
        %v2782 = vpop.f32.mrf.mxu0
        %v2783 = vadd.f32 0.0, %v2782
        %v2784 = vpop.f32.mrf.mxu0
        %v2785 = vpop.f32.mrf.mxu0
        %v2786 = vpop.f32.mrf.mxu0
        %2787 = vdwg.mxu0
        %v2789 = vsel %vm1934, %v2125, 0
        %v2792 = vsel %vm2146, %v2141, 0
        %2794 = vmatprep.subr.bf16.mxu0 0
        %2795 = vmatpush1.bf16.msra.mxu0 0
        %2796 = vmatprep.subr.bf16.mxu0 0
        %2797 = vmatpush1.bf16.msra.mxu0 0
        %2798 = vmatprep.subr.bf16.mxu0 0
        %2799 = vmatpush1.bf16.msra.mxu0 0
        %2800 = vmatprep.subr.bf16.mxu0 0
        %2801 = vmatpush1.bf16.msra.mxu0 0
        %2802 = vmatprep.subr.bf16.mxu0 0
        %2803 = vmatpush1.bf16.msra.mxu0 0
        %2804 = vmatprep.subr.bf16.mxu0 0
        %2805 = vmatpush1.bf16.msra.mxu0 0
        %2806 = vmatprep.subr.bf16.mxu0 0
        %2807 = vmatpush1.bf16.msra.mxu0 0
        %2808 = vmatprep.subr.bf16.mxu0 0
        %2809 = vmatpush1.bf16.msra.mxu0 %v2792
        %2810 = vmatprep.subr.bf16.mxu0 0
        %2811 = vmatpush2.bf16.msra.mxu0 0
        %2812 = vmatprep.subr.bf16.mxu0 0
        %2813 = vmatpush2.bf16.msra.mxu0 0
        %2814 = vmatprep.subr.bf16.mxu0 0
        %2815 = vmatpush2.bf16.msra.mxu0 0
        %2816 = vmatprep.subr.bf16.mxu0 0
        %2817 = vmatpush2.bf16.msra.mxu0 0
        %2818 = vmatprep.subr.bf16.mxu0 0
        %2819 = vmatpush2.bf16.msra.mxu0 0
        %2820 = vmatprep.subr.bf16.mxu0 0
        %2821 = vmatpush2.bf16.msra.mxu0 0
        %2822 = vmatprep.subr.bf16.mxu0 0
        %2823 = vmatpush2.bf16.msra.mxu0 0
        %2824 = vmatprep.subr.bf16.mxu0 0
        %2825 = vmatpush2.bf16.msra.mxu0 0
        %2826 = vmatprep.mubr.bf16.mxu0 0
        %2827 = vmatmul.mubr.bf16.gmra.mxu0 %v2789
        %v2828 = vpop.f32.mrf.mxu0
        %v2829 = vadd.f32 0.0, %v2828
        %v2830 = vpop.f32.mrf.mxu0
        %v2831 = vpop.f32.mrf.mxu0
        %v2832 = vpop.f32.mrf.mxu0
        %2833 = vdwg.mxu0
        %v2835 = vsel %vm1934, %v2126, 0
        %v2838 = vsel %vm2146, %v2142, 0
        %2840 = vmatprep.subr.bf16.mxu0 0
        %2841 = vmatpush1.bf16.msra.mxu0 0
        %2842 = vmatprep.subr.bf16.mxu0 0
        %2843 = vmatpush1.bf16.msra.mxu0 0
        %2844 = vmatprep.subr.bf16.mxu0 0
        %2845 = vmatpush1.bf16.msra.mxu0 0
        %2846 = vmatprep.subr.bf16.mxu0 0
        %2847 = vmatpush1.bf16.msra.mxu0 0
        %2848 = vmatprep.subr.bf16.mxu0 0
        %2849 = vmatpush1.bf16.msra.mxu0 0
        %2850 = vmatprep.subr.bf16.mxu0 0
        %2851 = vmatpush1.bf16.msra.mxu0 0
        %2852 = vmatprep.subr.bf16.mxu0 0
        %2853 = vmatpush1.bf16.msra.mxu0 0
        %2854 = vmatprep.subr.bf16.mxu0 0
        %2855 = vmatpush1.bf16.msra.mxu0 %v2838
        %2856 = vmatprep.subr.bf16.mxu0 0
        %2857 = vmatpush2.bf16.msra.mxu0 0
        %2858 = vmatprep.subr.bf16.mxu0 0
        %2859 = vmatpush2.bf16.msra.mxu0 0
        %2860 = vmatprep.subr.bf16.mxu0 0
        %2861 = vmatpush2.bf16.msra.mxu0 0
        %2862 = vmatprep.subr.bf16.mxu0 0
        %2863 = vmatpush2.bf16.msra.mxu0 0
        %2864 = vmatprep.subr.bf16.mxu0 0
        %2865 = vmatpush2.bf16.msra.mxu0 0
        %2866 = vmatprep.subr.bf16.mxu0 0
        %2867 = vmatpush2.bf16.msra.mxu0 0
        %2868 = vmatprep.subr.bf16.mxu0 0
        %2869 = vmatpush2.bf16.msra.mxu0 0
        %2870 = vmatprep.subr.bf16.mxu0 0
        %2871 = vmatpush2.bf16.msra.mxu0 0
        %2872 = vmatprep.mubr.bf16.mxu0 0
        %2873 = vmatmul.mubr.bf16.gmra.mxu0 %v2835
        %v2874 = vpop.f32.mrf.mxu0
        %v2875 = vadd.f32 0.0, %v2874
        %v2876 = vpop.f32.mrf.mxu0
        %v2877 = vpop.f32.mrf.mxu0
        %v2878 = vpop.f32.mrf.mxu0
        %2879 = vdwg.mxu0
        %v2880 = vpack.c.bf16 %v2231, %v2185
        %v2881 = vpack.c.bf16 %v2323, %v2277
        %v2882 = vpack.c.bf16 %v2415, %v2369
        %v2883 = vpack.c.bf16 %v2507, %v2461
        %v2884 = vpack.c.bf16 %v2599, %v2553
        %v2885 = vpack.c.bf16 %v2691, %v2645
        %v2886 = vpack.c.bf16 %v2783, %v2737
        %v2887 = vpack.c.bf16 %v2875, %v2829
        %v2892 = vunpack.c.l.b16 %v487
        %v2893 = vunpack.c.l.b16 %v488
        %v2894 = vunpack.c.l.b16 %v489
        %v2895 = vunpack.c.l.b16 %v490
        %v2896 = vpack.c.b16 %v2893, %v2892
        %v2897 = vpack.c.b16 %v2895, %v2894
        %2901 = vrot.lane.b32.xlu0 %v773, 112
        %v2902 = vpop.permute.xlu0 %2901
        %2904 = vmatprep.subr.bf16.mxu0 0
        %2905 = vmatpush1.bf16.msra.mxu0 0
        %2906 = vmatprep.subr.bf16.mxu0 0
        %2907 = vmatpush1.bf16.msra.mxu0 0
        %2908 = vmatprep.subr.bf16.mxu0 0
        %2909 = vmatpush1.bf16.msra.mxu0 0
        %2910 = vmatprep.subr.bf16.mxu0 0
        %2911 = vmatpush1.bf16.msra.mxu0 0
        %2912 = vmatprep.subr.bf16.mxu0 0
        %2913 = vmatpush1.bf16.msra.mxu0 0
        %2914 = vmatprep.subr.bf16.mxu0 0
        %2915 = vmatpush1.bf16.msra.mxu0 0
        %2916 = vmatprep.subr.bf16.mxu0 0
        %2917 = vmatpush1.bf16.msra.mxu0 %v2897
        %2918 = vmatprep.subr.bf16.mxu0 0
        %2919 = vmatpush1.bf16.msra.mxu0 %v2896
        %2920 = vmatprep.subr.bf16.mxu0 0
        %2921 = vmatpush2.bf16.msra.mxu0 0
        %2922 = vmatprep.subr.bf16.mxu0 0
        %2923 = vmatpush2.bf16.msra.mxu0 0
        %2924 = vmatprep.subr.bf16.mxu0 0
        %2925 = vmatpush2.bf16.msra.mxu0 0
        %2926 = vmatprep.subr.bf16.mxu0 0
        %2927 = vmatpush2.bf16.msra.mxu0 0
        %2928 = vmatprep.subr.bf16.mxu0 0
        %2929 = vmatpush2.bf16.msra.mxu0 0
        %2930 = vmatprep.subr.bf16.mxu0 0
        %2931 = vmatpush2.bf16.msra.mxu0 0
        %2932 = vmatprep.subr.bf16.mxu0 0
        %2933 = vmatpush2.bf16.msra.mxu0 0
        %2934 = vmatprep.subr.bf16.mxu0 0
        %2935 = vmatpush2.bf16.msra.mxu0 0
        %2936 = vmatprep.mubr.bf16.mxu0 0
        %2937 = vmatmul.mubr.bf16.gmra.mxu0 %v787
        %v2938 = vpop.f32.mrf.mxu0
        %v2939 = vadd.f32 %v2902, %v2938
        %v2940 = vpop.f32.mrf.mxu0
        %v2941 = vpop.f32.mrf.mxu0
        %v2942 = vadd.f32 %v2902, %v2941
        %v2943 = vpop.f32.mrf.mxu0
        %2944 = vmatprep.mubr.bf16.mxu0 0
        %2945 = vmatmul.mubr.bf16.gmra.mxu0 %v790
        %v2946 = vpop.f32.mrf.mxu0
        %v2947 = vadd.f32 %v2902, %v2946
        %v2948 = vpop.f32.mrf.mxu0
        %v2949 = vpop.f32.mrf.mxu0
        %v2950 = vadd.f32 %v2902, %v2949
        %v2951 = vpop.f32.mrf.mxu0
        %2952 = vmatprep.mubr.bf16.mxu0 0
        %2953 = vmatmul.mubr.bf16.gmra.mxu0 %v793
        %v2954 = vpop.f32.mrf.mxu0
        %v2955 = vadd.f32 %v2902, %v2954
        %v2956 = vpop.f32.mrf.mxu0
        %v2957 = vpop.f32.mrf.mxu0
        %v2958 = vadd.f32 %v2902, %v2957
        %v2959 = vpop.f32.mrf.mxu0
        %2960 = vmatprep.mubr.bf16.mxu0 0
        %2961 = vmatmul.mubr.bf16.gmra.mxu0 %v796
        %v2962 = vpop.f32.mrf.mxu0
        %v2963 = vadd.f32 %v2902, %v2962
        %v2964 = vpop.f32.mrf.mxu0
        %v2965 = vpop.f32.mrf.mxu0
        %v2966 = vadd.f32 %v2902, %v2965
        %v2967 = vpop.f32.mrf.mxu0
        %2968 = vmatprep.mubr.bf16.mxu0 0
        %2969 = vmatmul.mubr.bf16.gmra.mxu0 %v799
        %v2970 = vpop.f32.mrf.mxu0
        %v2971 = vadd.f32 %v2902, %v2970
        %v2972 = vpop.f32.mrf.mxu0
        %v2973 = vpop.f32.mrf.mxu0
        %v2974 = vadd.f32 %v2902, %v2973
        %v2975 = vpop.f32.mrf.mxu0
        %2976 = vmatprep.mubr.bf16.mxu0 0
        %2977 = vmatmul.mubr.bf16.gmra.mxu0 %v802
        %v2978 = vpop.f32.mrf.mxu0
        %v2979 = vadd.f32 %v2902, %v2978
        %v2980 = vpop.f32.mrf.mxu0
        %v2981 = vpop.f32.mrf.mxu0
        %v2982 = vadd.f32 %v2902, %v2981
        %v2983 = vpop.f32.mrf.mxu0
        %2984 = vmatprep.mubr.bf16.mxu0 0
        %2985 = vmatmul.mubr.bf16.gmra.mxu0 %v805
        %v2986 = vpop.f32.mrf.mxu0
        %v2987 = vadd.f32 %v2902, %v2986
        %v2988 = vpop.f32.mrf.mxu0
        %v2989 = vpop.f32.mrf.mxu0
        %v2990 = vadd.f32 %v2902, %v2989
        %v2991 = vpop.f32.mrf.mxu0
        %2992 = vmatprep.mubr.bf16.mxu0 0
        %2993 = vmatmul.mubr.bf16.gmra.mxu0 %v808
        %v2994 = vpop.f32.mrf.mxu0
        %v2995 = vadd.f32 %v2902, %v2994
        %v2996 = vpop.f32.mrf.mxu0
        %v2997 = vpop.f32.mrf.mxu0
        %v2998 = vadd.f32 %v2902, %v2997
        %v2999 = vpop.f32.mrf.mxu0
        %3000 = vdwg.mxu0
        %v3005 = vunpack.c.l.b16 %v495
        %v3006 = vunpack.c.l.b16 %v496
        %v3007 = vunpack.c.l.b16 %v497
        %v3008 = vunpack.c.l.b16 %v498
        %v3009 = vpack.c.b16 %v3006, %v3005
        %v3010 = vpack.c.b16 %v3008, %v3007
        %3014 = vrot.lane.b32.xlu0 %v910, 112
        %v3015 = vpop.permute.xlu0 %3014
        %3017 = vmatprep.subr.bf16.mxu0 0
        %3018 = vmatpush1.bf16.msra.mxu0 0
        %3019 = vmatprep.subr.bf16.mxu0 0
        %3020 = vmatpush1.bf16.msra.mxu0 0
        %3021 = vmatprep.subr.bf16.mxu0 0
        %3022 = vmatpush1.bf16.msra.mxu0 0
        %3023 = vmatprep.subr.bf16.mxu0 0
        %3024 = vmatpush1.bf16.msra.mxu0 0
        %3025 = vmatprep.subr.bf16.mxu0 0
        %3026 = vmatpush1.bf16.msra.mxu0 0
        %3027 = vmatprep.subr.bf16.mxu0 0
        %3028 = vmatpush1.bf16.msra.mxu0 0
        %3029 = vmatprep.subr.bf16.mxu0 0
        %3030 = vmatpush1.bf16.msra.mxu0 %v3010
        %3031 = vmatprep.subr.bf16.mxu0 0
        %3032 = vmatpush1.bf16.msra.mxu0 %v3009
        %3033 = vmatprep.subr.bf16.mxu0 0
        %3034 = vmatpush2.bf16.msra.mxu0 0
        %3035 = vmatprep.subr.bf16.mxu0 0
        %3036 = vmatpush2.bf16.msra.mxu0 0
        %3037 = vmatprep.subr.bf16.mxu0 0
        %3038 = vmatpush2.bf16.msra.mxu0 0
        %3039 = vmatprep.subr.bf16.mxu0 0
        %3040 = vmatpush2.bf16.msra.mxu0 0
        %3041 = vmatprep.subr.bf16.mxu0 0
        %3042 = vmatpush2.bf16.msra.mxu0 0
        %3043 = vmatprep.subr.bf16.mxu0 0
        %3044 = vmatpush2.bf16.msra.mxu0 0
        %3045 = vmatprep.subr.bf16.mxu0 0
        %3046 = vmatpush2.bf16.msra.mxu0 0
        %3047 = vmatprep.subr.bf16.mxu0 0
        %3048 = vmatpush2.bf16.msra.mxu0 0
        %3049 = vmatprep.mubr.bf16.mxu0 0
        %3050 = vmatmul.mubr.bf16.gmra.mxu0 %v787
        %v3051 = vpop.f32.mrf.mxu0
        %v3052 = vadd.f32 %v3015, %v3051
        %v3053 = vpop.f32.mrf.mxu0
        %v3054 = vpop.f32.mrf.mxu0
        %v3055 = vadd.f32 %v3015, %v3054
        %v3056 = vpop.f32.mrf.mxu0
        %3057 = vmatprep.mubr.bf16.mxu0 0
        %3058 = vmatmul.mubr.bf16.gmra.mxu0 %v790
        %v3059 = vpop.f32.mrf.mxu0
        %v3060 = vadd.f32 %v3015, %v3059
        %v3061 = vpop.f32.mrf.mxu0
        %v3062 = vpop.f32.mrf.mxu0
        %v3063 = vadd.f32 %v3015, %v3062
        %v3064 = vpop.f32.mrf.mxu0
        %3065 = vmatprep.mubr.bf16.mxu0 0
        %3066 = vmatmul.mubr.bf16.gmra.mxu0 %v793
        %v3067 = vpop.f32.mrf.mxu0
        %v3068 = vadd.f32 %v3015, %v3067
        %v3069 = vpop.f32.mrf.mxu0
        %v3070 = vpop.f32.mrf.mxu0
        %v3071 = vadd.f32 %v3015, %v3070
        %v3072 = vpop.f32.mrf.mxu0
        %3073 = vmatprep.mubr.bf16.mxu0 0
        %3074 = vmatmul.mubr.bf16.gmra.mxu0 %v796
        %v3075 = vpop.f32.mrf.mxu0
        %v3076 = vadd.f32 %v3015, %v3075
        %v3077 = vpop.f32.mrf.mxu0
        %v3078 = vpop.f32.mrf.mxu0
        %v3079 = vadd.f32 %v3015, %v3078
        %v3080 = vpop.f32.mrf.mxu0
        %3081 = vmatprep.mubr.bf16.mxu0 0
        %3082 = vmatmul.mubr.bf16.gmra.mxu0 %v799
        %v3083 = vpop.f32.mrf.mxu0
        %v3084 = vadd.f32 %v3015, %v3083
        %v3085 = vpop.f32.mrf.mxu0
        %v3086 = vpop.f32.mrf.mxu0
        %v3087 = vadd.f32 %v3015, %v3086
        %v3088 = vpop.f32.mrf.mxu0
        %3089 = vmatprep.mubr.bf16.mxu0 0
        %3090 = vmatmul.mubr.bf16.gmra.mxu0 %v802
        %v3091 = vpop.f32.mrf.mxu0
        %v3092 = vadd.f32 %v3015, %v3091
        %v3093 = vpop.f32.mrf.mxu0
        %v3094 = vpop.f32.mrf.mxu0
        %v3095 = vadd.f32 %v3015, %v3094
        %v3096 = vpop.f32.mrf.mxu0
        %3097 = vmatprep.mubr.bf16.mxu0 0
        %3098 = vmatmul.mubr.bf16.gmra.mxu0 %v805
        %v3099 = vpop.f32.mrf.mxu0
        %v3100 = vadd.f32 %v3015, %v3099
        %v3101 = vpop.f32.mrf.mxu0
        %v3102 = vpop.f32.mrf.mxu0
        %v3103 = vadd.f32 %v3015, %v3102
        %v3104 = vpop.f32.mrf.mxu0
        %3105 = vmatprep.mubr.bf16.mxu0 0
        %3106 = vmatmul.mubr.bf16.gmra.mxu0 %v808
        %v3107 = vpop.f32.mrf.mxu0
        %v3108 = vadd.f32 %v3015, %v3107
        %v3109 = vpop.f32.mrf.mxu0
        %v3110 = vpop.f32.mrf.mxu0
        %v3111 = vadd.f32 %v3015, %v3110
        %v3112 = vpop.f32.mrf.mxu0
        %3113 = vdwg.mxu0
        %v3118 = vunpack.c.l.b16 %v503
        %v3119 = vunpack.c.l.b16 %v504
        %v3120 = vunpack.c.l.b16 %v505
        %v3121 = vunpack.c.l.b16 %v506
        %v3122 = vpack.c.b16 %v3119, %v3118
        %v3123 = vpack.c.b16 %v3121, %v3120
        %3127 = vrot.lane.b32.xlu0 %v1023, 112
        %v3128 = vpop.permute.xlu0 %3127
        %3130 = vmatprep.subr.bf16.mxu0 0
        %3131 = vmatpush1.bf16.msra.mxu0 0
        %3132 = vmatprep.subr.bf16.mxu0 0
        %3133 = vmatpush1.bf16.msra.mxu0 0
        %3134 = vmatprep.subr.bf16.mxu0 0
        %3135 = vmatpush1.bf16.msra.mxu0 0
        %3136 = vmatprep.subr.bf16.mxu0 0
        %3137 = vmatpush1.bf16.msra.mxu0 0
        %3138 = vmatprep.subr.bf16.mxu0 0
        %3139 = vmatpush1.bf16.msra.mxu0 0
        %3140 = vmatprep.subr.bf16.mxu0 0
        %3141 = vmatpush1.bf16.msra.mxu0 0
        %3142 = vmatprep.subr.bf16.mxu0 0
        %3143 = vmatpush1.bf16.msra.mxu0 %v3123
        %3144 = vmatprep.subr.bf16.mxu0 0
        %3145 = vmatpush1.bf16.msra.mxu0 %v3122
        %3146 = vmatprep.subr.bf16.mxu0 0
        %3147 = vmatpush2.bf16.msra.mxu0 0
        %3148 = vmatprep.subr.bf16.mxu0 0
        %3149 = vmatpush2.bf16.msra.mxu0 0
        %3150 = vmatprep.subr.bf16.mxu0 0
        %3151 = vmatpush2.bf16.msra.mxu0 0
        %3152 = vmatprep.subr.bf16.mxu0 0
        %3153 = vmatpush2.bf16.msra.mxu0 0
        %3154 = vmatprep.subr.bf16.mxu0 0
        %3155 = vmatpush2.bf16.msra.mxu0 0
        %3156 = vmatprep.subr.bf16.mxu0 0
        %3157 = vmatpush2.bf16.msra.mxu0 0
        %3158 = vmatprep.subr.bf16.mxu0 0
        %3159 = vmatpush2.bf16.msra.mxu0 0
        %3160 = vmatprep.subr.bf16.mxu0 0
        %3161 = vmatpush2.bf16.msra.mxu0 0
        %3162 = vmatprep.mubr.bf16.mxu0 0
        %3163 = vmatmul.mubr.bf16.gmra.mxu0 %v787
        %v3164 = vpop.f32.mrf.mxu0
        %v3165 = vadd.f32 %v3128, %v3164
        %v3166 = vpop.f32.mrf.mxu0
        %v3167 = vpop.f32.mrf.mxu0
        %v3168 = vadd.f32 %v3128, %v3167
        %v3169 = vpop.f32.mrf.mxu0
        %3170 = vmatprep.mubr.bf16.mxu0 0
        %3171 = vmatmul.mubr.bf16.gmra.mxu0 %v790
        %v3172 = vpop.f32.mrf.mxu0
        %v3173 = vadd.f32 %v3128, %v3172
        %v3174 = vpop.f32.mrf.mxu0
        %v3175 = vpop.f32.mrf.mxu0
        %v3176 = vadd.f32 %v3128, %v3175
        %v3177 = vpop.f32.mrf.mxu0
        %3178 = vmatprep.mubr.bf16.mxu0 0
        %3179 = vmatmul.mubr.bf16.gmra.mxu0 %v793
        %v3180 = vpop.f32.mrf.mxu0
        %v3181 = vadd.f32 %v3128, %v3180
        %v3182 = vpop.f32.mrf.mxu0
        %v3183 = vpop.f32.mrf.mxu0
        %v3184 = vadd.f32 %v3128, %v3183
        %v3185 = vpop.f32.mrf.mxu0
        %3186 = vmatprep.mubr.bf16.mxu0 0
        %3187 = vmatmul.mubr.bf16.gmra.mxu0 %v796
        %v3188 = vpop.f32.mrf.mxu0
        %v3189 = vadd.f32 %v3128, %v3188
        %v3190 = vpop.f32.mrf.mxu0
        %v3191 = vpop.f32.mrf.mxu0
        %v3192 = vadd.f32 %v3128, %v3191
        %v3193 = vpop.f32.mrf.mxu0
        %3194 = vmatprep.mubr.bf16.mxu0 0
        %3195 = vmatmul.mubr.bf16.gmra.mxu0 %v799
        %v3196 = vpop.f32.mrf.mxu0
        %v3197 = vadd.f32 %v3128, %v3196
        %v3198 = vpop.f32.mrf.mxu0
        %v3199 = vpop.f32.mrf.mxu0
        %v3200 = vadd.f32 %v3128, %v3199
        %v3201 = vpop.f32.mrf.mxu0
        %3202 = vmatprep.mubr.bf16.mxu0 0
        %3203 = vmatmul.mubr.bf16.gmra.mxu0 %v802
        %v3204 = vpop.f32.mrf.mxu0
        %v3205 = vadd.f32 %v3128, %v3204
        %v3206 = vpop.f32.mrf.mxu0
        %v3207 = vpop.f32.mrf.mxu0
        %v3208 = vadd.f32 %v3128, %v3207
        %v3209 = vpop.f32.mrf.mxu0
        %3210 = vmatprep.mubr.bf16.mxu0 0
        %3211 = vmatmul.mubr.bf16.gmra.mxu0 %v805
        %v3212 = vpop.f32.mrf.mxu0
        %v3213 = vadd.f32 %v3128, %v3212
        %v3214 = vpop.f32.mrf.mxu0
        %v3215 = vpop.f32.mrf.mxu0
        %v3216 = vadd.f32 %v3128, %v3215
        %v3217 = vpop.f32.mrf.mxu0
        %3218 = vmatprep.mubr.bf16.mxu0 0
        %3219 = vmatmul.mubr.bf16.gmra.mxu0 %v808
        %v3220 = vpop.f32.mrf.mxu0
        %v3221 = vadd.f32 %v3128, %v3220
        %v3222 = vpop.f32.mrf.mxu0
        %v3223 = vpop.f32.mrf.mxu0
        %v3224 = vadd.f32 %v3128, %v3223
        %v3225 = vpop.f32.mrf.mxu0
        %3226 = vdwg.mxu0
        %v3227 = vpack.c.bf16 %v2939, %v2939
        %v3228 = vpack.c.bf16 %v2942, %v2942
        %v3229 = vpack.c.bf16 %v2947, %v2947
        %v3230 = vpack.c.bf16 %v2950, %v2950
        %v3231 = vpack.c.bf16 %v2955, %v2955
        %v3232 = vpack.c.bf16 %v2958, %v2958
        %v3233 = vpack.c.bf16 %v2963, %v2963
        %v3234 = vpack.c.bf16 %v2966, %v2966
        %v3235 = vpack.c.bf16 %v2971, %v2971
        %v3236 = vpack.c.bf16 %v2974, %v2974
        %v3237 = vpack.c.bf16 %v2979, %v2979
        %v3238 = vpack.c.bf16 %v2982, %v2982
        %v3239 = vpack.c.bf16 %v2987, %v2987
        %v3240 = vpack.c.bf16 %v2990, %v2990
        %v3241 = vpack.c.bf16 %v2995, %v2995
        %v3242 = vpack.c.bf16 %v2998, %v2998
        %v3243 = vpack.c.bf16 %v3052, %v3052
        %v3244 = vpack.c.bf16 %v3055, %v3055
        %v3245 = vpack.c.bf16 %v3060, %v3060
        %v3246 = vpack.c.bf16 %v3063, %v3063
        %v3247 = vpack.c.bf16 %v3068, %v3068
        %v3248 = vpack.c.bf16 %v3071, %v3071
        %v3249 = vpack.c.bf16 %v3076, %v3076
        %v3250 = vpack.c.bf16 %v3079, %v3079
        %v3251 = vpack.c.bf16 %v3084, %v3084
        %v3252 = vpack.c.bf16 %v3087, %v3087
        %v3253 = vpack.c.bf16 %v3092, %v3092
        %v3254 = vpack.c.bf16 %v3095, %v3095
        %v3255 = vpack.c.bf16 %v3100, %v3100
        %v3256 = vpack.c.bf16 %v3103, %v3103
        %v3257 = vpack.c.bf16 %v3108, %v3108
        %v3258 = vpack.c.bf16 %v3111, %v3111
        %v3260 = vsel %vm1165, %v3227, 0
        %v3263 = vsel %vm1165, %v3243, 0
        %3265 = vmatprep.subr.bf16.mxu0 0
        %3266 = vmatpush1.bf16.xpose.msra.mxu0 0
        %3267 = vmatprep.subr.bf16.mxu0 0
        %3268 = vmatpush1.bf16.xpose.msra.mxu0 0
        %3269 = vmatprep.subr.bf16.mxu0 0
        %3270 = vmatpush1.bf16.xpose.msra.mxu0 0
        %3271 = vmatprep.subr.bf16.mxu0 0
        %3272 = vmatpush1.bf16.xpose.msra.mxu0 0
        %3273 = vmatprep.subr.bf16.mxu0 0
        %3274 = vmatpush1.bf16.xpose.msra.mxu0 0
        %3275 = vmatprep.subr.bf16.mxu0 0
        %3276 = vmatpush1.bf16.xpose.msra.mxu0 0
        %3277 = vmatprep.subr.bf16.mxu0 0
        %3278 = vmatpush1.bf16.xpose.msra.mxu0 0
        %3279 = vmatprep.subr.bf16.mxu0 0
        %3280 = vmatpush1.bf16.xpose.msra.mxu0 %v3263
        %3281 = vmatprep.subr.bf16.mxu0 0
        %3282 = vmatpush2.bf16.xpose.msra.mxu0 0
        %3283 = vmatprep.subr.bf16.mxu0 0
        %3284 = vmatpush2.bf16.xpose.msra.mxu0 0
        %3285 = vmatprep.subr.bf16.mxu0 0
        %3286 = vmatpush2.bf16.xpose.msra.mxu0 0
        %3287 = vmatprep.subr.bf16.mxu0 0
        %3288 = vmatpush2.bf16.xpose.msra.mxu0 0
        %3289 = vmatprep.subr.bf16.mxu0 0
        %3290 = vmatpush2.bf16.xpose.msra.mxu0 0
        %3291 = vmatprep.subr.bf16.mxu0 0
        %3292 = vmatpush2.bf16.xpose.msra.mxu0 0
        %3293 = vmatprep.subr.bf16.mxu0 0
        %3294 = vmatpush2.bf16.xpose.msra.mxu0 0
        %3295 = vmatprep.subr.bf16.mxu0 0
        %3296 = vmatpush2.bf16.xpose.msra.mxu0 0
        %3297 = vmatprep.mubr.bf16.mxu0 0
        %3298 = vmatmul.mubr.bf16.gmra.mxu0 %v3260
        %v3299 = vpop.f32.mrf.mxu0
        %v3300 = vadd.f32 0.0, %v3299
        %v3301 = vpop.f32.mrf.mxu0
        %v3302 = vpop.f32.mrf.mxu0
        %v3303 = vpop.f32.mrf.mxu0
        %3304 = vdwg.mxu0
        %v3306 = vsel %vm1165, %v3228, 0
        %v3309 = vsel %vm1165, %v3244, 0
        %3311 = vmatprep.subr.bf16.mxu0 0
        %3312 = vmatpush1.bf16.xpose.msra.mxu0 0
        %3313 = vmatprep.subr.bf16.mxu0 0
        %3314 = vmatpush1.bf16.xpose.msra.mxu0 0
        %3315 = vmatprep.subr.bf16.mxu0 0
        %3316 = vmatpush1.bf16.xpose.msra.mxu0 0
        %3317 = vmatprep.subr.bf16.mxu0 0
        %3318 = vmatpush1.bf16.xpose.msra.mxu0 0
        %3319 = vmatprep.subr.bf16.mxu0 0
        %3320 = vmatpush1.bf16.xpose.msra.mxu0 0
        %3321 = vmatprep.subr.bf16.mxu0 0
        %3322 = vmatpush1.bf16.xpose.msra.mxu0 0
        %3323 = vmatprep.subr.bf16.mxu0 0
        %3324 = vmatpush1.bf16.xpose.msra.mxu0 0
        %3325 = vmatprep.subr.bf16.mxu0 0
        %3326 = vmatpush1.bf16.xpose.msra.mxu0 %v3309
        %3327 = vmatprep.subr.bf16.mxu0 0
        %3328 = vmatpush2.bf16.xpose.msra.mxu0 0
        %3329 = vmatprep.subr.bf16.mxu0 0
        %3330 = vmatpush2.bf16.xpose.msra.mxu0 0
        %3331 = vmatprep.subr.bf16.mxu0 0
        %3332 = vmatpush2.bf16.xpose.msra.mxu0 0
        %3333 = vmatprep.subr.bf16.mxu0 0
        %3334 = vmatpush2.bf16.xpose.msra.mxu0 0
        %3335 = vmatprep.subr.bf16.mxu0 0
        %3336 = vmatpush2.bf16.xpose.msra.mxu0 0
        %3337 = vmatprep.subr.bf16.mxu0 0
        %3338 = vmatpush2.bf16.xpose.msra.mxu0 0
        %3339 = vmatprep.subr.bf16.mxu0 0
        %3340 = vmatpush2.bf16.xpose.msra.mxu0 0
        %3341 = vmatprep.subr.bf16.mxu0 0
        %3342 = vmatpush2.bf16.xpose.msra.mxu0 0
        %3343 = vmatprep.mubr.bf16.mxu0 0
        %3344 = vmatmul.mubr.bf16.gmra.mxu0 %v3306
        %v3345 = vpop.f32.mrf.mxu0
        %v3346 = vadd.f32 0.0, %v3345
        %v3347 = vpop.f32.mrf.mxu0
        %v3348 = vpop.f32.mrf.mxu0
        %v3349 = vpop.f32.mrf.mxu0
        %3350 = vdwg.mxu0
        %v3352 = vsel %vm1165, %v3229, 0
        %v3355 = vsel %vm1165, %v3245, 0
        %3357 = vmatprep.subr.bf16.mxu0 0
        %3358 = vmatpush1.bf16.xpose.msra.mxu0 0
        %3359 = vmatprep.subr.bf16.mxu0 0
        %3360 = vmatpush1.bf16.xpose.msra.mxu0 0
        %3361 = vmatprep.subr.bf16.mxu0 0
        %3362 = vmatpush1.bf16.xpose.msra.mxu0 0
        %3363 = vmatprep.subr.bf16.mxu0 0
        %3364 = vmatpush1.bf16.xpose.msra.mxu0 0
        %3365 = vmatprep.subr.bf16.mxu0 0
        %3366 = vmatpush1.bf16.xpose.msra.mxu0 0
        %3367 = vmatprep.subr.bf16.mxu0 0
        %3368 = vmatpush1.bf16.xpose.msra.mxu0 0
        %3369 = vmatprep.subr.bf16.mxu0 0
        %3370 = vmatpush1.bf16.xpose.msra.mxu0 0
        %3371 = vmatprep.subr.bf16.mxu0 0
        %3372 = vmatpush1.bf16.xpose.msra.mxu0 %v3355
        %3373 = vmatprep.subr.bf16.mxu0 0
        %3374 = vmatpush2.bf16.xpose.msra.mxu0 0
        %3375 = vmatprep.subr.bf16.mxu0 0
        %3376 = vmatpush2.bf16.xpose.msra.mxu0 0
        %3377 = vmatprep.subr.bf16.mxu0 0
        %3378 = vmatpush2.bf16.xpose.msra.mxu0 0
        %3379 = vmatprep.subr.bf16.mxu0 0
        %3380 = vmatpush2.bf16.xpose.msra.mxu0 0
        %3381 = vmatprep.subr.bf16.mxu0 0
        %3382 = vmatpush2.bf16.xpose.msra.mxu0 0
        %3383 = vmatprep.subr.bf16.mxu0 0
        %3384 = vmatpush2.bf16.xpose.msra.mxu0 0
        %3385 = vmatprep.subr.bf16.mxu0 0
        %3386 = vmatpush2.bf16.xpose.msra.mxu0 0
        %3387 = vmatprep.subr.bf16.mxu0 0
        %3388 = vmatpush2.bf16.xpose.msra.mxu0 0
        %3389 = vmatprep.mubr.bf16.mxu0 0
        %3390 = vmatmul.mubr.bf16.gmra.mxu0 %v3352
        %v3391 = vpop.f32.mrf.mxu0
        %v3392 = vadd.f32 0.0, %v3391
        %v3393 = vpop.f32.mrf.mxu0
        %v3394 = vpop.f32.mrf.mxu0
        %v3395 = vpop.f32.mrf.mxu0
        %3396 = vdwg.mxu0
        %v3398 = vsel %vm1165, %v3230, 0
        %v3401 = vsel %vm1165, %v3246, 0
        %3403 = vmatprep.subr.bf16.mxu0 0
        %3404 = vmatpush1.bf16.xpose.msra.mxu0 0
        %3405 = vmatprep.subr.bf16.mxu0 0
        %3406 = vmatpush1.bf16.xpose.msra.mxu0 0
        %3407 = vmatprep.subr.bf16.mxu0 0
        %3408 = vmatpush1.bf16.xpose.msra.mxu0 0
        %3409 = vmatprep.subr.bf16.mxu0 0
        %3410 = vmatpush1.bf16.xpose.msra.mxu0 0
        %3411 = vmatprep.subr.bf16.mxu0 0
        %3412 = vmatpush1.bf16.xpose.msra.mxu0 0
        %3413 = vmatprep.subr.bf16.mxu0 0
        %3414 = vmatpush1.bf16.xpose.msra.mxu0 0
        %3415 = vmatprep.subr.bf16.mxu0 0
        %3416 = vmatpush1.bf16.xpose.msra.mxu0 0
        %3417 = vmatprep.subr.bf16.mxu0 0
        %3418 = vmatpush1.bf16.xpose.msra.mxu0 %v3401
        %3419 = vmatprep.subr.bf16.mxu0 0
        %3420 = vmatpush2.bf16.xpose.msra.mxu0 0
        %3421 = vmatprep.subr.bf16.mxu0 0
        %3422 = vmatpush2.bf16.xpose.msra.mxu0 0
        %3423 = vmatprep.subr.bf16.mxu0 0
        %3424 = vmatpush2.bf16.xpose.msra.mxu0 0
        %3425 = vmatprep.subr.bf16.mxu0 0
        %3426 = vmatpush2.bf16.xpose.msra.mxu0 0
        %3427 = vmatprep.subr.bf16.mxu0 0
        %3428 = vmatpush2.bf16.xpose.msra.mxu0 0
        %3429 = vmatprep.subr.bf16.mxu0 0
        %3430 = vmatpush2.bf16.xpose.msra.mxu0 0
        %3431 = vmatprep.subr.bf16.mxu0 0
        %3432 = vmatpush2.bf16.xpose.msra.mxu0 0
        %3433 = vmatprep.subr.bf16.mxu0 0
        %3434 = vmatpush2.bf16.xpose.msra.mxu0 0
        %3435 = vmatprep.mubr.bf16.mxu0 0
        %3436 = vmatmul.mubr.bf16.gmra.mxu0 %v3398
        %v3437 = vpop.f32.mrf.mxu0
        %v3438 = vadd.f32 0.0, %v3437
        %v3439 = vpop.f32.mrf.mxu0
        %v3440 = vpop.f32.mrf.mxu0
        %v3441 = vpop.f32.mrf.mxu0
        %3442 = vdwg.mxu0
        %v3444 = vsel %vm1165, %v3231, 0
        %v3447 = vsel %vm1165, %v3247, 0
        %3449 = vmatprep.subr.bf16.mxu0 0
        %3450 = vmatpush1.bf16.xpose.msra.mxu0 0
        %3451 = vmatprep.subr.bf16.mxu0 0
        %3452 = vmatpush1.bf16.xpose.msra.mxu0 0
        %3453 = vmatprep.subr.bf16.mxu0 0
        %3454 = vmatpush1.bf16.xpose.msra.mxu0 0
        %3455 = vmatprep.subr.bf16.mxu0 0
        %3456 = vmatpush1.bf16.xpose.msra.mxu0 0
        %3457 = vmatprep.subr.bf16.mxu0 0
        %3458 = vmatpush1.bf16.xpose.msra.mxu0 0
        %3459 = vmatprep.subr.bf16.mxu0 0
        %3460 = vmatpush1.bf16.xpose.msra.mxu0 0
        %3461 = vmatprep.subr.bf16.mxu0 0
        %3462 = vmatpush1.bf16.xpose.msra.mxu0 0
        %3463 = vmatprep.subr.bf16.mxu0 0
        %3464 = vmatpush1.bf16.xpose.msra.mxu0 %v3447
        %3465 = vmatprep.subr.bf16.mxu0 0
        %3466 = vmatpush2.bf16.xpose.msra.mxu0 0
        %3467 = vmatprep.subr.bf16.mxu0 0
        %3468 = vmatpush2.bf16.xpose.msra.mxu0 0
        %3469 = vmatprep.subr.bf16.mxu0 0
        %3470 = vmatpush2.bf16.xpose.msra.mxu0 0
        %3471 = vmatprep.subr.bf16.mxu0 0
        %3472 = vmatpush2.bf16.xpose.msra.mxu0 0
        %3473 = vmatprep.subr.bf16.mxu0 0
        %3474 = vmatpush2.bf16.xpose.msra.mxu0 0
        %3475 = vmatprep.subr.bf16.mxu0 0
        %3476 = vmatpush2.bf16.xpose.msra.mxu0 0
        %3477 = vmatprep.subr.bf16.mxu0 0
        %3478 = vmatpush2.bf16.xpose.msra.mxu0 0
        %3479 = vmatprep.subr.bf16.mxu0 0
        %3480 = vmatpush2.bf16.xpose.msra.mxu0 0
        %3481 = vmatprep.mubr.bf16.mxu0 0
        %3482 = vmatmul.mubr.bf16.gmra.mxu0 %v3444
        %v3483 = vpop.f32.mrf.mxu0
        %v3484 = vadd.f32 0.0, %v3483
        %v3485 = vpop.f32.mrf.mxu0
        %v3486 = vpop.f32.mrf.mxu0
        %v3487 = vpop.f32.mrf.mxu0
        %3488 = vdwg.mxu0
        %v3490 = vsel %vm1165, %v3232, 0
        %v3493 = vsel %vm1165, %v3248, 0
        %3495 = vmatprep.subr.bf16.mxu0 0
        %3496 = vmatpush1.bf16.xpose.msra.mxu0 0
        %3497 = vmatprep.subr.bf16.mxu0 0
        %3498 = vmatpush1.bf16.xpose.msra.mxu0 0
        %3499 = vmatprep.subr.bf16.mxu0 0
        %3500 = vmatpush1.bf16.xpose.msra.mxu0 0
        %3501 = vmatprep.subr.bf16.mxu0 0
        %3502 = vmatpush1.bf16.xpose.msra.mxu0 0
        %3503 = vmatprep.subr.bf16.mxu0 0
        %3504 = vmatpush1.bf16.xpose.msra.mxu0 0
        %3505 = vmatprep.subr.bf16.mxu0 0
        %3506 = vmatpush1.bf16.xpose.msra.mxu0 0
        %3507 = vmatprep.subr.bf16.mxu0 0
        %3508 = vmatpush1.bf16.xpose.msra.mxu0 0
        %3509 = vmatprep.subr.bf16.mxu0 0
        %3510 = vmatpush1.bf16.xpose.msra.mxu0 %v3493
        %3511 = vmatprep.subr.bf16.mxu0 0
        %3512 = vmatpush2.bf16.xpose.msra.mxu0 0
        %3513 = vmatprep.subr.bf16.mxu0 0
        %3514 = vmatpush2.bf16.xpose.msra.mxu0 0
        %3515 = vmatprep.subr.bf16.mxu0 0
        %3516 = vmatpush2.bf16.xpose.msra.mxu0 0
        %3517 = vmatprep.subr.bf16.mxu0 0
        %3518 = vmatpush2.bf16.xpose.msra.mxu0 0
        %3519 = vmatprep.subr.bf16.mxu0 0
        %3520 = vmatpush2.bf16.xpose.msra.mxu0 0
        %3521 = vmatprep.subr.bf16.mxu0 0
        %3522 = vmatpush2.bf16.xpose.msra.mxu0 0
        %3523 = vmatprep.subr.bf16.mxu0 0
        %3524 = vmatpush2.bf16.xpose.msra.mxu0 0
        %3525 = vmatprep.subr.bf16.mxu0 0
        %3526 = vmatpush2.bf16.xpose.msra.mxu0 0
        %3527 = vmatprep.mubr.bf16.mxu0 0
        %3528 = vmatmul.mubr.bf16.gmra.mxu0 %v3490
        %v3529 = vpop.f32.mrf.mxu0
        %v3530 = vadd.f32 0.0, %v3529
        %v3531 = vpop.f32.mrf.mxu0
        %v3532 = vpop.f32.mrf.mxu0
        %v3533 = vpop.f32.mrf.mxu0
        %3534 = vdwg.mxu0
        %v3536 = vsel %vm1165, %v3233, 0
        %v3539 = vsel %vm1165, %v3249, 0
        %3541 = vmatprep.subr.bf16.mxu0 0
        %3542 = vmatpush1.bf16.xpose.msra.mxu0 0
        %3543 = vmatprep.subr.bf16.mxu0 0
        %3544 = vmatpush1.bf16.xpose.msra.mxu0 0
        %3545 = vmatprep.subr.bf16.mxu0 0
        %3546 = vmatpush1.bf16.xpose.msra.mxu0 0
        %3547 = vmatprep.subr.bf16.mxu0 0
        %3548 = vmatpush1.bf16.xpose.msra.mxu0 0
        %3549 = vmatprep.subr.bf16.mxu0 0
        %3550 = vmatpush1.bf16.xpose.msra.mxu0 0
        %3551 = vmatprep.subr.bf16.mxu0 0
        %3552 = vmatpush1.bf16.xpose.msra.mxu0 0
        %3553 = vmatprep.subr.bf16.mxu0 0
        %3554 = vmatpush1.bf16.xpose.msra.mxu0 0
        %3555 = vmatprep.subr.bf16.mxu0 0
        %3556 = vmatpush1.bf16.xpose.msra.mxu0 %v3539
        %3557 = vmatprep.subr.bf16.mxu0 0
        %3558 = vmatpush2.bf16.xpose.msra.mxu0 0
        %3559 = vmatprep.subr.bf16.mxu0 0
        %3560 = vmatpush2.bf16.xpose.msra.mxu0 0
        %3561 = vmatprep.subr.bf16.mxu0 0
        %3562 = vmatpush2.bf16.xpose.msra.mxu0 0
        %3563 = vmatprep.subr.bf16.mxu0 0
        %3564 = vmatpush2.bf16.xpose.msra.mxu0 0
        %3565 = vmatprep.subr.bf16.mxu0 0
        %3566 = vmatpush2.bf16.xpose.msra.mxu0 0
        %3567 = vmatprep.subr.bf16.mxu0 0
        %3568 = vmatpush2.bf16.xpose.msra.mxu0 0
        %3569 = vmatprep.subr.bf16.mxu0 0
        %3570 = vmatpush2.bf16.xpose.msra.mxu0 0
        %3571 = vmatprep.subr.bf16.mxu0 0
        %3572 = vmatpush2.bf16.xpose.msra.mxu0 0
        %3573 = vmatprep.mubr.bf16.mxu0 0
        %3574 = vmatmul.mubr.bf16.gmra.mxu0 %v3536
        %v3575 = vpop.f32.mrf.mxu0
        %v3576 = vadd.f32 0.0, %v3575
        %v3577 = vpop.f32.mrf.mxu0
        %v3578 = vpop.f32.mrf.mxu0
        %v3579 = vpop.f32.mrf.mxu0
        %3580 = vdwg.mxu0
        %v3582 = vsel %vm1165, %v3234, 0
        %v3585 = vsel %vm1165, %v3250, 0
        %3587 = vmatprep.subr.bf16.mxu0 0
        %3588 = vmatpush1.bf16.xpose.msra.mxu0 0
        %3589 = vmatprep.subr.bf16.mxu0 0
        %3590 = vmatpush1.bf16.xpose.msra.mxu0 0
        %3591 = vmatprep.subr.bf16.mxu0 0
        %3592 = vmatpush1.bf16.xpose.msra.mxu0 0
        %3593 = vmatprep.subr.bf16.mxu0 0
        %3594 = vmatpush1.bf16.xpose.msra.mxu0 0
        %3595 = vmatprep.subr.bf16.mxu0 0
        %3596 = vmatpush1.bf16.xpose.msra.mxu0 0
        %3597 = vmatprep.subr.bf16.mxu0 0
        %3598 = vmatpush1.bf16.xpose.msra.mxu0 0
        %3599 = vmatprep.subr.bf16.mxu0 0
        %3600 = vmatpush1.bf16.xpose.msra.mxu0 0
        %3601 = vmatprep.subr.bf16.mxu0 0
        %3602 = vmatpush1.bf16.xpose.msra.mxu0 %v3585
        %3603 = vmatprep.subr.bf16.mxu0 0
        %3604 = vmatpush2.bf16.xpose.msra.mxu0 0
        %3605 = vmatprep.subr.bf16.mxu0 0
        %3606 = vmatpush2.bf16.xpose.msra.mxu0 0
        %3607 = vmatprep.subr.bf16.mxu0 0
        %3608 = vmatpush2.bf16.xpose.msra.mxu0 0
        %3609 = vmatprep.subr.bf16.mxu0 0
        %3610 = vmatpush2.bf16.xpose.msra.mxu0 0
        %3611 = vmatprep.subr.bf16.mxu0 0
        %3612 = vmatpush2.bf16.xpose.msra.mxu0 0
        %3613 = vmatprep.subr.bf16.mxu0 0
        %3614 = vmatpush2.bf16.xpose.msra.mxu0 0
        %3615 = vmatprep.subr.bf16.mxu0 0
        %3616 = vmatpush2.bf16.xpose.msra.mxu0 0
        %3617 = vmatprep.subr.bf16.mxu0 0
        %3618 = vmatpush2.bf16.xpose.msra.mxu0 0
        %3619 = vmatprep.mubr.bf16.mxu0 0
        %3620 = vmatmul.mubr.bf16.gmra.mxu0 %v3582
        %v3621 = vpop.f32.mrf.mxu0
        %v3622 = vadd.f32 0.0, %v3621
        %v3623 = vpop.f32.mrf.mxu0
        %v3624 = vpop.f32.mrf.mxu0
        %v3625 = vpop.f32.mrf.mxu0
        %3626 = vdwg.mxu0
        %v3628 = vsel %vm1165, %v3235, 0
        %v3631 = vsel %vm1165, %v3251, 0
        %3633 = vmatprep.subr.bf16.mxu0 0
        %3634 = vmatpush1.bf16.xpose.msra.mxu0 0
        %3635 = vmatprep.subr.bf16.mxu0 0
        %3636 = vmatpush1.bf16.xpose.msra.mxu0 0
        %3637 = vmatprep.subr.bf16.mxu0 0
        %3638 = vmatpush1.bf16.xpose.msra.mxu0 0
        %3639 = vmatprep.subr.bf16.mxu0 0
        %3640 = vmatpush1.bf16.xpose.msra.mxu0 0
        %3641 = vmatprep.subr.bf16.mxu0 0
        %3642 = vmatpush1.bf16.xpose.msra.mxu0 0
        %3643 = vmatprep.subr.bf16.mxu0 0
        %3644 = vmatpush1.bf16.xpose.msra.mxu0 0
        %3645 = vmatprep.subr.bf16.mxu0 0
        %3646 = vmatpush1.bf16.xpose.msra.mxu0 0
        %3647 = vmatprep.subr.bf16.mxu0 0
        %3648 = vmatpush1.bf16.xpose.msra.mxu0 %v3631
        %3649 = vmatprep.subr.bf16.mxu0 0
        %3650 = vmatpush2.bf16.xpose.msra.mxu0 0
        %3651 = vmatprep.subr.bf16.mxu0 0
        %3652 = vmatpush2.bf16.xpose.msra.mxu0 0
        %3653 = vmatprep.subr.bf16.mxu0 0
        %3654 = vmatpush2.bf16.xpose.msra.mxu0 0
        %3655 = vmatprep.subr.bf16.mxu0 0
        %3656 = vmatpush2.bf16.xpose.msra.mxu0 0
        %3657 = vmatprep.subr.bf16.mxu0 0
        %3658 = vmatpush2.bf16.xpose.msra.mxu0 0
        %3659 = vmatprep.subr.bf16.mxu0 0
        %3660 = vmatpush2.bf16.xpose.msra.mxu0 0
        %3661 = vmatprep.subr.bf16.mxu0 0
        %3662 = vmatpush2.bf16.xpose.msra.mxu0 0
        %3663 = vmatprep.subr.bf16.mxu0 0
        %3664 = vmatpush2.bf16.xpose.msra.mxu0 0
        %3665 = vmatprep.mubr.bf16.mxu0 0
        %3666 = vmatmul.mubr.bf16.gmra.mxu0 %v3628
        %v3667 = vpop.f32.mrf.mxu0
        %v3668 = vadd.f32 0.0, %v3667
        %v3669 = vpop.f32.mrf.mxu0
        %v3670 = vpop.f32.mrf.mxu0
        %v3671 = vpop.f32.mrf.mxu0
        %3672 = vdwg.mxu0
        %v3674 = vsel %vm1165, %v3236, 0
        %v3677 = vsel %vm1165, %v3252, 0
        %3679 = vmatprep.subr.bf16.mxu0 0
        %3680 = vmatpush1.bf16.xpose.msra.mxu0 0
        %3681 = vmatprep.subr.bf16.mxu0 0
        %3682 = vmatpush1.bf16.xpose.msra.mxu0 0
        %3683 = vmatprep.subr.bf16.mxu0 0
        %3684 = vmatpush1.bf16.xpose.msra.mxu0 0
        %3685 = vmatprep.subr.bf16.mxu0 0
        %3686 = vmatpush1.bf16.xpose.msra.mxu0 0
        %3687 = vmatprep.subr.bf16.mxu0 0
        %3688 = vmatpush1.bf16.xpose.msra.mxu0 0
        %3689 = vmatprep.subr.bf16.mxu0 0
        %3690 = vmatpush1.bf16.xpose.msra.mxu0 0
        %3691 = vmatprep.subr.bf16.mxu0 0
        %3692 = vmatpush1.bf16.xpose.msra.mxu0 0
        %3693 = vmatprep.subr.bf16.mxu0 0
        %3694 = vmatpush1.bf16.xpose.msra.mxu0 %v3677
        %3695 = vmatprep.subr.bf16.mxu0 0
        %3696 = vmatpush2.bf16.xpose.msra.mxu0 0
        %3697 = vmatprep.subr.bf16.mxu0 0
        %3698 = vmatpush2.bf16.xpose.msra.mxu0 0
        %3699 = vmatprep.subr.bf16.mxu0 0
        %3700 = vmatpush2.bf16.xpose.msra.mxu0 0
        %3701 = vmatprep.subr.bf16.mxu0 0
        %3702 = vmatpush2.bf16.xpose.msra.mxu0 0
        %3703 = vmatprep.subr.bf16.mxu0 0
        %3704 = vmatpush2.bf16.xpose.msra.mxu0 0
        %3705 = vmatprep.subr.bf16.mxu0 0
        %3706 = vmatpush2.bf16.xpose.msra.mxu0 0
        %3707 = vmatprep.subr.bf16.mxu0 0
        %3708 = vmatpush2.bf16.xpose.msra.mxu0 0
        %3709 = vmatprep.subr.bf16.mxu0 0
        %3710 = vmatpush2.bf16.xpose.msra.mxu0 0
        %3711 = vmatprep.mubr.bf16.mxu0 0
        %3712 = vmatmul.mubr.bf16.gmra.mxu0 %v3674
        %v3713 = vpop.f32.mrf.mxu0
        %v3714 = vadd.f32 0.0, %v3713
        %v3715 = vpop.f32.mrf.mxu0
        %v3716 = vpop.f32.mrf.mxu0
        %v3717 = vpop.f32.mrf.mxu0
        %3718 = vdwg.mxu0
        %v3720 = vsel %vm1165, %v3237, 0
        %v3723 = vsel %vm1165, %v3253, 0
        %3725 = vmatprep.subr.bf16.mxu0 0
        %3726 = vmatpush1.bf16.xpose.msra.mxu0 0
        %3727 = vmatprep.subr.bf16.mxu0 0
        %3728 = vmatpush1.bf16.xpose.msra.mxu0 0
        %3729 = vmatprep.subr.bf16.mxu0 0
        %3730 = vmatpush1.bf16.xpose.msra.mxu0 0
        %3731 = vmatprep.subr.bf16.mxu0 0
        %3732 = vmatpush1.bf16.xpose.msra.mxu0 0
        %3733 = vmatprep.subr.bf16.mxu0 0
        %3734 = vmatpush1.bf16.xpose.msra.mxu0 0
        %3735 = vmatprep.subr.bf16.mxu0 0
        %3736 = vmatpush1.bf16.xpose.msra.mxu0 0
        %3737 = vmatprep.subr.bf16.mxu0 0
        %3738 = vmatpush1.bf16.xpose.msra.mxu0 0
        %3739 = vmatprep.subr.bf16.mxu0 0
        %3740 = vmatpush1.bf16.xpose.msra.mxu0 %v3723
        %3741 = vmatprep.subr.bf16.mxu0 0
        %3742 = vmatpush2.bf16.xpose.msra.mxu0 0
        %3743 = vmatprep.subr.bf16.mxu0 0
        %3744 = vmatpush2.bf16.xpose.msra.mxu0 0
        %3745 = vmatprep.subr.bf16.mxu0 0
        %3746 = vmatpush2.bf16.xpose.msra.mxu0 0
        %3747 = vmatprep.subr.bf16.mxu0 0
        %3748 = vmatpush2.bf16.xpose.msra.mxu0 0
        %3749 = vmatprep.subr.bf16.mxu0 0
        %3750 = vmatpush2.bf16.xpose.msra.mxu0 0
        %3751 = vmatprep.subr.bf16.mxu0 0
        %3752 = vmatpush2.bf16.xpose.msra.mxu0 0
        %3753 = vmatprep.subr.bf16.mxu0 0
        %3754 = vmatpush2.bf16.xpose.msra.mxu0 0
        %3755 = vmatprep.subr.bf16.mxu0 0
        %3756 = vmatpush2.bf16.xpose.msra.mxu0 0
        %3757 = vmatprep.mubr.bf16.mxu0 0
        %3758 = vmatmul.mubr.bf16.gmra.mxu0 %v3720
        %v3759 = vpop.f32.mrf.mxu0
        %v3760 = vadd.f32 0.0, %v3759
        %v3761 = vpop.f32.mrf.mxu0
        %v3762 = vpop.f32.mrf.mxu0
        %v3763 = vpop.f32.mrf.mxu0
        %3764 = vdwg.mxu0
        %v3766 = vsel %vm1165, %v3238, 0
        %v3769 = vsel %vm1165, %v3254, 0
        %3771 = vmatprep.subr.bf16.mxu0 0
        %3772 = vmatpush1.bf16.xpose.msra.mxu0 0
        %3773 = vmatprep.subr.bf16.mxu0 0
        %3774 = vmatpush1.bf16.xpose.msra.mxu0 0
        %3775 = vmatprep.subr.bf16.mxu0 0
        %3776 = vmatpush1.bf16.xpose.msra.mxu0 0
        %3777 = vmatprep.subr.bf16.mxu0 0
        %3778 = vmatpush1.bf16.xpose.msra.mxu0 0
        %3779 = vmatprep.subr.bf16.mxu0 0
        %3780 = vmatpush1.bf16.xpose.msra.mxu0 0
        %3781 = vmatprep.subr.bf16.mxu0 0
        %3782 = vmatpush1.bf16.xpose.msra.mxu0 0
        %3783 = vmatprep.subr.bf16.mxu0 0
        %3784 = vmatpush1.bf16.xpose.msra.mxu0 0
        %3785 = vmatprep.subr.bf16.mxu0 0
        %3786 = vmatpush1.bf16.xpose.msra.mxu0 %v3769
        %3787 = vmatprep.subr.bf16.mxu0 0
        %3788 = vmatpush2.bf16.xpose.msra.mxu0 0
        %3789 = vmatprep.subr.bf16.mxu0 0
        %3790 = vmatpush2.bf16.xpose.msra.mxu0 0
        %3791 = vmatprep.subr.bf16.mxu0 0
        %3792 = vmatpush2.bf16.xpose.msra.mxu0 0
        %3793 = vmatprep.subr.bf16.mxu0 0
        %3794 = vmatpush2.bf16.xpose.msra.mxu0 0
        %3795 = vmatprep.subr.bf16.mxu0 0
        %3796 = vmatpush2.bf16.xpose.msra.mxu0 0
        %3797 = vmatprep.subr.bf16.mxu0 0
        %3798 = vmatpush2.bf16.xpose.msra.mxu0 0
        %3799 = vmatprep.subr.bf16.mxu0 0
        %3800 = vmatpush2.bf16.xpose.msra.mxu0 0
        %3801 = vmatprep.subr.bf16.mxu0 0
        %3802 = vmatpush2.bf16.xpose.msra.mxu0 0
        %3803 = vmatprep.mubr.bf16.mxu0 0
        %3804 = vmatmul.mubr.bf16.gmra.mxu0 %v3766
        %v3805 = vpop.f32.mrf.mxu0
        %v3806 = vadd.f32 0.0, %v3805
        %v3807 = vpop.f32.mrf.mxu0
        %v3808 = vpop.f32.mrf.mxu0
        %v3809 = vpop.f32.mrf.mxu0
        %3810 = vdwg.mxu0
        %v3812 = vsel %vm1165, %v3239, 0
        %v3815 = vsel %vm1165, %v3255, 0
        %3817 = vmatprep.subr.bf16.mxu0 0
        %3818 = vmatpush1.bf16.xpose.msra.mxu0 0
        %3819 = vmatprep.subr.bf16.mxu0 0
        %3820 = vmatpush1.bf16.xpose.msra.mxu0 0
        %3821 = vmatprep.subr.bf16.mxu0 0
        %3822 = vmatpush1.bf16.xpose.msra.mxu0 0
        %3823 = vmatprep.subr.bf16.mxu0 0
        %3824 = vmatpush1.bf16.xpose.msra.mxu0 0
        %3825 = vmatprep.subr.bf16.mxu0 0
        %3826 = vmatpush1.bf16.xpose.msra.mxu0 0
        %3827 = vmatprep.subr.bf16.mxu0 0
        %3828 = vmatpush1.bf16.xpose.msra.mxu0 0
        %3829 = vmatprep.subr.bf16.mxu0 0
        %3830 = vmatpush1.bf16.xpose.msra.mxu0 0
        %3831 = vmatprep.subr.bf16.mxu0 0
        %3832 = vmatpush1.bf16.xpose.msra.mxu0 %v3815
        %3833 = vmatprep.subr.bf16.mxu0 0
        %3834 = vmatpush2.bf16.xpose.msra.mxu0 0
        %3835 = vmatprep.subr.bf16.mxu0 0
        %3836 = vmatpush2.bf16.xpose.msra.mxu0 0
        %3837 = vmatprep.subr.bf16.mxu0 0
        %3838 = vmatpush2.bf16.xpose.msra.mxu0 0
        %3839 = vmatprep.subr.bf16.mxu0 0
        %3840 = vmatpush2.bf16.xpose.msra.mxu0 0
        %3841 = vmatprep.subr.bf16.mxu0 0
        %3842 = vmatpush2.bf16.xpose.msra.mxu0 0
        %3843 = vmatprep.subr.bf16.mxu0 0
        %3844 = vmatpush2.bf16.xpose.msra.mxu0 0
        %3845 = vmatprep.subr.bf16.mxu0 0
        %3846 = vmatpush2.bf16.xpose.msra.mxu0 0
        %3847 = vmatprep.subr.bf16.mxu0 0
        %3848 = vmatpush2.bf16.xpose.msra.mxu0 0
        %3849 = vmatprep.mubr.bf16.mxu0 0
        %3850 = vmatmul.mubr.bf16.gmra.mxu0 %v3812
        %v3851 = vpop.f32.mrf.mxu0
        %v3852 = vadd.f32 0.0, %v3851
        %v3853 = vpop.f32.mrf.mxu0
        %v3854 = vpop.f32.mrf.mxu0
        %v3855 = vpop.f32.mrf.mxu0
        %3856 = vdwg.mxu0
        %v3858 = vsel %vm1165, %v3240, 0
        %v3861 = vsel %vm1165, %v3256, 0
        %3863 = vmatprep.subr.bf16.mxu0 0
        %3864 = vmatpush1.bf16.xpose.msra.mxu0 0
        %3865 = vmatprep.subr.bf16.mxu0 0
        %3866 = vmatpush1.bf16.xpose.msra.mxu0 0
        %3867 = vmatprep.subr.bf16.mxu0 0
        %3868 = vmatpush1.bf16.xpose.msra.mxu0 0
        %3869 = vmatprep.subr.bf16.mxu0 0
        %3870 = vmatpush1.bf16.xpose.msra.mxu0 0
        %3871 = vmatprep.subr.bf16.mxu0 0
        %3872 = vmatpush1.bf16.xpose.msra.mxu0 0
        %3873 = vmatprep.subr.bf16.mxu0 0
        %3874 = vmatpush1.bf16.xpose.msra.mxu0 0
        %3875 = vmatprep.subr.bf16.mxu0 0
        %3876 = vmatpush1.bf16.xpose.msra.mxu0 0
        %3877 = vmatprep.subr.bf16.mxu0 0
        %3878 = vmatpush1.bf16.xpose.msra.mxu0 %v3861
        %3879 = vmatprep.subr.bf16.mxu0 0
        %3880 = vmatpush2.bf16.xpose.msra.mxu0 0
        %3881 = vmatprep.subr.bf16.mxu0 0
        %3882 = vmatpush2.bf16.xpose.msra.mxu0 0
        %3883 = vmatprep.subr.bf16.mxu0 0
        %3884 = vmatpush2.bf16.xpose.msra.mxu0 0
        %3885 = vmatprep.subr.bf16.mxu0 0
        %3886 = vmatpush2.bf16.xpose.msra.mxu0 0
        %3887 = vmatprep.subr.bf16.mxu0 0
        %3888 = vmatpush2.bf16.xpose.msra.mxu0 0
        %3889 = vmatprep.subr.bf16.mxu0 0
        %3890 = vmatpush2.bf16.xpose.msra.mxu0 0
        %3891 = vmatprep.subr.bf16.mxu0 0
        %3892 = vmatpush2.bf16.xpose.msra.mxu0 0
        %3893 = vmatprep.subr.bf16.mxu0 0
        %3894 = vmatpush2.bf16.xpose.msra.mxu0 0
        %3895 = vmatprep.mubr.bf16.mxu0 0
        %3896 = vmatmul.mubr.bf16.gmra.mxu0 %v3858
        %v3897 = vpop.f32.mrf.mxu0
        %v3898 = vadd.f32 0.0, %v3897
        %v3899 = vpop.f32.mrf.mxu0
        %v3900 = vpop.f32.mrf.mxu0
        %v3901 = vpop.f32.mrf.mxu0
        %3902 = vdwg.mxu0
        %v3904 = vsel %vm1165, %v3241, 0
        %v3907 = vsel %vm1165, %v3257, 0
        %3909 = vmatprep.subr.bf16.mxu0 0
        %3910 = vmatpush1.bf16.xpose.msra.mxu0 0
        %3911 = vmatprep.subr.bf16.mxu0 0
        %3912 = vmatpush1.bf16.xpose.msra.mxu0 0
        %3913 = vmatprep.subr.bf16.mxu0 0
        %3914 = vmatpush1.bf16.xpose.msra.mxu0 0
        %3915 = vmatprep.subr.bf16.mxu0 0
        %3916 = vmatpush1.bf16.xpose.msra.mxu0 0
        %3917 = vmatprep.subr.bf16.mxu0 0
        %3918 = vmatpush1.bf16.xpose.msra.mxu0 0
        %3919 = vmatprep.subr.bf16.mxu0 0
        %3920 = vmatpush1.bf16.xpose.msra.mxu0 0
        %3921 = vmatprep.subr.bf16.mxu0 0
        %3922 = vmatpush1.bf16.xpose.msra.mxu0 0
        %3923 = vmatprep.subr.bf16.mxu0 0
        %3924 = vmatpush1.bf16.xpose.msra.mxu0 %v3907
        %3925 = vmatprep.subr.bf16.mxu0 0
        %3926 = vmatpush2.bf16.xpose.msra.mxu0 0
        %3927 = vmatprep.subr.bf16.mxu0 0
        %3928 = vmatpush2.bf16.xpose.msra.mxu0 0
        %3929 = vmatprep.subr.bf16.mxu0 0
        %3930 = vmatpush2.bf16.xpose.msra.mxu0 0
        %3931 = vmatprep.subr.bf16.mxu0 0
        %3932 = vmatpush2.bf16.xpose.msra.mxu0 0
        %3933 = vmatprep.subr.bf16.mxu0 0
        %3934 = vmatpush2.bf16.xpose.msra.mxu0 0
        %3935 = vmatprep.subr.bf16.mxu0 0
        %3936 = vmatpush2.bf16.xpose.msra.mxu0 0
        %3937 = vmatprep.subr.bf16.mxu0 0
        %3938 = vmatpush2.bf16.xpose.msra.mxu0 0
        %3939 = vmatprep.subr.bf16.mxu0 0
        %3940 = vmatpush2.bf16.xpose.msra.mxu0 0
        %3941 = vmatprep.mubr.bf16.mxu0 0
        %3942 = vmatmul.mubr.bf16.gmra.mxu0 %v3904
        %v3943 = vpop.f32.mrf.mxu0
        %v3944 = vadd.f32 0.0, %v3943
        %v3945 = vpop.f32.mrf.mxu0
        %v3946 = vpop.f32.mrf.mxu0
        %v3947 = vpop.f32.mrf.mxu0
        %3948 = vdwg.mxu0
        %v3950 = vsel %vm1165, %v3242, 0
        %v3953 = vsel %vm1165, %v3258, 0
        %3955 = vmatprep.subr.bf16.mxu0 0
        %3956 = vmatpush1.bf16.xpose.msra.mxu0 0
        %3957 = vmatprep.subr.bf16.mxu0 0
        %3958 = vmatpush1.bf16.xpose.msra.mxu0 0
        %3959 = vmatprep.subr.bf16.mxu0 0
        %3960 = vmatpush1.bf16.xpose.msra.mxu0 0
        %3961 = vmatprep.subr.bf16.mxu0 0
        %3962 = vmatpush1.bf16.xpose.msra.mxu0 0
        %3963 = vmatprep.subr.bf16.mxu0 0
        %3964 = vmatpush1.bf16.xpose.msra.mxu0 0
        %3965 = vmatprep.subr.bf16.mxu0 0
        %3966 = vmatpush1.bf16.xpose.msra.mxu0 0
        %3967 = vmatprep.subr.bf16.mxu0 0
        %3968 = vmatpush1.bf16.xpose.msra.mxu0 0
        %3969 = vmatprep.subr.bf16.mxu0 0
        %3970 = vmatpush1.bf16.xpose.msra.mxu0 %v3953
        %3971 = vmatprep.subr.bf16.mxu0 0
        %3972 = vmatpush2.bf16.xpose.msra.mxu0 0
        %3973 = vmatprep.subr.bf16.mxu0 0
        %3974 = vmatpush2.bf16.xpose.msra.mxu0 0
        %3975 = vmatprep.subr.bf16.mxu0 0
        %3976 = vmatpush2.bf16.xpose.msra.mxu0 0
        %3977 = vmatprep.subr.bf16.mxu0 0
        %3978 = vmatpush2.bf16.xpose.msra.mxu0 0
        %3979 = vmatprep.subr.bf16.mxu0 0
        %3980 = vmatpush2.bf16.xpose.msra.mxu0 0
        %3981 = vmatprep.subr.bf16.mxu0 0
        %3982 = vmatpush2.bf16.xpose.msra.mxu0 0
        %3983 = vmatprep.subr.bf16.mxu0 0
        %3984 = vmatpush2.bf16.xpose.msra.mxu0 0
        %3985 = vmatprep.subr.bf16.mxu0 0
        %3986 = vmatpush2.bf16.xpose.msra.mxu0 0
        %3987 = vmatprep.mubr.bf16.mxu0 0
        %3988 = vmatmul.mubr.bf16.gmra.mxu0 %v3950
        %v3989 = vpop.f32.mrf.mxu0
        %v3990 = vadd.f32 0.0, %v3989
        %v3991 = vpop.f32.mrf.mxu0
        %v3992 = vpop.f32.mrf.mxu0
        %v3993 = vpop.f32.mrf.mxu0
        %3994 = vdwg.mxu0
        %v3995 = vmul.f32 %v3300, 0.25
        %v3996 = vmul.f32 %v3346, 0.25
        %v3997 = vmul.f32 %v3392, 0.25
        %v3998 = vmul.f32 %v3438, 0.25
        %v3999 = vmul.f32 %v3484, 0.25
        %v4000 = vmul.f32 %v3530, 0.25
        %v4001 = vmul.f32 %v3576, 0.25
        %v4002 = vmul.f32 %v3622, 0.25
        %v4003 = vmul.f32 %v3668, 0.25
        %v4004 = vmul.f32 %v3714, 0.25
        %v4005 = vmul.f32 %v3760, 0.25
        %v4006 = vmul.f32 %v3806, 0.25
        %v4007 = vmul.f32 %v3852, 0.25
        %v4008 = vmul.f32 %v3898, 0.25
        %v4009 = vmul.f32 %v3944, 0.25
        %v4010 = vmul.f32 %v3990, 0.25
        %v4011 = vadd.f32 %v3995, %v511
        %v4012 = vadd.f32 %v3996, %v511
        %v4013 = vadd.f32 %v3997, %v511
        %v4014 = vadd.f32 %v3998, %v511
        %v4015 = vadd.f32 %v3999, %v511
        %v4016 = vadd.f32 %v4000, %v511
        %v4017 = vadd.f32 %v4001, %v511
        %v4018 = vadd.f32 %v4002, %v511
        %v4019 = vadd.f32 %v4003, %v511
        %v4020 = vadd.f32 %v4004, %v511
        %v4021 = vadd.f32 %v4005, %v511
        %v4022 = vadd.f32 %v4006, %v511
        %v4023 = vadd.f32 %v4007, %v511
        %v4024 = vadd.f32 %v4008, %v511
        %v4025 = vadd.f32 %v4009, %v511
        %v4026 = vadd.f32 %v4010, %v511
        %v4027 = vsel %vm1934, %v4011, -inf
        %4028 = vmax.xlane.f32.xlu0 %v4027
        %v4029 = vpop.xlane.xlu0 %4028
        %v4030 = vsel %vm1934, %v4012, -inf
        %4031 = vmax.xlane.f32.xlu0 %v4030
        %v4032 = vpop.xlane.xlu0 %4031
        %v4033 = vsel %vm1934, %v4013, -inf
        %4034 = vmax.xlane.f32.xlu0 %v4033
        %v4035 = vpop.xlane.xlu0 %4034
        %v4036 = vsel %vm1934, %v4014, -inf
        %4037 = vmax.xlane.f32.xlu0 %v4036
        %v4038 = vpop.xlane.xlu0 %4037
        %v4039 = vsel %vm1934, %v4015, -inf
        %4040 = vmax.xlane.f32.xlu0 %v4039
        %v4041 = vpop.xlane.xlu0 %4040
        %v4042 = vsel %vm1934, %v4016, -inf
        %4043 = vmax.xlane.f32.xlu0 %v4042
        %v4044 = vpop.xlane.xlu0 %4043
        %v4045 = vsel %vm1934, %v4017, -inf
        %4046 = vmax.xlane.f32.xlu0 %v4045
        %v4047 = vpop.xlane.xlu0 %4046
        %v4048 = vsel %vm1934, %v4018, -inf
        %4049 = vmax.xlane.f32.xlu0 %v4048
        %v4050 = vpop.xlane.xlu0 %4049
        %v4051 = vsel %vm1934, %v4019, -inf
        %4052 = vmax.xlane.f32.xlu0 %v4051
        %v4053 = vpop.xlane.xlu0 %4052
        %v4054 = vsel %vm1934, %v4020, -inf
        %4055 = vmax.xlane.f32.xlu0 %v4054
        %v4056 = vpop.xlane.xlu0 %4055
        %v4057 = vsel %vm1934, %v4021, -inf
        %4058 = vmax.xlane.f32.xlu0 %v4057
        %v4059 = vpop.xlane.xlu0 %4058
        %v4060 = vsel %vm1934, %v4022, -inf
        %4061 = vmax.xlane.f32.xlu0 %v4060
        %v4062 = vpop.xlane.xlu0 %4061
        %v4063 = vsel %vm1934, %v4023, -inf
        %4064 = vmax.xlane.f32.xlu0 %v4063
        %v4065 = vpop.xlane.xlu0 %4064
        %v4066 = vsel %vm1934, %v4024, -inf
        %4067 = vmax.xlane.f32.xlu0 %v4066
        %v4068 = vpop.xlane.xlu0 %4067
        %v4069 = vsel %vm1934, %v4025, -inf
        %4070 = vmax.xlane.f32.xlu0 %v4069
        %v4071 = vpop.xlane.xlu0 %4070
        %v4072 = vsel %vm1934, %v4026, -inf
        %4073 = vmax.xlane.f32.xlu0 %v4072
        %v4074 = vpop.xlane.xlu0 %4073
        %v4075 = vsub.f32 %v4011, %v4029
        %v4076 = vsub.f32 %v4012, %v4032
        %v4077 = vsub.f32 %v4013, %v4035
        %v4078 = vsub.f32 %v4014, %v4038
        %v4079 = vsub.f32 %v4015, %v4041
        %v4080 = vsub.f32 %v4016, %v4044
        %v4081 = vsub.f32 %v4017, %v4047
        %v4082 = vsub.f32 %v4018, %v4050
        %v4083 = vsub.f32 %v4019, %v4053
        %v4084 = vsub.f32 %v4020, %v4056
        %v4085 = vsub.f32 %v4021, %v4059
        %v4086 = vsub.f32 %v4022, %v4062
        %v4087 = vsub.f32 %v4023, %v4065
        %v4088 = vsub.f32 %v4024, %v4068
        %v4089 = vsub.f32 %v4025, %v4071
        %v4090 = vsub.f32 %v4026, %v4074
        %v4091 = vmul.f32 %v4075, 1.442695
        %v4092 = vpow.pop %v4091
        %v4093 = vmul.f32 %v4076, 1.442695
        %v4094 = vpow.pop %v4093
        %v4095 = vmul.f32 %v4077, 1.442695
        %v4096 = vpow.pop %v4095
        %v4097 = vmul.f32 %v4078, 1.442695
        %v4098 = vpow.pop %v4097
        %v4099 = vmul.f32 %v4079, 1.442695
        %v4100 = vpow.pop %v4099
        %v4101 = vmul.f32 %v4080, 1.442695
        %v4102 = vpow.pop %v4101
        %v4103 = vmul.f32 %v4081, 1.442695
        %v4104 = vpow.pop %v4103
        %v4105 = vmul.f32 %v4082, 1.442695
        %v4106 = vpow.pop %v4105
        %v4107 = vmul.f32 %v4083, 1.442695
        %v4108 = vpow.pop %v4107
        %v4109 = vmul.f32 %v4084, 1.442695
        %v4110 = vpow.pop %v4109
        %v4111 = vmul.f32 %v4085, 1.442695
        %v4112 = vpow.pop %v4111
        %v4113 = vmul.f32 %v4086, 1.442695
        %v4114 = vpow.pop %v4113
        %v4115 = vmul.f32 %v4087, 1.442695
        %v4116 = vpow.pop %v4115
        %v4117 = vmul.f32 %v4088, 1.442695
        %v4118 = vpow.pop %v4117
        %v4119 = vmul.f32 %v4089, 1.442695
        %v4120 = vpow.pop %v4119
        %v4121 = vmul.f32 %v4090, 1.442695
        %v4122 = vpow.pop %v4121
        %v4123 = vsel %vm1934, %v4092, 0.0
        %4124 = vadd.xlane.f32.xlu0 %v4123
        %v4125 = vpop.xlane.xlu0 %4124
        %v4126 = vsel %vm1934, %v4094, 0.0
        %4127 = vadd.xlane.f32.xlu0 %v4126
        %v4128 = vpop.xlane.xlu0 %4127
        %v4129 = vsel %vm1934, %v4096, 0.0
        %4130 = vadd.xlane.f32.xlu0 %v4129
        %v4131 = vpop.xlane.xlu0 %4130
        %v4132 = vsel %vm1934, %v4098, 0.0
        %4133 = vadd.xlane.f32.xlu0 %v4132
        %v4134 = vpop.xlane.xlu0 %4133
        %v4135 = vsel %vm1934, %v4100, 0.0
        %4136 = vadd.xlane.f32.xlu0 %v4135
        %v4137 = vpop.xlane.xlu0 %4136
        %v4138 = vsel %vm1934, %v4102, 0.0
        %4139 = vadd.xlane.f32.xlu0 %v4138
        %v4140 = vpop.xlane.xlu0 %4139
        %v4141 = vsel %vm1934, %v4104, 0.0
        %4142 = vadd.xlane.f32.xlu0 %v4141
        %v4143 = vpop.xlane.xlu0 %4142
        %v4144 = vsel %vm1934, %v4106, 0.0
        %4145 = vadd.xlane.f32.xlu0 %v4144
        %v4146 = vpop.xlane.xlu0 %4145
        %v4147 = vsel %vm1934, %v4108, 0.0
        %4148 = vadd.xlane.f32.xlu0 %v4147
        %v4149 = vpop.xlane.xlu0 %4148
        %v4150 = vsel %vm1934, %v4110, 0.0
        %4151 = vadd.xlane.f32.xlu0 %v4150
        %v4152 = vpop.xlane.xlu0 %4151
        %v4153 = vsel %vm1934, %v4112, 0.0
        %4154 = vadd.xlane.f32.xlu0 %v4153
        %v4155 = vpop.xlane.xlu0 %4154
        %v4156 = vsel %vm1934, %v4114, 0.0
        %4157 = vadd.xlane.f32.xlu0 %v4156
        %v4158 = vpop.xlane.xlu0 %4157
        %v4159 = vsel %vm1934, %v4116, 0.0
        %4160 = vadd.xlane.f32.xlu0 %v4159
        %v4161 = vpop.xlane.xlu0 %4160
        %v4162 = vsel %vm1934, %v4118, 0.0
        %4163 = vadd.xlane.f32.xlu0 %v4162
        %v4164 = vpop.xlane.xlu0 %4163
        %v4165 = vsel %vm1934, %v4120, 0.0
        %4166 = vadd.xlane.f32.xlu0 %v4165
        %v4167 = vpop.xlane.xlu0 %4166
        %v4168 = vsel %vm1934, %v4122, 0.0
        %4169 = vadd.xlane.f32.xlu0 %v4168
        %v4170 = vpop.xlane.xlu0 %4169
        %v4171 = vrcp.pop %v4125
        %v4172 = vrcp.pop %v4128
        %v4173 = vrcp.pop %v4131
        %v4174 = vrcp.pop %v4134
        %v4175 = vrcp.pop %v4137
        %v4176 = vrcp.pop %v4140
        %v4177 = vrcp.pop %v4143
        %v4178 = vrcp.pop %v4146
        %v4179 = vrcp.pop %v4149
        %v4180 = vrcp.pop %v4152
        %v4181 = vrcp.pop %v4155
        %v4182 = vrcp.pop %v4158
        %v4183 = vrcp.pop %v4161
        %v4184 = vrcp.pop %v4164
        %v4185 = vrcp.pop %v4167
        %v4186 = vrcp.pop %v4170
        %v4187 = vmul.f32 %v4092, %v4171
        %v4188 = vmul.f32 %v4094, %v4172
        %v4189 = vmul.f32 %v4096, %v4173
        %v4190 = vmul.f32 %v4098, %v4174
        %v4191 = vmul.f32 %v4100, %v4175
        %v4192 = vmul.f32 %v4102, %v4176
        %v4193 = vmul.f32 %v4104, %v4177
        %v4194 = vmul.f32 %v4106, %v4178
        %v4195 = vmul.f32 %v4108, %v4179
        %v4196 = vmul.f32 %v4110, %v4180
        %v4197 = vmul.f32 %v4112, %v4181
        %v4198 = vmul.f32 %v4114, %v4182
        %v4199 = vmul.f32 %v4116, %v4183
        %v4200 = vmul.f32 %v4118, %v4184
        %v4201 = vmul.f32 %v4120, %v4185
        %v4202 = vmul.f32 %v4122, %v4186
        %v4203 = vpack.c.bf16 %v4187, %v4187
        %v4204 = vpack.c.bf16 %v4188, %v4188
        %v4205 = vpack.c.bf16 %v4189, %v4189
        %v4206 = vpack.c.bf16 %v4190, %v4190
        %v4207 = vpack.c.bf16 %v4191, %v4191
        %v4208 = vpack.c.bf16 %v4192, %v4192
        %v4209 = vpack.c.bf16 %v4193, %v4193
        %v4210 = vpack.c.bf16 %v4194, %v4194
        %v4211 = vpack.c.bf16 %v4195, %v4195
        %v4212 = vpack.c.bf16 %v4196, %v4196
        %v4213 = vpack.c.bf16 %v4197, %v4197
        %v4214 = vpack.c.bf16 %v4198, %v4198
        %v4215 = vpack.c.bf16 %v4199, %v4199
        %v4216 = vpack.c.bf16 %v4200, %v4200
        %v4217 = vpack.c.bf16 %v4201, %v4201
        %v4218 = vpack.c.bf16 %v4202, %v4202
        %v4219 = vpack.c.bf16 %v3165, %v3165
        %v4220 = vpack.c.bf16 %v3168, %v3168
        %v4221 = vpack.c.bf16 %v3173, %v3173
        %v4222 = vpack.c.bf16 %v3176, %v3176
        %v4223 = vpack.c.bf16 %v3181, %v3181
        %v4224 = vpack.c.bf16 %v3184, %v3184
        %v4225 = vpack.c.bf16 %v3189, %v3189
        %v4226 = vpack.c.bf16 %v3192, %v3192
        %v4227 = vpack.c.bf16 %v3197, %v3197
        %v4228 = vpack.c.bf16 %v3200, %v3200
        %v4229 = vpack.c.bf16 %v3205, %v3205
        %v4230 = vpack.c.bf16 %v3208, %v3208
        %v4231 = vpack.c.bf16 %v3213, %v3213
        %v4232 = vpack.c.bf16 %v3216, %v3216
        %v4233 = vpack.c.bf16 %v3221, %v3221
        %v4234 = vpack.c.bf16 %v3224, %v3224
        %v4236 = vsel %vm1934, %v4203, 0
        %v4239 = vsel %vm2146, %v4219, 0
        %4241 = vmatprep.subr.bf16.mxu0 0
        %4242 = vmatpush1.bf16.msra.mxu0 0
        %4243 = vmatprep.subr.bf16.mxu0 0
        %4244 = vmatpush1.bf16.msra.mxu0 0
        %4245 = vmatprep.subr.bf16.mxu0 0
        %4246 = vmatpush1.bf16.msra.mxu0 0
        %4247 = vmatprep.subr.bf16.mxu0 0
        %4248 = vmatpush1.bf16.msra.mxu0 0
        %4249 = vmatprep.subr.bf16.mxu0 0
        %4250 = vmatpush1.bf16.msra.mxu0 0
        %4251 = vmatprep.subr.bf16.mxu0 0
        %4252 = vmatpush1.bf16.msra.mxu0 0
        %4253 = vmatprep.subr.bf16.mxu0 0
        %4254 = vmatpush1.bf16.msra.mxu0 0
        %4255 = vmatprep.subr.bf16.mxu0 0
        %4256 = vmatpush1.bf16.msra.mxu0 %v4239
        %4257 = vmatprep.subr.bf16.mxu0 0
        %4258 = vmatpush2.bf16.msra.mxu0 0
        %4259 = vmatprep.subr.bf16.mxu0 0
        %4260 = vmatpush2.bf16.msra.mxu0 0
        %4261 = vmatprep.subr.bf16.mxu0 0
        %4262 = vmatpush2.bf16.msra.mxu0 0
        %4263 = vmatprep.subr.bf16.mxu0 0
        %4264 = vmatpush2.bf16.msra.mxu0 0
        %4265 = vmatprep.subr.bf16.mxu0 0
        %4266 = vmatpush2.bf16.msra.mxu0 0
        %4267 = vmatprep.subr.bf16.mxu0 0
        %4268 = vmatpush2.bf16.msra.mxu0 0
        %4269 = vmatprep.subr.bf16.mxu0 0
        %4270 = vmatpush2.bf16.msra.mxu0 0
        %4271 = vmatprep.subr.bf16.mxu0 0
        %4272 = vmatpush2.bf16.msra.mxu0 0
        %4273 = vmatprep.mubr.bf16.mxu0 0
        %4274 = vmatmul.mubr.bf16.gmra.mxu0 %v4236
        %v4275 = vpop.f32.mrf.mxu0
        %v4276 = vadd.f32 0.0, %v4275
        %v4277 = vpop.f32.mrf.mxu0
        %v4278 = vpop.f32.mrf.mxu0
        %v4279 = vpop.f32.mrf.mxu0
        %4280 = vdwg.mxu0
        %v4282 = vsel %vm1934, %v4204, 0
        %v4285 = vsel %vm2146, %v4220, 0
        %4287 = vmatprep.subr.bf16.mxu0 0
        %4288 = vmatpush1.bf16.msra.mxu0 0
        %4289 = vmatprep.subr.bf16.mxu0 0
        %4290 = vmatpush1.bf16.msra.mxu0 0
        %4291 = vmatprep.subr.bf16.mxu0 0
        %4292 = vmatpush1.bf16.msra.mxu0 0
        %4293 = vmatprep.subr.bf16.mxu0 0
        %4294 = vmatpush1.bf16.msra.mxu0 0
        %4295 = vmatprep.subr.bf16.mxu0 0
        %4296 = vmatpush1.bf16.msra.mxu0 0
        %4297 = vmatprep.subr.bf16.mxu0 0
        %4298 = vmatpush1.bf16.msra.mxu0 0
        %4299 = vmatprep.subr.bf16.mxu0 0
        %4300 = vmatpush1.bf16.msra.mxu0 0
        %4301 = vmatprep.subr.bf16.mxu0 0
        %4302 = vmatpush1.bf16.msra.mxu0 %v4285
        %4303 = vmatprep.subr.bf16.mxu0 0
        %4304 = vmatpush2.bf16.msra.mxu0 0
        %4305 = vmatprep.subr.bf16.mxu0 0
        %4306 = vmatpush2.bf16.msra.mxu0 0
        %4307 = vmatprep.subr.bf16.mxu0 0
        %4308 = vmatpush2.bf16.msra.mxu0 0
        %4309 = vmatprep.subr.bf16.mxu0 0
        %4310 = vmatpush2.bf16.msra.mxu0 0
        %4311 = vmatprep.subr.bf16.mxu0 0
        %4312 = vmatpush2.bf16.msra.mxu0 0
        %4313 = vmatprep.subr.bf16.mxu0 0
        %4314 = vmatpush2.bf16.msra.mxu0 0
        %4315 = vmatprep.subr.bf16.mxu0 0
        %4316 = vmatpush2.bf16.msra.mxu0 0
        %4317 = vmatprep.subr.bf16.mxu0 0
        %4318 = vmatpush2.bf16.msra.mxu0 0
        %4319 = vmatprep.mubr.bf16.mxu0 0
        %4320 = vmatmul.mubr.bf16.gmra.mxu0 %v4282
        %v4321 = vpop.f32.mrf.mxu0
        %v4322 = vadd.f32 0.0, %v4321
        %v4323 = vpop.f32.mrf.mxu0
        %v4324 = vpop.f32.mrf.mxu0
        %v4325 = vpop.f32.mrf.mxu0
        %4326 = vdwg.mxu0
        %v4328 = vsel %vm1934, %v4205, 0
        %v4331 = vsel %vm2146, %v4221, 0
        %4333 = vmatprep.subr.bf16.mxu0 0
        %4334 = vmatpush1.bf16.msra.mxu0 0
        %4335 = vmatprep.subr.bf16.mxu0 0
        %4336 = vmatpush1.bf16.msra.mxu0 0
        %4337 = vmatprep.subr.bf16.mxu0 0
        %4338 = vmatpush1.bf16.msra.mxu0 0
        %4339 = vmatprep.subr.bf16.mxu0 0
        %4340 = vmatpush1.bf16.msra.mxu0 0
        %4341 = vmatprep.subr.bf16.mxu0 0
        %4342 = vmatpush1.bf16.msra.mxu0 0
        %4343 = vmatprep.subr.bf16.mxu0 0
        %4344 = vmatpush1.bf16.msra.mxu0 0
        %4345 = vmatprep.subr.bf16.mxu0 0
        %4346 = vmatpush1.bf16.msra.mxu0 0
        %4347 = vmatprep.subr.bf16.mxu0 0
        %4348 = vmatpush1.bf16.msra.mxu0 %v4331
        %4349 = vmatprep.subr.bf16.mxu0 0
        %4350 = vmatpush2.bf16.msra.mxu0 0
        %4351 = vmatprep.subr.bf16.mxu0 0
        %4352 = vmatpush2.bf16.msra.mxu0 0
        %4353 = vmatprep.subr.bf16.mxu0 0
        %4354 = vmatpush2.bf16.msra.mxu0 0
        %4355 = vmatprep.subr.bf16.mxu0 0
        %4356 = vmatpush2.bf16.msra.mxu0 0
        %4357 = vmatprep.subr.bf16.mxu0 0
        %4358 = vmatpush2.bf16.msra.mxu0 0
        %4359 = vmatprep.subr.bf16.mxu0 0
        %4360 = vmatpush2.bf16.msra.mxu0 0
        %4361 = vmatprep.subr.bf16.mxu0 0
        %4362 = vmatpush2.bf16.msra.mxu0 0
        %4363 = vmatprep.subr.bf16.mxu0 0
        %4364 = vmatpush2.bf16.msra.mxu0 0
        %4365 = vmatprep.mubr.bf16.mxu0 0
        %4366 = vmatmul.mubr.bf16.gmra.mxu0 %v4328
        %v4367 = vpop.f32.mrf.mxu0
        %v4368 = vadd.f32 0.0, %v4367
        %v4369 = vpop.f32.mrf.mxu0
        %v4370 = vpop.f32.mrf.mxu0
        %v4371 = vpop.f32.mrf.mxu0
        %4372 = vdwg.mxu0
        %v4374 = vsel %vm1934, %v4206, 0
        %v4377 = vsel %vm2146, %v4222, 0
        %4379 = vmatprep.subr.bf16.mxu0 0
        %4380 = vmatpush1.bf16.msra.mxu0 0
        %4381 = vmatprep.subr.bf16.mxu0 0
        %4382 = vmatpush1.bf16.msra.mxu0 0
        %4383 = vmatprep.subr.bf16.mxu0 0
        %4384 = vmatpush1.bf16.msra.mxu0 0
        %4385 = vmatprep.subr.bf16.mxu0 0
        %4386 = vmatpush1.bf16.msra.mxu0 0
        %4387 = vmatprep.subr.bf16.mxu0 0
        %4388 = vmatpush1.bf16.msra.mxu0 0
        %4389 = vmatprep.subr.bf16.mxu0 0
        %4390 = vmatpush1.bf16.msra.mxu0 0
        %4391 = vmatprep.subr.bf16.mxu0 0
        %4392 = vmatpush1.bf16.msra.mxu0 0
        %4393 = vmatprep.subr.bf16.mxu0 0
        %4394 = vmatpush1.bf16.msra.mxu0 %v4377
        %4395 = vmatprep.subr.bf16.mxu0 0
        %4396 = vmatpush2.bf16.msra.mxu0 0
        %4397 = vmatprep.subr.bf16.mxu0 0
        %4398 = vmatpush2.bf16.msra.mxu0 0
        %4399 = vmatprep.subr.bf16.mxu0 0
        %4400 = vmatpush2.bf16.msra.mxu0 0
        %4401 = vmatprep.subr.bf16.mxu0 0
        %4402 = vmatpush2.bf16.msra.mxu0 0
        %4403 = vmatprep.subr.bf16.mxu0 0
        %4404 = vmatpush2.bf16.msra.mxu0 0
        %4405 = vmatprep.subr.bf16.mxu0 0
        %4406 = vmatpush2.bf16.msra.mxu0 0
        %4407 = vmatprep.subr.bf16.mxu0 0
        %4408 = vmatpush2.bf16.msra.mxu0 0
        %4409 = vmatprep.subr.bf16.mxu0 0
        %4410 = vmatpush2.bf16.msra.mxu0 0
        %4411 = vmatprep.mubr.bf16.mxu0 0
        %4412 = vmatmul.mubr.bf16.gmra.mxu0 %v4374
        %v4413 = vpop.f32.mrf.mxu0
        %v4414 = vadd.f32 0.0, %v4413
        %v4415 = vpop.f32.mrf.mxu0
        %v4416 = vpop.f32.mrf.mxu0
        %v4417 = vpop.f32.mrf.mxu0
        %4418 = vdwg.mxu0
        %v4420 = vsel %vm1934, %v4207, 0
        %v4423 = vsel %vm2146, %v4223, 0
        %4425 = vmatprep.subr.bf16.mxu0 0
        %4426 = vmatpush1.bf16.msra.mxu0 0
        %4427 = vmatprep.subr.bf16.mxu0 0
        %4428 = vmatpush1.bf16.msra.mxu0 0
        %4429 = vmatprep.subr.bf16.mxu0 0
        %4430 = vmatpush1.bf16.msra.mxu0 0
        %4431 = vmatprep.subr.bf16.mxu0 0
        %4432 = vmatpush1.bf16.msra.mxu0 0
        %4433 = vmatprep.subr.bf16.mxu0 0
        %4434 = vmatpush1.bf16.msra.mxu0 0
        %4435 = vmatprep.subr.bf16.mxu0 0
        %4436 = vmatpush1.bf16.msra.mxu0 0
        %4437 = vmatprep.subr.bf16.mxu0 0
        %4438 = vmatpush1.bf16.msra.mxu0 0
        %4439 = vmatprep.subr.bf16.mxu0 0
        %4440 = vmatpush1.bf16.msra.mxu0 %v4423
        %4441 = vmatprep.subr.bf16.mxu0 0
        %4442 = vmatpush2.bf16.msra.mxu0 0
        %4443 = vmatprep.subr.bf16.mxu0 0
        %4444 = vmatpush2.bf16.msra.mxu0 0
        %4445 = vmatprep.subr.bf16.mxu0 0
        %4446 = vmatpush2.bf16.msra.mxu0 0
        %4447 = vmatprep.subr.bf16.mxu0 0
        %4448 = vmatpush2.bf16.msra.mxu0 0
        %4449 = vmatprep.subr.bf16.mxu0 0
        %4450 = vmatpush2.bf16.msra.mxu0 0
        %4451 = vmatprep.subr.bf16.mxu0 0
        %4452 = vmatpush2.bf16.msra.mxu0 0
        %4453 = vmatprep.subr.bf16.mxu0 0
        %4454 = vmatpush2.bf16.msra.mxu0 0
        %4455 = vmatprep.subr.bf16.mxu0 0
        %4456 = vmatpush2.bf16.msra.mxu0 0
        %4457 = vmatprep.mubr.bf16.mxu0 0
        %4458 = vmatmul.mubr.bf16.gmra.mxu0 %v4420
        %v4459 = vpop.f32.mrf.mxu0
        %v4460 = vadd.f32 0.0, %v4459
        %v4461 = vpop.f32.mrf.mxu0
        %v4462 = vpop.f32.mrf.mxu0
        %v4463 = vpop.f32.mrf.mxu0
        %4464 = vdwg.mxu0
        %v4466 = vsel %vm1934, %v4208, 0
        %v4469 = vsel %vm2146, %v4224, 0
        %4471 = vmatprep.subr.bf16.mxu0 0
        %4472 = vmatpush1.bf16.msra.mxu0 0
        %4473 = vmatprep.subr.bf16.mxu0 0
        %4474 = vmatpush1.bf16.msra.mxu0 0
        %4475 = vmatprep.subr.bf16.mxu0 0
        %4476 = vmatpush1.bf16.msra.mxu0 0
        %4477 = vmatprep.subr.bf16.mxu0 0
        %4478 = vmatpush1.bf16.msra.mxu0 0
        %4479 = vmatprep.subr.bf16.mxu0 0
        %4480 = vmatpush1.bf16.msra.mxu0 0
        %4481 = vmatprep.subr.bf16.mxu0 0
        %4482 = vmatpush1.bf16.msra.mxu0 0
        %4483 = vmatprep.subr.bf16.mxu0 0
        %4484 = vmatpush1.bf16.msra.mxu0 0
        %4485 = vmatprep.subr.bf16.mxu0 0
        %4486 = vmatpush1.bf16.msra.mxu0 %v4469
        %4487 = vmatprep.subr.bf16.mxu0 0
        %4488 = vmatpush2.bf16.msra.mxu0 0
        %4489 = vmatprep.subr.bf16.mxu0 0
        %4490 = vmatpush2.bf16.msra.mxu0 0
        %4491 = vmatprep.subr.bf16.mxu0 0
        %4492 = vmatpush2.bf16.msra.mxu0 0
        %4493 = vmatprep.subr.bf16.mxu0 0
        %4494 = vmatpush2.bf16.msra.mxu0 0
        %4495 = vmatprep.subr.bf16.mxu0 0
        %4496 = vmatpush2.bf16.msra.mxu0 0
        %4497 = vmatprep.subr.bf16.mxu0 0
        %4498 = vmatpush2.bf16.msra.mxu0 0
        %4499 = vmatprep.subr.bf16.mxu0 0
        %4500 = vmatpush2.bf16.msra.mxu0 0
        %4501 = vmatprep.subr.bf16.mxu0 0
        %4502 = vmatpush2.bf16.msra.mxu0 0
        %4503 = vmatprep.mubr.bf16.mxu0 0
        %4504 = vmatmul.mubr.bf16.gmra.mxu0 %v4466
        %v4505 = vpop.f32.mrf.mxu0
        %v4506 = vadd.f32 0.0, %v4505
        %v4507 = vpop.f32.mrf.mxu0
        %v4508 = vpop.f32.mrf.mxu0
        %v4509 = vpop.f32.mrf.mxu0
        %4510 = vdwg.mxu0
        %v4512 = vsel %vm1934, %v4209, 0
        %v4515 = vsel %vm2146, %v4225, 0
        %4517 = vmatprep.subr.bf16.mxu0 0
        %4518 = vmatpush1.bf16.msra.mxu0 0
        %4519 = vmatprep.subr.bf16.mxu0 0
        %4520 = vmatpush1.bf16.msra.mxu0 0
        %4521 = vmatprep.subr.bf16.mxu0 0
        %4522 = vmatpush1.bf16.msra.mxu0 0
        %4523 = vmatprep.subr.bf16.mxu0 0
        %4524 = vmatpush1.bf16.msra.mxu0 0
        %4525 = vmatprep.subr.bf16.mxu0 0
        %4526 = vmatpush1.bf16.msra.mxu0 0
        %4527 = vmatprep.subr.bf16.mxu0 0
        %4528 = vmatpush1.bf16.msra.mxu0 0
        %4529 = vmatprep.subr.bf16.mxu0 0
        %4530 = vmatpush1.bf16.msra.mxu0 0
        %4531 = vmatprep.subr.bf16.mxu0 0
        %4532 = vmatpush1.bf16.msra.mxu0 %v4515
        %4533 = vmatprep.subr.bf16.mxu0 0
        %4534 = vmatpush2.bf16.msra.mxu0 0
        %4535 = vmatprep.subr.bf16.mxu0 0
        %4536 = vmatpush2.bf16.msra.mxu0 0
        %4537 = vmatprep.subr.bf16.mxu0 0
        %4538 = vmatpush2.bf16.msra.mxu0 0
        %4539 = vmatprep.subr.bf16.mxu0 0
        %4540 = vmatpush2.bf16.msra.mxu0 0
        %4541 = vmatprep.subr.bf16.mxu0 0
        %4542 = vmatpush2.bf16.msra.mxu0 0
        %4543 = vmatprep.subr.bf16.mxu0 0
        %4544 = vmatpush2.bf16.msra.mxu0 0
        %4545 = vmatprep.subr.bf16.mxu0 0
        %4546 = vmatpush2.bf16.msra.mxu0 0
        %4547 = vmatprep.subr.bf16.mxu0 0
        %4548 = vmatpush2.bf16.msra.mxu0 0
        %4549 = vmatprep.mubr.bf16.mxu0 0
        %4550 = vmatmul.mubr.bf16.gmra.mxu0 %v4512
        %v4551 = vpop.f32.mrf.mxu0
        %v4552 = vadd.f32 0.0, %v4551
        %v4553 = vpop.f32.mrf.mxu0
        %v4554 = vpop.f32.mrf.mxu0
        %v4555 = vpop.f32.mrf.mxu0
        %4556 = vdwg.mxu0
        %v4558 = vsel %vm1934, %v4210, 0
        %v4561 = vsel %vm2146, %v4226, 0
        %4563 = vmatprep.subr.bf16.mxu0 0
        %4564 = vmatpush1.bf16.msra.mxu0 0
        %4565 = vmatprep.subr.bf16.mxu0 0
        %4566 = vmatpush1.bf16.msra.mxu0 0
        %4567 = vmatprep.subr.bf16.mxu0 0
        %4568 = vmatpush1.bf16.msra.mxu0 0
        %4569 = vmatprep.subr.bf16.mxu0 0
        %4570 = vmatpush1.bf16.msra.mxu0 0
        %4571 = vmatprep.subr.bf16.mxu0 0
        %4572 = vmatpush1.bf16.msra.mxu0 0
        %4573 = vmatprep.subr.bf16.mxu0 0
        %4574 = vmatpush1.bf16.msra.mxu0 0
        %4575 = vmatprep.subr.bf16.mxu0 0
        %4576 = vmatpush1.bf16.msra.mxu0 0
        %4577 = vmatprep.subr.bf16.mxu0 0
        %4578 = vmatpush1.bf16.msra.mxu0 %v4561
        %4579 = vmatprep.subr.bf16.mxu0 0
        %4580 = vmatpush2.bf16.msra.mxu0 0
        %4581 = vmatprep.subr.bf16.mxu0 0
        %4582 = vmatpush2.bf16.msra.mxu0 0
        %4583 = vmatprep.subr.bf16.mxu0 0
        %4584 = vmatpush2.bf16.msra.mxu0 0
        %4585 = vmatprep.subr.bf16.mxu0 0
        %4586 = vmatpush2.bf16.msra.mxu0 0
        %4587 = vmatprep.subr.bf16.mxu0 0
        %4588 = vmatpush2.bf16.msra.mxu0 0
        %4589 = vmatprep.subr.bf16.mxu0 0
        %4590 = vmatpush2.bf16.msra.mxu0 0
        %4591 = vmatprep.subr.bf16.mxu0 0
        %4592 = vmatpush2.bf16.msra.mxu0 0
        %4593 = vmatprep.subr.bf16.mxu0 0
        %4594 = vmatpush2.bf16.msra.mxu0 0
        %4595 = vmatprep.mubr.bf16.mxu0 0
        %4596 = vmatmul.mubr.bf16.gmra.mxu0 %v4558
        %v4597 = vpop.f32.mrf.mxu0
        %v4598 = vadd.f32 0.0, %v4597
        %v4599 = vpop.f32.mrf.mxu0
        %v4600 = vpop.f32.mrf.mxu0
        %v4601 = vpop.f32.mrf.mxu0
        %4602 = vdwg.mxu0
        %v4604 = vsel %vm1934, %v4211, 0
        %v4607 = vsel %vm2146, %v4227, 0
        %4609 = vmatprep.subr.bf16.mxu0 0
        %4610 = vmatpush1.bf16.msra.mxu0 0
        %4611 = vmatprep.subr.bf16.mxu0 0
        %4612 = vmatpush1.bf16.msra.mxu0 0
        %4613 = vmatprep.subr.bf16.mxu0 0
        %4614 = vmatpush1.bf16.msra.mxu0 0
        %4615 = vmatprep.subr.bf16.mxu0 0
        %4616 = vmatpush1.bf16.msra.mxu0 0
        %4617 = vmatprep.subr.bf16.mxu0 0
        %4618 = vmatpush1.bf16.msra.mxu0 0
        %4619 = vmatprep.subr.bf16.mxu0 0
        %4620 = vmatpush1.bf16.msra.mxu0 0
        %4621 = vmatprep.subr.bf16.mxu0 0
        %4622 = vmatpush1.bf16.msra.mxu0 0
        %4623 = vmatprep.subr.bf16.mxu0 0
        %4624 = vmatpush1.bf16.msra.mxu0 %v4607
        %4625 = vmatprep.subr.bf16.mxu0 0
        %4626 = vmatpush2.bf16.msra.mxu0 0
        %4627 = vmatprep.subr.bf16.mxu0 0
        %4628 = vmatpush2.bf16.msra.mxu0 0
        %4629 = vmatprep.subr.bf16.mxu0 0
        %4630 = vmatpush2.bf16.msra.mxu0 0
        %4631 = vmatprep.subr.bf16.mxu0 0
        %4632 = vmatpush2.bf16.msra.mxu0 0
        %4633 = vmatprep.subr.bf16.mxu0 0
        %4634 = vmatpush2.bf16.msra.mxu0 0
        %4635 = vmatprep.subr.bf16.mxu0 0
        %4636 = vmatpush2.bf16.msra.mxu0 0
        %4637 = vmatprep.subr.bf16.mxu0 0
        %4638 = vmatpush2.bf16.msra.mxu0 0
        %4639 = vmatprep.subr.bf16.mxu0 0
        %4640 = vmatpush2.bf16.msra.mxu0 0
        %4641 = vmatprep.mubr.bf16.mxu0 0
        %4642 = vmatmul.mubr.bf16.gmra.mxu0 %v4604
        %v4643 = vpop.f32.mrf.mxu0
        %v4644 = vadd.f32 0.0, %v4643
        %v4645 = vpop.f32.mrf.mxu0
        %v4646 = vpop.f32.mrf.mxu0
        %v4647 = vpop.f32.mrf.mxu0
        %4648 = vdwg.mxu0
        %v4650 = vsel %vm1934, %v4212, 0
        %v4653 = vsel %vm2146, %v4228, 0
        %4655 = vmatprep.subr.bf16.mxu0 0
        %4656 = vmatpush1.bf16.msra.mxu0 0
        %4657 = vmatprep.subr.bf16.mxu0 0
        %4658 = vmatpush1.bf16.msra.mxu0 0
        %4659 = vmatprep.subr.bf16.mxu0 0
        %4660 = vmatpush1.bf16.msra.mxu0 0
        %4661 = vmatprep.subr.bf16.mxu0 0
        %4662 = vmatpush1.bf16.msra.mxu0 0
        %4663 = vmatprep.subr.bf16.mxu0 0
        %4664 = vmatpush1.bf16.msra.mxu0 0
        %4665 = vmatprep.subr.bf16.mxu0 0
        %4666 = vmatpush1.bf16.msra.mxu0 0
        %4667 = vmatprep.subr.bf16.mxu0 0
        %4668 = vmatpush1.bf16.msra.mxu0 0
        %4669 = vmatprep.subr.bf16.mxu0 0
        %4670 = vmatpush1.bf16.msra.mxu0 %v4653
        %4671 = vmatprep.subr.bf16.mxu0 0
        %4672 = vmatpush2.bf16.msra.mxu0 0
        %4673 = vmatprep.subr.bf16.mxu0 0
        %4674 = vmatpush2.bf16.msra.mxu0 0
        %4675 = vmatprep.subr.bf16.mxu0 0
        %4676 = vmatpush2.bf16.msra.mxu0 0
        %4677 = vmatprep.subr.bf16.mxu0 0
        %4678 = vmatpush2.bf16.msra.mxu0 0
        %4679 = vmatprep.subr.bf16.mxu0 0
        %4680 = vmatpush2.bf16.msra.mxu0 0
        %4681 = vmatprep.subr.bf16.mxu0 0
        %4682 = vmatpush2.bf16.msra.mxu0 0
        %4683 = vmatprep.subr.bf16.mxu0 0
        %4684 = vmatpush2.bf16.msra.mxu0 0
        %4685 = vmatprep.subr.bf16.mxu0 0
        %4686 = vmatpush2.bf16.msra.mxu0 0
        %4687 = vmatprep.mubr.bf16.mxu0 0
        %4688 = vmatmul.mubr.bf16.gmra.mxu0 %v4650
        %v4689 = vpop.f32.mrf.mxu0
        %v4690 = vadd.f32 0.0, %v4689
        %v4691 = vpop.f32.mrf.mxu0
        %v4692 = vpop.f32.mrf.mxu0
        %v4693 = vpop.f32.mrf.mxu0
        %4694 = vdwg.mxu0
        %v4696 = vsel %vm1934, %v4213, 0
        %v4699 = vsel %vm2146, %v4229, 0
        %4701 = vmatprep.subr.bf16.mxu0 0
        %4702 = vmatpush1.bf16.msra.mxu0 0
        %4703 = vmatprep.subr.bf16.mxu0 0
        %4704 = vmatpush1.bf16.msra.mxu0 0
        %4705 = vmatprep.subr.bf16.mxu0 0
        %4706 = vmatpush1.bf16.msra.mxu0 0
        %4707 = vmatprep.subr.bf16.mxu0 0
        %4708 = vmatpush1.bf16.msra.mxu0 0
        %4709 = vmatprep.subr.bf16.mxu0 0
        %4710 = vmatpush1.bf16.msra.mxu0 0
        %4711 = vmatprep.subr.bf16.mxu0 0
        %4712 = vmatpush1.bf16.msra.mxu0 0
        %4713 = vmatprep.subr.bf16.mxu0 0
        %4714 = vmatpush1.bf16.msra.mxu0 0
        %4715 = vmatprep.subr.bf16.mxu0 0
        %4716 = vmatpush1.bf16.msra.mxu0 %v4699
        %4717 = vmatprep.subr.bf16.mxu0 0
        %4718 = vmatpush2.bf16.msra.mxu0 0
        %4719 = vmatprep.subr.bf16.mxu0 0
        %4720 = vmatpush2.bf16.msra.mxu0 0
        %4721 = vmatprep.subr.bf16.mxu0 0
        %4722 = vmatpush2.bf16.msra.mxu0 0
        %4723 = vmatprep.subr.bf16.mxu0 0
        %4724 = vmatpush2.bf16.msra.mxu0 0
        %4725 = vmatprep.subr.bf16.mxu0 0
        %4726 = vmatpush2.bf16.msra.mxu0 0
        %4727 = vmatprep.subr.bf16.mxu0 0
        %4728 = vmatpush2.bf16.msra.mxu0 0
        %4729 = vmatprep.subr.bf16.mxu0 0
        %4730 = vmatpush2.bf16.msra.mxu0 0
        %4731 = vmatprep.subr.bf16.mxu0 0
        %4732 = vmatpush2.bf16.msra.mxu0 0
        %4733 = vmatprep.mubr.bf16.mxu0 0
        %4734 = vmatmul.mubr.bf16.gmra.mxu0 %v4696
        %v4735 = vpop.f32.mrf.mxu0
        %v4736 = vadd.f32 0.0, %v4735
        %v4737 = vpop.f32.mrf.mxu0
        %v4738 = vpop.f32.mrf.mxu0
        %v4739 = vpop.f32.mrf.mxu0
        %4740 = vdwg.mxu0
        %v4742 = vsel %vm1934, %v4214, 0
        %v4745 = vsel %vm2146, %v4230, 0
        %4747 = vmatprep.subr.bf16.mxu0 0
        %4748 = vmatpush1.bf16.msra.mxu0 0
        %4749 = vmatprep.subr.bf16.mxu0 0
        %4750 = vmatpush1.bf16.msra.mxu0 0
        %4751 = vmatprep.subr.bf16.mxu0 0
        %4752 = vmatpush1.bf16.msra.mxu0 0
        %4753 = vmatprep.subr.bf16.mxu0 0
        %4754 = vmatpush1.bf16.msra.mxu0 0
        %4755 = vmatprep.subr.bf16.mxu0 0
        %4756 = vmatpush1.bf16.msra.mxu0 0
        %4757 = vmatprep.subr.bf16.mxu0 0
        %4758 = vmatpush1.bf16.msra.mxu0 0
        %4759 = vmatprep.subr.bf16.mxu0 0
        %4760 = vmatpush1.bf16.msra.mxu0 0
        %4761 = vmatprep.subr.bf16.mxu0 0
        %4762 = vmatpush1.bf16.msra.mxu0 %v4745
        %4763 = vmatprep.subr.bf16.mxu0 0
        %4764 = vmatpush2.bf16.msra.mxu0 0
        %4765 = vmatprep.subr.bf16.mxu0 0
        %4766 = vmatpush2.bf16.msra.mxu0 0
        %4767 = vmatprep.subr.bf16.mxu0 0
        %4768 = vmatpush2.bf16.msra.mxu0 0
        %4769 = vmatprep.subr.bf16.mxu0 0
        %4770 = vmatpush2.bf16.msra.mxu0 0
        %4771 = vmatprep.subr.bf16.mxu0 0
        %4772 = vmatpush2.bf16.msra.mxu0 0
        %4773 = vmatprep.subr.bf16.mxu0 0
        %4774 = vmatpush2.bf16.msra.mxu0 0
        %4775 = vmatprep.subr.bf16.mxu0 0
        %4776 = vmatpush2.bf16.msra.mxu0 0
        %4777 = vmatprep.subr.bf16.mxu0 0
        %4778 = vmatpush2.bf16.msra.mxu0 0
        %4779 = vmatprep.mubr.bf16.mxu0 0
        %4780 = vmatmul.mubr.bf16.gmra.mxu0 %v4742
        %v4781 = vpop.f32.mrf.mxu0
        %v4782 = vadd.f32 0.0, %v4781
        %v4783 = vpop.f32.mrf.mxu0
        %v4784 = vpop.f32.mrf.mxu0
        %v4785 = vpop.f32.mrf.mxu0
        %4786 = vdwg.mxu0
        %v4788 = vsel %vm1934, %v4215, 0
        %v4791 = vsel %vm2146, %v4231, 0
        %4793 = vmatprep.subr.bf16.mxu0 0
        %4794 = vmatpush1.bf16.msra.mxu0 0
        %4795 = vmatprep.subr.bf16.mxu0 0
        %4796 = vmatpush1.bf16.msra.mxu0 0
        %4797 = vmatprep.subr.bf16.mxu0 0
        %4798 = vmatpush1.bf16.msra.mxu0 0
        %4799 = vmatprep.subr.bf16.mxu0 0
        %4800 = vmatpush1.bf16.msra.mxu0 0
        %4801 = vmatprep.subr.bf16.mxu0 0
        %4802 = vmatpush1.bf16.msra.mxu0 0
        %4803 = vmatprep.subr.bf16.mxu0 0
        %4804 = vmatpush1.bf16.msra.mxu0 0
        %4805 = vmatprep.subr.bf16.mxu0 0
        %4806 = vmatpush1.bf16.msra.mxu0 0
        %4807 = vmatprep.subr.bf16.mxu0 0
        %4808 = vmatpush1.bf16.msra.mxu0 %v4791
        %4809 = vmatprep.subr.bf16.mxu0 0
        %4810 = vmatpush2.bf16.msra.mxu0 0
        %4811 = vmatprep.subr.bf16.mxu0 0
        %4812 = vmatpush2.bf16.msra.mxu0 0
        %4813 = vmatprep.subr.bf16.mxu0 0
        %4814 = vmatpush2.bf16.msra.mxu0 0
        %4815 = vmatprep.subr.bf16.mxu0 0
        %4816 = vmatpush2.bf16.msra.mxu0 0
        %4817 = vmatprep.subr.bf16.mxu0 0
        %4818 = vmatpush2.bf16.msra.mxu0 0
        %4819 = vmatprep.subr.bf16.mxu0 0
        %4820 = vmatpush2.bf16.msra.mxu0 0
        %4821 = vmatprep.subr.bf16.mxu0 0
        %4822 = vmatpush2.bf16.msra.mxu0 0
        %4823 = vmatprep.subr.bf16.mxu0 0
        %4824 = vmatpush2.bf16.msra.mxu0 0
        %4825 = vmatprep.mubr.bf16.mxu0 0
        %4826 = vmatmul.mubr.bf16.gmra.mxu0 %v4788
        %v4827 = vpop.f32.mrf.mxu0
        %v4828 = vadd.f32 0.0, %v4827
        %v4829 = vpop.f32.mrf.mxu0
        %v4830 = vpop.f32.mrf.mxu0
        %v4831 = vpop.f32.mrf.mxu0
        %4832 = vdwg.mxu0
        %v4834 = vsel %vm1934, %v4216, 0
        %v4837 = vsel %vm2146, %v4232, 0
        %4839 = vmatprep.subr.bf16.mxu0 0
        %4840 = vmatpush1.bf16.msra.mxu0 0
        %4841 = vmatprep.subr.bf16.mxu0 0
        %4842 = vmatpush1.bf16.msra.mxu0 0
        %4843 = vmatprep.subr.bf16.mxu0 0
        %4844 = vmatpush1.bf16.msra.mxu0 0
        %4845 = vmatprep.subr.bf16.mxu0 0
        %4846 = vmatpush1.bf16.msra.mxu0 0
        %4847 = vmatprep.subr.bf16.mxu0 0
        %4848 = vmatpush1.bf16.msra.mxu0 0
        %4849 = vmatprep.subr.bf16.mxu0 0
        %4850 = vmatpush1.bf16.msra.mxu0 0
        %4851 = vmatprep.subr.bf16.mxu0 0
        %4852 = vmatpush1.bf16.msra.mxu0 0
        %4853 = vmatprep.subr.bf16.mxu0 0
        %4854 = vmatpush1.bf16.msra.mxu0 %v4837
        %4855 = vmatprep.subr.bf16.mxu0 0
        %4856 = vmatpush2.bf16.msra.mxu0 0
        %4857 = vmatprep.subr.bf16.mxu0 0
        %4858 = vmatpush2.bf16.msra.mxu0 0
        %4859 = vmatprep.subr.bf16.mxu0 0
        %4860 = vmatpush2.bf16.msra.mxu0 0
        %4861 = vmatprep.subr.bf16.mxu0 0
        %4862 = vmatpush2.bf16.msra.mxu0 0
        %4863 = vmatprep.subr.bf16.mxu0 0
        %4864 = vmatpush2.bf16.msra.mxu0 0
        %4865 = vmatprep.subr.bf16.mxu0 0
        %4866 = vmatpush2.bf16.msra.mxu0 0
        %4867 = vmatprep.subr.bf16.mxu0 0
        %4868 = vmatpush2.bf16.msra.mxu0 0
        %4869 = vmatprep.subr.bf16.mxu0 0
        %4870 = vmatpush2.bf16.msra.mxu0 0
        %4871 = vmatprep.mubr.bf16.mxu0 0
        %4872 = vmatmul.mubr.bf16.gmra.mxu0 %v4834
        %v4873 = vpop.f32.mrf.mxu0
        %v4874 = vadd.f32 0.0, %v4873
        %v4875 = vpop.f32.mrf.mxu0
        %v4876 = vpop.f32.mrf.mxu0
        %v4877 = vpop.f32.mrf.mxu0
        %4878 = vdwg.mxu0
        %v4880 = vsel %vm1934, %v4217, 0
        %v4883 = vsel %vm2146, %v4233, 0
        %4885 = vmatprep.subr.bf16.mxu0 0
        %4886 = vmatpush1.bf16.msra.mxu0 0
        %4887 = vmatprep.subr.bf16.mxu0 0
        %4888 = vmatpush1.bf16.msra.mxu0 0
        %4889 = vmatprep.subr.bf16.mxu0 0
        %4890 = vmatpush1.bf16.msra.mxu0 0
        %4891 = vmatprep.subr.bf16.mxu0 0
        %4892 = vmatpush1.bf16.msra.mxu0 0
        %4893 = vmatprep.subr.bf16.mxu0 0
        %4894 = vmatpush1.bf16.msra.mxu0 0
        %4895 = vmatprep.subr.bf16.mxu0 0
        %4896 = vmatpush1.bf16.msra.mxu0 0
        %4897 = vmatprep.subr.bf16.mxu0 0
        %4898 = vmatpush1.bf16.msra.mxu0 0
        %4899 = vmatprep.subr.bf16.mxu0 0
        %4900 = vmatpush1.bf16.msra.mxu0 %v4883
        %4901 = vmatprep.subr.bf16.mxu0 0
        %4902 = vmatpush2.bf16.msra.mxu0 0
        %4903 = vmatprep.subr.bf16.mxu0 0
        %4904 = vmatpush2.bf16.msra.mxu0 0
        %4905 = vmatprep.subr.bf16.mxu0 0
        %4906 = vmatpush2.bf16.msra.mxu0 0
        %4907 = vmatprep.subr.bf16.mxu0 0
        %4908 = vmatpush2.bf16.msra.mxu0 0
        %4909 = vmatprep.subr.bf16.mxu0 0
        %4910 = vmatpush2.bf16.msra.mxu0 0
        %4911 = vmatprep.subr.bf16.mxu0 0
        %4912 = vmatpush2.bf16.msra.mxu0 0
        %4913 = vmatprep.subr.bf16.mxu0 0
        %4914 = vmatpush2.bf16.msra.mxu0 0
        %4915 = vmatprep.subr.bf16.mxu0 0
        %4916 = vmatpush2.bf16.msra.mxu0 0
        %4917 = vmatprep.mubr.bf16.mxu0 0
        %4918 = vmatmul.mubr.bf16.gmra.mxu0 %v4880
        %v4919 = vpop.f32.mrf.mxu0
        %v4920 = vadd.f32 0.0, %v4919
        %v4921 = vpop.f32.mrf.mxu0
        %v4922 = vpop.f32.mrf.mxu0
        %v4923 = vpop.f32.mrf.mxu0
        %4924 = vdwg.mxu0
        %v4926 = vsel %vm1934, %v4218, 0
        %v4929 = vsel %vm2146, %v4234, 0
        %4931 = vmatprep.subr.bf16.mxu0 0
        %4932 = vmatpush1.bf16.msra.mxu0 0
        %4933 = vmatprep.subr.bf16.mxu0 0
        %4934 = vmatpush1.bf16.msra.mxu0 0
        %4935 = vmatprep.subr.bf16.mxu0 0
        %4936 = vmatpush1.bf16.msra.mxu0 0
        %4937 = vmatprep.subr.bf16.mxu0 0
        %4938 = vmatpush1.bf16.msra.mxu0 0
        %4939 = vmatprep.subr.bf16.mxu0 0
        %4940 = vmatpush1.bf16.msra.mxu0 0
        %4941 = vmatprep.subr.bf16.mxu0 0
        %4942 = vmatpush1.bf16.msra.mxu0 0
        %4943 = vmatprep.subr.bf16.mxu0 0
        %4944 = vmatpush1.bf16.msra.mxu0 0
        %4945 = vmatprep.subr.bf16.mxu0 0
        %4946 = vmatpush1.bf16.msra.mxu0 %v4929
        %4947 = vmatprep.subr.bf16.mxu0 0
        %4948 = vmatpush2.bf16.msra.mxu0 0
        %4949 = vmatprep.subr.bf16.mxu0 0
        %4950 = vmatpush2.bf16.msra.mxu0 0
        %4951 = vmatprep.subr.bf16.mxu0 0
        %4952 = vmatpush2.bf16.msra.mxu0 0
        %4953 = vmatprep.subr.bf16.mxu0 0
        %4954 = vmatpush2.bf16.msra.mxu0 0
        %4955 = vmatprep.subr.bf16.mxu0 0
        %4956 = vmatpush2.bf16.msra.mxu0 0
        %4957 = vmatprep.subr.bf16.mxu0 0
        %4958 = vmatpush2.bf16.msra.mxu0 0
        %4959 = vmatprep.subr.bf16.mxu0 0
        %4960 = vmatpush2.bf16.msra.mxu0 0
        %4961 = vmatprep.subr.bf16.mxu0 0
        %4962 = vmatpush2.bf16.msra.mxu0 0
        %4963 = vmatprep.mubr.bf16.mxu0 0
        %4964 = vmatmul.mubr.bf16.gmra.mxu0 %v4926
        %v4965 = vpop.f32.mrf.mxu0
        %v4966 = vadd.f32 0.0, %v4965
        %v4967 = vpop.f32.mrf.mxu0
        %v4968 = vpop.f32.mrf.mxu0
        %v4969 = vpop.f32.mrf.mxu0
        %4970 = vdwg.mxu0
        %v4971 = vpack.c.bf16 %v4322, %v4276
        %v4972 = vpack.c.bf16 %v4414, %v4368
        %v4973 = vpack.c.bf16 %v4506, %v4460
        %v4974 = vpack.c.bf16 %v4598, %v4552
        %v4975 = vpack.c.bf16 %v4690, %v4644
        %v4976 = vpack.c.bf16 %v4782, %v4736
        %v4977 = vpack.c.bf16 %v4874, %v4828
        %v4978 = vpack.c.bf16 %v4966, %v4920
        %v4981 = vunpack.c.l.b16 %v509
        %v4982 = vunpack.c.l.b16 %v510
        %v4983 = vpack.c.b16 %v4982, %v4981
        %v4986 = vsel %vm1165, %v4971, 0
        %v4989 = vsel %vm1165, %v4972, 0
        %v4992 = vsel %vm1165, %v4973, 0
        %v4995 = vsel %vm1165, %v4974, 0
        %v4998 = vsel %vm1165, %v4975, 0
        %v5001 = vsel %vm1165, %v4976, 0
        %v5004 = vsel %vm1165, %v4977, 0
        %v5007 = vsel %vm1165, %v4978, 0
        %5009 = vmatprep.subr.bf16.mxu0 0
        %5010 = vmatpush1.bf16.msra.mxu0 0
        %5011 = vmatprep.subr.bf16.mxu0 0
        %5012 = vmatpush1.bf16.msra.mxu0 0
        %5013 = vmatprep.subr.bf16.mxu0 0
        %5014 = vmatpush1.bf16.msra.mxu0 0
        %5015 = vmatprep.subr.bf16.mxu0 0
        %5016 = vmatpush1.bf16.msra.mxu0 0
        %5017 = vmatprep.subr.bf16.mxu0 0
        %5018 = vmatpush1.bf16.msra.mxu0 0
        %5019 = vmatprep.subr.bf16.mxu0 0
        %5020 = vmatpush1.bf16.msra.mxu0 0
        %5021 = vmatprep.subr.bf16.mxu0 0
        %5022 = vmatpush1.bf16.msra.mxu0 0
        %5023 = vmatprep.subr.bf16.mxu0 0
        %5024 = vmatpush1.bf16.msra.mxu0 %v4983
        %5025 = vmatprep.subr.bf16.mxu0 0
        %5026 = vmatpush2.bf16.msra.mxu0 0
        %5027 = vmatprep.subr.bf16.mxu0 0
        %5028 = vmatpush2.bf16.msra.mxu0 0
        %5029 = vmatprep.subr.bf16.mxu0 0
        %5030 = vmatpush2.bf16.msra.mxu0 0
        %5031 = vmatprep.subr.bf16.mxu0 0
        %5032 = vmatpush2.bf16.msra.mxu0 0
        %5033 = vmatprep.subr.bf16.mxu0 0
        %5034 = vmatpush2.bf16.msra.mxu0 0
        %5035 = vmatprep.subr.bf16.mxu0 0
        %5036 = vmatpush2.bf16.msra.mxu0 0
        %5037 = vmatprep.subr.bf16.mxu0 0
        %5038 = vmatpush2.bf16.msra.mxu0 0
        %5039 = vmatprep.subr.bf16.mxu0 0
        %5040 = vmatpush2.bf16.msra.mxu0 0
        %5041 = vmatprep.mubr.bf16.mxu0 0
        %5042 = vmatmul.mubr.bf16.gmra.mxu0 %v4986
        %v5043 = vpop.f32.mrf.mxu0
        %v5044 = vadd.f32 0.0, %v5043
        %v5045 = vpop.f32.mrf.mxu0
        %v5046 = vpop.f32.mrf.mxu0
        %v5047 = vadd.f32 0.0, %v5046
        %v5048 = vpop.f32.mrf.mxu0
        %5049 = vmatprep.mubr.bf16.mxu0 0
        %5050 = vmatmul.mubr.bf16.gmra.mxu0 %v4989
        %v5051 = vpop.f32.mrf.mxu0
        %v5052 = vadd.f32 0.0, %v5051
        %v5053 = vpop.f32.mrf.mxu0
        %v5054 = vpop.f32.mrf.mxu0
        %v5055 = vadd.f32 0.0, %v5054
        %v5056 = vpop.f32.mrf.mxu0
        %5057 = vmatprep.mubr.bf16.mxu0 0
        %5058 = vmatmul.mubr.bf16.gmra.mxu0 %v4992
        %v5059 = vpop.f32.mrf.mxu0
        %v5060 = vadd.f32 0.0, %v5059
        %v5061 = vpop.f32.mrf.mxu0
        %v5062 = vpop.f32.mrf.mxu0
        %v5063 = vadd.f32 0.0, %v5062
        %v5064 = vpop.f32.mrf.mxu0
        %5065 = vmatprep.mubr.bf16.mxu0 0
        %5066 = vmatmul.mubr.bf16.gmra.mxu0 %v4995
        %v5067 = vpop.f32.mrf.mxu0
        %v5068 = vadd.f32 0.0, %v5067
        %v5069 = vpop.f32.mrf.mxu0
        %v5070 = vpop.f32.mrf.mxu0
        %v5071 = vadd.f32 0.0, %v5070
        %v5072 = vpop.f32.mrf.mxu0
        %5073 = vmatprep.mubr.bf16.mxu0 0
        %5074 = vmatmul.mubr.bf16.gmra.mxu0 %v4998
        %v5075 = vpop.f32.mrf.mxu0
        %v5076 = vadd.f32 0.0, %v5075
        %v5077 = vpop.f32.mrf.mxu0
        %v5078 = vpop.f32.mrf.mxu0
        %v5079 = vadd.f32 0.0, %v5078
        %v5080 = vpop.f32.mrf.mxu0
        %5081 = vmatprep.mubr.bf16.mxu0 0
        %5082 = vmatmul.mubr.bf16.gmra.mxu0 %v5001
        %v5083 = vpop.f32.mrf.mxu0
        %v5084 = vadd.f32 0.0, %v5083
        %v5085 = vpop.f32.mrf.mxu0
        %v5086 = vpop.f32.mrf.mxu0
        %v5087 = vadd.f32 0.0, %v5086
        %v5088 = vpop.f32.mrf.mxu0
        %5089 = vmatprep.mubr.bf16.mxu0 0
        %5090 = vmatmul.mubr.bf16.gmra.mxu0 %v5004
        %v5091 = vpop.f32.mrf.mxu0
        %v5092 = vadd.f32 0.0, %v5091
        %v5093 = vpop.f32.mrf.mxu0
        %v5094 = vpop.f32.mrf.mxu0
        %v5095 = vadd.f32 0.0, %v5094
        %v5096 = vpop.f32.mrf.mxu0
        %5097 = vmatprep.mubr.bf16.mxu0 0
        %5098 = vmatmul.mubr.bf16.gmra.mxu0 %v5007
        %v5099 = vpop.f32.mrf.mxu0
        %v5100 = vadd.f32 0.0, %v5099
        %v5101 = vpop.f32.mrf.mxu0
        %v5102 = vpop.f32.mrf.mxu0
        %v5103 = vadd.f32 0.0, %v5102
        %v5104 = vpop.f32.mrf.mxu0
        %5105 = vdwg.mxu0
        %v5108 = vunpack.c.l.b16 %v507
        %v5109 = vunpack.c.l.b16 %v508
        %v5110 = vpack.c.b16 %v5109, %v5108
        %v5113 = vsel %vm1165, %v2880, 0
        %v5116 = vsel %vm1165, %v2881, 0
        %v5119 = vsel %vm1165, %v2882, 0
        %v5122 = vsel %vm1165, %v2883, 0
        %v5125 = vsel %vm1165, %v2884, 0
        %v5128 = vsel %vm1165, %v2885, 0
        %v5131 = vsel %vm1165, %v2886, 0
        %v5134 = vsel %vm1165, %v2887, 0
        %5136 = vmatprep.subr.bf16.mxu0 0
        %5137 = vmatpush1.bf16.msra.mxu0 0
        %5138 = vmatprep.subr.bf16.mxu0 0
        %5139 = vmatpush1.bf16.msra.mxu0 0
        %5140 = vmatprep.subr.bf16.mxu0 0
        %5141 = vmatpush1.bf16.msra.mxu0 0
        %5142 = vmatprep.subr.bf16.mxu0 0
        %5143 = vmatpush1.bf16.msra.mxu0 0
        %5144 = vmatprep.subr.bf16.mxu0 0
        %5145 = vmatpush1.bf16.msra.mxu0 0
        %5146 = vmatprep.subr.bf16.mxu0 0
        %5147 = vmatpush1.bf16.msra.mxu0 0
        %5148 = vmatprep.subr.bf16.mxu0 0
        %5149 = vmatpush1.bf16.msra.mxu0 0
        %5150 = vmatprep.subr.bf16.mxu0 0
        %5151 = vmatpush1.bf16.msra.mxu0 %v5110
        %5152 = vmatprep.subr.bf16.mxu0 0
        %5153 = vmatpush2.bf16.msra.mxu0 0
        %5154 = vmatprep.subr.bf16.mxu0 0
        %5155 = vmatpush2.bf16.msra.mxu0 0
        %5156 = vmatprep.subr.bf16.mxu0 0
        %5157 = vmatpush2.bf16.msra.mxu0 0
        %5158 = vmatprep.subr.bf16.mxu0 0
        %5159 = vmatpush2.bf16.msra.mxu0 0
        %5160 = vmatprep.subr.bf16.mxu0 0
        %5161 = vmatpush2.bf16.msra.mxu0 0
        %5162 = vmatprep.subr.bf16.mxu0 0
        %5163 = vmatpush2.bf16.msra.mxu0 0
        %5164 = vmatprep.subr.bf16.mxu0 0
        %5165 = vmatpush2.bf16.msra.mxu0 0
        %5166 = vmatprep.subr.bf16.mxu0 0
        %5167 = vmatpush2.bf16.msra.mxu0 0
        %5168 = vmatprep.mubr.bf16.mxu0 0
        %5169 = vmatmul.mubr.bf16.gmra.mxu0 %v5113
        %v5170 = vpop.f32.mrf.mxu0
        %v5171 = vadd.f32 %v5044, %v5170
        %v5172 = vpop.f32.mrf.mxu0
        %v5173 = vpop.f32.mrf.mxu0
        %v5174 = vadd.f32 %v5047, %v5173
        %v5175 = vpop.f32.mrf.mxu0
        %5176 = vmatprep.mubr.bf16.mxu0 0
        %5177 = vmatmul.mubr.bf16.gmra.mxu0 %v5116
        %v5178 = vpop.f32.mrf.mxu0
        %v5179 = vadd.f32 %v5052, %v5178
        %v5180 = vpop.f32.mrf.mxu0
        %v5181 = vpop.f32.mrf.mxu0
        %v5182 = vadd.f32 %v5055, %v5181
        %v5183 = vpop.f32.mrf.mxu0
        %5184 = vmatprep.mubr.bf16.mxu0 0
        %5185 = vmatmul.mubr.bf16.gmra.mxu0 %v5119
        %v5186 = vpop.f32.mrf.mxu0
        %v5187 = vadd.f32 %v5060, %v5186
        %v5188 = vpop.f32.mrf.mxu0
        %v5189 = vpop.f32.mrf.mxu0
        %v5190 = vadd.f32 %v5063, %v5189
        %v5191 = vpop.f32.mrf.mxu0
        %5192 = vmatprep.mubr.bf16.mxu0 0
        %5193 = vmatmul.mubr.bf16.gmra.mxu0 %v5122
        %v5194 = vpop.f32.mrf.mxu0
        %v5195 = vadd.f32 %v5068, %v5194
        %v5196 = vpop.f32.mrf.mxu0
        %v5197 = vpop.f32.mrf.mxu0
        %v5198 = vadd.f32 %v5071, %v5197
        %v5199 = vpop.f32.mrf.mxu0
        %5200 = vmatprep.mubr.bf16.mxu0 0
        %5201 = vmatmul.mubr.bf16.gmra.mxu0 %v5125
        %v5202 = vpop.f32.mrf.mxu0
        %v5203 = vadd.f32 %v5076, %v5202
        %v5204 = vpop.f32.mrf.mxu0
        %v5205 = vpop.f32.mrf.mxu0
        %v5206 = vadd.f32 %v5079, %v5205
        %v5207 = vpop.f32.mrf.mxu0
        %5208 = vmatprep.mubr.bf16.mxu0 0
        %5209 = vmatmul.mubr.bf16.gmra.mxu0 %v5128
        %v5210 = vpop.f32.mrf.mxu0
        %v5211 = vadd.f32 %v5084, %v5210
        %v5212 = vpop.f32.mrf.mxu0
        %v5213 = vpop.f32.mrf.mxu0
        %v5214 = vadd.f32 %v5087, %v5213
        %v5215 = vpop.f32.mrf.mxu0
        %5216 = vmatprep.mubr.bf16.mxu0 0
        %5217 = vmatmul.mubr.bf16.gmra.mxu0 %v5131
        %v5218 = vpop.f32.mrf.mxu0
        %v5219 = vadd.f32 %v5092, %v5218
        %v5220 = vpop.f32.mrf.mxu0
        %v5221 = vpop.f32.mrf.mxu0
        %v5222 = vadd.f32 %v5095, %v5221
        %v5223 = vpop.f32.mrf.mxu0
        %5224 = vmatprep.mubr.bf16.mxu0 0
        %5225 = vmatmul.mubr.bf16.gmra.mxu0 %v5134
        %v5226 = vpop.f32.mrf.mxu0
        %v5227 = vadd.f32 %v5100, %v5226
        %v5228 = vpop.f32.mrf.mxu0
        %v5229 = vpop.f32.mrf.mxu0
        %v5230 = vadd.f32 %v5103, %v5229
        %v5231 = vpop.f32.mrf.mxu0
        %5232 = vdwg.mxu0
        %v5233 = vadd.f32 %v465, %v5171
        %v5234 = vadd.f32 %v466, %v5174
        %v5235 = vadd.f32 %v467, %v5179
        %v5236 = vadd.f32 %v468, %v5182
        %v5237 = vadd.f32 %v469, %v5187
        %v5238 = vadd.f32 %v470, %v5190
        %v5239 = vadd.f32 %v471, %v5195
        %v5240 = vadd.f32 %v472, %v5198
        %v5241 = vadd.f32 %v473, %v5203
        %v5242 = vadd.f32 %v474, %v5206
        %v5243 = vadd.f32 %v475, %v5211
        %v5244 = vadd.f32 %v476, %v5214
        %v5245 = vadd.f32 %v477, %v5219
        %v5246 = vadd.f32 %v478, %v5222
        %v5247 = vadd.f32 %v479, %v5227
        %v5248 = vadd.f32 %v480, %v5230
        %v5249 = vlaneseq
        %v5250 = vshrl.u32 %v5249, 7
        %v5251 = vsub.s32 5, %v5250
        %v5252 = vrot.slane %v481, %v5251
        %v5253 = vadd.f32 %v5233, %v5252
        %v5254 = vadd.f32 %v5234, %v5252
        %v5255 = vadd.f32 %v5235, %v5252
        %v5256 = vadd.f32 %v5236, %v5252
        %v5257 = vadd.f32 %v5237, %v5252
        %v5258 = vadd.f32 %v5238, %v5252
        %v5259 = vadd.f32 %v5239, %v5252
        %v5260 = vadd.f32 %v5240, %v5252
        %v5261 = vadd.f32 %v5241, %v5252
        %v5262 = vadd.f32 %v5242, %v5252
        %v5263 = vadd.f32 %v5243, %v5252
        %v5264 = vadd.f32 %v5244, %v5252
        %v5265 = vadd.f32 %v5245, %v5252
        %v5266 = vadd.f32 %v5246, %v5252
        %v5267 = vadd.f32 %v5247, %v5252
        %v5268 = vadd.f32 %v5248, %v5252
        %v5269 = vsel %vm512, %v5253, 0.0
        %5270 = vadd.xlane.f32.xlu0 %v5269
        %v5271 = vpop.xlane.xlu0 %5270
        %v5272 = vsel %vm512, %v5254, 0.0
        %5273 = vadd.xlane.f32.xlu0 %v5272
        %v5274 = vpop.xlane.xlu0 %5273
        %v5275 = vsel %vm512, %v5255, 0.0
        %5276 = vadd.xlane.f32.xlu0 %v5275
        %v5277 = vpop.xlane.xlu0 %5276
        %v5278 = vsel %vm512, %v5256, 0.0
        %5279 = vadd.xlane.f32.xlu0 %v5278
        %v5280 = vpop.xlane.xlu0 %5279
        %v5281 = vsel %vm512, %v5257, 0.0
        %5282 = vadd.xlane.f32.xlu0 %v5281
        %v5283 = vpop.xlane.xlu0 %5282
        %v5284 = vsel %vm512, %v5258, 0.0
        %5285 = vadd.xlane.f32.xlu0 %v5284
        %v5286 = vpop.xlane.xlu0 %5285
        %v5287 = vsel %vm512, %v5259, 0.0
        %5288 = vadd.xlane.f32.xlu0 %v5287
        %v5289 = vpop.xlane.xlu0 %5288
        %v5290 = vsel %vm512, %v5260, 0.0
        %5291 = vadd.xlane.f32.xlu0 %v5290
        %v5292 = vpop.xlane.xlu0 %5291
        %v5293 = vsel %vm512, %v5261, 0.0
        %5294 = vadd.xlane.f32.xlu0 %v5293
        %v5295 = vpop.xlane.xlu0 %5294
        %v5296 = vsel %vm512, %v5262, 0.0
        %5297 = vadd.xlane.f32.xlu0 %v5296
        %v5298 = vpop.xlane.xlu0 %5297
        %v5299 = vsel %vm512, %v5263, 0.0
        %5300 = vadd.xlane.f32.xlu0 %v5299
        %v5301 = vpop.xlane.xlu0 %5300
        %v5302 = vsel %vm512, %v5264, 0.0
        %5303 = vadd.xlane.f32.xlu0 %v5302
        %v5304 = vpop.xlane.xlu0 %5303
        %v5305 = vsel %vm512, %v5265, 0.0
        %5306 = vadd.xlane.f32.xlu0 %v5305
        %v5307 = vpop.xlane.xlu0 %5306
        %v5308 = vsel %vm512, %v5266, 0.0
        %5309 = vadd.xlane.f32.xlu0 %v5308
        %v5310 = vpop.xlane.xlu0 %5309
        %v5311 = vsel %vm512, %v5267, 0.0
        %5312 = vadd.xlane.f32.xlu0 %v5311
        %v5313 = vpop.xlane.xlu0 %5312
        %v5314 = vsel %vm512, %v5268, 0.0
        %5315 = vadd.xlane.f32.xlu0 %v5314
        %v5316 = vpop.xlane.xlu0 %5315
        %v5317 = vmul.f32 %v5271, %v561
        %v5318 = vmul.f32 %v5274, %v561
        %v5319 = vmul.f32 %v5277, %v561
        %v5320 = vmul.f32 %v5280, %v561
        %v5321 = vmul.f32 %v5283, %v561
        %v5322 = vmul.f32 %v5286, %v561
        %v5323 = vmul.f32 %v5289, %v561
        %v5324 = vmul.f32 %v5292, %v561
        %v5325 = vmul.f32 %v5295, %v561
        %v5326 = vmul.f32 %v5298, %v561
        %v5327 = vmul.f32 %v5301, %v561
        %v5328 = vmul.f32 %v5304, %v561
        %v5329 = vmul.f32 %v5307, %v561
        %v5330 = vmul.f32 %v5310, %v561
        %v5331 = vmul.f32 %v5313, %v561
        %v5332 = vmul.f32 %v5316, %v561
        %v5333 = vsub.f32 %v5253, %v5317
        %v5334 = vsub.f32 %v5254, %v5318
        %v5335 = vsub.f32 %v5255, %v5319
        %v5336 = vsub.f32 %v5256, %v5320
        %v5337 = vsub.f32 %v5257, %v5321
        %v5338 = vsub.f32 %v5258, %v5322
        %v5339 = vsub.f32 %v5259, %v5323
        %v5340 = vsub.f32 %v5260, %v5324
        %v5341 = vsub.f32 %v5261, %v5325
        %v5342 = vsub.f32 %v5262, %v5326
        %v5343 = vsub.f32 %v5263, %v5327
        %v5344 = vsub.f32 %v5264, %v5328
        %v5345 = vsub.f32 %v5265, %v5329
        %v5346 = vsub.f32 %v5266, %v5330
        %v5347 = vsub.f32 %v5267, %v5331
        %v5348 = vsub.f32 %v5268, %v5332
        %v5349 = vmul.f32 %v5333, %v5333
        %v5350 = vmul.f32 %v5334, %v5334
        %v5351 = vmul.f32 %v5335, %v5335
        %v5352 = vmul.f32 %v5336, %v5336
        %v5353 = vmul.f32 %v5337, %v5337
        %v5354 = vmul.f32 %v5338, %v5338
        %v5355 = vmul.f32 %v5339, %v5339
        %v5356 = vmul.f32 %v5340, %v5340
        %v5357 = vmul.f32 %v5341, %v5341
        %v5358 = vmul.f32 %v5342, %v5342
        %v5359 = vmul.f32 %v5343, %v5343
        %v5360 = vmul.f32 %v5344, %v5344
        %v5361 = vmul.f32 %v5345, %v5345
        %v5362 = vmul.f32 %v5346, %v5346
        %v5363 = vmul.f32 %v5347, %v5347
        %v5364 = vmul.f32 %v5348, %v5348
        %v5365 = vsel %vm512, %v5349, 0.0
        %5366 = vadd.xlane.f32.xlu0 %v5365
        %v5367 = vpop.xlane.xlu0 %5366
        %v5368 = vsel %vm512, %v5350, 0.0
        %5369 = vadd.xlane.f32.xlu0 %v5368
        %v5370 = vpop.xlane.xlu0 %5369
        %v5371 = vsel %vm512, %v5351, 0.0
        %5372 = vadd.xlane.f32.xlu0 %v5371
        %v5373 = vpop.xlane.xlu0 %5372
        %v5374 = vsel %vm512, %v5352, 0.0
        %5375 = vadd.xlane.f32.xlu0 %v5374
        %v5376 = vpop.xlane.xlu0 %5375
        %v5377 = vsel %vm512, %v5353, 0.0
        %5378 = vadd.xlane.f32.xlu0 %v5377
        %v5379 = vpop.xlane.xlu0 %5378
        %v5380 = vsel %vm512, %v5354, 0.0
        %5381 = vadd.xlane.f32.xlu0 %v5380
        %v5382 = vpop.xlane.xlu0 %5381
        %v5383 = vsel %vm512, %v5355, 0.0
        %5384 = vadd.xlane.f32.xlu0 %v5383
        %v5385 = vpop.xlane.xlu0 %5384
        %v5386 = vsel %vm512, %v5356, 0.0
        %5387 = vadd.xlane.f32.xlu0 %v5386
        %v5388 = vpop.xlane.xlu0 %5387
        %v5389 = vsel %vm512, %v5357, 0.0
        %5390 = vadd.xlane.f32.xlu0 %v5389
        %v5391 = vpop.xlane.xlu0 %5390
        %v5392 = vsel %vm512, %v5358, 0.0
        %5393 = vadd.xlane.f32.xlu0 %v5392
        %v5394 = vpop.xlane.xlu0 %5393
        %v5395 = vsel %vm512, %v5359, 0.0
        %5396 = vadd.xlane.f32.xlu0 %v5395
        %v5397 = vpop.xlane.xlu0 %5396
        %v5398 = vsel %vm512, %v5360, 0.0
        %5399 = vadd.xlane.f32.xlu0 %v5398
        %v5400 = vpop.xlane.xlu0 %5399
        %v5401 = vsel %vm512, %v5361, 0.0
        %5402 = vadd.xlane.f32.xlu0 %v5401
        %v5403 = vpop.xlane.xlu0 %5402
        %v5404 = vsel %vm512, %v5362, 0.0
        %5405 = vadd.xlane.f32.xlu0 %v5404
        %v5406 = vpop.xlane.xlu0 %5405
        %v5407 = vsel %vm512, %v5363, 0.0
        %5408 = vadd.xlane.f32.xlu0 %v5407
        %v5409 = vpop.xlane.xlu0 %5408
        %v5410 = vsel %vm512, %v5364, 0.0
        %5411 = vadd.xlane.f32.xlu0 %v5410
        %v5412 = vpop.xlane.xlu0 %5411
        %v5413 = vmul.f32 %v5367, %v561
        %v5414 = vmul.f32 %v5370, %v561
        %v5415 = vmul.f32 %v5373, %v561
        %v5416 = vmul.f32 %v5376, %v561
        %v5417 = vmul.f32 %v5379, %v561
        %v5418 = vmul.f32 %v5382, %v561
        %v5419 = vmul.f32 %v5385, %v561
        %v5420 = vmul.f32 %v5388, %v561
        %v5421 = vmul.f32 %v5391, %v561
        %v5422 = vmul.f32 %v5394, %v561
        %v5423 = vmul.f32 %v5397, %v561
        %v5424 = vmul.f32 %v5400, %v561
        %v5425 = vmul.f32 %v5403, %v561
        %v5426 = vmul.f32 %v5406, %v561
        %v5427 = vmul.f32 %v5409, %v561
        %v5428 = vmul.f32 %v5412, %v561
        %v5429 = vadd.f32 %v5413, 1e-05
        %v5430 = vadd.f32 %v5414, 1e-05
        %v5431 = vadd.f32 %v5415, 1e-05
        %v5432 = vadd.f32 %v5416, 1e-05
        %v5433 = vadd.f32 %v5417, 1e-05
        %v5434 = vadd.f32 %v5418, 1e-05
        %v5435 = vadd.f32 %v5419, 1e-05
        %v5436 = vadd.f32 %v5420, 1e-05
        %v5437 = vadd.f32 %v5421, 1e-05
        %v5438 = vadd.f32 %v5422, 1e-05
        %v5439 = vadd.f32 %v5423, 1e-05
        %v5440 = vadd.f32 %v5424, 1e-05
        %v5441 = vadd.f32 %v5425, 1e-05
        %v5442 = vadd.f32 %v5426, 1e-05
        %v5443 = vadd.f32 %v5427, 1e-05
        %v5444 = vadd.f32 %v5428, 1e-05
        %v5445 = vrsqrt.pop %v5429
        %v5446 = vrsqrt.pop %v5430
        %v5447 = vrsqrt.pop %v5431
        %v5448 = vrsqrt.pop %v5432
        %v5449 = vrsqrt.pop %v5433
        %v5450 = vrsqrt.pop %v5434
        %v5451 = vrsqrt.pop %v5435
        %v5452 = vrsqrt.pop %v5436
        %v5453 = vrsqrt.pop %v5437
        %v5454 = vrsqrt.pop %v5438
        %v5455 = vrsqrt.pop %v5439
        %v5456 = vrsqrt.pop %v5440
        %v5457 = vrsqrt.pop %v5441
        %v5458 = vrsqrt.pop %v5442
        %v5459 = vrsqrt.pop %v5443
        %v5460 = vrsqrt.pop %v5444
        %v5461 = vmul.f32 %v5333, %v5445
        %v5462 = vmul.f32 %v5334, %v5446
        %v5463 = vmul.f32 %v5335, %v5447
        %v5464 = vmul.f32 %v5336, %v5448
        %v5465 = vmul.f32 %v5337, %v5449
        %v5466 = vmul.f32 %v5338, %v5450
        %v5467 = vmul.f32 %v5339, %v5451
        %v5468 = vmul.f32 %v5340, %v5452
        %v5469 = vmul.f32 %v5341, %v5453
        %v5470 = vmul.f32 %v5342, %v5454
        %v5471 = vmul.f32 %v5343, %v5455
        %v5472 = vmul.f32 %v5344, %v5456
        %v5473 = vmul.f32 %v5345, %v5457
        %v5474 = vmul.f32 %v5346, %v5458
        %v5475 = vmul.f32 %v5347, %v5459
        %v5476 = vmul.f32 %v5348, %v5460
        %v5477 = vlaneseq
        %v5478 = vshrl.u32 %v5477, 7
        %v5479 = vsub.s32 6, %v5478
        %v5480 = vrot.slane %v481, %v5479
        %v5481 = vmul.f32 %v5461, %v5480
        %v5482 = vmul.f32 %v5462, %v5480
        %v5483 = vmul.f32 %v5463, %v5480
        %v5484 = vmul.f32 %v5464, %v5480
        %v5485 = vmul.f32 %v5465, %v5480
        %v5486 = vmul.f32 %v5466, %v5480
        %v5487 = vmul.f32 %v5467, %v5480
        %v5488 = vmul.f32 %v5468, %v5480
        %v5489 = vmul.f32 %v5469, %v5480
        %v5490 = vmul.f32 %v5470, %v5480
        %v5491 = vmul.f32 %v5471, %v5480
        %v5492 = vmul.f32 %v5472, %v5480
        %v5493 = vmul.f32 %v5473, %v5480
        %v5494 = vmul.f32 %v5474, %v5480
        %v5495 = vmul.f32 %v5475, %v5480
        %v5496 = vmul.f32 %v5476, %v5480
        %v5497 = vlaneseq
        %v5498 = vshrl.u32 %v5497, 7
        %v5499 = vsub.s32 7, %v5498
        %v5500 = vrot.slane %v481, %v5499
        %v5501 = vadd.f32 %v5481, %v5500
        %v5502 = vadd.f32 %v5482, %v5500
        %v5503 = vadd.f32 %v5483, %v5500
        %v5504 = vadd.f32 %v5484, %v5500
        %v5505 = vadd.f32 %v5485, %v5500
        %v5506 = vadd.f32 %v5486, %v5500
        %v5507 = vadd.f32 %v5487, %v5500
        %v5508 = vadd.f32 %v5488, %v5500
        %v5509 = vadd.f32 %v5489, %v5500
        %v5510 = vadd.f32 %v5490, %v5500
        %v5511 = vadd.f32 %v5491, %v5500
        %v5512 = vadd.f32 %v5492, %v5500
        %v5513 = vadd.f32 %v5493, %v5500
        %v5514 = vadd.f32 %v5494, %v5500
        %v5515 = vadd.f32 %v5495, %v5500
        %v5516 = vadd.f32 %v5496, %v5500
        %v5517 = vpack.c.bf16 %v5502, %v5501
        %v5518 = vpack.c.bf16 %v5504, %v5503
        %v5519 = vpack.c.bf16 %v5506, %v5505
        %v5520 = vpack.c.bf16 %v5508, %v5507
        %v5521 = vpack.c.bf16 %v5510, %v5509
        %v5522 = vpack.c.bf16 %v5512, %v5511
        %v5523 = vpack.c.bf16 %v5514, %v5513
        %v5524 = vpack.c.bf16 %v5516, %v5515
        %v5525 = vld [vmem:[%s407] sm:$0xf]
        %v5526 = vld [vmem:[%s407 + $0x4] sm:$0xf]
        %v5527 = vld [vmem:[%s407 + $0x8] sm:$0xf]
        %v5528 = vld [vmem:[%s407 + $0xc] sm:$0xf]
        %v5529 = vlaneseq
        %v5530 = vshrl.u32 %v5529, 7
        %v5531 = vsub.s32 0, %v5530
        %v5532 = vrot.slane %v482, %v5531
        %v5537 = vunpack.c.l.b16 %v5525
        %v5538 = vunpack.c.l.b16 %v5526
        %v5539 = vunpack.c.l.b16 %v5527
        %v5540 = vunpack.c.l.b16 %v5528
        %v5541 = vpack.c.b16 %v5538, %v5537
        %v5542 = vpack.c.b16 %v5540, %v5539
        %v5546 = vsel %vm512, %v5517, 0
        %v5549 = vsel %vm512, %v5518, 0
        %v5552 = vsel %vm512, %v5519, 0
        %v5555 = vsel %vm512, %v5520, 0
        %v5558 = vsel %vm512, %v5521, 0
        %v5561 = vsel %vm512, %v5522, 0
        %v5564 = vsel %vm512, %v5523, 0
        %v5567 = vsel %vm512, %v5524, 0
        %5569 = vmatprep.subr.bf16.mxu0 0
        %5570 = vmatpush1.bf16.msra.mxu0 0
        %5571 = vmatprep.subr.bf16.mxu0 0
        %5572 = vmatpush1.bf16.msra.mxu0 0
        %5573 = vmatprep.subr.bf16.mxu0 0
        %5574 = vmatpush1.bf16.msra.mxu0 0
        %5575 = vmatprep.subr.bf16.mxu0 0
        %5576 = vmatpush1.bf16.msra.mxu0 0
        %5577 = vmatprep.subr.bf16.mxu0 0
        %5578 = vmatpush1.bf16.msra.mxu0 0
        %5579 = vmatprep.subr.bf16.mxu0 0
        %5580 = vmatpush1.bf16.msra.mxu0 0
        %5581 = vmatprep.subr.bf16.mxu0 0
        %5582 = vmatpush1.bf16.msra.mxu0 %v5542
        %5583 = vmatprep.subr.bf16.mxu0 0
        %5584 = vmatpush1.bf16.msra.mxu0 %v5541
        %5585 = vmatprep.subr.bf16.mxu0 0
        %5586 = vmatpush2.bf16.msra.mxu0 0
        %5587 = vmatprep.subr.bf16.mxu0 0
        %5588 = vmatpush2.bf16.msra.mxu0 0
        %5589 = vmatprep.subr.bf16.mxu0 0
        %5590 = vmatpush2.bf16.msra.mxu0 0
        %5591 = vmatprep.subr.bf16.mxu0 0
        %5592 = vmatpush2.bf16.msra.mxu0 0
        %5593 = vmatprep.subr.bf16.mxu0 0
        %5594 = vmatpush2.bf16.msra.mxu0 0
        %5595 = vmatprep.subr.bf16.mxu0 0
        %5596 = vmatpush2.bf16.msra.mxu0 0
        %5597 = vmatprep.subr.bf16.mxu0 0
        %5598 = vmatpush2.bf16.msra.mxu0 0
        %5599 = vmatprep.subr.bf16.mxu0 0
        %5600 = vmatpush2.bf16.msra.mxu0 0
        %5601 = vmatprep.mubr.bf16.mxu0 0
        %5602 = vmatmul.mubr.bf16.gmra.mxu0 %v5546
        %v5603 = vpop.f32.mrf.mxu0
        %v5604 = vadd.f32 %v5532, %v5603
        %v5605 = vpop.f32.mrf.mxu0
        %v5606 = vpop.f32.mrf.mxu0
        %v5607 = vadd.f32 %v5532, %v5606
        %v5608 = vpop.f32.mrf.mxu0
        %5609 = vmatprep.mubr.bf16.mxu0 0
        %5610 = vmatmul.mubr.bf16.gmra.mxu0 %v5549
        %v5611 = vpop.f32.mrf.mxu0
        %v5612 = vadd.f32 %v5532, %v5611
        %v5613 = vpop.f32.mrf.mxu0
        %v5614 = vpop.f32.mrf.mxu0
        %v5615 = vadd.f32 %v5532, %v5614
        %v5616 = vpop.f32.mrf.mxu0
        %5617 = vmatprep.mubr.bf16.mxu0 0
        %5618 = vmatmul.mubr.bf16.gmra.mxu0 %v5552
        %v5619 = vpop.f32.mrf.mxu0
        %v5620 = vadd.f32 %v5532, %v5619
        %v5621 = vpop.f32.mrf.mxu0
        %v5622 = vpop.f32.mrf.mxu0
        %v5623 = vadd.f32 %v5532, %v5622
        %v5624 = vpop.f32.mrf.mxu0
        %5625 = vmatprep.mubr.bf16.mxu0 0
        %5626 = vmatmul.mubr.bf16.gmra.mxu0 %v5555
        %v5627 = vpop.f32.mrf.mxu0
        %v5628 = vadd.f32 %v5532, %v5627
        %v5629 = vpop.f32.mrf.mxu0
        %v5630 = vpop.f32.mrf.mxu0
        %v5631 = vadd.f32 %v5532, %v5630
        %v5632 = vpop.f32.mrf.mxu0
        %5633 = vmatprep.mubr.bf16.mxu0 0
        %5634 = vmatmul.mubr.bf16.gmra.mxu0 %v5558
        %v5635 = vpop.f32.mrf.mxu0
        %v5636 = vadd.f32 %v5532, %v5635
        %v5637 = vpop.f32.mrf.mxu0
        %v5638 = vpop.f32.mrf.mxu0
        %v5639 = vadd.f32 %v5532, %v5638
        %v5640 = vpop.f32.mrf.mxu0
        %5641 = vmatprep.mubr.bf16.mxu0 0
        %5642 = vmatmul.mubr.bf16.gmra.mxu0 %v5561
        %v5643 = vpop.f32.mrf.mxu0
        %v5644 = vadd.f32 %v5532, %v5643
        %v5645 = vpop.f32.mrf.mxu0
        %v5646 = vpop.f32.mrf.mxu0
        %v5647 = vadd.f32 %v5532, %v5646
        %v5648 = vpop.f32.mrf.mxu0
        %5649 = vmatprep.mubr.bf16.mxu0 0
        %5650 = vmatmul.mubr.bf16.gmra.mxu0 %v5564
        %v5651 = vpop.f32.mrf.mxu0
        %v5652 = vadd.f32 %v5532, %v5651
        %v5653 = vpop.f32.mrf.mxu0
        %v5654 = vpop.f32.mrf.mxu0
        %v5655 = vadd.f32 %v5532, %v5654
        %v5656 = vpop.f32.mrf.mxu0
        %5657 = vmatprep.mubr.bf16.mxu0 0
        %5658 = vmatmul.mubr.bf16.gmra.mxu0 %v5567
        %v5659 = vpop.f32.mrf.mxu0
        %v5660 = vadd.f32 %v5532, %v5659
        %v5661 = vpop.f32.mrf.mxu0
        %v5662 = vpop.f32.mrf.mxu0
        %v5663 = vadd.f32 %v5532, %v5662
        %v5664 = vpop.f32.mrf.mxu0
        %5665 = vdwg.mxu0
        %v5666 = vmul.f32 %v5604, 1.702
        %v5667 = vmul.f32 %v5607, 1.702
        %v5668 = vmul.f32 %v5612, 1.702
        %v5669 = vmul.f32 %v5615, 1.702
        %v5670 = vmul.f32 %v5620, 1.702
        %v5671 = vmul.f32 %v5623, 1.702
        %v5672 = vmul.f32 %v5628, 1.702
        %v5673 = vmul.f32 %v5631, 1.702
        %v5674 = vmul.f32 %v5636, 1.702
        %v5675 = vmul.f32 %v5639, 1.702
        %v5676 = vmul.f32 %v5644, 1.702
        %v5677 = vmul.f32 %v5647, 1.702
        %v5678 = vmul.f32 %v5652, 1.702
        %v5679 = vmul.f32 %v5655, 1.702
        %v5680 = vmul.f32 %v5660, 1.702
        %v5681 = vmul.f32 %v5663, 1.702
        %v5682 = vxor.u32 %v5666, 2147483648
        %v5683 = vxor.u32 %v5667, 2147483648
        %v5684 = vxor.u32 %v5668, 2147483648
        %v5685 = vxor.u32 %v5669, 2147483648
        %v5686 = vxor.u32 %v5670, 2147483648
        %v5687 = vxor.u32 %v5671, 2147483648
        %v5688 = vxor.u32 %v5672, 2147483648
        %v5689 = vxor.u32 %v5673, 2147483648
        %v5690 = vxor.u32 %v5674, 2147483648
        %v5691 = vxor.u32 %v5675, 2147483648
        %v5692 = vxor.u32 %v5676, 2147483648
        %v5693 = vxor.u32 %v5677, 2147483648
        %v5694 = vxor.u32 %v5678, 2147483648
        %v5695 = vxor.u32 %v5679, 2147483648
        %v5696 = vxor.u32 %v5680, 2147483648
        %v5697 = vxor.u32 %v5681, 2147483648
        %v5698 = vmul.f32 %v5682, 1.442695
        %v5699 = vpow.pop %v5698
        %v5700 = vmul.f32 %v5683, 1.442695
        %v5701 = vpow.pop %v5700
        %v5702 = vmul.f32 %v5684, 1.442695
        %v5703 = vpow.pop %v5702
        %v5704 = vmul.f32 %v5685, 1.442695
        %v5705 = vpow.pop %v5704
        %v5706 = vmul.f32 %v5686, 1.442695
        %v5707 = vpow.pop %v5706
        %v5708 = vmul.f32 %v5687, 1.442695
        %v5709 = vpow.pop %v5708
        %v5710 = vmul.f32 %v5688, 1.442695
        %v5711 = vpow.pop %v5710
        %v5712 = vmul.f32 %v5689, 1.442695
        %v5713 = vpow.pop %v5712
        %v5714 = vmul.f32 %v5690, 1.442695
        %v5715 = vpow.pop %v5714
        %v5716 = vmul.f32 %v5691, 1.442695
        %v5717 = vpow.pop %v5716
        %v5718 = vmul.f32 %v5692, 1.442695
        %v5719 = vpow.pop %v5718
        %v5720 = vmul.f32 %v5693, 1.442695
        %v5721 = vpow.pop %v5720
        %v5722 = vmul.f32 %v5694, 1.442695
        %v5723 = vpow.pop %v5722
        %v5724 = vmul.f32 %v5695, 1.442695
        %v5725 = vpow.pop %v5724
        %v5726 = vmul.f32 %v5696, 1.442695
        %v5727 = vpow.pop %v5726
        %v5728 = vmul.f32 %v5697, 1.442695
        %v5729 = vpow.pop %v5728
        %v5730 = vadd.f32 %v5699, 1.0
        %v5731 = vadd.f32 %v5701, 1.0
        %v5732 = vadd.f32 %v5703, 1.0
        %v5733 = vadd.f32 %v5705, 1.0
        %v5734 = vadd.f32 %v5707, 1.0
        %v5735 = vadd.f32 %v5709, 1.0
        %v5736 = vadd.f32 %v5711, 1.0
        %v5737 = vadd.f32 %v5713, 1.0
        %v5738 = vadd.f32 %v5715, 1.0
        %v5739 = vadd.f32 %v5717, 1.0
        %v5740 = vadd.f32 %v5719, 1.0
        %v5741 = vadd.f32 %v5721, 1.0
        %v5742 = vadd.f32 %v5723, 1.0
        %v5743 = vadd.f32 %v5725, 1.0
        %v5744 = vadd.f32 %v5727, 1.0
        %v5745 = vadd.f32 %v5729, 1.0
        %v5746 = vrcp.pop %v5730
        %v5747 = vmul.f32 1.0, %v5746
        %v5748 = vrcp.pop %v5731
        %v5749 = vmul.f32 1.0, %v5748
        %v5750 = vrcp.pop %v5732
        %v5751 = vmul.f32 1.0, %v5750
        %v5752 = vrcp.pop %v5733
        %v5753 = vmul.f32 1.0, %v5752
        %v5754 = vrcp.pop %v5734
        %v5755 = vmul.f32 1.0, %v5754
        %v5756 = vrcp.pop %v5735
        %v5757 = vmul.f32 1.0, %v5756
        %v5758 = vrcp.pop %v5736
        %v5759 = vmul.f32 1.0, %v5758
        %v5760 = vrcp.pop %v5737
        %v5761 = vmul.f32 1.0, %v5760
        %v5762 = vrcp.pop %v5738
        %v5763 = vmul.f32 1.0, %v5762
        %v5764 = vrcp.pop %v5739
        %v5765 = vmul.f32 1.0, %v5764
        %v5766 = vrcp.pop %v5740
        %v5767 = vmul.f32 1.0, %v5766
        %v5768 = vrcp.pop %v5741
        %v5769 = vmul.f32 1.0, %v5768
        %v5770 = vrcp.pop %v5742
        %v5771 = vmul.f32 1.0, %v5770
        %v5772 = vrcp.pop %v5743
        %v5773 = vmul.f32 1.0, %v5772
        %v5774 = vrcp.pop %v5744
        %v5775 = vmul.f32 1.0, %v5774
        %v5776 = vrcp.pop %v5745
        %v5777 = vmul.f32 1.0, %v5776
        %v5778 = vmul.f32 %v5604, %v5747
        %v5779 = vmul.f32 %v5607, %v5749
        %v5780 = vmul.f32 %v5612, %v5751
        %v5781 = vmul.f32 %v5615, %v5753
        %v5782 = vmul.f32 %v5620, %v5755
        %v5783 = vmul.f32 %v5623, %v5757
        %v5784 = vmul.f32 %v5628, %v5759
        %v5785 = vmul.f32 %v5631, %v5761
        %v5786 = vmul.f32 %v5636, %v5763
        %v5787 = vmul.f32 %v5639, %v5765
        %v5788 = vmul.f32 %v5644, %v5767
        %v5789 = vmul.f32 %v5647, %v5769
        %v5790 = vmul.f32 %v5652, %v5771
        %v5791 = vmul.f32 %v5655, %v5773
        %v5792 = vmul.f32 %v5660, %v5775
        %v5793 = vmul.f32 %v5663, %v5777
        %v5794 = vpack.c.bf16 %v5779, %v5778
        %v5795 = vpack.c.bf16 %v5781, %v5780
        %v5796 = vpack.c.bf16 %v5783, %v5782
        %v5797 = vpack.c.bf16 %v5785, %v5784
        %v5798 = vpack.c.bf16 %v5787, %v5786
        %v5799 = vpack.c.bf16 %v5789, %v5788
        %v5800 = vpack.c.bf16 %v5791, %v5790
        %v5801 = vpack.c.bf16 %v5793, %v5792
        %v5802 = vld [vmem:[%s412] sm:$0xf]
        %v5803 = vld [vmem:[%s412 + $0x4] sm:$0xf]
        %v5804 = vld [vmem:[%s412 + $0x8] sm:$0xf]
        %v5805 = vld [vmem:[%s412 + $0xc] sm:$0xf]
        %v5806 = vld [vmem:[%s412 + $0x10] sm:$0xf]
        %v5807 = vld [vmem:[%s412 + $0x14] sm:$0xf]
        %v5808 = vld [vmem:[%s412 + $0x18] sm:$0xf]
        %v5809 = vld [vmem:[%s412 + $0x1c] sm:$0xf]
        %v5810 = vld [vmem:[%s412 + $0x20] sm:$0xf]
        %v5811 = vld [vmem:[%s412 + $0x24] sm:$0xf]
        %v5812 = vld [vmem:[%s412 + $0x28] sm:$0xf]
        %v5813 = vld [vmem:[%s412 + $0x2c] sm:$0xf]
        %v5814 = vld [vmem:[%s412 + $0x30] sm:$0xf]
        %v5815 = vld [vmem:[%s412 + $0x34] sm:$0xf]
        %v5816 = vld [vmem:[%s412 + $0x38] sm:$0xf]
        %v5817 = vld [vmem:[%s412 + $0x3c] sm:$0xf]
        %v5834 = vunpack.c.l.b16 %v5802
        %v5835 = vunpack.c.l.b16 %v5803
        %v5836 = vunpack.c.l.b16 %v5804
        %v5837 = vunpack.c.l.b16 %v5805
        %v5838 = vunpack.c.l.b16 %v5806
        %v5839 = vunpack.c.l.b16 %v5807
        %v5840 = vunpack.c.l.b16 %v5808
        %v5841 = vunpack.c.l.b16 %v5809
        %v5842 = vunpack.c.l.b16 %v5810
        %v5843 = vunpack.c.l.b16 %v5811
        %v5844 = vunpack.c.l.b16 %v5812
        %v5845 = vunpack.c.l.b16 %v5813
        %v5846 = vunpack.c.l.b16 %v5814
        %v5847 = vunpack.c.l.b16 %v5815
        %v5848 = vunpack.c.l.b16 %v5816
        %v5849 = vunpack.c.l.b16 %v5817
        %v5850 = vpack.c.b16 %v5835, %v5834
        %v5851 = vpack.c.b16 %v5837, %v5836
        %v5852 = vpack.c.b16 %v5839, %v5838
        %v5853 = vpack.c.b16 %v5841, %v5840
        %v5854 = vpack.c.b16 %v5843, %v5842
        %v5855 = vpack.c.b16 %v5845, %v5844
        %v5856 = vpack.c.b16 %v5847, %v5846
        %v5857 = vpack.c.b16 %v5849, %v5848
        %5866 = vmatprep.subr.bf16.mxu0 0
        %5867 = vmatpush1.bf16.msra.mxu0 %v5857
        %5868 = vmatprep.subr.bf16.mxu0 0
        %5869 = vmatpush1.bf16.msra.mxu0 %v5856
        %5870 = vmatprep.subr.bf16.mxu0 0
        %5871 = vmatpush1.bf16.msra.mxu0 %v5855
        %5872 = vmatprep.subr.bf16.mxu0 0
        %5873 = vmatpush1.bf16.msra.mxu0 %v5854
        %5874 = vmatprep.subr.bf16.mxu0 0
        %5875 = vmatpush1.bf16.msra.mxu0 %v5853
        %5876 = vmatprep.subr.bf16.mxu0 0
        %5877 = vmatpush1.bf16.msra.mxu0 %v5852
        %5878 = vmatprep.subr.bf16.mxu0 0
        %5879 = vmatpush1.bf16.msra.mxu0 %v5851
        %5880 = vmatprep.subr.bf16.mxu0 0
        %5881 = vmatpush1.bf16.msra.mxu0 %v5850
        %5882 = vmatprep.subr.bf16.mxu0 0
        %5883 = vmatpush2.bf16.msra.mxu0 0
        %5884 = vmatprep.subr.bf16.mxu0 0
        %5885 = vmatpush2.bf16.msra.mxu0 0
        %5886 = vmatprep.subr.bf16.mxu0 0
        %5887 = vmatpush2.bf16.msra.mxu0 0
        %5888 = vmatprep.subr.bf16.mxu0 0
        %5889 = vmatpush2.bf16.msra.mxu0 0
        %5890 = vmatprep.subr.bf16.mxu0 0
        %5891 = vmatpush2.bf16.msra.mxu0 0
        %5892 = vmatprep.subr.bf16.mxu0 0
        %5893 = vmatpush2.bf16.msra.mxu0 0
        %5894 = vmatprep.subr.bf16.mxu0 0
        %5895 = vmatpush2.bf16.msra.mxu0 0
        %5896 = vmatprep.subr.bf16.mxu0 0
        %5897 = vmatpush2.bf16.msra.mxu0 0
        %5898 = vmatprep.mubr.bf16.mxu0 0
        %5899 = vmatmul.mubr.bf16.gmra.mxu0 %v5794
        %v5900 = vpop.f32.mrf.mxu0
        %v5901 = vadd.f32 0.0, %v5900
        %v5902 = vpop.f32.mrf.mxu0
        %v5903 = vpop.f32.mrf.mxu0
        %v5904 = vadd.f32 0.0, %v5903
        %v5905 = vpop.f32.mrf.mxu0
        %5906 = vmatprep.mubr.bf16.mxu0 0
        %5907 = vmatmul.mubr.bf16.gmra.mxu0 %v5795
        %v5908 = vpop.f32.mrf.mxu0
        %v5909 = vadd.f32 0.0, %v5908
        %v5910 = vpop.f32.mrf.mxu0
        %v5911 = vpop.f32.mrf.mxu0
        %v5912 = vadd.f32 0.0, %v5911
        %v5913 = vpop.f32.mrf.mxu0
        %5914 = vmatprep.mubr.bf16.mxu0 0
        %5915 = vmatmul.mubr.bf16.gmra.mxu0 %v5796
        %v5916 = vpop.f32.mrf.mxu0
        %v5917 = vadd.f32 0.0, %v5916
        %v5918 = vpop.f32.mrf.mxu0
        %v5919 = vpop.f32.mrf.mxu0
        %v5920 = vadd.f32 0.0, %v5919
        %v5921 = vpop.f32.mrf.mxu0
        %5922 = vmatprep.mubr.bf16.mxu0 0
        %5923 = vmatmul.mubr.bf16.gmra.mxu0 %v5797
        %v5924 = vpop.f32.mrf.mxu0
        %v5925 = vadd.f32 0.0, %v5924
        %v5926 = vpop.f32.mrf.mxu0
        %v5927 = vpop.f32.mrf.mxu0
        %v5928 = vadd.f32 0.0, %v5927
        %v5929 = vpop.f32.mrf.mxu0
        %5930 = vmatprep.mubr.bf16.mxu0 0
        %5931 = vmatmul.mubr.bf16.gmra.mxu0 %v5798
        %v5932 = vpop.f32.mrf.mxu0
        %v5933 = vadd.f32 0.0, %v5932
        %v5934 = vpop.f32.mrf.mxu0
        %v5935 = vpop.f32.mrf.mxu0
        %v5936 = vadd.f32 0.0, %v5935
        %v5937 = vpop.f32.mrf.mxu0
        %5938 = vmatprep.mubr.bf16.mxu0 0
        %5939 = vmatmul.mubr.bf16.gmra.mxu0 %v5799
        %v5940 = vpop.f32.mrf.mxu0
        %v5941 = vadd.f32 0.0, %v5940
        %v5942 = vpop.f32.mrf.mxu0
        %v5943 = vpop.f32.mrf.mxu0
        %v5944 = vadd.f32 0.0, %v5943
        %v5945 = vpop.f32.mrf.mxu0
        %5946 = vmatprep.mubr.bf16.mxu0 0
        %5947 = vmatmul.mubr.bf16.gmra.mxu0 %v5800
        %v5948 = vpop.f32.mrf.mxu0
        %v5949 = vadd.f32 0.0, %v5948
        %v5950 = vpop.f32.mrf.mxu0
        %v5951 = vpop.f32.mrf.mxu0
        %v5952 = vadd.f32 0.0, %v5951
        %v5953 = vpop.f32.mrf.mxu0
        %5954 = vmatprep.mubr.bf16.mxu0 0
        %5955 = vmatmul.mubr.bf16.gmra.mxu0 %v5801
        %v5956 = vpop.f32.mrf.mxu0
        %v5957 = vadd.f32 0.0, %v5956
        %v5958 = vpop.f32.mrf.mxu0
        %v5959 = vpop.f32.mrf.mxu0
        %v5960 = vadd.f32 0.0, %v5959
        %v5961 = vpop.f32.mrf.mxu0
        %5962 = vdwg.mxu0
        %v5963 = vadd.f32 %v5253, %v5901
        %v5964 = vadd.f32 %v5254, %v5904
        %v5965 = vadd.f32 %v5255, %v5909
        %v5966 = vadd.f32 %v5256, %v5912
        %v5967 = vadd.f32 %v5257, %v5917
        %v5968 = vadd.f32 %v5258, %v5920
        %v5969 = vadd.f32 %v5259, %v5925
        %v5970 = vadd.f32 %v5260, %v5928
        %v5971 = vadd.f32 %v5261, %v5933
        %v5972 = vadd.f32 %v5262, %v5936
        %v5973 = vadd.f32 %v5263, %v5941
        %v5974 = vadd.f32 %v5264, %v5944
        %v5975 = vadd.f32 %v5265, %v5949
        %v5976 = vadd.f32 %v5266, %v5952
        %v5977 = vadd.f32 %v5267, %v5957
        %v5978 = vadd.f32 %v5268, %v5960
        %v5979 = vlaneseq
        %v5980 = vshrl.u32 %v5979, 7
        %v5981 = vsub.s32 1, %v5980
        %v5982 = vrot.slane %v482, %v5981
        %v5983 = vadd.f32 %v5963, %v5982
        %v5984 = vadd.f32 %v5964, %v5982
        %v5985 = vadd.f32 %v5965, %v5982
        %v5986 = vadd.f32 %v5966, %v5982
        %v5987 = vadd.f32 %v5967, %v5982
        %v5988 = vadd.f32 %v5968, %v5982
        %v5989 = vadd.f32 %v5969, %v5982
        %v5990 = vadd.f32 %v5970, %v5982
        %v5991 = vadd.f32 %v5971, %v5982
        %v5992 = vadd.f32 %v5972, %v5982
        %v5993 = vadd.f32 %v5973, %v5982
        %v5994 = vadd.f32 %v5974, %v5982
        %v5995 = vadd.f32 %v5975, %v5982
        %v5996 = vadd.f32 %v5976, %v5982
        %v5997 = vadd.f32 %v5977, %v5982
        %v5998 = vadd.f32 %v5978, %v5982
        %5999 = vst.msk [vmem:[#allocation2] sm:$0xff] %vm512, %v5983
        %6000 = vst.msk [vmem:[#allocation2 + $0x8] sm:$0xff] %vm512, %v5984
        %6001 = vst.msk [vmem:[#allocation2 + $0x10] sm:$0xff] %vm512, %v5985
        %6002 = vst.msk [vmem:[#allocation2 + $0x18] sm:$0xff] %vm512, %v5986
        %6003 = vst.msk [vmem:[#allocation2 + $0x20] sm:$0xff] %vm512, %v5987
        %6004 = vst.msk [vmem:[#allocation2 + $0x28] sm:$0xff] %vm512, %v5988
        %6005 = vst.msk [vmem:[#allocation2 + $0x30] sm:$0xff] %vm512, %v5989
        %6006 = vst.msk [vmem:[#allocation2 + $0x38] sm:$0xff] %vm512, %v5990
        %6007 = vst.msk [vmem:[#allocation2 + $0x40] sm:$0xff] %vm512, %v5991
        %6008 = vst.msk [vmem:[#allocation2 + $0x48] sm:$0xff] %vm512, %v5992
        %6009 = vst.msk [vmem:[#allocation2 + $0x50] sm:$0xff] %vm512, %v5993
        %6010 = vst.msk [vmem:[#allocation2 + $0x58] sm:$0xff] %vm512, %v5994
        %6011 = vst.msk [vmem:[#allocation2 + $0x60] sm:$0xff] %vm512, %v5995
        %6012 = vst.msk [vmem:[#allocation2 + $0x68] sm:$0xff] %vm512, %v5996
        %6013 = vst.msk [vmem:[#allocation2 + $0x70] sm:$0xff] %vm512, %v5997
        %6014 = vst.msk [vmem:[#allocation2 + $0x78] sm:$0xff] %vm512, %v5998
        %p6015 = scmp.eq.s32.totalorder %s32, 1
        // Predicated region
        $region57: #{clip_encode_text.1} parent=51 // pred_check
          %p6016 = pneg %p6015
        $region58: #{clip_encode_text.1} parent=51 // pred_check_branch
          %6018 = sbr.rel (%p6016) target = $region60
        $region59: #{clip_encode_text.1} parent=51 // pred_region
          %v6019 = vld [vmem:[%s7] sm:$0x3]
          %s6020 = smul.u32 %s31, 16
          %s6021 = sld [smem:[#allocation5 + %s6020]]
          %s6022 = scalar_lea.vmem [#allocation2], %s6021
          %v6023 = vld [vmem:[%s6022] sm:$0x1]
          %s6024 = sadd.s32 %s6020, 1
          %s6025 = sld [smem:[#allocation5 + %s6024]]
          %s6026 = sadd.s32 %s6025, 8
          %s6027 = scalar_lea.vmem [#allocation2], %s6026
          %v6028 = vld [vmem:[%s6027] sm:$0x1]
          %s6029 = sadd.s32 %s6020, 2
          %s6030 = sld [smem:[#allocation5 + %s6029]]
          %s6031 = sadd.s32 %s6030, 16
          %s6032 = scalar_lea.vmem [#allocation2], %s6031
          %v6033 = vld [vmem:[%s6032] sm:$0x1]
          %s6034 = sadd.s32 %s6020, 3
          %s6035 = sld [smem:[#allocation5 + %s6034]]
          %s6036 = sadd.s32 %s6035, 24
          %s6037 = scalar_lea.vmem [#allocation2], %s6036
          %v6038 = vld [vmem:[%s6037] sm:$0x1]
          %s6039 = sadd.s32 %s6020, 4
          %s6040 = sld [smem:[#allocation5 + %s6039]]
          %s6041 = sadd.s32 %s6040, 32
          %s6042 = scalar_lea.vmem [#allocation2], %s6041
          %v6043 = vld [vmem:[%s6042] sm:$0x1]
          %s6044 = sadd.s32 %s6020, 5
          %s6045 = sld [smem:[#allocation5 + %s6044]]
          %s6046 = sadd.s32 %s6045, 40
          %s6047 = scalar_lea.vmem [#allocation2], %s6046
          %v6048 = vld [vmem:[%s6047] sm:$0x1]
          %s6049 = sadd.s32 %s6020, 6
          %s6050 = sld [smem:[#allocation5 + %s6049]]
          %s6051 = sadd.s32 %s6050, 48
          %s6052 = scalar_lea.vmem [#allocation2], %s6051
          %v6053 = vld [vmem:[%s6052] sm:$0x1]
          %s6054 = sadd.s32 %s6020, 7
          %s6055 = sld [smem:[#allocation5 + %s6054]]
          %s6056 = sadd.s32 %s6055, 56
          %s6057 = scalar_lea.vmem [#allocation2], %s6056
          %v6058 = vld [vmem:[%s6057] sm:$0x1]
          %s6059 = sadd.s32 %s6020, 8
          %s6060 = sld [smem:[#allocation5 + %s6059]]
          %s6061 = sadd.s32 %s6060, 64
          %s6062 = scalar_lea.vmem [#allocation2], %s6061
          %v6063 = vld [vmem:[%s6062] sm:$0x1]
          %s6064 = sadd.s32 %s6020, 9
          %s6065 = sld [smem:[#allocation5 + %s6064]]
          %s6066 = sadd.s32 %s6065, 72
          %s6067 = scalar_lea.vmem [#allocation2], %s6066
          %v6068 = vld [vmem:[%s6067] sm:$0x1]
          %s6069 = sadd.s32 %s6020, 10
          %s6070 = sld [smem:[#allocation5 + %s6069]]
          %s6071 = sadd.s32 %s6070, 80
          %s6072 = scalar_lea.vmem [#allocation2], %s6071
          %v6073 = vld [vmem:[%s6072] sm:$0x1]
          %s6074 = sadd.s32 %s6020, 11
          %s6075 = sld [smem:[#allocation5 + %s6074]]
          %s6076 = sadd.s32 %s6075, 88
          %s6077 = scalar_lea.vmem [#allocation2], %s6076
          %v6078 = vld [vmem:[%s6077] sm:$0x1]
          %s6079 = sadd.s32 %s6020, 12
          %s6080 = sld [smem:[#allocation5 + %s6079]]
          %s6081 = sadd.s32 %s6080, 96
          %s6082 = scalar_lea.vmem [#allocation2], %s6081
          %v6083 = vld [vmem:[%s6082] sm:$0x1]
          %s6084 = sadd.s32 %s6020, 13
          %s6085 = sld [smem:[#allocation5 + %s6084]]
          %s6086 = sadd.s32 %s6085, 104
          %s6087 = scalar_lea.vmem [#allocation2], %s6086
          %v6088 = vld [vmem:[%s6087] sm:$0x1]
          %s6089 = sadd.s32 %s6020, 14
          %s6090 = sld [smem:[#allocation5 + %s6089]]
          %s6091 = sadd.s32 %s6090, 112
          %s6092 = scalar_lea.vmem [#allocation2], %s6091
          %v6093 = vld [vmem:[%s6092] sm:$0x1]
          %s6094 = sadd.s32 %s6020, 15
          %s6095 = sld [smem:[#allocation5 + %s6094]]
          %s6096 = sadd.s32 %s6095, 120
          %s6097 = scalar_lea.vmem [#allocation2], %s6096
          %v6098 = vld [vmem:[%s6097] sm:$0x1]
          %v6100 = vrot.slane %v6028, 7
          %v6103 = vrot.slane %v6033, 6
          %v6106 = vrot.slane %v6038, 5
          %v6109 = vrot.slane %v6043, 4
          %v6112 = vrot.slane %v6048, 3
          %v6115 = vrot.slane %v6053, 2
          %v6118 = vrot.slane %v6058, 1
          %v6121 = vrot.slane %v6068, 7
          %v6124 = vrot.slane %v6073, 6
          %v6127 = vrot.slane %v6078, 5
          %v6130 = vrot.slane %v6083, 4
          %v6133 = vrot.slane %v6088, 3
          %v6136 = vrot.slane %v6093, 2
          %v6139 = vrot.slane %v6098, 1
          %vm6141 = vcmask 1040384
          %v6142 = vsel %vm6141, %v6023, %v6100
          %vm6143 = vcmask 1041408
          %v6144 = vsel %vm6143, %v6142, %v6103
          %vm6145 = vcmask 1042432
          %v6146 = vsel %vm6145, %v6144, %v6106
          %v6147 = vsel %vm2146, %v6146, %v6109
          %vm6148 = vcmask 1044480
          %v6149 = vsel %vm6148, %v6147, %v6112
          %vm6150 = vcmask 1045504
          %v6151 = vsel %vm6150, %v6149, %v6115
          %vm6152 = vcmask 1046528
          %v6153 = vsel %vm6152, %v6151, %v6118
          %v6154 = vsel %vm6141, %v6063, %v6121
          %v6155 = vsel %vm6143, %v6154, %v6124
          %v6156 = vsel %vm6145, %v6155, %v6127
          %v6157 = vsel %vm2146, %v6156, %v6130
          %v6158 = vsel %vm6148, %v6157, %v6133
          %v6159 = vsel %vm6150, %v6158, %v6136
          %v6160 = vsel %vm6152, %v6159, %v6139
          %v6161 = vsel %vm512, %v6153, 0.0
          %6162 = vadd.xlane.f32.xlu0 %v6161
          %v6163 = vpop.xlane.xlu0 %6162
          %v6164 = vsel %vm512, %v6160, 0.0
          %6165 = vadd.xlane.f32.xlu0 %v6164
          %v6166 = vpop.xlane.xlu0 %6165
          %v6167 = vmul.f32 %v6163, %v561
          %v6168 = vmul.f32 %v6166, %v561
          %v6169 = vsub.f32 %v6153, %v6167
          %v6170 = vsub.f32 %v6160, %v6168
          %v6171 = vmul.f32 %v6169, %v6169
          %v6172 = vmul.f32 %v6170, %v6170
          %v6173 = vsel %vm512, %v6171, 0.0
          %6174 = vadd.xlane.f32.xlu0 %v6173
          %v6175 = vpop.xlane.xlu0 %6174
          %v6176 = vsel %vm512, %v6172, 0.0
          %6177 = vadd.xlane.f32.xlu0 %v6176
          %v6178 = vpop.xlane.xlu0 %6177
          %v6179 = vmul.f32 %v6175, %v561
          %v6180 = vmul.f32 %v6178, %v561
          %v6181 = vadd.f32 %v6179, 1e-05
          %v6182 = vadd.f32 %v6180, 1e-05
          %v6183 = vrsqrt.pop %v6181
          %v6184 = vrsqrt.pop %v6182
          %v6185 = vmul.f32 %v6169, %v6183
          %v6186 = vmul.f32 %v6170, %v6184
          %v6187 = vlaneseq
          %v6188 = vshrl.u32 %v6187, 7
          %v6189 = vsub.s32 0, %v6188
          %v6190 = vrot.slane %v6019, %v6189
          %v6191 = vmul.f32 %v6185, %v6190
          %v6192 = vmul.f32 %v6186, %v6190
          %v6193 = vlaneseq
          %v6194 = vshrl.u32 %v6193, 7
          %v6195 = vsub.s32 1, %v6194
          %v6196 = vrot.slane %v6019, %v6195
          %v6197 = vadd.f32 %v6191, %v6196
          %v6198 = vadd.f32 %v6192, %v6196
          %v6199 = vpack.c.bf16 %v6198, %v6197
          %v6200 = vld [vmem:[%s8] sm:$0xf]
          %v6201 = vld [vmem:[%s8 + $0x4] sm:$0xf]
          %v6202 = vld [vmem:[%s8 + $0x8] sm:$0xf]
          %v6203 = vld [vmem:[%s8 + $0xc] sm:$0xf]
          %v6208 = vunpack.c.l.b16 %v6200
          %v6209 = vunpack.c.l.b16 %v6201
          %v6210 = vunpack.c.l.b16 %v6202
          %v6211 = vunpack.c.l.b16 %v6203
          %v6212 = vpack.c.b16 %v6209, %v6208
          %v6213 = vpack.c.b16 %v6211, %v6210
          %v6217 = vsel %vm512, %v6199, 0
          %6219 = vmatprep.subr.bf16.mxu0 0
          %6220 = vmatpush1.bf16.msra.mxu0 0
          %6221 = vmatprep.subr.bf16.mxu0 0
          %6222 = vmatpush1.bf16.msra.mxu0 0
          %6223 = vmatprep.subr.bf16.mxu0 0
          %6224 = vmatpush1.bf16.msra.mxu0 0
          %6225 = vmatprep.subr.bf16.mxu0 0
          %6226 = vmatpush1.bf16.msra.mxu0 0
          %6227 = vmatprep.subr.bf16.mxu0 0
          %6228 = vmatpush1.bf16.msra.mxu0 0
          %6229 = vmatprep.subr.bf16.mxu0 0
          %6230 = vmatpush1.bf16.msra.mxu0 0
          %6231 = vmatprep.subr.bf16.mxu0 0
          %6232 = vmatpush1.bf16.msra.mxu0 %v6213
          %6233 = vmatprep.subr.bf16.mxu0 0
          %6234 = vmatpush1.bf16.msra.mxu0 %v6212
          %6235 = vmatprep.subr.bf16.mxu0 0
          %6236 = vmatpush2.bf16.msra.mxu0 0
          %6237 = vmatprep.subr.bf16.mxu0 0
          %6238 = vmatpush2.bf16.msra.mxu0 0
          %6239 = vmatprep.subr.bf16.mxu0 0
          %6240 = vmatpush2.bf16.msra.mxu0 0
          %6241 = vmatprep.subr.bf16.mxu0 0
          %6242 = vmatpush2.bf16.msra.mxu0 0
          %6243 = vmatprep.subr.bf16.mxu0 0
          %6244 = vmatpush2.bf16.msra.mxu0 0
          %6245 = vmatprep.subr.bf16.mxu0 0
          %6246 = vmatpush2.bf16.msra.mxu0 0
          %6247 = vmatprep.subr.bf16.mxu0 0
          %6248 = vmatpush2.bf16.msra.mxu0 0
          %6249 = vmatprep.subr.bf16.mxu0 0
          %6250 = vmatpush2.bf16.msra.mxu0 0
          %6251 = vmatprep.mubr.bf16.mxu0 0
          %6252 = vmatmul.mubr.bf16.gmra.mxu0 %v6217
          %v6253 = vpop.f32.mrf.mxu0
          %v6254 = vadd.f32 0.0, %v6253
          %v6255 = vpop.f32.mrf.mxu0
          %v6256 = vpop.f32.mrf.mxu0
          %v6257 = vadd.f32 0.0, %v6256
          %v6258 = vpop.f32.mrf.mxu0
          %6259 = vdwg.mxu0
          %6260 = vst.msk [vmem:[#allocation6] sm:$0xff] %vm512, %v6254
          %6261 = vst.msk [vmem:[#allocation6 + $0x8] sm:$0xff] %vm512, %v6257
        $region60: #{clip_encode_text.1} parent=51 // pred_fallthru
          _
        // Predicated region
        $region61: #{clip_encode_text.1} parent=51 // pred_check
          %p6262 = pneg %p255
        $region62: #{clip_encode_text.1} parent=51 // pred_check_branch
          %6264 = sbr.rel (%p6262) target = $region64
        $region63: #{clip_encode_text.1} parent=51 // pred_region
          %s6265 = smul.u32 2, %s31
          %s6267 = ssub.s32 256, 256
          %6268 = vsyncadd [#allocation7], %s6267
          %s6269 = smul.addr %s6265, 128
          %s6270 = scalar_lea.hbm %s9, %s6269
          %s6271 = sshll.u32 [#allocation6], 4
          %s6272 = int_to_ptr.vmem [resolvable:$true] %s6271
          %6277 = dma.vmem_to_hbm [thread:$0]  %s6272, 256, %s6270, [#allocation7], 128, 128, 8
        $region64: #{clip_encode_text.1} parent=51 // pred_fallthru
          _
        // Predicated region
        $region65: #{clip_encode_text.1} parent=51 // pred_check
          %p6278 = pneg %p255
        $region66: #{clip_encode_text.1} parent=51 // pred_check_branch
          %6280 = sbr.rel (%p6278) target = $region68
        $region67: #{clip_encode_text.1} parent=51 // pred_region
          %6281 = dma.done [#allocation7], 256
        $region68: #{clip_encode_text.1} parent=51 // pred_fallthru
          _
      $region52: #{clip_encode_text.1} parent=5 // pred_fallthru
        _
      %p6282 = scmp.le.s32.totalorder 2, %s22
      // Predicated region
      $region69: #{clip_encode_text.1} parent=5 // pred_check
        %p6283 = pneg %p6282
      $region70: #{clip_encode_text.1} parent=5 // pred_check_branch
        %6285 = sbr.rel (%p6283) target = $region72
      $region71: #{clip_encode_text.1} parent=5 // pred_region
        %s6286 = ssub.s32 %s22, 2
      $region72: #{clip_encode_text.1} parent=5 // pred_fallthru
        _
    $region6: #{clip_encode_text.1} parent=1 // loop_footer
      %s26 = sadd.s32 1, %s22
    $region7: #{clip_encode_text.1} parent=1 // loop_footer_branch
      %21 = sbr.rel target = $region3
    $region8: #{clip_encode_text.1} parent=1 // loop_exit
      _
    %6287 = vsyncpa [#allocation7], 1
    %s6288 = scalar_lea.sflag [#allocation7], 1
    %6289 = vsyncpa %s6288, 1

</llo_original>
